<compile_context>
chip_gen: v7x
topology: tpu7x:2x2x1
jax: 0.10.0
libtpu: 0.0.40
codegen_flags: <defaults>
</compile_context>

<pallas_src>
import jax
import jax.numpy as jnp
from jax.experimental import pallas as pl
from jax.experimental.pallas import tpu as pltpu

FEATURE_LENGTH = 8
IN_FEATURES = FEATURE_LENGTH * 11     # 88
HIDDEN = 2048
OUT_FEATURES = 40
OUT_PAD = 128                          # lane-dense padded output width
BN_EPS = 1e-5


# --------------------------------------------------------------------------
# Kernel
# --------------------------------------------------------------------------
def _ffn_kernel(x_ref, gamma_ref, beta_ref,
                w1_ref, b1_ref,
                w2_ref, b2_ref,
                w3_ref, b3_ref,
                out_ref,
                h1_ref):
    c = pl.program_id(0)                       # core-split (megacore) index
    j = pl.program_id(1)                       # hidden-slab index (per split)
    last_j = pl.num_programs(1) - 1

    # --- phase 0 (once per core-split): batchnorm (batch stats) + layer1 +
    #     relu into the resident bf16 h1 scratch; zero this split's partial ---
    @pl.when(j == 0)
    def _():
        x = x_ref[...].astype(jnp.float32)
        mean = jnp.mean(x, axis=0, keepdims=True)
        var = jnp.mean((x - mean) ** 2, axis=0, keepdims=True)   # biased var (PyTorch train fwd)
        xn = (x - mean) * jax.lax.rsqrt(var + BN_EPS)
        xn = xn * gamma_ref[...] + beta_ref[...]
        h1 = jnp.dot(xn.astype(jnp.bfloat16), w1_ref[...],
                     preferred_element_type=jnp.float32) + b1_ref[...]
        h1_ref[...] = jnp.maximum(h1, 0.0).astype(jnp.bfloat16)
        out_ref[...] = jnp.zeros_like(out_ref)

    # --- every step: one contiguous [HIDDEN, tn] slab of layer2 (+relu)
    #     folded through the matching [tn, OUT_PAD] slab of layer3 ---
    h2 = jnp.dot(h1_ref[...], w2_ref[...],
                 preferred_element_type=jnp.float32) + b2_ref[...]
    h2 = jnp.maximum(h2, 0.0)
    out_ref[0] += jnp.dot(h2.astype(jnp.bfloat16), w3_ref[...],
                          preferred_element_type=jnp.float32)

    # layer3 bias: added exactly once (core-split 0, last slab) inside kernel
    @pl.when((c == 0) & (j == last_j))
    def _():
        out_ref[0] += b3_ref[...]


# --------------------------------------------------------------------------
# One-time parameter preparation (hoisted out of the per-call path)
# --------------------------------------------------------------------------
def prepare_params(params, *, tn=1024):
    """Pre-cast, pre-pad and pre-layout the weights ONCE.  The result is what
    `feedforward` consumes; doing this per call would triple HBM traffic."""
    assert HIDDEN % tn == 0
    n_blocks = HIDDEN // tn
    f32, bf16 = jnp.float32, jnp.bfloat16

    # w2 column slabs made contiguous: (HIDDEN, HIDDEN) -> (n_blocks, HIDDEN, tn)
    w2_slabs = (params["w2"].astype(bf16)
                .reshape(HIDDEN, n_blocks, tn)
                .transpose(1, 0, 2))

    prepared = {
        "gamma": params["bn_gamma"].reshape(1, IN_FEATURES).astype(f32),
        "beta": params["bn_beta"].reshape(1, IN_FEATURES).astype(f32),
        "w1": params["w1"].astype(bf16),
        "b1": params["b1"].reshape(1, HIDDEN).astype(f32),
        "w2_slabs": w2_slabs,
        "b2": params["b2"].reshape(1, HIDDEN).astype(f32),
        "w3_pad": jnp.pad(params["w3"].astype(bf16),
                          ((0, 0), (0, OUT_PAD - OUT_FEATURES))),
        "b3_pad": jnp.pad(params["b3"].astype(f32),
                          (0, OUT_PAD - OUT_FEATURES)).reshape(1, OUT_PAD),
        "tn": tn,
    }
    return jax.tree_util.tree_map(
        lambda a: jax.device_put(a) if isinstance(a, jnp.ndarray) else a, prepared)


def _default_config():
    """Generation-aware defaults: core-split only on multi-TC (v7x) chips."""
    try:
        kind = jax.devices()[0].device_kind.lower()
    except Exception:  # pragma: no cover - defensive
        kind = ""
    if "v7" in kind:
        return 2, 1024        # megacore split, 1 hidden-slab step per core
    return 1, 1024            # v5e / v6e: single TensorCore, 2 slab steps


# --------------------------------------------------------------------------
# Wrapper
# --------------------------------------------------------------------------
def feedforward(x, prepared, C=None, *, num_splits=None, tn=None):
    """Pallas implementation of FeedForward.forward(x, C).  `C` is unused
    (as in the reference module).  `prepared` comes from prepare_params()."""
    del C
    B, F = x.shape
    assert F == IN_FEATURES

    auto_splits, auto_tn = _default_config()
    if num_splits is None:
        num_splits = auto_splits
    if tn is None:
        tn = prepared["tn"]
    assert tn == prepared["tn"], "tile size must match prepare_params(tn=...)"
    n_blocks = HIDDEN // tn
    assert n_blocks % num_splits == 0
    steps = n_blocks // num_splits          # hidden-slab steps per core split

    partials = pl.pallas_call(
        _ffn_kernel,
        out_shape=jax.ShapeDtypeStruct((num_splits, B, OUT_PAD), jnp.float32),
        grid_spec=pltpu.PrefetchScalarGridSpec(
            num_scalar_prefetch=0,
            grid=(num_splits, steps),
            in_specs=[
                pl.BlockSpec((B, F), lambda c, j: (0, 0)),              # x
                pl.BlockSpec((1, F), lambda c, j: (0, 0)),              # bn gamma
                pl.BlockSpec((1, F), lambda c, j: (0, 0)),              # bn beta
                pl.BlockSpec((F, HIDDEN), lambda c, j: (0, 0)),         # w1 (bf16)
                pl.BlockSpec((1, HIDDEN), lambda c, j: (0, 0)),         # b1
                pl.BlockSpec((None, HIDDEN, tn),                        # w2 slab (contiguous, bf16)
                             lambda c, j: (c * steps + j, 0, 0)),
                pl.BlockSpec((1, tn),                                   # b2 slab
                             lambda c, j: (0, c * steps + j)),
                pl.BlockSpec((tn, OUT_PAD),                             # w3 slab (bf16)
                             lambda c, j: (c * steps + j, 0)),
                pl.BlockSpec((1, OUT_PAD), lambda c, j: (0, 0)),        # b3 (padded)
            ],
            out_specs=pl.BlockSpec((1, B, OUT_PAD), lambda c, j: (c, 0, 0)),
            scratch_shapes=[pltpu.VMEM((B, HIDDEN), jnp.bfloat16)],     # resident h1
        ),
        compiler_params=pltpu.CompilerParams(
            dimension_semantics=("parallel", "arbitrary"),
            vmem_limit_bytes=32 << 20,
        ),
    )(x, prepared["gamma"], prepared["beta"],
      prepared["w1"], prepared["b1"],
      prepared["w2_slabs"], prepared["b2"],
      prepared["w3_pad"], prepared["b3_pad"])

    # b3 was added in-kernel (split 0, last step); just combine splits + slice.
    if num_splits == 1:
        out = partials[0]
    else:
        out = partials.sum(axis=0)
    return out[:, :OUT_FEATURES]


# --------------------------------------------------------------------------
# Reference + params
# --------------------------------------------------------------------------
def feedforward_ref(x, params):
    """Pure-JAX f32 reference (same semantics) for validation."""
    x = x.astype(jnp.float32)
    mean = jnp.mean(x, axis=0, keepdims=True)
    var = jnp.mean((x - mean) ** 2, axis=0, keepdims=True)
    xn = (x - mean) / jnp.sqrt(var + BN_EPS)
    xn = xn * params["bn_gamma"][None, :] + params["bn_beta"][None, :]
    h1 = jax.nn.relu(xn @ params["w1"] + params["b1"])
    h2 = jax.nn.relu(h1 @ params["w2"] + params["b2"])
    return h2 @ params["w3"] + params["b3"]


def init_params(key):
    ks = jax.random.split(key, 8)
    scale1 = 1.0 / jnp.sqrt(IN_FEATURES)
    scale2 = 1.0 / jnp.sqrt(HIDDEN)
    return {
        "bn_gamma": jnp.ones((IN_FEATURES,), jnp.float32),
        "bn_beta": jnp.zeros((IN_FEATURES,), jnp.float32),
        "w1": jax.random.uniform(ks[0], (IN_FEATURES, HIDDEN), jnp.float32, -scale1, scale1),
        "b1": jax.random.uniform(ks[1], (HIDDEN,), jnp.float32, -scale1, scale1),
        "w2": jax.random.uniform(ks[2], (HIDDEN, HIDDEN), jnp.float32, -scale2, scale2),
        "b2": jax.random.uniform(ks[3], (HIDDEN,), jnp.float32, -scale2, scale2),
        "w3": jax.random.uniform(ks[4], (HIDDEN, OUT_FEATURES), jnp.float32, -scale2, scale2),
        "b3": jax.random.uniform(ks[5], (OUT_FEATURES,), jnp.float32, -scale2, scale2),
    }


if __name__ == "__main__":
    key = jax.random.PRNGKey(0)
    kx, kp = jax.random.split(key)

    B = 8
    x = jax.random.normal(kx, (B, IN_FEATURES), jnp.float32)
    C = None  # unused by the reference module's forward
    params = init_params(kp)

    # One-time weight prep (bf16 cast, padding, contiguous w2 slab layout).
    prepared = prepare_params(params, tn=1024)
    prepared = jax.block_until_ready(prepared)

    out = feedforward(x, prepared, C)
    out = jax.block_until_ready(out)

    ref = feedforward_ref(x, params)
    assert out.shape == (B, OUT_FEATURES)
    # TODO(synk): BatchNorm uses per-call batch statistics (training-mode fwd);
    # PyTorch eval-mode running stats are not modeled.
    assert jnp.allclose(out, ref, rtol=2e-2, atol=2e-2), (
        f"max abs diff = {jnp.max(jnp.abs(out - ref))}")

    print("KERNEL_OK")
</pallas_src>

<mosaic_0001>
module attributes {stable_mosaic.version = 11 : i64} {
  func.func @_ffn_kernel(%arg0: i32, %arg1: i32, %arg2: memref<8x88xf32, #tpu.memory_space<vmem>>, %arg3: memref<1x88xf32, #tpu.memory_space<vmem>>, %arg4: memref<1x88xf32, #tpu.memory_space<vmem>>, %arg5: memref<88x2048xbf16, #tpu.memory_space<vmem>>, %arg6: memref<1x2048xf32, #tpu.memory_space<vmem>>, %arg7: memref<1x2048x1024xbf16, #tpu.memory_space<vmem>>, %arg8: memref<1x1024xf32, #tpu.memory_space<vmem>>, %arg9: memref<1024x128xbf16, #tpu.memory_space<vmem>>, %arg10: memref<1x128xf32, #tpu.memory_space<vmem>>, %arg11: memref<1x8x128xf32, #tpu.memory_space<vmem>>, %arg12: memref<8x2048xbf16, #tpu.memory_space<vmem>>) attributes {dimension_semantics = [#tpu.dimension_semantics<parallel>, #tpu.dimension_semantics<arbitrary>], iteration_bounds = array<i64: 1, 2>, scalar_prefetch = 0 : i64, scratch_operands = 1 : i64, tpu.core_type = #tpu.core_type<tc>, window_params = [{pipeline_mode = #tpu.pipeline_mode<synchronous>, transform_indices = @transform_0, window_bounds = array<i64: 8, 88>}, {pipeline_mode = #tpu.pipeline_mode<synchronous>, transform_indices = @transform_1, window_bounds = array<i64: 1, 88>}, {pipeline_mode = #tpu.pipeline_mode<synchronous>, transform_indices = @transform_2, window_bounds = array<i64: 1, 88>}, {pipeline_mode = #tpu.pipeline_mode<synchronous>, transform_indices = @transform_3, window_bounds = array<i64: 88, 2048>}, {pipeline_mode = #tpu.pipeline_mode<synchronous>, transform_indices = @transform_4, window_bounds = array<i64: 1, 2048>}, {transform_indices = @transform_5, window_bounds = array<i64: 1, 2048, 1024>}, {transform_indices = @transform_6, window_bounds = array<i64: 1, 1024>}, {transform_indices = @transform_7, window_bounds = array<i64: 1024, 128>}, {pipeline_mode = #tpu.pipeline_mode<synchronous>, transform_indices = @transform_8, window_bounds = array<i64: 1, 128>}, {transform_indices = @transform_9, window_bounds = array<i64: 1, 8, 128>}]} {
    %c0_i32 = arith.constant 0 : i32
    %0 = arith.cmpi eq, %arg1, %c0_i32 : i32
    %1 = arith.extui %0 : i1 to i32
    %c0_i32_0 = arith.constant 0 : i32
    %2 = arith.cmpi ne, %1, %c0_i32_0 : i32
    scf.if %2 {
      %c0_19 = arith.constant 0 : index
      %c0_20 = arith.constant 0 : index
      %26 = vector.load %arg2[%c0_19, %c0_20] : memref<8x88xf32, #tpu.memory_space<vmem>>, vector<8x88xf32>
      %cst_21 = arith.constant dense<0.000000e+00> : vector<88xf32>
      %27 = vector.multi_reduction <add>, %26, %cst_21 [0] : vector<8x88xf32> to vector<88xf32>
      %28 = vector.shape_cast %27 : vector<88xf32> to vector<1x88xf32>
      %cst_22 = arith.constant 8.000000e+00 : f32
      %29 = vector.broadcast %cst_22 : f32 to vector<1x88xf32>
      %30 = arith.divf %28, %29 : vector<1x88xf32>
      %31 = vector.broadcast %30 : vector<1x88xf32> to vector<8x88xf32>
      %32 = arith.subf %26, %31 : vector<8x88xf32>
      %33 = arith.mulf %32, %32 : vector<8x88xf32>
      %cst_23 = arith.constant dense<0.000000e+00> : vector<88xf32>
      %34 = vector.multi_reduction <add>, %33, %cst_23 [0] : vector<8x88xf32> to vector<88xf32>
      %35 = vector.shape_cast %34 : vector<88xf32> to vector<1x88xf32>
      %cst_24 = arith.constant 8.000000e+00 : f32
      %36 = vector.broadcast %cst_24 : f32 to vector<1x88xf32>
      %37 = arith.divf %35, %36 : vector<1x88xf32>
      %38 = vector.broadcast %30 : vector<1x88xf32> to vector<8x88xf32>
      %39 = arith.subf %26, %38 : vector<8x88xf32>
      %cst_25 = arith.constant 9.99999974E-6 : f32
      %40 = vector.broadcast %cst_25 : f32 to vector<1x88xf32>
      %41 = arith.addf %37, %40 : vector<1x88xf32>
      %42 = math.rsqrt %41 : vector<1x88xf32>
      %43 = vector.broadcast %42 : vector<1x88xf32> to vector<8x88xf32>
      %44 = arith.mulf %39, %43 : vector<8x88xf32>
      %c0_26 = arith.constant 0 : index
      %c0_27 = arith.constant 0 : index
      %45 = vector.load %arg3[%c0_26, %c0_27] : memref<1x88xf32, #tpu.memory_space<vmem>>, vector<1x88xf32>
      %46 = vector.broadcast %45 : vector<1x88xf32> to vector<8x88xf32>
      %47 = arith.mulf %44, %46 : vector<8x88xf32>
      %c0_28 = arith.constant 0 : index
      %c0_29 = arith.constant 0 : index
      %48 = vector.load %arg4[%c0_28, %c0_29] : memref<1x88xf32, #tpu.memory_space<vmem>>, vector<1x88xf32>
      %49 = vector.broadcast %48 : vector<1x88xf32> to vector<8x88xf32>
      %50 = arith.addf %47, %49 : vector<8x88xf32>
      %51 = arith.truncf %50 : vector<8x88xf32> to vector<8x88xbf16>
      %c0_30 = arith.constant 0 : index
      %c0_31 = arith.constant 0 : index
      %52 = vector.load %arg5[%c0_30, %c0_31] : memref<88x2048xbf16, #tpu.memory_space<vmem>>, vector<88x2048xbf16>
      %cst_32 = arith.constant dense<0.000000e+00> : vector<8x2048xf32>
      %53 = tpu.matmul %51, %52, %cst_32 {dimension_numbers = #tpu.dot_dimension_numbers<[1], [0], [0], [1], [0, 0, 1, 1], [], []>} : vector<8x88xbf16>, vector<88x2048xbf16>, vector<8x2048xf32> -> vector<8x2048xf32>
      %c0_33 = arith.constant 0 : index
      %c0_34 = arith.constant 0 : index
      %54 = vector.load %arg6[%c0_33, %c0_34] : memref<1x2048xf32, #tpu.memory_space<vmem>>, vector<1x2048xf32>
      %55 = vector.broadcast %54 : vector<1x2048xf32> to vector<8x2048xf32>
      %56 = arith.addf %53, %55 : vector<8x2048xf32>
      %cst_35 = arith.constant 0.000000e+00 : f32
      %57 = vector.broadcast %cst_35 : f32 to vector<8x2048xf32>
      %58 = arith.maximumf %56, %57 : vector<8x2048xf32>
      %59 = arith.truncf %58 : vector<8x2048xf32> to vector<8x2048xbf16>
      %c0_36 = arith.constant 0 : index
      %c0_37 = arith.constant 0 : index
      %60 = vector.load %arg12[%c0_36, %c0_37] : memref<8x2048xbf16, #tpu.memory_space<vmem>>, vector<8x2048xbf16>
      tpu.vector_store %arg12[%c0_36, %c0_37], %59 {strides = array<i32>} : memref<8x2048xbf16, #tpu.memory_space<vmem>>, vector<8x2048xbf16>,
      %cst_38 = arith.constant 0.000000e+00 : f32
      %61 = vector.broadcast %cst_38 : f32 to vector<1x8x128xf32>
      %c0_39 = arith.constant 0 : index
      %c0_40 = arith.constant 0 : index
      %c0_41 = arith.constant 0 : index
      %62 = vector.load %arg11[%c0_39, %c0_40, %c0_41] : memref<1x8x128xf32, #tpu.memory_space<vmem>>, vector<1x8x128xf32>
      tpu.vector_store %arg11[%c0_39, %c0_40, %c0_41], %61 {strides = array<i32>} : memref<1x8x128xf32, #tpu.memory_space<vmem>>, vector<1x8x128xf32>,
    } else {
    }
    %c0 = arith.constant 0 : index
    %c0_1 = arith.constant 0 : index
    %3 = vector.load %arg12[%c0, %c0_1] : memref<8x2048xbf16, #tpu.memory_space<vmem>>, vector<8x2048xbf16>
    %c0_2 = arith.constant 0 : index
    %c0_3 = arith.constant 0 : index
    %c0_4 = arith.constant 0 : index
    %4 = vector.load %arg7[%c0_2, %c0_3, %c0_4] : memref<1x2048x1024xbf16, #tpu.memory_space<vmem>>, vector<1x2048x1024xbf16>
    %5 = vector.shape_cast %4 : vector<1x2048x1024xbf16> to vector<2048x1024xbf16>
    %cst = arith.constant dense<0.000000e+00> : vector<8x1024xf32>
    %6 = tpu.matmul %3, %5, %cst {dimension_numbers = #tpu.dot_dimension_numbers<[1], [0], [0], [1], [0, 0, 1, 1], [], []>} : vector<8x2048xbf16>, vector<2048x1024xbf16>, vector<8x1024xf32> -> vector<8x1024xf32>
    %c0_5 = arith.constant 0 : index
    %c0_6 = arith.constant 0 : index
    %7 = vector.load %arg8[%c0_5, %c0_6] : memref<1x1024xf32, #tpu.memory_space<vmem>>, vector<1x1024xf32>
    %8 = vector.broadcast %7 : vector<1x1024xf32> to vector<8x1024xf32>
    %9 = arith.addf %6, %8 : vector<8x1024xf32>
    %cst_7 = arith.constant 0.000000e+00 : f32
    %10 = vector.broadcast %cst_7 : f32 to vector<8x1024xf32>
    %11 = arith.maximumf %9, %10 : vector<8x1024xf32>
    %c0_8 = arith.constant 0 : index
    %c0_9 = arith.constant 0 : index
    %c0_10 = arith.constant 0 : index
    %12 = vector.load %arg11[%c0_8, %c0_9, %c0_10] : memref<1x8x128xf32, #tpu.memory_space<vmem>>, vector<1x8x128xf32>
    %13 = vector.shape_cast %12 : vector<1x8x128xf32> to vector<8x128xf32>
    %14 = arith.truncf %11 : vector<8x1024xf32> to vector<8x1024xbf16>
    %c0_11 = arith.constant 0 : index
    %c0_12 = arith.constant 0 : index
    %15 = vector.load %arg9[%c0_11, %c0_12] : memref<1024x128xbf16, #tpu.memory_space<vmem>>, vector<1024x128xbf16>
    %cst_13 = arith.constant dense<0.000000e+00> : vector<8x128xf32>
    %16 = tpu.matmul %14, %15, %cst_13 {dimension_numbers = #tpu.dot_dimension_numbers<[1], [0], [0], [1], [0, 0, 1, 1], [], []>} : vector<8x1024xbf16>, vector<1024x128xbf16>, vector<8x128xf32> -> vector<8x128xf32>
    %17 = arith.addf %13, %16 : vector<8x128xf32>
    %c0_14 = arith.constant 0 : index
    %c0_15 = arith.constant 0 : index
    %c0_16 = arith.constant 0 : index
    %18 = vector.load %arg11[%c0_14, %c0_15, %c0_16] : memref<1x8x128xf32, #tpu.memory_space<vmem>>, vector<1x8x128xf32>
    %19 = vector.shape_cast %18 : vector<1x8x128xf32> to vector<8x128xf32>
    %20 = vector.shape_cast %17 : vector<8x128xf32> to vector<1x8x128xf32>
    tpu.vector_store %arg11[%c0_14, %c0_15, %c0_16], %20 {strides = array<i32>} : memref<1x8x128xf32, #tpu.memory_space<vmem>>, vector<1x8x128xf32>,
    %c0_i32_17 = arith.constant 0 : i32
    %21 = arith.cmpi eq, %arg0, %c0_i32_17 : i32
    %c1_i32 = arith.constant 1 : i32
    %22 = arith.cmpi eq, %arg1, %c1_i32 : i32
    %23 = arith.andi %21, %22 : i1
    %24 = arith.extui %23 : i1 to i32
    %c0_i32_18 = arith.constant 0 : i32
    %25 = arith.cmpi ne, %24, %c0_i32_18 : i32
    scf.if %25 {
      %c0_19 = arith.constant 0 : index
      %c0_20 = arith.constant 0 : index
      %c0_21 = arith.constant 0 : index
      %26 = vector.load %arg11[%c0_19, %c0_20, %c0_21] : memref<1x8x128xf32, #tpu.memory_space<vmem>>, vector<1x8x128xf32>
      %27 = vector.shape_cast %26 : vector<1x8x128xf32> to vector<8x128xf32>
      %c0_22 = arith.constant 0 : index
      %c0_23 = arith.constant 0 : index
      %28 = vector.load %arg10[%c0_22, %c0_23] : memref<1x128xf32, #tpu.memory_space<vmem>>, vector<1x128xf32>
      %29 = vector.broadcast %28 : vector<1x128xf32> to vector<8x128xf32>
      %30 = arith.addf %27, %29 : vector<8x128xf32>
      %c0_24 = arith.constant 0 : index
      %c0_25 = arith.constant 0 : index
      %c0_26 = arith.constant 0 : index
      %31 = vector.load %arg11[%c0_24, %c0_25, %c0_26] : memref<1x8x128xf32, #tpu.memory_space<vmem>>, vector<1x8x128xf32>
      %32 = vector.shape_cast %31 : vector<1x8x128xf32> to vector<8x128xf32>
      %33 = vector.shape_cast %30 : vector<8x128xf32> to vector<1x8x128xf32>
      tpu.vector_store %arg11[%c0_24, %c0_25, %c0_26], %33 {strides = array<i32>} : memref<1x8x128xf32, #tpu.memory_space<vmem>>, vector<1x8x128xf32>,
    } else {
    }
    return
  }
  func.func @transform_0(%arg0: i32, %arg1: i32) -> (i32, i32) {
    %c0_i32 = arith.constant 0 : i32
    %c0_i32_0 = arith.constant 0 : i32
    %c0_i32_1 = arith.constant 0 : i32
    return %c0_i32, %c0_i32_0 : i32, i32
  }
  func.func @transform_1(%arg0: i32, %arg1: i32) -> (i32, i32) {
    %c0_i32 = arith.constant 0 : i32
    %c0_i32_0 = arith.constant 0 : i32
    %c0_i32_1 = arith.constant 0 : i32
    return %c0_i32, %c0_i32_0 : i32, i32
  }
  func.func @transform_2(%arg0: i32, %arg1: i32) -> (i32, i32) {
    %c0_i32 = arith.constant 0 : i32
    %c0_i32_0 = arith.constant 0 : i32
    %c0_i32_1 = arith.constant 0 : i32
    return %c0_i32, %c0_i32_0 : i32, i32
  }
  func.func @transform_3(%arg0: i32, %arg1: i32) -> (i32, i32) {
    %c0_i32 = arith.constant 0 : i32
    %c0_i32_0 = arith.constant 0 : i32
    %c0_i32_1 = arith.constant 0 : i32
    return %c0_i32, %c0_i32_0 : i32, i32
  }
  func.func @transform_4(%arg0: i32, %arg1: i32) -> (i32, i32) {
    %c0_i32 = arith.constant 0 : i32
    %c0_i32_0 = arith.constant 0 : i32
    %c0_i32_1 = arith.constant 0 : i32
    return %c0_i32, %c0_i32_0 : i32, i32
  }
  func.func @transform_5(%arg0: i32, %arg1: i32) -> (i32, i32, i32) {
    %c2_i32 = arith.constant 2 : i32
    %0 = arith.muli %arg0, %c2_i32 : i32
    %1 = arith.addi %0, %arg1 : i32
    %c0_i32 = arith.constant 0 : i32
    %c0_i32_0 = arith.constant 0 : i32
    %c0_i32_1 = arith.constant 0 : i32
    return %1, %c0_i32, %c0_i32_0 : i32, i32, i32
  }
  func.func @transform_6(%arg0: i32, %arg1: i32) -> (i32, i32) {
    %c2_i32 = arith.constant 2 : i32
    %0 = arith.muli %arg0, %c2_i32 : i32
    %1 = arith.addi %0, %arg1 : i32
    %c0_i32 = arith.constant 0 : i32
    %c0_i32_0 = arith.constant 0 : i32
    return %c0_i32, %1 : i32, i32
  }
  func.func @transform_7(%arg0: i32, %arg1: i32) -> (i32, i32) {
    %c2_i32 = arith.constant 2 : i32
    %0 = arith.muli %arg0, %c2_i32 : i32
    %1 = arith.addi %0, %arg1 : i32
    %c0_i32 = arith.constant 0 : i32
    %c0_i32_0 = arith.constant 0 : i32
    return %1, %c0_i32 : i32, i32
  }
  func.func @transform_8(%arg0: i32, %arg1: i32) -> (i32, i32) {
    %c0_i32 = arith.constant 0 : i32
    %c0_i32_0 = arith.constant 0 : i32
    %c0_i32_1 = arith.constant 0 : i32
    return %c0_i32, %c0_i32_0 : i32, i32
  }
  func.func @transform_9(%arg0: i32, %arg1: i32) -> (i32, i32, i32) {
    %c0_i32 = arith.constant 0 : i32
    %c0_i32_0 = arith.constant 0 : i32
    %c0_i32_1 = arith.constant 0 : i32
    return %arg0, %c0_i32, %c0_i32_0 : i32, i32, i32
  }
}

</mosaic_0001>

<llo_original>
// kernel: tpu_custom_call.1
$region0: #{tpu_custom_call.1}
  #allocation0 [shape = 'u32[]', space=smem, size = 0x4, offset = 0x4, fixed_abs, tag = 'smem constant byte address 0x4 - core index']
  #allocation1 [shape = 'u32[144,128]{1,0:T(1,128)}', space=vmem, size = 0x12000, scoped, tag = 'internal scratch']
  #allocation2 [shape = 'bf16[8,2048]{1,0:T(8,128)(2,1)}', space=vmem, size = 0x8000, scoped, tag = 'scratch operand']
  %s0 = inlined_call_operand.hbm [shape: f32[8,88], index: 0, kind: input, shape index: {}]
  %s1 = inlined_call_operand.hbm [shape: f32[1,88], index: 1, kind: input, shape index: {}]
  %s2 = inlined_call_operand.hbm [shape: f32[1,88], index: 2, kind: input, shape index: {}]
  %s3 = inlined_call_operand.hbm [shape: bf16[88,2048], index: 3, kind: input, shape index: {}]
  %s4 = inlined_call_operand.hbm [shape: f32[1,2048], index: 4, kind: input, shape index: {}]
  %s5 = inlined_call_operand.hbm [shape: bf16[2,2048,1024], index: 5, kind: input, shape index: {}]
  %s6 = inlined_call_operand.hbm [shape: f32[1,2048], index: 6, kind: input, shape index: {}]
  %s7 = inlined_call_operand.hbm [shape: bf16[2048,128], index: 7, kind: input, shape index: {}]
  %s8 = inlined_call_operand.hbm [shape: f32[1,128], index: 8, kind: input, shape index: {}]
  %s9 = inlined_call_operand.hbm [shape: f32[1,8,128], index: 9, kind: output, shape index: {}]
  %s10 = sld [smem:[#allocation0]]
  $region113: #{tpu_custom_call.1} parent=0
    _
  %s12 = ssub.s32 1, %s10
  %s13 = scalar_select 0, %s12, %s10
  $region1: #{tpu_custom_call.1} parent=0
    #allocation3 [shape = 'u8[4096]{0}', space=vmem, size = 0x1000, scoped, tag = 'input window, operand 0, single buffered']
    #allocation4 [shape = 's32[2]{0}', space=sflag, size = 0x8, scoped, tag = 'scoped memory for tpu_custom_call.1']
    #allocation5 [shape = 's32[2]{0}', space=sflag, size = 0x8, scoped, tag = 'scoped memory for tpu_custom_call.1']
    #allocation6 [shape = 'u8[512]{0}', space=vmem, size = 0x400, scoped, tag = 'input window, operand 1, single buffered']
    #allocation7 [shape = 's32[1]{0}', space=sflag, size = 0x4, scoped, tag = 'scoped memory for tpu_custom_call.1']
    #allocation8 [shape = 'u8[512]{0}', space=vmem, size = 0x400, scoped, tag = 'input window, operand 2, single buffered']
    #allocation9 [shape = 'u8[360448]{0}', space=vmem, size = 0x58000, scoped, tag = 'input window, operand 3, single buffered']
    #allocation10 [shape = 's32[1]{0}', space=sflag, size = 0x4, scoped, tag = 'scoped memory for tpu_custom_call.1']
    #allocation11 [shape = 'u8[8192]{0}', space=vmem, size = 0x2000, scoped, tag = 'input window, operand 4, single buffered']
    #allocation12 [shape = 'u8[8388608]{0}', space=vmem, size = 0x800000, scoped, tag = 'input window, operand 5']
    #allocation13 [shape = 's32[2]{0}', space=sflag, size = 0x8, scoped, tag = 'scoped memory for tpu_custom_call.1']
    #allocation14 [shape = 'u8[8192]{0}', space=vmem, size = 0x2000, scoped, tag = 'input window, operand 6']
    #allocation15 [shape = 'u8[524288]{0}', space=vmem, size = 0x80000, scoped, tag = 'input window, operand 7']
    #allocation16 [shape = 's32[2]{0}', space=sflag, size = 0x8, scoped, tag = 'scoped memory for tpu_custom_call.1']
    #allocation17 [shape = 'u8[512]{0}', space=vmem, size = 0x400, scoped, tag = 'input window, operand 8, single buffered']
    #allocation18 [shape = 'u8[4096]{0}', space=vmem, size = 0x1000, scoped, tag = 'output window, operand 0, single buffered']
    %14 = vsyncpa [#allocation4], 0
    %15 = vsyncpa [#allocation7], 0
    %16 = vsyncpa [#allocation10], 0
    %17 = vsyncpa [#allocation13], 0
    %s18 = scalar_lea.sflag [#allocation13], 1
    %19 = vsyncpa %s18, 0
    %20 = vsyncpa [#allocation16], 0
    %s21 = scalar_lea.sflag [#allocation16], 1
    %22 = vsyncpa %s21, 0
    %23 = vsyncpa [#allocation5], 0
    loop: start=0, step=1, limit=4
    $region2: #{tpu_custom_call.1} parent=1 // loop_pre_header
      _
    $region3: #{tpu_custom_call.1} parent=1 // loop_header
      %s25 = sphi 0, %s29
      %p26 = scmp.ge.s32.totalorder %s25, 4
      %s32 = sphi 0, %s44
      %s33 = sphi 0, %s40
      %s34 = sphi 0, %s32
      %s35 = sphi 0, %s33
      %s36 = sphi 0, %s34
      %s37 = sphi 0, %s35
      %s45 = sphi 0, %s45
      %s47 = sphi 0, %s45
      %s48 = sphi 0, %s47
      %s62 = sphi 0, %s48
      %s66 = sphi 0, %s66
      %s68 = sphi 0, %s66
      %s69 = sphi 0, %s68
      %s83 = sphi 0, %s69
      %s87 = sphi 0, %s87
      %s89 = sphi 0, %s87
      %s90 = sphi 0, %s89
      %s104 = sphi 0, %s90
      %s108 = sphi 0, %s108
      %s110 = sphi 0, %s108
      %s111 = sphi 0, %s110
      %s125 = sphi 0, %s111
      %s129 = sphi 0, %s129
      %s131 = sphi 0, %s129
      %s132 = sphi 0, %s131
      %s146 = sphi 0, %s132
      %s156 = sphi 0, %s158
      %s159 = sphi 0, %s156
      %s160 = sphi 0, %s159
      %s176 = sphi 0, %s160
      %s186 = sphi 0, %s188
      %s189 = sphi 0, %s186
      %s190 = sphi 0, %s189
      %s206 = sphi 0, %s190
      %s216 = sphi 0, %s218
      %s219 = sphi 0, %s216
      %s220 = sphi 0, %s219
      %s236 = sphi 0, %s220
      %s240 = sphi 0, %s240
      %s242 = sphi 0, %s240
      %s243 = sphi 0, %s242
      %s257 = sphi 0, %s243
      %s263 = sphi 0, %s265
      %s266 = sphi 0, %s263
      %s267 = sphi 0, %s266
      %s283 = sphi 0, %s267
    $region4: #{tpu_custom_call.1} parent=1 // loop_header_branch
      %28 = sbr.rel (%p26) target = $region8
    $region5: #{tpu_custom_call.1} parent=1 // loop_body
      %s30 = ssub.s32 %s25, 1
      %s31 = ssub.s32 %s25, 2
      %s38 = sadd.s32 1, %s33
      %p39 = scmp.ge.s32.totalorder %s38, 2
      %s40 = scalar_select %p39, 0, %s38
      %s41 = sadd.s32 1, %s32
      %s42 = scalar_select %p39, %s41, %s32
      %p43 = scmp.ge.s32.totalorder %s42, 1
      %s44 = scalar_select %p43, 0, %s42
      %s46 = sadd.s32 %s45, 1
      %p49 = scmp.eq.s32.totalorder %s25, 1
      %p50 = scmp.ne.s32.totalorder %s45, %s47
      %p51 = scmp.eq.s32.totalorder %s25, 0
      %p52 = por %p50, %p51
      %p53 = scmp.ne.s32.totalorder %s45, %s47
      %p54 = scmp.eq.s32.totalorder %s30, 1
      %p55 = por %p53, %p54
      %p56 = scmp.ne.s32.totalorder %s47, %s48
      %p57 = scmp.eq.s32.totalorder %s30, 0
      %p58 = por %p56, %p57
      %p59 = scmp.ne.s32.totalorder %s47, %s48
      %p60 = scmp.eq.s32.totalorder %s31, 1
      %p61 = por %p59, %p60
      %p63 = scmp.ne.s32.totalorder %s48, %s62
      %p64 = scmp.eq.s32.totalorder %s31, 0
      %p65 = por %p63, %p64
      %s67 = sadd.s32 %s66, 1
      %p70 = scmp.eq.s32.totalorder %s25, 1
      %p71 = scmp.ne.s32.totalorder %s66, %s68
      %p72 = scmp.eq.s32.totalorder %s25, 0
      %p73 = por %p71, %p72
      %p74 = scmp.ne.s32.totalorder %s66, %s68
      %p75 = scmp.eq.s32.totalorder %s30, 1
      %p76 = por %p74, %p75
      %p77 = scmp.ne.s32.totalorder %s68, %s69
      %p78 = scmp.eq.s32.totalorder %s30, 0
      %p79 = por %p77, %p78
      %p80 = scmp.ne.s32.totalorder %s68, %s69
      %p81 = scmp.eq.s32.totalorder %s31, 1
      %p82 = por %p80, %p81
      %p84 = scmp.ne.s32.totalorder %s69, %s83
      %p85 = scmp.eq.s32.totalorder %s31, 0
      %p86 = por %p84, %p85
      %s88 = sadd.s32 %s87, 1
      %p91 = scmp.eq.s32.totalorder %s25, 1
      %p92 = scmp.ne.s32.totalorder %s87, %s89
      %p93 = scmp.eq.s32.totalorder %s25, 0
      %p94 = por %p92, %p93
      %p95 = scmp.ne.s32.totalorder %s87, %s89
      %p96 = scmp.eq.s32.totalorder %s30, 1
      %p97 = por %p95, %p96
      %p98 = scmp.ne.s32.totalorder %s89, %s90
      %p99 = scmp.eq.s32.totalorder %s30, 0
      %p100 = por %p98, %p99
      %p101 = scmp.ne.s32.totalorder %s89, %s90
      %p102 = scmp.eq.s32.totalorder %s31, 1
      %p103 = por %p101, %p102
      %p105 = scmp.ne.s32.totalorder %s90, %s104
      %p106 = scmp.eq.s32.totalorder %s31, 0
      %p107 = por %p105, %p106
      %s109 = sadd.s32 %s108, 1
      %p112 = scmp.eq.s32.totalorder %s25, 1
      %p113 = scmp.ne.s32.totalorder %s108, %s110
      %p114 = scmp.eq.s32.totalorder %s25, 0
      %p115 = por %p113, %p114
      %p116 = scmp.ne.s32.totalorder %s108, %s110
      %p117 = scmp.eq.s32.totalorder %s30, 1
      %p118 = por %p116, %p117
      %p119 = scmp.ne.s32.totalorder %s110, %s111
      %p120 = scmp.eq.s32.totalorder %s30, 0
      %p121 = por %p119, %p120
      %p122 = scmp.ne.s32.totalorder %s110, %s111
      %p123 = scmp.eq.s32.totalorder %s31, 1
      %p124 = por %p122, %p123
      %p126 = scmp.ne.s32.totalorder %s111, %s125
      %p127 = scmp.eq.s32.totalorder %s31, 0
      %p128 = por %p126, %p127
      %s130 = sadd.s32 %s129, 1
      %p133 = scmp.eq.s32.totalorder %s25, 1
      %p134 = scmp.ne.s32.totalorder %s129, %s131
      %p135 = scmp.eq.s32.totalorder %s25, 0
      %p136 = por %p134, %p135
      %p137 = scmp.ne.s32.totalorder %s129, %s131
      %p138 = scmp.eq.s32.totalorder %s30, 1
      %p139 = por %p137, %p138
      %p140 = scmp.ne.s32.totalorder %s131, %s132
      %p141 = scmp.eq.s32.totalorder %s30, 0
      %p142 = por %p140, %p141
      %p143 = scmp.ne.s32.totalorder %s131, %s132
      %p144 = scmp.eq.s32.totalorder %s31, 1
      %p145 = por %p143, %p144
      %p147 = scmp.ne.s32.totalorder %s132, %s146
      %p148 = scmp.eq.s32.totalorder %s31, 0
      %p149 = por %p147, %p148
      %s150 = smul.u32 %s32, 2
      %s151 = sadd.s32 %s150, %s33
      %s152 = smul.u32 %s44, 2
      %s153 = sadd.s32 %s152, %s40
      %s154 = ssub.s32 %s151, %s153
      %p155 = scmp.eq.s32.totalorder %s154, 0
      %s157 = sadd.s32 %s156, 1
      %s158 = scalar_select %p155, %s156, %s157
      %p161 = pneg %p155
      %p162 = scmp.eq.s32.totalorder %s25, 1
      %p163 = por %p161, %p162
      %p164 = scmp.ne.s32.totalorder %s156, %s159
      %p165 = scmp.eq.s32.totalorder %s25, 0
      %p166 = por %p164, %p165
      %p167 = scmp.ne.s32.totalorder %s156, %s159
      %p168 = scmp.eq.s32.totalorder %s30, 1
      %p169 = por %p167, %p168
      %p170 = scmp.ne.s32.totalorder %s159, %s160
      %p171 = scmp.eq.s32.totalorder %s30, 0
      %p172 = por %p170, %p171
      %p173 = scmp.ne.s32.totalorder %s159, %s160
      %p174 = scmp.eq.s32.totalorder %s31, 1
      %p175 = por %p173, %p174
      %p177 = scmp.ne.s32.totalorder %s160, %s176
      %p178 = scmp.eq.s32.totalorder %s31, 0
      %p179 = por %p177, %p178
      %s180 = smul.u32 %s32, 2
      %s181 = sadd.s32 %s180, %s33
      %s182 = smul.u32 %s44, 2
      %s183 = sadd.s32 %s182, %s40
      %s184 = ssub.s32 %s181, %s183
      %p185 = scmp.eq.s32.totalorder %s184, 0
      %s187 = sadd.s32 %s186, 1
      %s188 = scalar_select %p185, %s186, %s187
      %p191 = pneg %p185
      %p192 = scmp.eq.s32.totalorder %s25, 1
      %p193 = por %p191, %p192
      %p194 = scmp.ne.s32.totalorder %s186, %s189
      %p195 = scmp.eq.s32.totalorder %s25, 0
      %p196 = por %p194, %p195
      %p197 = scmp.ne.s32.totalorder %s186, %s189
      %p198 = scmp.eq.s32.totalorder %s30, 1
      %p199 = por %p197, %p198
      %p200 = scmp.ne.s32.totalorder %s189, %s190
      %p201 = scmp.eq.s32.totalorder %s30, 0
      %p202 = por %p200, %p201
      %p203 = scmp.ne.s32.totalorder %s189, %s190
      %p204 = scmp.eq.s32.totalorder %s31, 1
      %p205 = por %p203, %p204
      %p207 = scmp.ne.s32.totalorder %s190, %s206
      %p208 = scmp.eq.s32.totalorder %s31, 0
      %p209 = por %p207, %p208
      %s210 = smul.u32 %s32, 2
      %s211 = sadd.s32 %s210, %s33
      %s212 = smul.u32 %s44, 2
      %s213 = sadd.s32 %s212, %s40
      %s214 = ssub.s32 %s211, %s213
      %p215 = scmp.eq.s32.totalorder %s214, 0
      %s217 = sadd.s32 %s216, 1
      %s218 = scalar_select %p215, %s216, %s217
      %p221 = pneg %p215
      %p222 = scmp.eq.s32.totalorder %s25, 1
      %p223 = por %p221, %p222
      %p224 = scmp.ne.s32.totalorder %s216, %s219
      %p225 = scmp.eq.s32.totalorder %s25, 0
      %p226 = por %p224, %p225
      %p227 = scmp.ne.s32.totalorder %s216, %s219
      %p228 = scmp.eq.s32.totalorder %s30, 1
      %p229 = por %p227, %p228
      %p230 = scmp.ne.s32.totalorder %s219, %s220
      %p231 = scmp.eq.s32.totalorder %s30, 0
      %p232 = por %p230, %p231
      %p233 = scmp.ne.s32.totalorder %s219, %s220
      %p234 = scmp.eq.s32.totalorder %s31, 1
      %p235 = por %p233, %p234
      %p237 = scmp.ne.s32.totalorder %s220, %s236
      %p238 = scmp.eq.s32.totalorder %s31, 0
      %p239 = por %p237, %p238
      %s241 = sadd.s32 %s240, 1
      %p244 = scmp.eq.s32.totalorder %s25, 1
      %p245 = scmp.ne.s32.totalorder %s240, %s242
      %p246 = scmp.eq.s32.totalorder %s25, 0
      %p247 = por %p245, %p246
      %p248 = scmp.ne.s32.totalorder %s240, %s242
      %p249 = scmp.eq.s32.totalorder %s30, 1
      %p250 = por %p248, %p249
      %p251 = scmp.ne.s32.totalorder %s242, %s243
      %p252 = scmp.eq.s32.totalorder %s30, 0
      %p253 = por %p251, %p252
      %p254 = scmp.ne.s32.totalorder %s242, %s243
      %p255 = scmp.eq.s32.totalorder %s31, 1
      %p256 = por %p254, %p255
      %p258 = scmp.ne.s32.totalorder %s243, %s257
      %p259 = scmp.eq.s32.totalorder %s31, 0
      %p260 = por %p258, %p259
      %s261 = ssub.s32 %s32, %s44
      %p262 = scmp.eq.s32.totalorder %s261, 0
      %s264 = sadd.s32 %s263, 1
      %s265 = scalar_select %p262, %s263, %s264
      %p268 = pneg %p262
      %p269 = scmp.eq.s32.totalorder %s25, 1
      %p270 = por %p268, %p269
      %p271 = scmp.ne.s32.totalorder %s263, %s266
      %p272 = scmp.eq.s32.totalorder %s25, 0
      %p273 = por %p271, %p272
      %p274 = scmp.ne.s32.totalorder %s263, %s266
      %p275 = scmp.eq.s32.totalorder %s30, 1
      %p276 = por %p274, %p275
      %p277 = scmp.ne.s32.totalorder %s266, %s267
      %p278 = scmp.eq.s32.totalorder %s30, 0
      %p279 = por %p277, %p278
      %p280 = scmp.ne.s32.totalorder %s266, %s267
      %p281 = scmp.eq.s32.totalorder %s31, 1
      %p282 = por %p280, %p281
      %p284 = scmp.ne.s32.totalorder %s267, %s283
      %p285 = scmp.eq.s32.totalorder %s31, 0
      %p286 = por %p284, %p285
      %p287 = scmp.le.s32.totalorder 1, %s25
      %p288 = scmp.lt.s32.totalorder %s25, 3
      %p289 = pnand %p287, %p288
      %p290 = pneg %p289
      // Predicated region
      $region9: #{tpu_custom_call.1} parent=5 // pred_check
        _
      $region10: #{tpu_custom_call.1} parent=5 // pred_check_branch
        %292 = sbr.rel (%p289) target = $region12
      $region11: #{tpu_custom_call.1} parent=5 // pred_region
        %s293 = ssub.s32 %s25, 1
        // Predicated region
        $region13: #{tpu_custom_call.1} parent=11 // pred_check
          %p294 = pneg %p58
        $region14: #{tpu_custom_call.1} parent=11 // pred_check_branch
          %296 = sbr.rel (%p294) target = $region16
        $region15: #{tpu_custom_call.1} parent=11 // pred_region
          %s298 = ssub.s32 128, 128
          %299 = vsyncadd [#allocation4], %s298
          %s301 = sshll.u32 [#allocation3], 4
          %s302 = int_to_ptr.vmem [resolvable:$true] %s301
          %304 = dma.hbm_to_vmem [thread:$0]  %s0, 128, %s302, [#allocation4]
        $region16: #{tpu_custom_call.1} parent=11 // pred_fallthru
          _
        // Predicated region
        $region17: #{tpu_custom_call.1} parent=11 // pred_check
          %p305 = pneg %p79
        $region18: #{tpu_custom_call.1} parent=11 // pred_check_branch
          %307 = sbr.rel (%p305) target = $region20
        $region19: #{tpu_custom_call.1} parent=11 // pred_region
          %s309 = ssub.s32 16, 16
          %310 = vsyncadd [#allocation7], %s309
          %s312 = sshll.u32 [#allocation6], 4
          %s313 = int_to_ptr.vmem [resolvable:$true] %s312
          %315 = dma.hbm_to_vmem [thread:$0]  %s1, 16, %s313, [#allocation7]
        $region20: #{tpu_custom_call.1} parent=11 // pred_fallthru
          _
        // Predicated region
        $region21: #{tpu_custom_call.1} parent=11 // pred_check
          %p316 = pneg %p100
        $region22: #{tpu_custom_call.1} parent=11 // pred_check_branch
          %318 = sbr.rel (%p316) target = $region24
        $region23: #{tpu_custom_call.1} parent=11 // pred_region
          %s320 = ssub.s32 16, 16
          %321 = vsyncadd [#allocation7], %s320
          %s323 = sshll.u32 [#allocation8], 4
          %s324 = int_to_ptr.vmem [resolvable:$true] %s323
          %326 = dma.hbm_to_vmem [thread:$0]  %s2, 16, %s324, [#allocation7]
        $region24: #{tpu_custom_call.1} parent=11 // pred_fallthru
          _
        // Predicated region
        $region25: #{tpu_custom_call.1} parent=11 // pred_check
          %p327 = pneg %p121
        $region26: #{tpu_custom_call.1} parent=11 // pred_check_branch
          %329 = sbr.rel (%p327) target = $region28
        $region27: #{tpu_custom_call.1} parent=11 // pred_region
          %s331 = ssub.s32 11264, 11264
          %332 = vsyncadd [#allocation10], %s331
          %s333 = sshll.u32 [#allocation9], 4
          %s334 = int_to_ptr.vmem [resolvable:$true] %s333
          %339 = dma.hbm_to_vmem [thread:$0]  %s3, 11264, %s334, [#allocation10], 1024, 1024, 64
        $region28: #{tpu_custom_call.1} parent=11 // pred_fallthru
          _
        // Predicated region
        $region29: #{tpu_custom_call.1} parent=11 // pred_check
          %p340 = pneg %p142
        $region30: #{tpu_custom_call.1} parent=11 // pred_check_branch
          %342 = sbr.rel (%p340) target = $region32
        $region31: #{tpu_custom_call.1} parent=11 // pred_region
          %s344 = ssub.s32 256, 256
          %345 = vsyncadd [#allocation10], %s344
          %s347 = sshll.u32 [#allocation11], 4
          %s348 = int_to_ptr.vmem [resolvable:$true] %s347
          %350 = dma.hbm_to_vmem [thread:$0]  %s4, 256, %s348, [#allocation10]
        $region32: #{tpu_custom_call.1} parent=11 // pred_fallthru
          _
        // Predicated region
        $region33: #{tpu_custom_call.1} parent=11 // pred_check
          %p351 = pneg %p253
        $region34: #{tpu_custom_call.1} parent=11 // pred_check_branch
          %353 = sbr.rel (%p351) target = $region36
        $region35: #{tpu_custom_call.1} parent=11 // pred_region
          %s355 = ssub.s32 16, 16
          %356 = vsyncadd [#allocation16], %s355
          %s358 = sshll.u32 [#allocation17], 4
          %s359 = int_to_ptr.vmem [resolvable:$true] %s358
          %361 = dma.hbm_to_vmem [thread:$0]  %s8, 16, %s359, [#allocation16]
        $region36: #{tpu_custom_call.1} parent=11 // pred_fallthru
          _
      $region12: #{tpu_custom_call.1} parent=5 // pred_fallthru
        _
      %p362 = scmp.lt.s32.totalorder %s25, 2
      // Predicated region
      $region37: #{tpu_custom_call.1} parent=5 // pred_check
        %p363 = pneg %p362
      $region38: #{tpu_custom_call.1} parent=5 // pred_check_branch
        %365 = sbr.rel (%p363) target = $region40
      $region39: #{tpu_custom_call.1} parent=5 // pred_region
        // Predicated region
        $region41: #{tpu_custom_call.1} parent=39 // pred_check
          %p366 = pneg %p166
        $region42: #{tpu_custom_call.1} parent=39 // pred_check_branch
          %368 = sbr.rel (%p366) target = $region44
        $region43: #{tpu_custom_call.1} parent=39 // pred_region
          %s369 = sand.u32 %s25, 1
          %s370 = scalar_lea.sflag [#allocation13], %s369
          %s371 = sand.u32 %s156, 1
          %s372 = smul.addr %s371, 8192
          %s373 = scalar_lea.vmem [#allocation12], %s372
          %s374 = smul.u32 %s32, 2
          %s375 = sadd.s32 %s374, %s33
          %s377 = ssub.s32 131072, 131072
          %378 = vsyncadd %s370, %s377
          %s379 = smul.addr %s375, 2048
          %s380 = smul.addr %s379, 64
          %s381 = scalar_lea.hbm %s5, %s380
          %s382 = sshll.u32 %s373, 4
          %s383 = int_to_ptr.vmem [resolvable:$true] %s382
          %388 = dma.hbm_to_vmem [thread:$0]  %s381, 131072, %s383, %s370, 512, 512, 32
        $region44: #{tpu_custom_call.1} parent=39 // pred_fallthru
          _
        // Predicated region
        $region45: #{tpu_custom_call.1} parent=39 // pred_check
          %p389 = pneg %p196
        $region46: #{tpu_custom_call.1} parent=39 // pred_check_branch
          %391 = sbr.rel (%p389) target = $region48
        $region47: #{tpu_custom_call.1} parent=39 // pred_region
          %s392 = sand.u32 %s25, 1
          %s393 = scalar_lea.sflag [#allocation13], %s392
          %s394 = sand.u32 %s186, 1
          %s395 = smul.addr %s394, 8
          %s396 = scalar_lea.vmem [#allocation14], %s395
          %s397 = smul.u32 %s32, 2
          %s398 = sadd.s32 %s397, %s33
          %s399 = smul.u32 8, %s398
          %s401 = ssub.s32 128, 128
          %402 = vsyncadd %s393, %s401
          %s403 = smul.addr %s399, 16
          %s404 = scalar_lea.hbm %s6, %s403
          %s406 = sshll.u32 %s396, 4
          %s407 = int_to_ptr.vmem [resolvable:$true] %s406
          %409 = dma.hbm_to_vmem [thread:$0]  %s404, 128, %s407, %s393
        $region48: #{tpu_custom_call.1} parent=39 // pred_fallthru
          _
        // Predicated region
        $region49: #{tpu_custom_call.1} parent=39 // pred_check
          %p410 = pneg %p226
        $region50: #{tpu_custom_call.1} parent=39 // pred_check_branch
          %412 = sbr.rel (%p410) target = $region52
        $region51: #{tpu_custom_call.1} parent=39 // pred_region
          %s413 = sand.u32 %s25, 1
          %s414 = scalar_lea.sflag [#allocation16], %s413
          %s415 = sand.u32 %s216, 1
          %s416 = smul.addr %s415, 512
          %s417 = scalar_lea.vmem [#allocation15], %s416
          %s418 = smul.u32 %s32, 2
          %s419 = sadd.s32 %s418, %s33
          %s420 = smul.u32 128, %s419
          %s422 = ssub.s32 8192, 8192
          %423 = vsyncadd %s414, %s422
          %s424 = smul.addr %s420, 64
          %s425 = scalar_lea.hbm %s7, %s424
          %s426 = sshll.u32 %s417, 4
          %s427 = int_to_ptr.vmem [resolvable:$true] %s426
          %432 = dma.hbm_to_vmem [thread:$0]  %s425, 8192, %s427, %s414, 64, 64, 4
        $region52: #{tpu_custom_call.1} parent=39 // pred_fallthru
          _
      $region40: #{tpu_custom_call.1} parent=5 // pred_fallthru
        _
      %p433 = scmp.le.s32.totalorder 1, %s25
      %p434 = scmp.lt.s32.totalorder %s25, 3
      %p435 = pnand %p433, %p434
      %p436 = pneg %p435
      // Predicated region
      $region53: #{tpu_custom_call.1} parent=5 // pred_check
        _
      $region54: #{tpu_custom_call.1} parent=5 // pred_check_branch
        %438 = sbr.rel (%p435) target = $region56
      $region55: #{tpu_custom_call.1} parent=5 // pred_region
        %s439 = ssub.s32 %s25, 1
        // Predicated region
        $region57: #{tpu_custom_call.1} parent=55 // pred_check
          %p440 = pneg %p58
        $region58: #{tpu_custom_call.1} parent=55 // pred_check_branch
          %442 = sbr.rel (%p440) target = $region60
        $region59: #{tpu_custom_call.1} parent=55 // pred_region
          %443 = dma.done [#allocation4], 128
        $region60: #{tpu_custom_call.1} parent=55 // pred_fallthru
          _
        // Predicated region
        $region61: #{tpu_custom_call.1} parent=55 // pred_check
          %p444 = pneg %p79
        $region62: #{tpu_custom_call.1} parent=55 // pred_check_branch
          %446 = sbr.rel (%p444) target = $region64
        $region63: #{tpu_custom_call.1} parent=55 // pred_region
          %447 = dma.done [#allocation7], 16
        $region64: #{tpu_custom_call.1} parent=55 // pred_fallthru
          _
        // Predicated region
        $region65: #{tpu_custom_call.1} parent=55 // pred_check
          %p448 = pneg %p100
        $region66: #{tpu_custom_call.1} parent=55 // pred_check_branch
          %450 = sbr.rel (%p448) target = $region68
        $region67: #{tpu_custom_call.1} parent=55 // pred_region
          %451 = dma.done [#allocation7], 16
        $region68: #{tpu_custom_call.1} parent=55 // pred_fallthru
          _
        // Predicated region
        $region69: #{tpu_custom_call.1} parent=55 // pred_check
          %p452 = pneg %p121
        $region70: #{tpu_custom_call.1} parent=55 // pred_check_branch
          %454 = sbr.rel (%p452) target = $region72
        $region71: #{tpu_custom_call.1} parent=55 // pred_region
          %455 = dma.done [#allocation10], 11264
        $region72: #{tpu_custom_call.1} parent=55 // pred_fallthru
          _
        // Predicated region
        $region73: #{tpu_custom_call.1} parent=55 // pred_check
          %p456 = pneg %p142
        $region74: #{tpu_custom_call.1} parent=55 // pred_check_branch
          %458 = sbr.rel (%p456) target = $region76
        $region75: #{tpu_custom_call.1} parent=55 // pred_region
          %459 = dma.done [#allocation10], 256
        $region76: #{tpu_custom_call.1} parent=55 // pred_fallthru
          _
        %s460 = sand.u32 %s30, 1
        %s461 = scalar_lea.sflag [#allocation13], %s460
        %s462 = sand.u32 %s159, 1
        %s463 = smul.addr %s462, 8192
        %s464 = scalar_lea.vmem [#allocation12], %s463
        // Predicated region
        $region77: #{tpu_custom_call.1} parent=55 // pred_check
          %p465 = pneg %p172
        $region78: #{tpu_custom_call.1} parent=55 // pred_check_branch
          %467 = sbr.rel (%p465) target = $region80
        $region79: #{tpu_custom_call.1} parent=55 // pred_region
          %468 = dma.done %s461, 131072
        $region80: #{tpu_custom_call.1} parent=55 // pred_fallthru
          _
        %s469 = sand.u32 %s30, 1
        %s470 = scalar_lea.sflag [#allocation13], %s469
        %s471 = sand.u32 %s189, 1
        %s472 = smul.addr %s471, 8
        %s473 = scalar_lea.vmem [#allocation14], %s472
        // Predicated region
        $region81: #{tpu_custom_call.1} parent=55 // pred_check
          %p474 = pneg %p202
        $region82: #{tpu_custom_call.1} parent=55 // pred_check_branch
          %476 = sbr.rel (%p474) target = $region84
        $region83: #{tpu_custom_call.1} parent=55 // pred_region
          %477 = dma.done %s470, 128
        $region84: #{tpu_custom_call.1} parent=55 // pred_fallthru
          _
        %s478 = sand.u32 %s30, 1
        %s479 = scalar_lea.sflag [#allocation16], %s478
        %s480 = sand.u32 %s219, 1
        %s481 = smul.addr %s480, 512
        %s482 = scalar_lea.vmem [#allocation15], %s481
        // Predicated region
        $region85: #{tpu_custom_call.1} parent=55 // pred_check
          %p483 = pneg %p232
        $region86: #{tpu_custom_call.1} parent=55 // pred_check_branch
          %485 = sbr.rel (%p483) target = $region88
        $region87: #{tpu_custom_call.1} parent=55 // pred_region
          %486 = dma.done %s479, 8192
        $region88: #{tpu_custom_call.1} parent=55 // pred_fallthru
          _
        // Predicated region
        $region89: #{tpu_custom_call.1} parent=55 // pred_check
          %p487 = pneg %p253
        $region90: #{tpu_custom_call.1} parent=55 // pred_check_branch
          %489 = sbr.rel (%p487) target = $region92
        $region91: #{tpu_custom_call.1} parent=55 // pred_region
          %490 = dma.done [#allocation16], 16
        $region92: #{tpu_custom_call.1} parent=55 // pred_fallthru
          _
        %p491 = pneg %p58
        %p492 = pneg %p55
        %p493 = pneg %p79
        %p494 = pneg %p76
        %p495 = pneg %p100
        %p496 = pneg %p97
        %p497 = pneg %p121
        %p498 = pneg %p118
        %p499 = pneg %p142
        %p500 = pneg %p139
        %s501 = sand.u32 %s30, 1
        %s502 = scalar_lea.sflag [#allocation13], %s501
        %s503 = sand.u32 %s159, 1
        %s504 = smul.addr %s503, 8192
        %s505 = scalar_lea.vmem [#allocation12], %s504
        %p506 = pneg %p172
        %p507 = pneg %p169
        %s508 = sand.u32 %s30, 1
        %s509 = scalar_lea.sflag [#allocation13], %s508
        %s510 = sand.u32 %s189, 1
        %s511 = smul.addr %s510, 8
        %s512 = scalar_lea.vmem [#allocation14], %s511
        %p513 = pneg %p202
        %p514 = pneg %p199
        %s515 = sand.u32 %s30, 1
        %s516 = scalar_lea.sflag [#allocation16], %s515
        %s517 = sand.u32 %s219, 1
        %s518 = smul.addr %s517, 512
        %s519 = scalar_lea.vmem [#allocation15], %s518
        %p520 = pneg %p232
        %p521 = pneg %p229
        %p522 = pneg %p253
        %p523 = pneg %p250
        %p524 = pneg %p279
        %p525 = pneg %p276
        %s526 = smul.u32 %s34, 2
        %s527 = sadd.s32 %s526, %s35
        %s528 = smul.u32 %s34, 2
        %s529 = sadd.s32 %s528, %s35
        %s530 = smul.u32 8, %s529
        %s531 = smul.u32 %s34, 2
        %s532 = sadd.s32 %s531, %s35
        %s533 = smul.u32 128, %s532
        %p535 = scmp.eq.s32.totalorder %s35, 0
        // Predicated region
        $region93: #{tpu_custom_call.1} parent=55 // pred_check
          %p536 = pneg %p535
        $region94: #{tpu_custom_call.1} parent=55 // pred_check_branch
          %538 = sbr.rel (%p536) target = $region96
        $region95: #{tpu_custom_call.1} parent=55 // pred_region
          %v539 = vld [vmem:[#allocation3] sm:$0xff]
          %vm540 = vcmask 719872
          %v541 = vsel %vm540, %v539, 0.0
          %v542 = vrot.slane %v541, 4
          %v543 = vadd.f32 %v541, %v542
          %v544 = vrot.slane %v543, 2
          %v545 = vadd.f32 %v543, %v544
          %v546 = vrot.slane %v545, 1
          %v547 = vadd.f32 %v545, %v546
          %v548 = vrcp.pop 8.0
          %v549 = vmul.f32 %v547, %v548
          %v550 = vsub.f32 %v539, %v549
          %v551 = vmul.f32 %v550, %v550
          %v552 = vsel %vm540, %v551, 0.0
          %v553 = vrot.slane %v552, 4
          %v554 = vadd.f32 %v552, %v553
          %v555 = vrot.slane %v554, 2
          %v556 = vadd.f32 %v554, %v555
          %v557 = vrot.slane %v556, 1
          %v558 = vadd.f32 %v556, %v557
          %v559 = vmul.f32 %v558, %v548
          %v560 = vadd.f32 %v559, 1e-05
          %v561 = vrsqrt.pop %v560
          %v562 = vmul.f32 %v550, %v561
          %v563 = vld [vmem:[#allocation6] sm:$0x1]
          %v565 = vlaneseq
          %v566 = vshrl.u32 %v565, 7
          %v567 = vsub.s32 0, %v566
          %v568 = vrot.slane %v563, %v567
          %v570 = vmul.f32 %v562, %v568
          %v571 = vld [vmem:[#allocation8] sm:$0x1]
          %v573 = vlaneseq
          %v574 = vshrl.u32 %v573, 7
          %v575 = vsub.s32 0, %v574
          %v576 = vrot.slane %v571, %v575
          %v578 = vadd.f32 %v570, %v576
          %v579 = vpack.c.bf16 %v578, %v578
          %v580 = vld [vmem:[#allocation9] sm:$0xff]
          %v581 = vld [vmem:[#allocation9 + $0x8] sm:$0xff]
          %v582 = vld [vmem:[#allocation9 + $0x10] sm:$0xff]
          %v583 = vld [vmem:[#allocation9 + $0x18] sm:$0xff]
          %v584 = vld [vmem:[#allocation9 + $0x20] sm:$0xff]
          %v585 = vld [vmem:[#allocation9 + $0x28] sm:$0xff]
          %v586 = vld [vmem:[#allocation9 + $0x30] sm:$0xff]
          %v587 = vld [vmem:[#allocation9 + $0x38] sm:$0xff]
          %v588 = vld [vmem:[#allocation9 + $0x40] sm:$0xff]
          %v589 = vld [vmem:[#allocation9 + $0x48] sm:$0xff]
          %v590 = vld [vmem:[#allocation9 + $0x50] sm:$0xff]
          %v591 = vld [vmem:[#allocation9 + $0x58] sm:$0xff]
          %v592 = vld [vmem:[#allocation9 + $0x60] sm:$0xff]
          %v593 = vld [vmem:[#allocation9 + $0x68] sm:$0xff]
          %v594 = vld [vmem:[#allocation9 + $0x70] sm:$0xff]
          %v595 = vld [vmem:[#allocation9 + $0x78] sm:$0xff]
          %v596 = vld [vmem:[#allocation9 + $0x80] sm:$0xff]
          %v597 = vld [vmem:[#allocation9 + $0x88] sm:$0xff]
          %v598 = vld [vmem:[#allocation9 + $0x90] sm:$0xff]
          %v599 = vld [vmem:[#allocation9 + $0x98] sm:$0xff]
          %v600 = vld [vmem:[#allocation9 + $0xa0] sm:$0xff]
          %v601 = vld [vmem:[#allocation9 + $0xa8] sm:$0xff]
          %v602 = vld [vmem:[#allocation9 + $0xb0] sm:$0xff]
          %v603 = vld [vmem:[#allocation9 + $0xb8] sm:$0xff]
          %v604 = vld [vmem:[#allocation9 + $0xc0] sm:$0xff]
          %v605 = vld [vmem:[#allocation9 + $0xc8] sm:$0xff]
          %v606 = vld [vmem:[#allocation9 + $0xd0] sm:$0xff]
          %v607 = vld [vmem:[#allocation9 + $0xd8] sm:$0xff]
          %v608 = vld [vmem:[#allocation9 + $0xe0] sm:$0xff]
          %v609 = vld [vmem:[#allocation9 + $0xe8] sm:$0xff]
          %v610 = vld [vmem:[#allocation9 + $0xf0] sm:$0xff]
          %v611 = vld [vmem:[#allocation9 + $0xf8] sm:$0xff]
          %v612 = vld [vmem:[#allocation9 + $0x100] sm:$0xff]
          %v613 = vld [vmem:[#allocation9 + $0x108] sm:$0xff]
          %v614 = vld [vmem:[#allocation9 + $0x110] sm:$0xff]
          %v615 = vld [vmem:[#allocation9 + $0x118] sm:$0xff]
          %v616 = vld [vmem:[#allocation9 + $0x120] sm:$0xff]
          %v617 = vld [vmem:[#allocation9 + $0x128] sm:$0xff]
          %v618 = vld [vmem:[#allocation9 + $0x130] sm:$0xff]
          %v619 = vld [vmem:[#allocation9 + $0x138] sm:$0xff]
          %v620 = vld [vmem:[#allocation9 + $0x140] sm:$0xff]
          %v621 = vld [vmem:[#allocation9 + $0x148] sm:$0xff]
          %v622 = vld [vmem:[#allocation9 + $0x150] sm:$0xff]
          %v623 = vld [vmem:[#allocation9 + $0x158] sm:$0xff]
          %v624 = vld [vmem:[#allocation9 + $0x160] sm:$0xff]
          %v625 = vld [vmem:[#allocation9 + $0x168] sm:$0xff]
          %v626 = vld [vmem:[#allocation9 + $0x170] sm:$0xff]
          %v627 = vld [vmem:[#allocation9 + $0x178] sm:$0xff]
          %v628 = vld [vmem:[#allocation9 + $0x180] sm:$0xff]
          %v629 = vld [vmem:[#allocation9 + $0x188] sm:$0xff]
          %v630 = vld [vmem:[#allocation9 + $0x190] sm:$0xff]
          %v631 = vld [vmem:[#allocation9 + $0x198] sm:$0xff]
          %v632 = vld [vmem:[#allocation9 + $0x1a0] sm:$0xff]
          %v633 = vld [vmem:[#allocation9 + $0x1a8] sm:$0xff]
          %v634 = vld [vmem:[#allocation9 + $0x1b0] sm:$0xff]
          %v635 = vld [vmem:[#allocation9 + $0x1b8] sm:$0xff]
          %v636 = vld [vmem:[#allocation9 + $0x1c0] sm:$0xff]
          %v637 = vld [vmem:[#allocation9 + $0x1c8] sm:$0xff]
          %v638 = vld [vmem:[#allocation9 + $0x1d0] sm:$0xff]
          %v639 = vld [vmem:[#allocation9 + $0x1d8] sm:$0xff]
          %v640 = vld [vmem:[#allocation9 + $0x1e0] sm:$0xff]
          %v641 = vld [vmem:[#allocation9 + $0x1e8] sm:$0xff]
          %v642 = vld [vmem:[#allocation9 + $0x1f0] sm:$0xff]
          %v643 = vld [vmem:[#allocation9 + $0x1f8] sm:$0xff]
          %v644 = vld [vmem:[#allocation9 + $0x200] sm:$0xff]
          %v645 = vld [vmem:[#allocation9 + $0x208] sm:$0xff]
          %v646 = vld [vmem:[#allocation9 + $0x210] sm:$0xff]
          %v647 = vld [vmem:[#allocation9 + $0x218] sm:$0xff]
          %v648 = vld [vmem:[#allocation9 + $0x220] sm:$0xff]
          %v649 = vld [vmem:[#allocation9 + $0x228] sm:$0xff]
          %v650 = vld [vmem:[#allocation9 + $0x230] sm:$0xff]
          %v651 = vld [vmem:[#allocation9 + $0x238] sm:$0xff]
          %v652 = vld [vmem:[#allocation9 + $0x240] sm:$0xff]
          %v653 = vld [vmem:[#allocation9 + $0x248] sm:$0xff]
          %v654 = vld [vmem:[#allocation9 + $0x250] sm:$0xff]
          %v655 = vld [vmem:[#allocation9 + $0x258] sm:$0xff]
          %v656 = vld [vmem:[#allocation9 + $0x260] sm:$0xff]
          %v657 = vld [vmem:[#allocation9 + $0x268] sm:$0xff]
          %v658 = vld [vmem:[#allocation9 + $0x270] sm:$0xff]
          %v659 = vld [vmem:[#allocation9 + $0x278] sm:$0xff]
          %v660 = vld [vmem:[#allocation9 + $0x280] sm:$0xff]
          %v661 = vld [vmem:[#allocation9 + $0x288] sm:$0xff]
          %v662 = vld [vmem:[#allocation9 + $0x290] sm:$0xff]
          %v663 = vld [vmem:[#allocation9 + $0x298] sm:$0xff]
          %v664 = vld [vmem:[#allocation9 + $0x2a0] sm:$0xff]
          %v665 = vld [vmem:[#allocation9 + $0x2a8] sm:$0xff]
          %v666 = vld [vmem:[#allocation9 + $0x2b0] sm:$0xff]
          %v667 = vld [vmem:[#allocation9 + $0x2b8] sm:$0xff]
          %v668 = vld [vmem:[#allocation11] sm:$0xff]
          %v669 = vld [vmem:[#allocation11 + $0x8] sm:$0xff]
          %v672 = vlaneseq
          %v673 = vshrl.u32 %v672, 7
          %v674 = vsub.s32 0, %v673
          %v675 = vrot.slane %v668, %v674
          %v676 = vlaneseq
          %v677 = vshrl.u32 %v676, 7
          %v678 = vsub.s32 1, %v677
          %v679 = vrot.slane %v668, %v678
          %v680 = vlaneseq
          %v681 = vshrl.u32 %v680, 7
          %v682 = vsub.s32 2, %v681
          %v683 = vrot.slane %v668, %v682
          %v684 = vlaneseq
          %v685 = vshrl.u32 %v684, 7
          %v686 = vsub.s32 3, %v685
          %v687 = vrot.slane %v668, %v686
          %v688 = vlaneseq
          %v689 = vshrl.u32 %v688, 7
          %v690 = vsub.s32 4, %v689
          %v691 = vrot.slane %v668, %v690
          %v692 = vlaneseq
          %v693 = vshrl.u32 %v692, 7
          %v694 = vsub.s32 5, %v693
          %v695 = vrot.slane %v668, %v694
          %v696 = vlaneseq
          %v697 = vshrl.u32 %v696, 7
          %v698 = vsub.s32 6, %v697
          %v699 = vrot.slane %v668, %v698
          %v700 = vlaneseq
          %v701 = vshrl.u32 %v700, 7
          %v702 = vsub.s32 7, %v701
          %v703 = vrot.slane %v668, %v702
          %v704 = vlaneseq
          %v705 = vshrl.u32 %v704, 7
          %v706 = vsub.s32 0, %v705
          %v707 = vrot.slane %v669, %v706
          %v708 = vlaneseq
          %v709 = vshrl.u32 %v708, 7
          %v710 = vsub.s32 1, %v709
          %v711 = vrot.slane %v669, %v710
          %v712 = vlaneseq
          %v713 = vshrl.u32 %v712, 7
          %v714 = vsub.s32 2, %v713
          %v715 = vrot.slane %v669, %v714
          %v716 = vlaneseq
          %v717 = vshrl.u32 %v716, 7
          %v718 = vsub.s32 3, %v717
          %v719 = vrot.slane %v669, %v718
          %v720 = vlaneseq
          %v721 = vshrl.u32 %v720, 7
          %v722 = vsub.s32 4, %v721
          %v723 = vrot.slane %v669, %v722
          %v724 = vlaneseq
          %v725 = vshrl.u32 %v724, 7
          %v726 = vsub.s32 5, %v725
          %v727 = vrot.slane %v669, %v726
          %v728 = vlaneseq
          %v729 = vshrl.u32 %v728, 7
          %v730 = vsub.s32 6, %v729
          %v731 = vrot.slane %v669, %v730
          %v732 = vlaneseq
          %v733 = vshrl.u32 %v732, 7
          %v734 = vsub.s32 7, %v733
          %v735 = vrot.slane %v669, %v734
          %v840 = vunpack.c.l.b16 %v580
          %v841 = vunpack.c.h.b16 %v580
          %v842 = vunpack.c.l.b16 %v581
          %v843 = vunpack.c.h.b16 %v581
          %v844 = vunpack.c.l.b16 %v582
          %v845 = vunpack.c.h.b16 %v582
          %v846 = vunpack.c.l.b16 %v583
          %v847 = vunpack.c.h.b16 %v583
          %v848 = vunpack.c.l.b16 %v584
          %v849 = vunpack.c.h.b16 %v584
          %v850 = vunpack.c.l.b16 %v585
          %v851 = vunpack.c.h.b16 %v585
          %v852 = vunpack.c.l.b16 %v586
          %v853 = vunpack.c.h.b16 %v586
          %v854 = vunpack.c.l.b16 %v587
          %v855 = vunpack.c.h.b16 %v587
          %v856 = vunpack.c.l.b16 %v588
          %v857 = vunpack.c.h.b16 %v588
          %v858 = vunpack.c.l.b16 %v589
          %v859 = vunpack.c.h.b16 %v589
          %v860 = vunpack.c.l.b16 %v590
          %v861 = vunpack.c.h.b16 %v590
          %v862 = vunpack.c.l.b16 %v591
          %v863 = vunpack.c.h.b16 %v591
          %v864 = vunpack.c.l.b16 %v592
          %v865 = vunpack.c.h.b16 %v592
          %v866 = vunpack.c.l.b16 %v593
          %v867 = vunpack.c.h.b16 %v593
          %v868 = vunpack.c.l.b16 %v594
          %v869 = vunpack.c.h.b16 %v594
          %v870 = vunpack.c.l.b16 %v595
          %v871 = vunpack.c.h.b16 %v595
          %v872 = vunpack.c.l.b16 %v596
          %v873 = vunpack.c.h.b16 %v596
          %v874 = vunpack.c.l.b16 %v597
          %v875 = vunpack.c.h.b16 %v597
          %v876 = vunpack.c.l.b16 %v598
          %v877 = vunpack.c.h.b16 %v598
          %v878 = vunpack.c.l.b16 %v599
          %v879 = vunpack.c.h.b16 %v599
          %v880 = vunpack.c.l.b16 %v600
          %v881 = vunpack.c.h.b16 %v600
          %v882 = vunpack.c.l.b16 %v601
          %v883 = vunpack.c.h.b16 %v601
          %v884 = vunpack.c.l.b16 %v602
          %v885 = vunpack.c.h.b16 %v602
          %v886 = vunpack.c.l.b16 %v603
          %v887 = vunpack.c.h.b16 %v603
          %v888 = vunpack.c.l.b16 %v604
          %v889 = vunpack.c.h.b16 %v604
          %v890 = vunpack.c.l.b16 %v605
          %v891 = vunpack.c.h.b16 %v605
          %v892 = vunpack.c.l.b16 %v606
          %v893 = vunpack.c.h.b16 %v606
          %v894 = vunpack.c.l.b16 %v607
          %v895 = vunpack.c.h.b16 %v607
          %v896 = vunpack.c.l.b16 %v608
          %v897 = vunpack.c.h.b16 %v608
          %v898 = vunpack.c.l.b16 %v609
          %v899 = vunpack.c.h.b16 %v609
          %v900 = vunpack.c.l.b16 %v610
          %v901 = vunpack.c.h.b16 %v610
          %v902 = vunpack.c.l.b16 %v611
          %v903 = vunpack.c.h.b16 %v611
          %v904 = vunpack.c.l.b16 %v612
          %v905 = vunpack.c.h.b16 %v612
          %v906 = vunpack.c.l.b16 %v613
          %v907 = vunpack.c.h.b16 %v613
          %v908 = vunpack.c.l.b16 %v614
          %v909 = vunpack.c.h.b16 %v614
          %v910 = vunpack.c.l.b16 %v615
          %v911 = vunpack.c.h.b16 %v615
          %v912 = vunpack.c.l.b16 %v616
          %v913 = vunpack.c.h.b16 %v616
          %v914 = vunpack.c.l.b16 %v617
          %v915 = vunpack.c.h.b16 %v617
          %v916 = vunpack.c.l.b16 %v618
          %v917 = vunpack.c.h.b16 %v618
          %v918 = vunpack.c.l.b16 %v619
          %v919 = vunpack.c.h.b16 %v619
          %v920 = vunpack.c.l.b16 %v620
          %v921 = vunpack.c.h.b16 %v620
          %v922 = vunpack.c.l.b16 %v621
          %v923 = vunpack.c.h.b16 %v621
          %v924 = vunpack.c.l.b16 %v622
          %v925 = vunpack.c.h.b16 %v622
          %v926 = vunpack.c.l.b16 %v623
          %v927 = vunpack.c.h.b16 %v623
          %v928 = vunpack.c.l.b16 %v624
          %v929 = vunpack.c.h.b16 %v624
          %v930 = vunpack.c.l.b16 %v625
          %v931 = vunpack.c.h.b16 %v625
          %v932 = vunpack.c.l.b16 %v626
          %v933 = vunpack.c.h.b16 %v626
          %v934 = vunpack.c.l.b16 %v627
          %v935 = vunpack.c.h.b16 %v627
          %v936 = vunpack.c.l.b16 %v628
          %v937 = vunpack.c.h.b16 %v628
          %v938 = vunpack.c.l.b16 %v629
          %v939 = vunpack.c.h.b16 %v629
          %v940 = vunpack.c.l.b16 %v630
          %v941 = vunpack.c.h.b16 %v630
          %v942 = vunpack.c.l.b16 %v631
          %v943 = vunpack.c.h.b16 %v631
          %v944 = vunpack.c.l.b16 %v632
          %v945 = vunpack.c.h.b16 %v632
          %v946 = vunpack.c.l.b16 %v633
          %v947 = vunpack.c.h.b16 %v633
          %v948 = vunpack.c.l.b16 %v634
          %v949 = vunpack.c.h.b16 %v634
          %v950 = vunpack.c.l.b16 %v635
          %v951 = vunpack.c.h.b16 %v635
          %v952 = vunpack.c.l.b16 %v636
          %v953 = vunpack.c.h.b16 %v636
          %v954 = vunpack.c.l.b16 %v637
          %v955 = vunpack.c.h.b16 %v637
          %v956 = vunpack.c.l.b16 %v638
          %v957 = vunpack.c.h.b16 %v638
          %v958 = vunpack.c.l.b16 %v639
          %v959 = vunpack.c.h.b16 %v639
          %v960 = vunpack.c.l.b16 %v640
          %v961 = vunpack.c.h.b16 %v640
          %v962 = vunpack.c.l.b16 %v641
          %v963 = vunpack.c.h.b16 %v641
          %v964 = vunpack.c.l.b16 %v642
          %v965 = vunpack.c.h.b16 %v642
          %v966 = vunpack.c.l.b16 %v643
          %v967 = vunpack.c.h.b16 %v643
          %v968 = vunpack.c.l.b16 %v644
          %v969 = vunpack.c.h.b16 %v644
          %v970 = vunpack.c.l.b16 %v645
          %v971 = vunpack.c.h.b16 %v645
          %v972 = vunpack.c.l.b16 %v646
          %v973 = vunpack.c.h.b16 %v646
          %v974 = vunpack.c.l.b16 %v647
          %v975 = vunpack.c.h.b16 %v647
          %v976 = vunpack.c.l.b16 %v648
          %v977 = vunpack.c.h.b16 %v648
          %v978 = vunpack.c.l.b16 %v649
          %v979 = vunpack.c.h.b16 %v649
          %v980 = vunpack.c.l.b16 %v650
          %v981 = vunpack.c.h.b16 %v650
          %v982 = vunpack.c.l.b16 %v651
          %v983 = vunpack.c.h.b16 %v651
          %v984 = vunpack.c.l.b16 %v652
          %v985 = vunpack.c.h.b16 %v652
          %v986 = vunpack.c.l.b16 %v653
          %v987 = vunpack.c.h.b16 %v653
          %v988 = vunpack.c.l.b16 %v654
          %v989 = vunpack.c.h.b16 %v654
          %v990 = vunpack.c.l.b16 %v655
          %v991 = vunpack.c.h.b16 %v655
          %v992 = vunpack.c.l.b16 %v656
          %v993 = vunpack.c.h.b16 %v656
          %v994 = vunpack.c.l.b16 %v657
          %v995 = vunpack.c.h.b16 %v657
          %v996 = vunpack.c.l.b16 %v658
          %v997 = vunpack.c.h.b16 %v658
          %v998 = vunpack.c.l.b16 %v659
          %v999 = vunpack.c.h.b16 %v659
          %v1000 = vunpack.c.l.b16 %v660
          %v1001 = vunpack.c.h.b16 %v660
          %v1002 = vunpack.c.l.b16 %v661
          %v1003 = vunpack.c.h.b16 %v661
          %v1004 = vunpack.c.l.b16 %v662
          %v1005 = vunpack.c.h.b16 %v662
          %v1006 = vunpack.c.l.b16 %v663
          %v1007 = vunpack.c.h.b16 %v663
          %v1008 = vunpack.c.l.b16 %v664
          %v1009 = vunpack.c.h.b16 %v664
          %v1010 = vunpack.c.l.b16 %v665
          %v1011 = vunpack.c.h.b16 %v665
          %v1012 = vunpack.c.l.b16 %v666
          %v1013 = vunpack.c.h.b16 %v666
          %v1014 = vunpack.c.l.b16 %v667
          %v1015 = vunpack.c.h.b16 %v667
          %v1016 = vpack.c.b16 %v856, %v840
          %v1017 = vpack.c.b16 %v857, %v841
          %v1018 = vpack.c.b16 %v858, %v842
          %v1019 = vpack.c.b16 %v859, %v843
          %v1020 = vpack.c.b16 %v860, %v844
          %v1021 = vpack.c.b16 %v861, %v845
          %v1022 = vpack.c.b16 %v862, %v846
          %v1023 = vpack.c.b16 %v863, %v847
          %v1024 = vpack.c.b16 %v864, %v848
          %v1025 = vpack.c.b16 %v865, %v849
          %v1026 = vpack.c.b16 %v866, %v850
          %v1027 = vpack.c.b16 %v867, %v851
          %v1028 = vpack.c.b16 %v868, %v852
          %v1029 = vpack.c.b16 %v869, %v853
          %v1030 = vpack.c.b16 %v870, %v854
          %v1031 = vpack.c.b16 %v871, %v855
          %v1032 = vpack.c.b16 %v888, %v872
          %v1033 = vpack.c.b16 %v889, %v873
          %v1034 = vpack.c.b16 %v890, %v874
          %v1035 = vpack.c.b16 %v891, %v875
          %v1036 = vpack.c.b16 %v892, %v876
          %v1037 = vpack.c.b16 %v893, %v877
          %v1038 = vpack.c.b16 %v894, %v878
          %v1039 = vpack.c.b16 %v895, %v879
          %v1040 = vpack.c.b16 %v896, %v880
          %v1041 = vpack.c.b16 %v897, %v881
          %v1042 = vpack.c.b16 %v898, %v882
          %v1043 = vpack.c.b16 %v899, %v883
          %v1044 = vpack.c.b16 %v900, %v884
          %v1045 = vpack.c.b16 %v901, %v885
          %v1046 = vpack.c.b16 %v902, %v886
          %v1047 = vpack.c.b16 %v903, %v887
          %v1048 = vpack.c.b16 %v920, %v904
          %v1049 = vpack.c.b16 %v921, %v905
          %v1050 = vpack.c.b16 %v922, %v906
          %v1051 = vpack.c.b16 %v923, %v907
          %v1052 = vpack.c.b16 %v924, %v908
          %v1053 = vpack.c.b16 %v925, %v909
          %v1054 = vpack.c.b16 %v926, %v910
          %v1055 = vpack.c.b16 %v927, %v911
          %v1056 = vpack.c.b16 %v928, %v912
          %v1057 = vpack.c.b16 %v929, %v913
          %v1058 = vpack.c.b16 %v930, %v914
          %v1059 = vpack.c.b16 %v931, %v915
          %v1060 = vpack.c.b16 %v932, %v916
          %v1061 = vpack.c.b16 %v933, %v917
          %v1062 = vpack.c.b16 %v934, %v918
          %v1063 = vpack.c.b16 %v935, %v919
          %v1064 = vpack.c.b16 %v952, %v936
          %v1065 = vpack.c.b16 %v953, %v937
          %v1066 = vpack.c.b16 %v954, %v938
          %v1067 = vpack.c.b16 %v955, %v939
          %v1068 = vpack.c.b16 %v956, %v940
          %v1069 = vpack.c.b16 %v957, %v941
          %v1070 = vpack.c.b16 %v958, %v942
          %v1071 = vpack.c.b16 %v959, %v943
          %v1072 = vpack.c.b16 %v960, %v944
          %v1073 = vpack.c.b16 %v961, %v945
          %v1074 = vpack.c.b16 %v962, %v946
          %v1075 = vpack.c.b16 %v963, %v947
          %v1076 = vpack.c.b16 %v964, %v948
          %v1077 = vpack.c.b16 %v965, %v949
          %v1078 = vpack.c.b16 %v966, %v950
          %v1079 = vpack.c.b16 %v967, %v951
          %v1080 = vpack.c.b16 %v984, %v968
          %v1081 = vpack.c.b16 %v985, %v969
          %v1082 = vpack.c.b16 %v986, %v970
          %v1083 = vpack.c.b16 %v987, %v971
          %v1084 = vpack.c.b16 %v988, %v972
          %v1085 = vpack.c.b16 %v989, %v973
          %v1086 = vpack.c.b16 %v990, %v974
          %v1087 = vpack.c.b16 %v991, %v975
          %v1088 = vpack.c.b16 %v992, %v976
          %v1089 = vpack.c.b16 %v993, %v977
          %v1090 = vpack.c.b16 %v994, %v978
          %v1091 = vpack.c.b16 %v995, %v979
          %v1092 = vpack.c.b16 %v996, %v980
          %v1093 = vpack.c.b16 %v997, %v981
          %v1094 = vpack.c.b16 %v998, %v982
          %v1095 = vpack.c.b16 %v999, %v983
          %v1096 = vpack.c.b16 %v1000, %v1000
          %v1097 = vpack.c.b16 %v1001, %v1001
          %v1098 = vpack.c.b16 %v1002, %v1002
          %v1099 = vpack.c.b16 %v1003, %v1003
          %v1100 = vpack.c.b16 %v1004, %v1004
          %v1101 = vpack.c.b16 %v1005, %v1005
          %v1102 = vpack.c.b16 %v1006, %v1006
          %v1103 = vpack.c.b16 %v1007, %v1007
          %v1104 = vpack.c.b16 %v1008, %v1008
          %v1105 = vpack.c.b16 %v1009, %v1009
          %v1106 = vpack.c.b16 %v1010, %v1010
          %v1107 = vpack.c.b16 %v1011, %v1011
          %v1108 = vpack.c.b16 %v1012, %v1012
          %v1109 = vpack.c.b16 %v1013, %v1013
          %v1110 = vpack.c.b16 %v1014, %v1014
          %v1111 = vpack.c.b16 %v1015, %v1015
          %v1193 = vsel %vm540, %v579, 0
          %vm1195 = vcmask 1043456
          %v1197 = vsel %vm1195, %v1096, 0
          %v1200 = vsel %vm1195, %v1097, 0
          %v1203 = vsel %vm1195, %v1098, 0
          %v1206 = vsel %vm1195, %v1099, 0
          %v1209 = vsel %vm1195, %v1100, 0
          %v1212 = vsel %vm1195, %v1101, 0
          %v1215 = vsel %vm1195, %v1102, 0
          %v1218 = vsel %vm1195, %v1103, 0
          %v1221 = vsel %vm1195, %v1104, 0
          %v1224 = vsel %vm1195, %v1105, 0
          %v1227 = vsel %vm1195, %v1106, 0
          %v1230 = vsel %vm1195, %v1107, 0
          %v1233 = vsel %vm1195, %v1108, 0
          %v1236 = vsel %vm1195, %v1109, 0
          %v1239 = vsel %vm1195, %v1110, 0
          %v1242 = vsel %vm1195, %v1111, 0
          %1244 = vmatprep.subr.bf16.mxu0 %v1017
          %1245 = vmatpush1.bf16.msra.mxu0 %v1016
          %1246 = vmatprep.subr.bf16.mxu0 %v1033
          %1247 = vmatpush1.bf16.msra.mxu0 %v1032
          %1248 = vmatprep.subr.bf16.mxu0 %v1049
          %1249 = vmatpush1.bf16.msra.mxu0 %v1048
          %1250 = vmatprep.subr.bf16.mxu0 %v1065
          %1251 = vmatpush1.bf16.msra.mxu0 %v1064
          %1252 = vmatprep.subr.bf16.mxu0 %v1081
          %1253 = vmatpush1.bf16.msra.mxu0 %v1080
          %1254 = vmatprep.subr.bf16.mxu0 %v1200
          %1255 = vmatpush1.bf16.msra.mxu0 %v1197
          %1256 = vmatprep.subr.bf16.mxu0 0
          %1257 = vmatpush1.bf16.msra.mxu0 0
          %1258 = vmatprep.subr.bf16.mxu0 0
          %1259 = vmatpush1.bf16.msra.mxu0 0
          %1260 = vmatprep.subr.bf16.mxu0 0
          %1261 = vmatpush1.bf16.msra.mxu0 0
          %1262 = vmatprep.subr.bf16.mxu0 0
          %1263 = vmatpush1.bf16.msra.mxu0 0
          %1264 = vmatprep.subr.bf16.mxu0 0
          %1265 = vmatpush1.bf16.msra.mxu0 0
          %1266 = vmatprep.subr.bf16.mxu0 0
          %1267 = vmatpush1.bf16.msra.mxu0 0
          %1268 = vmatprep.subr.bf16.mxu0 0
          %1269 = vmatpush1.bf16.msra.mxu0 0
          %1270 = vmatprep.subr.bf16.mxu0 0
          %1271 = vmatpush1.bf16.msra.mxu0 0
          %1272 = vmatprep.subr.bf16.mxu0 0
          %1273 = vmatpush1.bf16.msra.mxu0 0
          %1274 = vmatprep.subr.bf16.mxu0 0
          %1275 = vmatpush1.bf16.msra.mxu0 0
          %1276 = vmatprep.mubr.bf16.mxu0 0
          %1277 = vmatmul.mubr.bf16.gmra.mrb[0].mxu0 %v1193
          %v1278 = vpop.f32.mrb[0].mxu0
          %v1279 = vadd.f32 %v675, %v1278
          %v1280 = vpop.f32.mrb[0].mxu0
          %v1281 = vadd.f32 %v679, %v1280
          %v1282 = vpop.f32.mrb[0].mxu0
          %v1283 = vpop.f32.mrb[0].mxu0
          %1284 = vdwg.mxu0
          %1285 = vmatprep.subr.bf16.mxu0 %v1019
          %1286 = vmatpush1.bf16.msra.mxu0 %v1018
          %1287 = vmatprep.subr.bf16.mxu0 %v1035
          %1288 = vmatpush1.bf16.msra.mxu0 %v1034
          %1289 = vmatprep.subr.bf16.mxu0 %v1051
          %1290 = vmatpush1.bf16.msra.mxu0 %v1050
          %1291 = vmatprep.subr.bf16.mxu0 %v1067
          %1292 = vmatpush1.bf16.msra.mxu0 %v1066
          %1293 = vmatprep.subr.bf16.mxu0 %v1083
          %1294 = vmatpush1.bf16.msra.mxu0 %v1082
          %1295 = vmatprep.subr.bf16.mxu0 %v1206
          %1296 = vmatpush1.bf16.msra.mxu0 %v1203
          %1297 = vmatprep.subr.bf16.mxu0 0
          %1298 = vmatpush1.bf16.msra.mxu0 0
          %1299 = vmatprep.subr.bf16.mxu0 0
          %1300 = vmatpush1.bf16.msra.mxu0 0
          %1301 = vmatprep.subr.bf16.mxu0 0
          %1302 = vmatpush1.bf16.msra.mxu0 0
          %1303 = vmatprep.subr.bf16.mxu0 0
          %1304 = vmatpush1.bf16.msra.mxu0 0
          %1305 = vmatprep.subr.bf16.mxu0 0
          %1306 = vmatpush1.bf16.msra.mxu0 0
          %1307 = vmatprep.subr.bf16.mxu0 0
          %1308 = vmatpush1.bf16.msra.mxu0 0
          %1309 = vmatprep.subr.bf16.mxu0 0
          %1310 = vmatpush1.bf16.msra.mxu0 0
          %1311 = vmatprep.subr.bf16.mxu0 0
          %1312 = vmatpush1.bf16.msra.mxu0 0
          %1313 = vmatprep.subr.bf16.mxu0 0
          %1314 = vmatpush1.bf16.msra.mxu0 0
          %1315 = vmatprep.subr.bf16.mxu0 0
          %1316 = vmatpush1.bf16.msra.mxu0 0
          %1317 = vmatprep.mubr.bf16.mxu0 0
          %1318 = vmatmul.mubr.bf16.gmra.mrb[0].mxu0 %v1193
          %v1319 = vpop.f32.mrb[0].mxu0
          %v1320 = vadd.f32 %v683, %v1319
          %v1321 = vpop.f32.mrb[0].mxu0
          %v1322 = vadd.f32 %v687, %v1321
          %v1323 = vpop.f32.mrb[0].mxu0
          %v1324 = vpop.f32.mrb[0].mxu0
          %1325 = vdwg.mxu0
          %1326 = vmatprep.subr.bf16.mxu0 %v1021
          %1327 = vmatpush1.bf16.msra.mxu0 %v1020
          %1328 = vmatprep.subr.bf16.mxu0 %v1037
          %1329 = vmatpush1.bf16.msra.mxu0 %v1036
          %1330 = vmatprep.subr.bf16.mxu0 %v1053
          %1331 = vmatpush1.bf16.msra.mxu0 %v1052
          %1332 = vmatprep.subr.bf16.mxu0 %v1069
          %1333 = vmatpush1.bf16.msra.mxu0 %v1068
          %1334 = vmatprep.subr.bf16.mxu0 %v1085
          %1335 = vmatpush1.bf16.msra.mxu0 %v1084
          %1336 = vmatprep.subr.bf16.mxu0 %v1212
          %1337 = vmatpush1.bf16.msra.mxu0 %v1209
          %1338 = vmatprep.subr.bf16.mxu0 0
          %1339 = vmatpush1.bf16.msra.mxu0 0
          %1340 = vmatprep.subr.bf16.mxu0 0
          %1341 = vmatpush1.bf16.msra.mxu0 0
          %1342 = vmatprep.subr.bf16.mxu0 0
          %1343 = vmatpush1.bf16.msra.mxu0 0
          %1344 = vmatprep.subr.bf16.mxu0 0
          %1345 = vmatpush1.bf16.msra.mxu0 0
          %1346 = vmatprep.subr.bf16.mxu0 0
          %1347 = vmatpush1.bf16.msra.mxu0 0
          %1348 = vmatprep.subr.bf16.mxu0 0
          %1349 = vmatpush1.bf16.msra.mxu0 0
          %1350 = vmatprep.subr.bf16.mxu0 0
          %1351 = vmatpush1.bf16.msra.mxu0 0
          %1352 = vmatprep.subr.bf16.mxu0 0
          %1353 = vmatpush1.bf16.msra.mxu0 0
          %1354 = vmatprep.subr.bf16.mxu0 0
          %1355 = vmatpush1.bf16.msra.mxu0 0
          %1356 = vmatprep.subr.bf16.mxu0 0
          %1357 = vmatpush1.bf16.msra.mxu0 0
          %1358 = vmatprep.mubr.bf16.mxu0 0
          %1359 = vmatmul.mubr.bf16.gmra.mrb[0].mxu0 %v1193
          %v1360 = vpop.f32.mrb[0].mxu0
          %v1361 = vadd.f32 %v691, %v1360
          %v1362 = vpop.f32.mrb[0].mxu0
          %v1363 = vadd.f32 %v695, %v1362
          %v1364 = vpop.f32.mrb[0].mxu0
          %v1365 = vpop.f32.mrb[0].mxu0
          %1366 = vdwg.mxu0
          %1367 = vmatprep.subr.bf16.mxu0 %v1023
          %1368 = vmatpush1.bf16.msra.mxu0 %v1022
          %1369 = vmatprep.subr.bf16.mxu0 %v1039
          %1370 = vmatpush1.bf16.msra.mxu0 %v1038
          %1371 = vmatprep.subr.bf16.mxu0 %v1055
          %1372 = vmatpush1.bf16.msra.mxu0 %v1054
          %1373 = vmatprep.subr.bf16.mxu0 %v1071
          %1374 = vmatpush1.bf16.msra.mxu0 %v1070
          %1375 = vmatprep.subr.bf16.mxu0 %v1087
          %1376 = vmatpush1.bf16.msra.mxu0 %v1086
          %1377 = vmatprep.subr.bf16.mxu0 %v1218
          %1378 = vmatpush1.bf16.msra.mxu0 %v1215
          %1379 = vmatprep.subr.bf16.mxu0 0
          %1380 = vmatpush1.bf16.msra.mxu0 0
          %1381 = vmatprep.subr.bf16.mxu0 0
          %1382 = vmatpush1.bf16.msra.mxu0 0
          %1383 = vmatprep.subr.bf16.mxu0 0
          %1384 = vmatpush1.bf16.msra.mxu0 0
          %1385 = vmatprep.subr.bf16.mxu0 0
          %1386 = vmatpush1.bf16.msra.mxu0 0
          %1387 = vmatprep.subr.bf16.mxu0 0
          %1388 = vmatpush1.bf16.msra.mxu0 0
          %1389 = vmatprep.subr.bf16.mxu0 0
          %1390 = vmatpush1.bf16.msra.mxu0 0
          %1391 = vmatprep.subr.bf16.mxu0 0
          %1392 = vmatpush1.bf16.msra.mxu0 0
          %1393 = vmatprep.subr.bf16.mxu0 0
          %1394 = vmatpush1.bf16.msra.mxu0 0
          %1395 = vmatprep.subr.bf16.mxu0 0
          %1396 = vmatpush1.bf16.msra.mxu0 0
          %1397 = vmatprep.subr.bf16.mxu0 0
          %1398 = vmatpush1.bf16.msra.mxu0 0
          %1399 = vmatprep.mubr.bf16.mxu0 0
          %1400 = vmatmul.mubr.bf16.gmra.mrb[0].mxu0 %v1193
          %v1401 = vpop.f32.mrb[0].mxu0
          %v1402 = vadd.f32 %v699, %v1401
          %v1403 = vpop.f32.mrb[0].mxu0
          %v1404 = vadd.f32 %v703, %v1403
          %v1405 = vpop.f32.mrb[0].mxu0
          %v1406 = vpop.f32.mrb[0].mxu0
          %1407 = vdwg.mxu0
          %1408 = vmatprep.subr.bf16.mxu0 %v1025
          %1409 = vmatpush1.bf16.msra.mxu0 %v1024
          %1410 = vmatprep.subr.bf16.mxu0 %v1041
          %1411 = vmatpush1.bf16.msra.mxu0 %v1040
          %1412 = vmatprep.subr.bf16.mxu0 %v1057
          %1413 = vmatpush1.bf16.msra.mxu0 %v1056
          %1414 = vmatprep.subr.bf16.mxu0 %v1073
          %1415 = vmatpush1.bf16.msra.mxu0 %v1072
          %1416 = vmatprep.subr.bf16.mxu0 %v1089
          %1417 = vmatpush1.bf16.msra.mxu0 %v1088
          %1418 = vmatprep.subr.bf16.mxu0 %v1224
          %1419 = vmatpush1.bf16.msra.mxu0 %v1221
          %1420 = vmatprep.subr.bf16.mxu0 0
          %1421 = vmatpush1.bf16.msra.mxu0 0
          %1422 = vmatprep.subr.bf16.mxu0 0
          %1423 = vmatpush1.bf16.msra.mxu0 0
          %1424 = vmatprep.subr.bf16.mxu0 0
          %1425 = vmatpush1.bf16.msra.mxu0 0
          %1426 = vmatprep.subr.bf16.mxu0 0
          %1427 = vmatpush1.bf16.msra.mxu0 0
          %1428 = vmatprep.subr.bf16.mxu0 0
          %1429 = vmatpush1.bf16.msra.mxu0 0
          %1430 = vmatprep.subr.bf16.mxu0 0
          %1431 = vmatpush1.bf16.msra.mxu0 0
          %1432 = vmatprep.subr.bf16.mxu0 0
          %1433 = vmatpush1.bf16.msra.mxu0 0
          %1434 = vmatprep.subr.bf16.mxu0 0
          %1435 = vmatpush1.bf16.msra.mxu0 0
          %1436 = vmatprep.subr.bf16.mxu0 0
          %1437 = vmatpush1.bf16.msra.mxu0 0
          %1438 = vmatprep.subr.bf16.mxu0 0
          %1439 = vmatpush1.bf16.msra.mxu0 0
          %1440 = vmatprep.mubr.bf16.mxu0 0
          %1441 = vmatmul.mubr.bf16.gmra.mrb[0].mxu0 %v1193
          %v1442 = vpop.f32.mrb[0].mxu0
          %v1443 = vadd.f32 %v707, %v1442
          %v1444 = vpop.f32.mrb[0].mxu0
          %v1445 = vadd.f32 %v711, %v1444
          %v1446 = vpop.f32.mrb[0].mxu0
          %v1447 = vpop.f32.mrb[0].mxu0
          %1448 = vdwg.mxu0
          %1449 = vmatprep.subr.bf16.mxu0 %v1027
          %1450 = vmatpush1.bf16.msra.mxu0 %v1026
          %1451 = vmatprep.subr.bf16.mxu0 %v1043
          %1452 = vmatpush1.bf16.msra.mxu0 %v1042
          %1453 = vmatprep.subr.bf16.mxu0 %v1059
          %1454 = vmatpush1.bf16.msra.mxu0 %v1058
          %1455 = vmatprep.subr.bf16.mxu0 %v1075
          %1456 = vmatpush1.bf16.msra.mxu0 %v1074
          %1457 = vmatprep.subr.bf16.mxu0 %v1091
          %1458 = vmatpush1.bf16.msra.mxu0 %v1090
          %1459 = vmatprep.subr.bf16.mxu0 %v1230
          %1460 = vmatpush1.bf16.msra.mxu0 %v1227
          %1461 = vmatprep.subr.bf16.mxu0 0
          %1462 = vmatpush1.bf16.msra.mxu0 0
          %1463 = vmatprep.subr.bf16.mxu0 0
          %1464 = vmatpush1.bf16.msra.mxu0 0
          %1465 = vmatprep.subr.bf16.mxu0 0
          %1466 = vmatpush1.bf16.msra.mxu0 0
          %1467 = vmatprep.subr.bf16.mxu0 0
          %1468 = vmatpush1.bf16.msra.mxu0 0
          %1469 = vmatprep.subr.bf16.mxu0 0
          %1470 = vmatpush1.bf16.msra.mxu0 0
          %1471 = vmatprep.subr.bf16.mxu0 0
          %1472 = vmatpush1.bf16.msra.mxu0 0
          %1473 = vmatprep.subr.bf16.mxu0 0
          %1474 = vmatpush1.bf16.msra.mxu0 0
          %1475 = vmatprep.subr.bf16.mxu0 0
          %1476 = vmatpush1.bf16.msra.mxu0 0
          %1477 = vmatprep.subr.bf16.mxu0 0
          %1478 = vmatpush1.bf16.msra.mxu0 0
          %1479 = vmatprep.subr.bf16.mxu0 0
          %1480 = vmatpush1.bf16.msra.mxu0 0
          %1481 = vmatprep.mubr.bf16.mxu0 0
          %1482 = vmatmul.mubr.bf16.gmra.mrb[0].mxu0 %v1193
          %v1483 = vpop.f32.mrb[0].mxu0
          %v1484 = vadd.f32 %v715, %v1483
          %v1485 = vpop.f32.mrb[0].mxu0
          %v1486 = vadd.f32 %v719, %v1485
          %v1487 = vpop.f32.mrb[0].mxu0
          %v1488 = vpop.f32.mrb[0].mxu0
          %1489 = vdwg.mxu0
          %1490 = vmatprep.subr.bf16.mxu0 %v1029
          %1491 = vmatpush1.bf16.msra.mxu0 %v1028
          %1492 = vmatprep.subr.bf16.mxu0 %v1045
          %1493 = vmatpush1.bf16.msra.mxu0 %v1044
          %1494 = vmatprep.subr.bf16.mxu0 %v1061
          %1495 = vmatpush1.bf16.msra.mxu0 %v1060
          %1496 = vmatprep.subr.bf16.mxu0 %v1077
          %1497 = vmatpush1.bf16.msra.mxu0 %v1076
          %1498 = vmatprep.subr.bf16.mxu0 %v1093
          %1499 = vmatpush1.bf16.msra.mxu0 %v1092
          %1500 = vmatprep.subr.bf16.mxu0 %v1236
          %1501 = vmatpush1.bf16.msra.mxu0 %v1233
          %1502 = vmatprep.subr.bf16.mxu0 0
          %1503 = vmatpush1.bf16.msra.mxu0 0
          %1504 = vmatprep.subr.bf16.mxu0 0
          %1505 = vmatpush1.bf16.msra.mxu0 0
          %1506 = vmatprep.subr.bf16.mxu0 0
          %1507 = vmatpush1.bf16.msra.mxu0 0
          %1508 = vmatprep.subr.bf16.mxu0 0
          %1509 = vmatpush1.bf16.msra.mxu0 0
          %1510 = vmatprep.subr.bf16.mxu0 0
          %1511 = vmatpush1.bf16.msra.mxu0 0
          %1512 = vmatprep.subr.bf16.mxu0 0
          %1513 = vmatpush1.bf16.msra.mxu0 0
          %1514 = vmatprep.subr.bf16.mxu0 0
          %1515 = vmatpush1.bf16.msra.mxu0 0
          %1516 = vmatprep.subr.bf16.mxu0 0
          %1517 = vmatpush1.bf16.msra.mxu0 0
          %1518 = vmatprep.subr.bf16.mxu0 0
          %1519 = vmatpush1.bf16.msra.mxu0 0
          %1520 = vmatprep.subr.bf16.mxu0 0
          %1521 = vmatpush1.bf16.msra.mxu0 0
          %1522 = vmatprep.mubr.bf16.mxu0 0
          %1523 = vmatmul.mubr.bf16.gmra.mrb[0].mxu0 %v1193
          %v1524 = vpop.f32.mrb[0].mxu0
          %v1525 = vadd.f32 %v723, %v1524
          %v1526 = vpop.f32.mrb[0].mxu0
          %v1527 = vadd.f32 %v727, %v1526
          %v1528 = vpop.f32.mrb[0].mxu0
          %v1529 = vpop.f32.mrb[0].mxu0
          %1530 = vdwg.mxu0
          %1531 = vmatprep.subr.bf16.mxu0 %v1031
          %1532 = vmatpush1.bf16.msra.mxu0 %v1030
          %1533 = vmatprep.subr.bf16.mxu0 %v1047
          %1534 = vmatpush1.bf16.msra.mxu0 %v1046
          %1535 = vmatprep.subr.bf16.mxu0 %v1063
          %1536 = vmatpush1.bf16.msra.mxu0 %v1062
          %1537 = vmatprep.subr.bf16.mxu0 %v1079
          %1538 = vmatpush1.bf16.msra.mxu0 %v1078
          %1539 = vmatprep.subr.bf16.mxu0 %v1095
          %1540 = vmatpush1.bf16.msra.mxu0 %v1094
          %1541 = vmatprep.subr.bf16.mxu0 %v1242
          %1542 = vmatpush1.bf16.msra.mxu0 %v1239
          %1543 = vmatprep.subr.bf16.mxu0 0
          %1544 = vmatpush1.bf16.msra.mxu0 0
          %1545 = vmatprep.subr.bf16.mxu0 0
          %1546 = vmatpush1.bf16.msra.mxu0 0
          %1547 = vmatprep.subr.bf16.mxu0 0
          %1548 = vmatpush1.bf16.msra.mxu0 0
          %1549 = vmatprep.subr.bf16.mxu0 0
          %1550 = vmatpush1.bf16.msra.mxu0 0
          %1551 = vmatprep.subr.bf16.mxu0 0
          %1552 = vmatpush1.bf16.msra.mxu0 0
          %1553 = vmatprep.subr.bf16.mxu0 0
          %1554 = vmatpush1.bf16.msra.mxu0 0
          %1555 = vmatprep.subr.bf16.mxu0 0
          %1556 = vmatpush1.bf16.msra.mxu0 0
          %1557 = vmatprep.subr.bf16.mxu0 0
          %1558 = vmatpush1.bf16.msra.mxu0 0
          %1559 = vmatprep.subr.bf16.mxu0 0
          %1560 = vmatpush1.bf16.msra.mxu0 0
          %1561 = vmatprep.subr.bf16.mxu0 0
          %1562 = vmatpush1.bf16.msra.mxu0 0
          %1563 = vmatprep.mubr.bf16.mxu0 0
          %1564 = vmatmul.mubr.bf16.gmra.mrb[0].mxu0 %v1193
          %v1565 = vpop.f32.mrb[0].mxu0
          %v1566 = vadd.f32 %v731, %v1565
          %v1567 = vpop.f32.mrb[0].mxu0
          %v1568 = vadd.f32 %v735, %v1567
          %v1569 = vpop.f32.mrb[0].mxu0
          %v1570 = vpop.f32.mrb[0].mxu0
          %1571 = vdwg.mxu0
          %v1572 = vmax.f32 %v1279, 0.0
          %v1573 = vmax.f32 %v1281, 0.0
          %v1574 = vmax.f32 %v1320, 0.0
          %v1575 = vmax.f32 %v1322, 0.0
          %v1576 = vmax.f32 %v1361, 0.0
          %v1577 = vmax.f32 %v1363, 0.0
          %v1578 = vmax.f32 %v1402, 0.0
          %v1579 = vmax.f32 %v1404, 0.0
          %v1580 = vmax.f32 %v1443, 0.0
          %v1581 = vmax.f32 %v1445, 0.0
          %v1582 = vmax.f32 %v1484, 0.0
          %v1583 = vmax.f32 %v1486, 0.0
          %v1584 = vmax.f32 %v1525, 0.0
          %v1585 = vmax.f32 %v1527, 0.0
          %v1586 = vmax.f32 %v1566, 0.0
          %v1587 = vmax.f32 %v1568, 0.0
          %v1588 = vpack.c.bf16 %v1572, %v1572
          %v1589 = vpack.c.bf16 %v1573, %v1573
          %v1590 = vpack.c.bf16 %v1574, %v1574
          %v1591 = vpack.c.bf16 %v1575, %v1575
          %v1592 = vpack.c.bf16 %v1576, %v1576
          %v1593 = vpack.c.bf16 %v1577, %v1577
          %v1594 = vpack.c.bf16 %v1578, %v1578
          %v1595 = vpack.c.bf16 %v1579, %v1579
          %v1596 = vpack.c.bf16 %v1580, %v1580
          %v1597 = vpack.c.bf16 %v1581, %v1581
          %v1598 = vpack.c.bf16 %v1582, %v1582
          %v1599 = vpack.c.bf16 %v1583, %v1583
          %v1600 = vpack.c.bf16 %v1584, %v1584
          %v1601 = vpack.c.bf16 %v1585, %v1585
          %v1602 = vpack.c.bf16 %v1586, %v1586
          %v1603 = vpack.c.bf16 %v1587, %v1587
          %v1620 = vunpack.c.l.b16 %v1588
          %v1621 = vunpack.c.l.b16 %v1589
          %v1622 = vunpack.c.l.b16 %v1590
          %v1623 = vunpack.c.l.b16 %v1591
          %v1624 = vunpack.c.l.b16 %v1592
          %v1625 = vunpack.c.l.b16 %v1593
          %v1626 = vunpack.c.l.b16 %v1594
          %v1627 = vunpack.c.l.b16 %v1595
          %v1628 = vunpack.c.l.b16 %v1596
          %v1629 = vunpack.c.l.b16 %v1597
          %v1630 = vunpack.c.l.b16 %v1598
          %v1631 = vunpack.c.l.b16 %v1599
          %v1632 = vunpack.c.l.b16 %v1600
          %v1633 = vunpack.c.l.b16 %v1601
          %v1634 = vunpack.c.l.b16 %v1602
          %v1635 = vunpack.c.l.b16 %v1603
          %v1636 = vpack.c.b16 %v1621, %v1620
          %v1637 = vpack.c.b16 %v1623, %v1622
          %v1638 = vpack.c.b16 %v1625, %v1624
          %v1639 = vpack.c.b16 %v1627, %v1626
          %v1640 = vpack.c.b16 %v1629, %v1628
          %v1641 = vpack.c.b16 %v1631, %v1630
          %v1642 = vpack.c.b16 %v1633, %v1632
          %v1643 = vpack.c.b16 %v1635, %v1634
          %1652 = vst [vmem:[#allocation2] sm:$0xff] %v1636
          %1653 = vst [vmem:[#allocation2 + $0x8] sm:$0xff] %v1637
          %1654 = vst [vmem:[#allocation2 + $0x10] sm:$0xff] %v1638
          %1655 = vst [vmem:[#allocation2 + $0x18] sm:$0xff] %v1639
          %1656 = vst [vmem:[#allocation2 + $0x20] sm:$0xff] %v1640
          %1657 = vst [vmem:[#allocation2 + $0x28] sm:$0xff] %v1641
          %1658 = vst [vmem:[#allocation2 + $0x30] sm:$0xff] %v1642
          %1659 = vst [vmem:[#allocation2 + $0x38] sm:$0xff] %v1643
          %1660 = vst [vmem:[#allocation18] sm:$0xff] 0.0
        $region96: #{tpu_custom_call.1} parent=55 // pred_fallthru
          _
        %v1661 = vld [vmem:[#allocation2] sm:$0xff]
        %v1662 = vld [vmem:[#allocation2 + $0x8] sm:$0xff]
        %v1663 = vld [vmem:[#allocation2 + $0x10] sm:$0xff]
        %v1664 = vld [vmem:[#allocation2 + $0x18] sm:$0xff]
        %v1665 = vld [vmem:[#allocation2 + $0x20] sm:$0xff]
        %v1666 = vld [vmem:[#allocation2 + $0x28] sm:$0xff]
        %v1667 = vld [vmem:[#allocation2 + $0x30] sm:$0xff]
        %v1668 = vld [vmem:[#allocation2 + $0x38] sm:$0xff]
        %v1669 = vld [vmem:[%s464] sm:$0xff]
        %v1670 = vld [vmem:[%s464 + $0x8] sm:$0xff]
        %v1671 = vld [vmem:[%s464 + $0x10] sm:$0xff]
        %v1672 = vld [vmem:[%s464 + $0x18] sm:$0xff]
        %v1673 = vld [vmem:[%s464 + $0x20] sm:$0xff]
        %v1674 = vld [vmem:[%s464 + $0x28] sm:$0xff]
        %v1675 = vld [vmem:[%s464 + $0x30] sm:$0xff]
        %v1676 = vld [vmem:[%s464 + $0x38] sm:$0xff]
        %v1677 = vld [vmem:[%s464 + $0x40] sm:$0xff]
        %v1678 = vld [vmem:[%s464 + $0x48] sm:$0xff]
        %v1679 = vld [vmem:[%s464 + $0x50] sm:$0xff]
        %v1680 = vld [vmem:[%s464 + $0x58] sm:$0xff]
        %v1681 = vld [vmem:[%s464 + $0x60] sm:$0xff]
        %v1682 = vld [vmem:[%s464 + $0x68] sm:$0xff]
        %v1683 = vld [vmem:[%s464 + $0x70] sm:$0xff]
        %v1684 = vld [vmem:[%s464 + $0x78] sm:$0xff]
        %v1685 = vld [vmem:[%s464 + $0x80] sm:$0xff]
        %v1686 = vld [vmem:[%s464 + $0x88] sm:$0xff]
        %v1687 = vld [vmem:[%s464 + $0x90] sm:$0xff]
        %v1688 = vld [vmem:[%s464 + $0x98] sm:$0xff]
        %v1689 = vld [vmem:[%s464 + $0xa0] sm:$0xff]
        %v1690 = vld [vmem:[%s464 + $0xa8] sm:$0xff]
        %v1691 = vld [vmem:[%s464 + $0xb0] sm:$0xff]
        %v1692 = vld [vmem:[%s464 + $0xb8] sm:$0xff]
        %v1693 = vld [vmem:[%s464 + $0xc0] sm:$0xff]
        %v1694 = vld [vmem:[%s464 + $0xc8] sm:$0xff]
        %v1695 = vld [vmem:[%s464 + $0xd0] sm:$0xff]
        %v1696 = vld [vmem:[%s464 + $0xd8] sm:$0xff]
        %v1697 = vld [vmem:[%s464 + $0xe0] sm:$0xff]
        %v1698 = vld [vmem:[%s464 + $0xe8] sm:$0xff]
        %v1699 = vld [vmem:[%s464 + $0xf0] sm:$0xff]
        %v1700 = vld [vmem:[%s464 + $0xf8] sm:$0xff]
        %v1701 = vld [vmem:[%s464 + $0x100] sm:$0xff]
        %v1702 = vld [vmem:[%s464 + $0x108] sm:$0xff]
        %v1703 = vld [vmem:[%s464 + $0x110] sm:$0xff]
        %v1704 = vld [vmem:[%s464 + $0x118] sm:$0xff]
        %v1705 = vld [vmem:[%s464 + $0x120] sm:$0xff]
        %v1706 = vld [vmem:[%s464 + $0x128] sm:$0xff]
        %v1707 = vld [vmem:[%s464 + $0x130] sm:$0xff]
        %v1708 = vld [vmem:[%s464 + $0x138] sm:$0xff]
        %v1709 = vld [vmem:[%s464 + $0x140] sm:$0xff]
        %v1710 = vld [vmem:[%s464 + $0x148] sm:$0xff]
        %v1711 = vld [vmem:[%s464 + $0x150] sm:$0xff]
        %v1712 = vld [vmem:[%s464 + $0x158] sm:$0xff]
        %v1713 = vld [vmem:[%s464 + $0x160] sm:$0xff]
        %v1714 = vld [vmem:[%s464 + $0x168] sm:$0xff]
        %v1715 = vld [vmem:[%s464 + $0x170] sm:$0xff]
        %v1716 = vld [vmem:[%s464 + $0x178] sm:$0xff]
        %v1717 = vld [vmem:[%s464 + $0x180] sm:$0xff]
        %v1718 = vld [vmem:[%s464 + $0x188] sm:$0xff]
        %v1719 = vld [vmem:[%s464 + $0x190] sm:$0xff]
        %v1720 = vld [vmem:[%s464 + $0x198] sm:$0xff]
        %v1721 = vld [vmem:[%s464 + $0x1a0] sm:$0xff]
        %v1722 = vld [vmem:[%s464 + $0x1a8] sm:$0xff]
        %v1723 = vld [vmem:[%s464 + $0x1b0] sm:$0xff]
        %v1724 = vld [vmem:[%s464 + $0x1b8] sm:$0xff]
        %v1725 = vld [vmem:[%s464 + $0x1c0] sm:$0xff]
        %v1726 = vld [vmem:[%s464 + $0x1c8] sm:$0xff]
        %v1727 = vld [vmem:[%s464 + $0x1d0] sm:$0xff]
        %v1728 = vld [vmem:[%s464 + $0x1d8] sm:$0xff]
        %v1729 = vld [vmem:[%s464 + $0x1e0] sm:$0xff]
        %v1730 = vld [vmem:[%s464 + $0x1e8] sm:$0xff]
        %v1731 = vld [vmem:[%s464 + $0x1f0] sm:$0xff]
        %v1732 = vld [vmem:[%s464 + $0x1f8] sm:$0xff]
        %v1733 = vld [vmem:[%s464 + $0x200] sm:$0xff]
        %v1734 = vld [vmem:[%s464 + $0x208] sm:$0xff]
        %v1735 = vld [vmem:[%s464 + $0x210] sm:$0xff]
        %v1736 = vld [vmem:[%s464 + $0x218] sm:$0xff]
        %v1737 = vld [vmem:[%s464 + $0x220] sm:$0xff]
        %v1738 = vld [vmem:[%s464 + $0x228] sm:$0xff]
        %v1739 = vld [vmem:[%s464 + $0x230] sm:$0xff]
        %v1740 = vld [vmem:[%s464 + $0x238] sm:$0xff]
        %v1741 = vld [vmem:[%s464 + $0x240] sm:$0xff]
        %v1742 = vld [vmem:[%s464 + $0x248] sm:$0xff]
        %v1743 = vld [vmem:[%s464 + $0x250] sm:$0xff]
        %v1744 = vld [vmem:[%s464 + $0x258] sm:$0xff]
        %v1745 = vld [vmem:[%s464 + $0x260] sm:$0xff]
        %v1746 = vld [vmem:[%s464 + $0x268] sm:$0xff]
        %v1747 = vld [vmem:[%s464 + $0x270] sm:$0xff]
        %v1748 = vld [vmem:[%s464 + $0x278] sm:$0xff]
        %v1749 = vld [vmem:[%s464 + $0x280] sm:$0xff]
        %v1750 = vld [vmem:[%s464 + $0x288] sm:$0xff]
        %v1751 = vld [vmem:[%s464 + $0x290] sm:$0xff]
        %v1752 = vld [vmem:[%s464 + $0x298] sm:$0xff]
        %v1753 = vld [vmem:[%s464 + $0x2a0] sm:$0xff]
        %v1754 = vld [vmem:[%s464 + $0x2a8] sm:$0xff]
        %v1755 = vld [vmem:[%s464 + $0x2b0] sm:$0xff]
        %v1756 = vld [vmem:[%s464 + $0x2b8] sm:$0xff]
        %v1757 = vld [vmem:[%s464 + $0x2c0] sm:$0xff]
        %v1758 = vld [vmem:[%s464 + $0x2c8] sm:$0xff]
        %v1759 = vld [vmem:[%s464 + $0x2d0] sm:$0xff]
        %v1760 = vld [vmem:[%s464 + $0x2d8] sm:$0xff]
        %v1761 = vld [vmem:[%s464 + $0x2e0] sm:$0xff]
        %v1762 = vld [vmem:[%s464 + $0x2e8] sm:$0xff]
        %v1763 = vld [vmem:[%s464 + $0x2f0] sm:$0xff]
        %v1764 = vld [vmem:[%s464 + $0x2f8] sm:$0xff]
        %v1765 = vld [vmem:[%s464 + $0x300] sm:$0xff]
        %v1766 = vld [vmem:[%s464 + $0x308] sm:$0xff]
        %v1767 = vld [vmem:[%s464 + $0x310] sm:$0xff]
        %v1768 = vld [vmem:[%s464 + $0x318] sm:$0xff]
        %v1769 = vld [vmem:[%s464 + $0x320] sm:$0xff]
        %v1770 = vld [vmem:[%s464 + $0x328] sm:$0xff]
        %v1771 = vld [vmem:[%s464 + $0x330] sm:$0xff]
        %v1772 = vld [vmem:[%s464 + $0x338] sm:$0xff]
        %v1773 = vld [vmem:[%s464 + $0x340] sm:$0xff]
        %v1774 = vld [vmem:[%s464 + $0x348] sm:$0xff]
        %v1775 = vld [vmem:[%s464 + $0x350] sm:$0xff]
        %v1776 = vld [vmem:[%s464 + $0x358] sm:$0xff]
        %v1777 = vld [vmem:[%s464 + $0x360] sm:$0xff]
        %v1778 = vld [vmem:[%s464 + $0x368] sm:$0xff]
        %v1779 = vld [vmem:[%s464 + $0x370] sm:$0xff]
        %v1780 = vld [vmem:[%s464 + $0x378] sm:$0xff]
        %v1781 = vld [vmem:[%s464 + $0x380] sm:$0xff]
        %v1782 = vld [vmem:[%s464 + $0x388] sm:$0xff]
        %v1783 = vld [vmem:[%s464 + $0x390] sm:$0xff]
        %v1784 = vld [vmem:[%s464 + $0x398] sm:$0xff]
        %v1785 = vld [vmem:[%s464 + $0x3a0] sm:$0xff]
        %v1786 = vld [vmem:[%s464 + $0x3a8] sm:$0xff]
        %v1787 = vld [vmem:[%s464 + $0x3b0] sm:$0xff]
        %v1788 = vld [vmem:[%s464 + $0x3b8] sm:$0xff]
        %v1789 = vld [vmem:[%s464 + $0x3c0] sm:$0xff]
        %v1790 = vld [vmem:[%s464 + $0x3c8] sm:$0xff]
        %v1791 = vld [vmem:[%s464 + $0x3d0] sm:$0xff]
        %v1792 = vld [vmem:[%s464 + $0x3d8] sm:$0xff]
        %v1793 = vld [vmem:[%s464 + $0x3e0] sm:$0xff]
        %v1794 = vld [vmem:[%s464 + $0x3e8] sm:$0xff]
        %v1795 = vld [vmem:[%s464 + $0x3f0] sm:$0xff]
        %v1796 = vld [vmem:[%s464 + $0x3f8] sm:$0xff]
        %v1797 = vld [vmem:[%s464 + $0x400] sm:$0xff]
        %v1798 = vld [vmem:[%s464 + $0x408] sm:$0xff]
        %v1799 = vld [vmem:[%s464 + $0x410] sm:$0xff]
        %v1800 = vld [vmem:[%s464 + $0x418] sm:$0xff]
        %v1801 = vld [vmem:[%s464 + $0x420] sm:$0xff]
        %v1802 = vld [vmem:[%s464 + $0x428] sm:$0xff]
        %v1803 = vld [vmem:[%s464 + $0x430] sm:$0xff]
        %v1804 = vld [vmem:[%s464 + $0x438] sm:$0xff]
        %v1805 = vld [vmem:[%s464 + $0x440] sm:$0xff]
        %v1806 = vld [vmem:[%s464 + $0x448] sm:$0xff]
        %v1807 = vld [vmem:[%s464 + $0x450] sm:$0xff]
        %v1808 = vld [vmem:[%s464 + $0x458] sm:$0xff]
        %v1809 = vld [vmem:[%s464 + $0x460] sm:$0xff]
        %v1810 = vld [vmem:[%s464 + $0x468] sm:$0xff]
        %v1811 = vld [vmem:[%s464 + $0x470] sm:$0xff]
        %v1812 = vld [vmem:[%s464 + $0x478] sm:$0xff]
        %v1813 = vld [vmem:[%s464 + $0x480] sm:$0xff]
        %v1814 = vld [vmem:[%s464 + $0x488] sm:$0xff]
        %v1815 = vld [vmem:[%s464 + $0x490] sm:$0xff]
        %v1816 = vld [vmem:[%s464 + $0x498] sm:$0xff]
        %v1817 = vld [vmem:[%s464 + $0x4a0] sm:$0xff]
        %v1818 = vld [vmem:[%s464 + $0x4a8] sm:$0xff]
        %v1819 = vld [vmem:[%s464 + $0x4b0] sm:$0xff]
        %v1820 = vld [vmem:[%s464 + $0x4b8] sm:$0xff]
        %v1821 = vld [vmem:[%s464 + $0x4c0] sm:$0xff]
        %v1822 = vld [vmem:[%s464 + $0x4c8] sm:$0xff]
        %v1823 = vld [vmem:[%s464 + $0x4d0] sm:$0xff]
        %v1824 = vld [vmem:[%s464 + $0x4d8] sm:$0xff]
        %v1825 = vld [vmem:[%s464 + $0x4e0] sm:$0xff]
        %v1826 = vld [vmem:[%s464 + $0x4e8] sm:$0xff]
        %v1827 = vld [vmem:[%s464 + $0x4f0] sm:$0xff]
        %v1828 = vld [vmem:[%s464 + $0x4f8] sm:$0xff]
        %v1829 = vld [vmem:[%s464 + $0x500] sm:$0xff]
        %v1830 = vld [vmem:[%s464 + $0x508] sm:$0xff]
        %v1831 = vld [vmem:[%s464 + $0x510] sm:$0xff]
        %v1832 = vld [vmem:[%s464 + $0x518] sm:$0xff]
        %v1833 = vld [vmem:[%s464 + $0x520] sm:$0xff]
        %v1834 = vld [vmem:[%s464 + $0x528] sm:$0xff]
        %v1835 = vld [vmem:[%s464 + $0x530] sm:$0xff]
        %v1836 = vld [vmem:[%s464 + $0x538] sm:$0xff]
        %v1837 = vld [vmem:[%s464 + $0x540] sm:$0xff]
        %v1838 = vld [vmem:[%s464 + $0x548] sm:$0xff]
        %v1839 = vld [vmem:[%s464 + $0x550] sm:$0xff]
        %v1840 = vld [vmem:[%s464 + $0x558] sm:$0xff]
        %v1841 = vld [vmem:[%s464 + $0x560] sm:$0xff]
        %v1842 = vld [vmem:[%s464 + $0x568] sm:$0xff]
        %v1843 = vld [vmem:[%s464 + $0x570] sm:$0xff]
        %v1844 = vld [vmem:[%s464 + $0x578] sm:$0xff]
        %v1845 = vld [vmem:[%s464 + $0x580] sm:$0xff]
        %v1846 = vld [vmem:[%s464 + $0x588] sm:$0xff]
        %v1847 = vld [vmem:[%s464 + $0x590] sm:$0xff]
        %v1848 = vld [vmem:[%s464 + $0x598] sm:$0xff]
        %v1849 = vld [vmem:[%s464 + $0x5a0] sm:$0xff]
        %v1850 = vld [vmem:[%s464 + $0x5a8] sm:$0xff]
        %v1851 = vld [vmem:[%s464 + $0x5b0] sm:$0xff]
        %v1852 = vld [vmem:[%s464 + $0x5b8] sm:$0xff]
        %v1853 = vld [vmem:[%s464 + $0x5c0] sm:$0xff]
        %v1854 = vld [vmem:[%s464 + $0x5c8] sm:$0xff]
        %v1855 = vld [vmem:[%s464 + $0x5d0] sm:$0xff]
        %v1856 = vld [vmem:[%s464 + $0x5d8] sm:$0xff]
        %v1857 = vld [vmem:[%s464 + $0x5e0] sm:$0xff]
        %v1858 = vld [vmem:[%s464 + $0x5e8] sm:$0xff]
        %v1859 = vld [vmem:[%s464 + $0x5f0] sm:$0xff]
        %v1860 = vld [vmem:[%s464 + $0x5f8] sm:$0xff]
        %v1861 = vld [vmem:[%s464 + $0x600] sm:$0xff]
        %v1862 = vld [vmem:[%s464 + $0x608] sm:$0xff]
        %v1863 = vld [vmem:[%s464 + $0x610] sm:$0xff]
        %v1864 = vld [vmem:[%s464 + $0x618] sm:$0xff]
        %v1865 = vld [vmem:[%s464 + $0x620] sm:$0xff]
        %v1866 = vld [vmem:[%s464 + $0x628] sm:$0xff]
        %v1867 = vld [vmem:[%s464 + $0x630] sm:$0xff]
        %v1868 = vld [vmem:[%s464 + $0x638] sm:$0xff]
        %v1869 = vld [vmem:[%s464 + $0x640] sm:$0xff]
        %v1870 = vld [vmem:[%s464 + $0x648] sm:$0xff]
        %v1871 = vld [vmem:[%s464 + $0x650] sm:$0xff]
        %v1872 = vld [vmem:[%s464 + $0x658] sm:$0xff]
        %v1873 = vld [vmem:[%s464 + $0x660] sm:$0xff]
        %v1874 = vld [vmem:[%s464 + $0x668] sm:$0xff]
        %v1875 = vld [vmem:[%s464 + $0x670] sm:$0xff]
        %v1876 = vld [vmem:[%s464 + $0x678] sm:$0xff]
        %v1877 = vld [vmem:[%s464 + $0x680] sm:$0xff]
        %v1878 = vld [vmem:[%s464 + $0x688] sm:$0xff]
        %v1879 = vld [vmem:[%s464 + $0x690] sm:$0xff]
        %v1880 = vld [vmem:[%s464 + $0x698] sm:$0xff]
        %v1881 = vld [vmem:[%s464 + $0x6a0] sm:$0xff]
        %v1882 = vld [vmem:[%s464 + $0x6a8] sm:$0xff]
        %v1883 = vld [vmem:[%s464 + $0x6b0] sm:$0xff]
        %v1884 = vld [vmem:[%s464 + $0x6b8] sm:$0xff]
        %v1885 = vld [vmem:[%s464 + $0x6c0] sm:$0xff]
        %v1886 = vld [vmem:[%s464 + $0x6c8] sm:$0xff]
        %v1887 = vld [vmem:[%s464 + $0x6d0] sm:$0xff]
        %v1888 = vld [vmem:[%s464 + $0x6d8] sm:$0xff]
        %v1889 = vld [vmem:[%s464 + $0x6e0] sm:$0xff]
        %v1890 = vld [vmem:[%s464 + $0x6e8] sm:$0xff]
        %v1891 = vld [vmem:[%s464 + $0x6f0] sm:$0xff]
        %v1892 = vld [vmem:[%s464 + $0x6f8] sm:$0xff]
        %v1893 = vld [vmem:[%s464 + $0x700] sm:$0xff]
        %v1894 = vld [vmem:[%s464 + $0x708] sm:$0xff]
        %v1895 = vld [vmem:[%s464 + $0x710] sm:$0xff]
        %v1896 = vld [vmem:[%s464 + $0x718] sm:$0xff]
        %v1897 = vld [vmem:[%s464 + $0x720] sm:$0xff]
        %v1898 = vld [vmem:[%s464 + $0x728] sm:$0xff]
        %v1899 = vld [vmem:[%s464 + $0x730] sm:$0xff]
        %v1900 = vld [vmem:[%s464 + $0x738] sm:$0xff]
        %v1901 = vld [vmem:[%s464 + $0x740] sm:$0xff]
        %v1902 = vld [vmem:[%s464 + $0x748] sm:$0xff]
        %v1903 = vld [vmem:[%s464 + $0x750] sm:$0xff]
        %v1904 = vld [vmem:[%s464 + $0x758] sm:$0xff]
        %v1905 = vld [vmem:[%s464 + $0x760] sm:$0xff]
        %v1906 = vld [vmem:[%s464 + $0x768] sm:$0xff]
        %v1907 = vld [vmem:[%s464 + $0x770] sm:$0xff]
        %v1908 = vld [vmem:[%s464 + $0x778] sm:$0xff]
        %v1909 = vld [vmem:[%s464 + $0x780] sm:$0xff]
        %v1910 = vld [vmem:[%s464 + $0x788] sm:$0xff]
        %v1911 = vld [vmem:[%s464 + $0x790] sm:$0xff]
        %v1912 = vld [vmem:[%s464 + $0x798] sm:$0xff]
        %v1913 = vld [vmem:[%s464 + $0x7a0] sm:$0xff]
        %v1914 = vld [vmem:[%s464 + $0x7a8] sm:$0xff]
        %v1915 = vld [vmem:[%s464 + $0x7b0] sm:$0xff]
        %v1916 = vld [vmem:[%s464 + $0x7b8] sm:$0xff]
        %v1917 = vld [vmem:[%s464 + $0x7c0] sm:$0xff]
        %v1918 = vld [vmem:[%s464 + $0x7c8] sm:$0xff]
        %v1919 = vld [vmem:[%s464 + $0x7d0] sm:$0xff]
        %v1920 = vld [vmem:[%s464 + $0x7d8] sm:$0xff]
        %v1921 = vld [vmem:[%s464 + $0x7e0] sm:$0xff]
        %v1922 = vld [vmem:[%s464 + $0x7e8] sm:$0xff]
        %v1923 = vld [vmem:[%s464 + $0x7f0] sm:$0xff]
        %v1924 = vld [vmem:[%s464 + $0x7f8] sm:$0xff]
        %v1925 = vld [vmem:[%s464 + $0x800] sm:$0xff]
        %v1926 = vld [vmem:[%s464 + $0x808] sm:$0xff]
        %v1927 = vld [vmem:[%s464 + $0x810] sm:$0xff]
        %v1928 = vld [vmem:[%s464 + $0x818] sm:$0xff]
        %v1929 = vld [vmem:[%s464 + $0x820] sm:$0xff]
        %v1930 = vld [vmem:[%s464 + $0x828] sm:$0xff]
        %v1931 = vld [vmem:[%s464 + $0x830] sm:$0xff]
        %v1932 = vld [vmem:[%s464 + $0x838] sm:$0xff]
        %v1933 = vld [vmem:[%s464 + $0x840] sm:$0xff]
        %v1934 = vld [vmem:[%s464 + $0x848] sm:$0xff]
        %v1935 = vld [vmem:[%s464 + $0x850] sm:$0xff]
        %v1936 = vld [vmem:[%s464 + $0x858] sm:$0xff]
        %v1937 = vld [vmem:[%s464 + $0x860] sm:$0xff]
        %v1938 = vld [vmem:[%s464 + $0x868] sm:$0xff]
        %v1939 = vld [vmem:[%s464 + $0x870] sm:$0xff]
        %v1940 = vld [vmem:[%s464 + $0x878] sm:$0xff]
        %v1941 = vld [vmem:[%s464 + $0x880] sm:$0xff]
        %v1942 = vld [vmem:[%s464 + $0x888] sm:$0xff]
        %v1943 = vld [vmem:[%s464 + $0x890] sm:$0xff]
        %v1944 = vld [vmem:[%s464 + $0x898] sm:$0xff]
        %v1945 = vld [vmem:[%s464 + $0x8a0] sm:$0xff]
        %v1946 = vld [vmem:[%s464 + $0x8a8] sm:$0xff]
        %v1947 = vld [vmem:[%s464 + $0x8b0] sm:$0xff]
        %v1948 = vld [vmem:[%s464 + $0x8b8] sm:$0xff]
        %v1949 = vld [vmem:[%s464 + $0x8c0] sm:$0xff]
        %v1950 = vld [vmem:[%s464 + $0x8c8] sm:$0xff]
        %v1951 = vld [vmem:[%s464 + $0x8d0] sm:$0xff]
        %v1952 = vld [vmem:[%s464 + $0x8d8] sm:$0xff]
        %v1953 = vld [vmem:[%s464 + $0x8e0] sm:$0xff]
        %v1954 = vld [vmem:[%s464 + $0x8e8] sm:$0xff]
        %v1955 = vld [vmem:[%s464 + $0x8f0] sm:$0xff]
        %v1956 = vld [vmem:[%s464 + $0x8f8] sm:$0xff]
        %v1957 = vld [vmem:[%s464 + $0x900] sm:$0xff]
        %v1958 = vld [vmem:[%s464 + $0x908] sm:$0xff]
        %v1959 = vld [vmem:[%s464 + $0x910] sm:$0xff]
        %v1960 = vld [vmem:[%s464 + $0x918] sm:$0xff]
        %v1961 = vld [vmem:[%s464 + $0x920] sm:$0xff]
        %v1962 = vld [vmem:[%s464 + $0x928] sm:$0xff]
        %v1963 = vld [vmem:[%s464 + $0x930] sm:$0xff]
        %v1964 = vld [vmem:[%s464 + $0x938] sm:$0xff]
        %v1965 = vld [vmem:[%s464 + $0x940] sm:$0xff]
        %v1966 = vld [vmem:[%s464 + $0x948] sm:$0xff]
        %v1967 = vld [vmem:[%s464 + $0x950] sm:$0xff]
        %v1968 = vld [vmem:[%s464 + $0x958] sm:$0xff]
        %v1969 = vld [vmem:[%s464 + $0x960] sm:$0xff]
        %v1970 = vld [vmem:[%s464 + $0x968] sm:$0xff]
        %v1971 = vld [vmem:[%s464 + $0x970] sm:$0xff]
        %v1972 = vld [vmem:[%s464 + $0x978] sm:$0xff]
        %v1973 = vld [vmem:[%s464 + $0x980] sm:$0xff]
        %v1974 = vld [vmem:[%s464 + $0x988] sm:$0xff]
        %v1975 = vld [vmem:[%s464 + $0x990] sm:$0xff]
        %v1976 = vld [vmem:[%s464 + $0x998] sm:$0xff]
        %v1977 = vld [vmem:[%s464 + $0x9a0] sm:$0xff]
        %v1978 = vld [vmem:[%s464 + $0x9a8] sm:$0xff]
        %v1979 = vld [vmem:[%s464 + $0x9b0] sm:$0xff]
        %v1980 = vld [vmem:[%s464 + $0x9b8] sm:$0xff]
        %v1981 = vld [vmem:[%s464 + $0x9c0] sm:$0xff]
        %v1982 = vld [vmem:[%s464 + $0x9c8] sm:$0xff]
        %v1983 = vld [vmem:[%s464 + $0x9d0] sm:$0xff]
        %v1984 = vld [vmem:[%s464 + $0x9d8] sm:$0xff]
        %v1985 = vld [vmem:[%s464 + $0x9e0] sm:$0xff]
        %v1986 = vld [vmem:[%s464 + $0x9e8] sm:$0xff]
        %v1987 = vld [vmem:[%s464 + $0x9f0] sm:$0xff]
        %v1988 = vld [vmem:[%s464 + $0x9f8] sm:$0xff]
        %v1989 = vld [vmem:[%s464 + $0xa00] sm:$0xff]
        %v1990 = vld [vmem:[%s464 + $0xa08] sm:$0xff]
        %v1991 = vld [vmem:[%s464 + $0xa10] sm:$0xff]
        %v1992 = vld [vmem:[%s464 + $0xa18] sm:$0xff]
        %v1993 = vld [vmem:[%s464 + $0xa20] sm:$0xff]
        %v1994 = vld [vmem:[%s464 + $0xa28] sm:$0xff]
        %v1995 = vld [vmem:[%s464 + $0xa30] sm:$0xff]
        %v1996 = vld [vmem:[%s464 + $0xa38] sm:$0xff]
        %v1997 = vld [vmem:[%s464 + $0xa40] sm:$0xff]
        %v1998 = vld [vmem:[%s464 + $0xa48] sm:$0xff]
        %v1999 = vld [vmem:[%s464 + $0xa50] sm:$0xff]
        %v2000 = vld [vmem:[%s464 + $0xa58] sm:$0xff]
        %v2001 = vld [vmem:[%s464 + $0xa60] sm:$0xff]
        %v2002 = vld [vmem:[%s464 + $0xa68] sm:$0xff]
        %v2003 = vld [vmem:[%s464 + $0xa70] sm:$0xff]
        %v2004 = vld [vmem:[%s464 + $0xa78] sm:$0xff]
        %v2005 = vld [vmem:[%s464 + $0xa80] sm:$0xff]
        %v2006 = vld [vmem:[%s464 + $0xa88] sm:$0xff]
        %v2007 = vld [vmem:[%s464 + $0xa90] sm:$0xff]
        %v2008 = vld [vmem:[%s464 + $0xa98] sm:$0xff]
        %v2009 = vld [vmem:[%s464 + $0xaa0] sm:$0xff]
        %v2010 = vld [vmem:[%s464 + $0xaa8] sm:$0xff]
        %v2011 = vld [vmem:[%s464 + $0xab0] sm:$0xff]
        %v2012 = vld [vmem:[%s464 + $0xab8] sm:$0xff]
        %v2013 = vld [vmem:[%s464 + $0xac0] sm:$0xff]
        %v2014 = vld [vmem:[%s464 + $0xac8] sm:$0xff]
        %v2015 = vld [vmem:[%s464 + $0xad0] sm:$0xff]
        %v2016 = vld [vmem:[%s464 + $0xad8] sm:$0xff]
        %v2017 = vld [vmem:[%s464 + $0xae0] sm:$0xff]
        %v2018 = vld [vmem:[%s464 + $0xae8] sm:$0xff]
        %v2019 = vld [vmem:[%s464 + $0xaf0] sm:$0xff]
        %v2020 = vld [vmem:[%s464 + $0xaf8] sm:$0xff]
        %v2021 = vld [vmem:[%s464 + $0xb00] sm:$0xff]
        %v2022 = vld [vmem:[%s464 + $0xb08] sm:$0xff]
        %v2023 = vld [vmem:[%s464 + $0xb10] sm:$0xff]
        %v2024 = vld [vmem:[%s464 + $0xb18] sm:$0xff]
        %v2025 = vld [vmem:[%s464 + $0xb20] sm:$0xff]
        %v2026 = vld [vmem:[%s464 + $0xb28] sm:$0xff]
        %v2027 = vld [vmem:[%s464 + $0xb30] sm:$0xff]
        %v2028 = vld [vmem:[%s464 + $0xb38] sm:$0xff]
        %v2029 = vld [vmem:[%s464 + $0xb40] sm:$0xff]
        %v2030 = vld [vmem:[%s464 + $0xb48] sm:$0xff]
        %v2031 = vld [vmem:[%s464 + $0xb50] sm:$0xff]
        %v2032 = vld [vmem:[%s464 + $0xb58] sm:$0xff]
        %v2033 = vld [vmem:[%s464 + $0xb60] sm:$0xff]
        %v2034 = vld [vmem:[%s464 + $0xb68] sm:$0xff]
        %v2035 = vld [vmem:[%s464 + $0xb70] sm:$0xff]
        %v2036 = vld [vmem:[%s464 + $0xb78] sm:$0xff]
        %v2037 = vld [vmem:[%s464 + $0xb80] sm:$0xff]
        %v2038 = vld [vmem:[%s464 + $0xb88] sm:$0xff]
        %v2039 = vld [vmem:[%s464 + $0xb90] sm:$0xff]
        %v2040 = vld [vmem:[%s464 + $0xb98] sm:$0xff]
        %v2041 = vld [vmem:[%s464 + $0xba0] sm:$0xff]
        %v2042 = vld [vmem:[%s464 + $0xba8] sm:$0xff]
        %v2043 = vld [vmem:[%s464 + $0xbb0] sm:$0xff]
        %v2044 = vld [vmem:[%s464 + $0xbb8] sm:$0xff]
        %v2045 = vld [vmem:[%s464 + $0xbc0] sm:$0xff]
        %v2046 = vld [vmem:[%s464 + $0xbc8] sm:$0xff]
        %v2047 = vld [vmem:[%s464 + $0xbd0] sm:$0xff]
        %v2048 = vld [vmem:[%s464 + $0xbd8] sm:$0xff]
        %v2049 = vld [vmem:[%s464 + $0xbe0] sm:$0xff]
        %v2050 = vld [vmem:[%s464 + $0xbe8] sm:$0xff]
        %v2051 = vld [vmem:[%s464 + $0xbf0] sm:$0xff]
        %v2052 = vld [vmem:[%s464 + $0xbf8] sm:$0xff]
        %v2053 = vld [vmem:[%s464 + $0xc00] sm:$0xff]
        %v2054 = vld [vmem:[%s464 + $0xc08] sm:$0xff]
        %v2055 = vld [vmem:[%s464 + $0xc10] sm:$0xff]
        %v2056 = vld [vmem:[%s464 + $0xc18] sm:$0xff]
        %v2057 = vld [vmem:[%s464 + $0xc20] sm:$0xff]
        %v2058 = vld [vmem:[%s464 + $0xc28] sm:$0xff]
        %v2059 = vld [vmem:[%s464 + $0xc30] sm:$0xff]
        %v2060 = vld [vmem:[%s464 + $0xc38] sm:$0xff]
        %v2061 = vld [vmem:[%s464 + $0xc40] sm:$0xff]
        %v2062 = vld [vmem:[%s464 + $0xc48] sm:$0xff]
        %v2063 = vld [vmem:[%s464 + $0xc50] sm:$0xff]
        %v2064 = vld [vmem:[%s464 + $0xc58] sm:$0xff]
        %v2065 = vld [vmem:[%s464 + $0xc60] sm:$0xff]
        %v2066 = vld [vmem:[%s464 + $0xc68] sm:$0xff]
        %v2067 = vld [vmem:[%s464 + $0xc70] sm:$0xff]
        %v2068 = vld [vmem:[%s464 + $0xc78] sm:$0xff]
        %v2069 = vld [vmem:[%s464 + $0xc80] sm:$0xff]
        %v2070 = vld [vmem:[%s464 + $0xc88] sm:$0xff]
        %v2071 = vld [vmem:[%s464 + $0xc90] sm:$0xff]
        %v2072 = vld [vmem:[%s464 + $0xc98] sm:$0xff]
        %v2073 = vld [vmem:[%s464 + $0xca0] sm:$0xff]
        %v2074 = vld [vmem:[%s464 + $0xca8] sm:$0xff]
        %v2075 = vld [vmem:[%s464 + $0xcb0] sm:$0xff]
        %v2076 = vld [vmem:[%s464 + $0xcb8] sm:$0xff]
        %v2077 = vld [vmem:[%s464 + $0xcc0] sm:$0xff]
        %v2078 = vld [vmem:[%s464 + $0xcc8] sm:$0xff]
        %v2079 = vld [vmem:[%s464 + $0xcd0] sm:$0xff]
        %v2080 = vld [vmem:[%s464 + $0xcd8] sm:$0xff]
        %v2081 = vld [vmem:[%s464 + $0xce0] sm:$0xff]
        %v2082 = vld [vmem:[%s464 + $0xce8] sm:$0xff]
        %v2083 = vld [vmem:[%s464 + $0xcf0] sm:$0xff]
        %v2084 = vld [vmem:[%s464 + $0xcf8] sm:$0xff]
        %v2085 = vld [vmem:[%s464 + $0xd00] sm:$0xff]
        %v2086 = vld [vmem:[%s464 + $0xd08] sm:$0xff]
        %v2087 = vld [vmem:[%s464 + $0xd10] sm:$0xff]
        %v2088 = vld [vmem:[%s464 + $0xd18] sm:$0xff]
        %v2089 = vld [vmem:[%s464 + $0xd20] sm:$0xff]
        %v2090 = vld [vmem:[%s464 + $0xd28] sm:$0xff]
        %v2091 = vld [vmem:[%s464 + $0xd30] sm:$0xff]
        %v2092 = vld [vmem:[%s464 + $0xd38] sm:$0xff]
        %v2093 = vld [vmem:[%s464 + $0xd40] sm:$0xff]
        %v2094 = vld [vmem:[%s464 + $0xd48] sm:$0xff]
        %v2095 = vld [vmem:[%s464 + $0xd50] sm:$0xff]
        %v2096 = vld [vmem:[%s464 + $0xd58] sm:$0xff]
        %v2097 = vld [vmem:[%s464 + $0xd60] sm:$0xff]
        %v2098 = vld [vmem:[%s464 + $0xd68] sm:$0xff]
        %v2099 = vld [vmem:[%s464 + $0xd70] sm:$0xff]
        %v2100 = vld [vmem:[%s464 + $0xd78] sm:$0xff]
        %v2101 = vld [vmem:[%s464 + $0xd80] sm:$0xff]
        %v2102 = vld [vmem:[%s464 + $0xd88] sm:$0xff]
        %v2103 = vld [vmem:[%s464 + $0xd90] sm:$0xff]
        %v2104 = vld [vmem:[%s464 + $0xd98] sm:$0xff]
        %v2105 = vld [vmem:[%s464 + $0xda0] sm:$0xff]
        %v2106 = vld [vmem:[%s464 + $0xda8] sm:$0xff]
        %v2107 = vld [vmem:[%s464 + $0xdb0] sm:$0xff]
        %v2108 = vld [vmem:[%s464 + $0xdb8] sm:$0xff]
        %v2109 = vld [vmem:[%s464 + $0xdc0] sm:$0xff]
        %v2110 = vld [vmem:[%s464 + $0xdc8] sm:$0xff]
        %v2111 = vld [vmem:[%s464 + $0xdd0] sm:$0xff]
        %v2112 = vld [vmem:[%s464 + $0xdd8] sm:$0xff]
        %v2113 = vld [vmem:[%s464 + $0xde0] sm:$0xff]
        %v2114 = vld [vmem:[%s464 + $0xde8] sm:$0xff]
        %v2115 = vld [vmem:[%s464 + $0xdf0] sm:$0xff]
        %v2116 = vld [vmem:[%s464 + $0xdf8] sm:$0xff]
        %v2117 = vld [vmem:[%s464 + $0xe00] sm:$0xff]
        %v2118 = vld [vmem:[%s464 + $0xe08] sm:$0xff]
        %v2119 = vld [vmem:[%s464 + $0xe10] sm:$0xff]
        %v2120 = vld [vmem:[%s464 + $0xe18] sm:$0xff]
        %v2121 = vld [vmem:[%s464 + $0xe20] sm:$0xff]
        %v2122 = vld [vmem:[%s464 + $0xe28] sm:$0xff]
        %v2123 = vld [vmem:[%s464 + $0xe30] sm:$0xff]
        %v2124 = vld [vmem:[%s464 + $0xe38] sm:$0xff]
        %v2125 = vld [vmem:[%s464 + $0xe40] sm:$0xff]
        %v2126 = vld [vmem:[%s464 + $0xe48] sm:$0xff]
        %v2127 = vld [vmem:[%s464 + $0xe50] sm:$0xff]
        %v2128 = vld [vmem:[%s464 + $0xe58] sm:$0xff]
        %v2129 = vld [vmem:[%s464 + $0xe60] sm:$0xff]
        %v2130 = vld [vmem:[%s464 + $0xe68] sm:$0xff]
        %v2131 = vld [vmem:[%s464 + $0xe70] sm:$0xff]
        %v2132 = vld [vmem:[%s464 + $0xe78] sm:$0xff]
        %v2133 = vld [vmem:[%s464 + $0xe80] sm:$0xff]
        %v2134 = vld [vmem:[%s464 + $0xe88] sm:$0xff]
        %v2135 = vld [vmem:[%s464 + $0xe90] sm:$0xff]
        %v2136 = vld [vmem:[%s464 + $0xe98] sm:$0xff]
        %v2137 = vld [vmem:[%s464 + $0xea0] sm:$0xff]
        %v2138 = vld [vmem:[%s464 + $0xea8] sm:$0xff]
        %v2139 = vld [vmem:[%s464 + $0xeb0] sm:$0xff]
        %v2140 = vld [vmem:[%s464 + $0xeb8] sm:$0xff]
        %v2141 = vld [vmem:[%s464 + $0xec0] sm:$0xff]
        %v2142 = vld [vmem:[%s464 + $0xec8] sm:$0xff]
        %v2143 = vld [vmem:[%s464 + $0xed0] sm:$0xff]
        %v2144 = vld [vmem:[%s464 + $0xed8] sm:$0xff]
        %v2145 = vld [vmem:[%s464 + $0xee0] sm:$0xff]
        %v2146 = vld [vmem:[%s464 + $0xee8] sm:$0xff]
        %v2147 = vld [vmem:[%s464 + $0xef0] sm:$0xff]
        %v2148 = vld [vmem:[%s464 + $0xef8] sm:$0xff]
        %v2149 = vld [vmem:[%s464 + $0xf00] sm:$0xff]
        %v2150 = vld [vmem:[%s464 + $0xf08] sm:$0xff]
        %v2151 = vld [vmem:[%s464 + $0xf10] sm:$0xff]
        %v2152 = vld [vmem:[%s464 + $0xf18] sm:$0xff]
        %v2153 = vld [vmem:[%s464 + $0xf20] sm:$0xff]
        %v2154 = vld [vmem:[%s464 + $0xf28] sm:$0xff]
        %v2155 = vld [vmem:[%s464 + $0xf30] sm:$0xff]
        %v2156 = vld [vmem:[%s464 + $0xf38] sm:$0xff]
        %v2157 = vld [vmem:[%s464 + $0xf40] sm:$0xff]
        %v2158 = vld [vmem:[%s464 + $0xf48] sm:$0xff]
        %v2159 = vld [vmem:[%s464 + $0xf50] sm:$0xff]
        %v2160 = vld [vmem:[%s464 + $0xf58] sm:$0xff]
        %v2161 = vld [vmem:[%s464 + $0xf60] sm:$0xff]
        %v2162 = vld [vmem:[%s464 + $0xf68] sm:$0xff]
        %v2163 = vld [vmem:[%s464 + $0xf70] sm:$0xff]
        %v2164 = vld [vmem:[%s464 + $0xf78] sm:$0xff]
        %v2165 = vld [vmem:[%s464 + $0xf80] sm:$0xff]
        %v2166 = vld [vmem:[%s464 + $0xf88] sm:$0xff]
        %v2167 = vld [vmem:[%s464 + $0xf90] sm:$0xff]
        %v2168 = vld [vmem:[%s464 + $0xf98] sm:$0xff]
        %v2169 = vld [vmem:[%s464 + $0xfa0] sm:$0xff]
        %v2170 = vld [vmem:[%s464 + $0xfa8] sm:$0xff]
        %v2171 = vld [vmem:[%s464 + $0xfb0] sm:$0xff]
        %v2172 = vld [vmem:[%s464 + $0xfb8] sm:$0xff]
        %v2173 = vld [vmem:[%s464 + $0xfc0] sm:$0xff]
        %v2174 = vld [vmem:[%s464 + $0xfc8] sm:$0xff]
        %v2175 = vld [vmem:[%s464 + $0xfd0] sm:$0xff]
        %v2176 = vld [vmem:[%s464 + $0xfd8] sm:$0xff]
        %v2177 = vld [vmem:[%s464 + $0xfe0] sm:$0xff]
        %v2178 = vld [vmem:[%s464 + $0xfe8] sm:$0xff]
        %v2179 = vld [vmem:[%s464 + $0xff0] sm:$0xff]
        %v2180 = vld [vmem:[%s464 + $0xff8] sm:$0xff]
        %v2181 = vld [vmem:[%s464 + $0x1000] sm:$0xff]
        %v2182 = vld [vmem:[%s464 + $0x1008] sm:$0xff]
        %v2183 = vld [vmem:[%s464 + $0x1010] sm:$0xff]
        %v2184 = vld [vmem:[%s464 + $0x1018] sm:$0xff]
        %v2185 = vld [vmem:[%s464 + $0x1020] sm:$0xff]
        %v2186 = vld [vmem:[%s464 + $0x1028] sm:$0xff]
        %v2187 = vld [vmem:[%s464 + $0x1030] sm:$0xff]
        %v2188 = vld [vmem:[%s464 + $0x1038] sm:$0xff]
        %v2189 = vld [vmem:[%s464 + $0x1040] sm:$0xff]
        %v2190 = vld [vmem:[%s464 + $0x1048] sm:$0xff]
        %v2191 = vld [vmem:[%s464 + $0x1050] sm:$0xff]
        %v2192 = vld [vmem:[%s464 + $0x1058] sm:$0xff]
        %v2193 = vld [vmem:[%s464 + $0x1060] sm:$0xff]
        %v2194 = vld [vmem:[%s464 + $0x1068] sm:$0xff]
        %v2195 = vld [vmem:[%s464 + $0x1070] sm:$0xff]
        %v2196 = vld [vmem:[%s464 + $0x1078] sm:$0xff]
        %v2197 = vld [vmem:[%s464 + $0x1080] sm:$0xff]
        %v2198 = vld [vmem:[%s464 + $0x1088] sm:$0xff]
        %v2199 = vld [vmem:[%s464 + $0x1090] sm:$0xff]
        %v2200 = vld [vmem:[%s464 + $0x1098] sm:$0xff]
        %v2201 = vld [vmem:[%s464 + $0x10a0] sm:$0xff]
        %v2202 = vld [vmem:[%s464 + $0x10a8] sm:$0xff]
        %v2203 = vld [vmem:[%s464 + $0x10b0] sm:$0xff]
        %v2204 = vld [vmem:[%s464 + $0x10b8] sm:$0xff]
        %v2205 = vld [vmem:[%s464 + $0x10c0] sm:$0xff]
        %v2206 = vld [vmem:[%s464 + $0x10c8] sm:$0xff]
        %v2207 = vld [vmem:[%s464 + $0x10d0] sm:$0xff]
        %v2208 = vld [vmem:[%s464 + $0x10d8] sm:$0xff]
        %v2209 = vld [vmem:[%s464 + $0x10e0] sm:$0xff]
        %v2210 = vld [vmem:[%s464 + $0x10e8] sm:$0xff]
        %v2211 = vld [vmem:[%s464 + $0x10f0] sm:$0xff]
        %v2212 = vld [vmem:[%s464 + $0x10f8] sm:$0xff]
        %v2213 = vld [vmem:[%s464 + $0x1100] sm:$0xff]
        %v2214 = vld [vmem:[%s464 + $0x1108] sm:$0xff]
        %v2215 = vld [vmem:[%s464 + $0x1110] sm:$0xff]
        %v2216 = vld [vmem:[%s464 + $0x1118] sm:$0xff]
        %v2217 = vld [vmem:[%s464 + $0x1120] sm:$0xff]
        %v2218 = vld [vmem:[%s464 + $0x1128] sm:$0xff]
        %v2219 = vld [vmem:[%s464 + $0x1130] sm:$0xff]
        %v2220 = vld [vmem:[%s464 + $0x1138] sm:$0xff]
        %v2221 = vld [vmem:[%s464 + $0x1140] sm:$0xff]
        %v2222 = vld [vmem:[%s464 + $0x1148] sm:$0xff]
        %v2223 = vld [vmem:[%s464 + $0x1150] sm:$0xff]
        %v2224 = vld [vmem:[%s464 + $0x1158] sm:$0xff]
        %v2225 = vld [vmem:[%s464 + $0x1160] sm:$0xff]
        %v2226 = vld [vmem:[%s464 + $0x1168] sm:$0xff]
        %v2227 = vld [vmem:[%s464 + $0x1170] sm:$0xff]
        %v2228 = vld [vmem:[%s464 + $0x1178] sm:$0xff]
        %v2229 = vld [vmem:[%s464 + $0x1180] sm:$0xff]
        %v2230 = vld [vmem:[%s464 + $0x1188] sm:$0xff]
        %v2231 = vld [vmem:[%s464 + $0x1190] sm:$0xff]
        %v2232 = vld [vmem:[%s464 + $0x1198] sm:$0xff]
        %v2233 = vld [vmem:[%s464 + $0x11a0] sm:$0xff]
        %v2234 = vld [vmem:[%s464 + $0x11a8] sm:$0xff]
        %v2235 = vld [vmem:[%s464 + $0x11b0] sm:$0xff]
        %v2236 = vld [vmem:[%s464 + $0x11b8] sm:$0xff]
        %v2237 = vld [vmem:[%s464 + $0x11c0] sm:$0xff]
        %v2238 = vld [vmem:[%s464 + $0x11c8] sm:$0xff]
        %v2239 = vld [vmem:[%s464 + $0x11d0] sm:$0xff]
        %v2240 = vld [vmem:[%s464 + $0x11d8] sm:$0xff]
        %v2241 = vld [vmem:[%s464 + $0x11e0] sm:$0xff]
        %v2242 = vld [vmem:[%s464 + $0x11e8] sm:$0xff]
        %v2243 = vld [vmem:[%s464 + $0x11f0] sm:$0xff]
        %v2244 = vld [vmem:[%s464 + $0x11f8] sm:$0xff]
        %v2245 = vld [vmem:[%s464 + $0x1200] sm:$0xff]
        %v2246 = vld [vmem:[%s464 + $0x1208] sm:$0xff]
        %v2247 = vld [vmem:[%s464 + $0x1210] sm:$0xff]
        %v2248 = vld [vmem:[%s464 + $0x1218] sm:$0xff]
        %v2249 = vld [vmem:[%s464 + $0x1220] sm:$0xff]
        %v2250 = vld [vmem:[%s464 + $0x1228] sm:$0xff]
        %v2251 = vld [vmem:[%s464 + $0x1230] sm:$0xff]
        %v2252 = vld [vmem:[%s464 + $0x1238] sm:$0xff]
        %v2253 = vld [vmem:[%s464 + $0x1240] sm:$0xff]
        %v2254 = vld [vmem:[%s464 + $0x1248] sm:$0xff]
        %v2255 = vld [vmem:[%s464 + $0x1250] sm:$0xff]
        %v2256 = vld [vmem:[%s464 + $0x1258] sm:$0xff]
        %v2257 = vld [vmem:[%s464 + $0x1260] sm:$0xff]
        %v2258 = vld [vmem:[%s464 + $0x1268] sm:$0xff]
        %v2259 = vld [vmem:[%s464 + $0x1270] sm:$0xff]
        %v2260 = vld [vmem:[%s464 + $0x1278] sm:$0xff]
        %v2261 = vld [vmem:[%s464 + $0x1280] sm:$0xff]
        %v2262 = vld [vmem:[%s464 + $0x1288] sm:$0xff]
        %v2263 = vld [vmem:[%s464 + $0x1290] sm:$0xff]
        %v2264 = vld [vmem:[%s464 + $0x1298] sm:$0xff]
        %v2265 = vld [vmem:[%s464 + $0x12a0] sm:$0xff]
        %v2266 = vld [vmem:[%s464 + $0x12a8] sm:$0xff]
        %v2267 = vld [vmem:[%s464 + $0x12b0] sm:$0xff]
        %v2268 = vld [vmem:[%s464 + $0x12b8] sm:$0xff]
        %v2269 = vld [vmem:[%s464 + $0x12c0] sm:$0xff]
        %v2270 = vld [vmem:[%s464 + $0x12c8] sm:$0xff]
        %v2271 = vld [vmem:[%s464 + $0x12d0] sm:$0xff]
        %v2272 = vld [vmem:[%s464 + $0x12d8] sm:$0xff]
        %v2273 = vld [vmem:[%s464 + $0x12e0] sm:$0xff]
        %v2274 = vld [vmem:[%s464 + $0x12e8] sm:$0xff]
        %v2275 = vld [vmem:[%s464 + $0x12f0] sm:$0xff]
        %v2276 = vld [vmem:[%s464 + $0x12f8] sm:$0xff]
        %v2277 = vld [vmem:[%s464 + $0x1300] sm:$0xff]
        %v2278 = vld [vmem:[%s464 + $0x1308] sm:$0xff]
        %v2279 = vld [vmem:[%s464 + $0x1310] sm:$0xff]
        %v2280 = vld [vmem:[%s464 + $0x1318] sm:$0xff]
        %v2281 = vld [vmem:[%s464 + $0x1320] sm:$0xff]
        %v2282 = vld [vmem:[%s464 + $0x1328] sm:$0xff]
        %v2283 = vld [vmem:[%s464 + $0x1330] sm:$0xff]
        %v2284 = vld [vmem:[%s464 + $0x1338] sm:$0xff]
        %v2285 = vld [vmem:[%s464 + $0x1340] sm:$0xff]
        %v2286 = vld [vmem:[%s464 + $0x1348] sm:$0xff]
        %v2287 = vld [vmem:[%s464 + $0x1350] sm:$0xff]
        %v2288 = vld [vmem:[%s464 + $0x1358] sm:$0xff]
        %v2289 = vld [vmem:[%s464 + $0x1360] sm:$0xff]
        %v2290 = vld [vmem:[%s464 + $0x1368] sm:$0xff]
        %v2291 = vld [vmem:[%s464 + $0x1370] sm:$0xff]
        %v2292 = vld [vmem:[%s464 + $0x1378] sm:$0xff]
        %v2293 = vld [vmem:[%s464 + $0x1380] sm:$0xff]
        %v2294 = vld [vmem:[%s464 + $0x1388] sm:$0xff]
        %v2295 = vld [vmem:[%s464 + $0x1390] sm:$0xff]
        %v2296 = vld [vmem:[%s464 + $0x1398] sm:$0xff]
        %v2297 = vld [vmem:[%s464 + $0x13a0] sm:$0xff]
        %v2298 = vld [vmem:[%s464 + $0x13a8] sm:$0xff]
        %v2299 = vld [vmem:[%s464 + $0x13b0] sm:$0xff]
        %v2300 = vld [vmem:[%s464 + $0x13b8] sm:$0xff]
        %v2301 = vld [vmem:[%s464 + $0x13c0] sm:$0xff]
        %v2302 = vld [vmem:[%s464 + $0x13c8] sm:$0xff]
        %v2303 = vld [vmem:[%s464 + $0x13d0] sm:$0xff]
        %v2304 = vld [vmem:[%s464 + $0x13d8] sm:$0xff]
        %v2305 = vld [vmem:[%s464 + $0x13e0] sm:$0xff]
        %v2306 = vld [vmem:[%s464 + $0x13e8] sm:$0xff]
        %v2307 = vld [vmem:[%s464 + $0x13f0] sm:$0xff]
        %v2308 = vld [vmem:[%s464 + $0x13f8] sm:$0xff]
        %v2309 = vld [vmem:[%s464 + $0x1400] sm:$0xff]
        %v2310 = vld [vmem:[%s464 + $0x1408] sm:$0xff]
        %v2311 = vld [vmem:[%s464 + $0x1410] sm:$0xff]
        %v2312 = vld [vmem:[%s464 + $0x1418] sm:$0xff]
        %v2313 = vld [vmem:[%s464 + $0x1420] sm:$0xff]
        %v2314 = vld [vmem:[%s464 + $0x1428] sm:$0xff]
        %v2315 = vld [vmem:[%s464 + $0x1430] sm:$0xff]
        %v2316 = vld [vmem:[%s464 + $0x1438] sm:$0xff]
        %v2317 = vld [vmem:[%s464 + $0x1440] sm:$0xff]
        %v2318 = vld [vmem:[%s464 + $0x1448] sm:$0xff]
        %v2319 = vld [vmem:[%s464 + $0x1450] sm:$0xff]
        %v2320 = vld [vmem:[%s464 + $0x1458] sm:$0xff]
        %v2321 = vld [vmem:[%s464 + $0x1460] sm:$0xff]
        %v2322 = vld [vmem:[%s464 + $0x1468] sm:$0xff]
        %v2323 = vld [vmem:[%s464 + $0x1470] sm:$0xff]
        %v2324 = vld [vmem:[%s464 + $0x1478] sm:$0xff]
        %v2325 = vld [vmem:[%s464 + $0x1480] sm:$0xff]
        %v2326 = vld [vmem:[%s464 + $0x1488] sm:$0xff]
        %v2327 = vld [vmem:[%s464 + $0x1490] sm:$0xff]
        %v2328 = vld [vmem:[%s464 + $0x1498] sm:$0xff]
        %v2329 = vld [vmem:[%s464 + $0x14a0] sm:$0xff]
        %v2330 = vld [vmem:[%s464 + $0x14a8] sm:$0xff]
        %v2331 = vld [vmem:[%s464 + $0x14b0] sm:$0xff]
        %v2332 = vld [vmem:[%s464 + $0x14b8] sm:$0xff]
        %v2333 = vld [vmem:[%s464 + $0x14c0] sm:$0xff]
        %v2334 = vld [vmem:[%s464 + $0x14c8] sm:$0xff]
        %v2335 = vld [vmem:[%s464 + $0x14d0] sm:$0xff]
        %v2336 = vld [vmem:[%s464 + $0x14d8] sm:$0xff]
        %v2337 = vld [vmem:[%s464 + $0x14e0] sm:$0xff]
        %v2338 = vld [vmem:[%s464 + $0x14e8] sm:$0xff]
        %v2339 = vld [vmem:[%s464 + $0x14f0] sm:$0xff]
        %v2340 = vld [vmem:[%s464 + $0x14f8] sm:$0xff]
        %v2341 = vld [vmem:[%s464 + $0x1500] sm:$0xff]
        %v2342 = vld [vmem:[%s464 + $0x1508] sm:$0xff]
        %v2343 = vld [vmem:[%s464 + $0x1510] sm:$0xff]
        %v2344 = vld [vmem:[%s464 + $0x1518] sm:$0xff]
        %v2345 = vld [vmem:[%s464 + $0x1520] sm:$0xff]
        %v2346 = vld [vmem:[%s464 + $0x1528] sm:$0xff]
        %v2347 = vld [vmem:[%s464 + $0x1530] sm:$0xff]
        %v2348 = vld [vmem:[%s464 + $0x1538] sm:$0xff]
        %v2349 = vld [vmem:[%s464 + $0x1540] sm:$0xff]
        %v2350 = vld [vmem:[%s464 + $0x1548] sm:$0xff]
        %v2351 = vld [vmem:[%s464 + $0x1550] sm:$0xff]
        %v2352 = vld [vmem:[%s464 + $0x1558] sm:$0xff]
        %v2353 = vld [vmem:[%s464 + $0x1560] sm:$0xff]
        %v2354 = vld [vmem:[%s464 + $0x1568] sm:$0xff]
        %v2355 = vld [vmem:[%s464 + $0x1570] sm:$0xff]
        %v2356 = vld [vmem:[%s464 + $0x1578] sm:$0xff]
        %v2357 = vld [vmem:[%s464 + $0x1580] sm:$0xff]
        %v2358 = vld [vmem:[%s464 + $0x1588] sm:$0xff]
        %v2359 = vld [vmem:[%s464 + $0x1590] sm:$0xff]
        %v2360 = vld [vmem:[%s464 + $0x1598] sm:$0xff]
        %v2361 = vld [vmem:[%s464 + $0x15a0] sm:$0xff]
        %v2362 = vld [vmem:[%s464 + $0x15a8] sm:$0xff]
        %v2363 = vld [vmem:[%s464 + $0x15b0] sm:$0xff]
        %v2364 = vld [vmem:[%s464 + $0x15b8] sm:$0xff]
        %v2365 = vld [vmem:[%s464 + $0x15c0] sm:$0xff]
        %v2366 = vld [vmem:[%s464 + $0x15c8] sm:$0xff]
        %v2367 = vld [vmem:[%s464 + $0x15d0] sm:$0xff]
        %v2368 = vld [vmem:[%s464 + $0x15d8] sm:$0xff]
        %v2369 = vld [vmem:[%s464 + $0x15e0] sm:$0xff]
        %v2370 = vld [vmem:[%s464 + $0x15e8] sm:$0xff]
        %v2371 = vld [vmem:[%s464 + $0x15f0] sm:$0xff]
        %v2372 = vld [vmem:[%s464 + $0x15f8] sm:$0xff]
        %v2373 = vld [vmem:[%s464 + $0x1600] sm:$0xff]
        %v2374 = vld [vmem:[%s464 + $0x1608] sm:$0xff]
        %v2375 = vld [vmem:[%s464 + $0x1610] sm:$0xff]
        %v2376 = vld [vmem:[%s464 + $0x1618] sm:$0xff]
        %v2377 = vld [vmem:[%s464 + $0x1620] sm:$0xff]
        %v2378 = vld [vmem:[%s464 + $0x1628] sm:$0xff]
        %v2379 = vld [vmem:[%s464 + $0x1630] sm:$0xff]
        %v2380 = vld [vmem:[%s464 + $0x1638] sm:$0xff]
        %v2381 = vld [vmem:[%s464 + $0x1640] sm:$0xff]
        %v2382 = vld [vmem:[%s464 + $0x1648] sm:$0xff]
        %v2383 = vld [vmem:[%s464 + $0x1650] sm:$0xff]
        %v2384 = vld [vmem:[%s464 + $0x1658] sm:$0xff]
        %v2385 = vld [vmem:[%s464 + $0x1660] sm:$0xff]
        %v2386 = vld [vmem:[%s464 + $0x1668] sm:$0xff]
        %v2387 = vld [vmem:[%s464 + $0x1670] sm:$0xff]
        %v2388 = vld [vmem:[%s464 + $0x1678] sm:$0xff]
        %v2389 = vld [vmem:[%s464 + $0x1680] sm:$0xff]
        %v2390 = vld [vmem:[%s464 + $0x1688] sm:$0xff]
        %v2391 = vld [vmem:[%s464 + $0x1690] sm:$0xff]
        %v2392 = vld [vmem:[%s464 + $0x1698] sm:$0xff]
        %v2393 = vld [vmem:[%s464 + $0x16a0] sm:$0xff]
        %v2394 = vld [vmem:[%s464 + $0x16a8] sm:$0xff]
        %v2395 = vld [vmem:[%s464 + $0x16b0] sm:$0xff]
        %v2396 = vld [vmem:[%s464 + $0x16b8] sm:$0xff]
        %v2397 = vld [vmem:[%s464 + $0x16c0] sm:$0xff]
        %v2398 = vld [vmem:[%s464 + $0x16c8] sm:$0xff]
        %v2399 = vld [vmem:[%s464 + $0x16d0] sm:$0xff]
        %v2400 = vld [vmem:[%s464 + $0x16d8] sm:$0xff]
        %v2401 = vld [vmem:[%s464 + $0x16e0] sm:$0xff]
        %v2402 = vld [vmem:[%s464 + $0x16e8] sm:$0xff]
        %v2403 = vld [vmem:[%s464 + $0x16f0] sm:$0xff]
        %v2404 = vld [vmem:[%s464 + $0x16f8] sm:$0xff]
        %v2405 = vld [vmem:[%s464 + $0x1700] sm:$0xff]
        %v2406 = vld [vmem:[%s464 + $0x1708] sm:$0xff]
        %v2407 = vld [vmem:[%s464 + $0x1710] sm:$0xff]
        %v2408 = vld [vmem:[%s464 + $0x1718] sm:$0xff]
        %v2409 = vld [vmem:[%s464 + $0x1720] sm:$0xff]
        %v2410 = vld [vmem:[%s464 + $0x1728] sm:$0xff]
        %v2411 = vld [vmem:[%s464 + $0x1730] sm:$0xff]
        %v2412 = vld [vmem:[%s464 + $0x1738] sm:$0xff]
        %v2413 = vld [vmem:[%s464 + $0x1740] sm:$0xff]
        %v2414 = vld [vmem:[%s464 + $0x1748] sm:$0xff]
        %v2415 = vld [vmem:[%s464 + $0x1750] sm:$0xff]
        %v2416 = vld [vmem:[%s464 + $0x1758] sm:$0xff]
        %v2417 = vld [vmem:[%s464 + $0x1760] sm:$0xff]
        %v2418 = vld [vmem:[%s464 + $0x1768] sm:$0xff]
        %v2419 = vld [vmem:[%s464 + $0x1770] sm:$0xff]
        %v2420 = vld [vmem:[%s464 + $0x1778] sm:$0xff]
        %v2421 = vld [vmem:[%s464 + $0x1780] sm:$0xff]
        %v2422 = vld [vmem:[%s464 + $0x1788] sm:$0xff]
        %v2423 = vld [vmem:[%s464 + $0x1790] sm:$0xff]
        %v2424 = vld [vmem:[%s464 + $0x1798] sm:$0xff]
        %v2425 = vld [vmem:[%s464 + $0x17a0] sm:$0xff]
        %v2426 = vld [vmem:[%s464 + $0x17a8] sm:$0xff]
        %v2427 = vld [vmem:[%s464 + $0x17b0] sm:$0xff]
        %v2428 = vld [vmem:[%s464 + $0x17b8] sm:$0xff]
        %v2429 = vld [vmem:[%s464 + $0x17c0] sm:$0xff]
        %v2430 = vld [vmem:[%s464 + $0x17c8] sm:$0xff]
        %v2431 = vld [vmem:[%s464 + $0x17d0] sm:$0xff]
        %v2432 = vld [vmem:[%s464 + $0x17d8] sm:$0xff]
        %v2433 = vld [vmem:[%s464 + $0x17e0] sm:$0xff]
        %v2434 = vld [vmem:[%s464 + $0x17e8] sm:$0xff]
        %v2435 = vld [vmem:[%s464 + $0x17f0] sm:$0xff]
        %v2436 = vld [vmem:[%s464 + $0x17f8] sm:$0xff]
        %v2437 = vld [vmem:[%s464 + $0x1800] sm:$0xff]
        %v2438 = vld [vmem:[%s464 + $0x1808] sm:$0xff]
        %v2439 = vld [vmem:[%s464 + $0x1810] sm:$0xff]
        %v2440 = vld [vmem:[%s464 + $0x1818] sm:$0xff]
        %v2441 = vld [vmem:[%s464 + $0x1820] sm:$0xff]
        %v2442 = vld [vmem:[%s464 + $0x1828] sm:$0xff]
        %v2443 = vld [vmem:[%s464 + $0x1830] sm:$0xff]
        %v2444 = vld [vmem:[%s464 + $0x1838] sm:$0xff]
        %v2445 = vld [vmem:[%s464 + $0x1840] sm:$0xff]
        %v2446 = vld [vmem:[%s464 + $0x1848] sm:$0xff]
        %v2447 = vld [vmem:[%s464 + $0x1850] sm:$0xff]
        %v2448 = vld [vmem:[%s464 + $0x1858] sm:$0xff]
        %v2449 = vld [vmem:[%s464 + $0x1860] sm:$0xff]
        %v2450 = vld [vmem:[%s464 + $0x1868] sm:$0xff]
        %v2451 = vld [vmem:[%s464 + $0x1870] sm:$0xff]
        %v2452 = vld [vmem:[%s464 + $0x1878] sm:$0xff]
        %v2453 = vld [vmem:[%s464 + $0x1880] sm:$0xff]
        %v2454 = vld [vmem:[%s464 + $0x1888] sm:$0xff]
        %v2455 = vld [vmem:[%s464 + $0x1890] sm:$0xff]
        %v2456 = vld [vmem:[%s464 + $0x1898] sm:$0xff]
        %v2457 = vld [vmem:[%s464 + $0x18a0] sm:$0xff]
        %v2458 = vld [vmem:[%s464 + $0x18a8] sm:$0xff]
        %v2459 = vld [vmem:[%s464 + $0x18b0] sm:$0xff]
        %v2460 = vld [vmem:[%s464 + $0x18b8] sm:$0xff]
        %v2461 = vld [vmem:[%s464 + $0x18c0] sm:$0xff]
        %v2462 = vld [vmem:[%s464 + $0x18c8] sm:$0xff]
        %v2463 = vld [vmem:[%s464 + $0x18d0] sm:$0xff]
        %v2464 = vld [vmem:[%s464 + $0x18d8] sm:$0xff]
        %v2465 = vld [vmem:[%s464 + $0x18e0] sm:$0xff]
        %v2466 = vld [vmem:[%s464 + $0x18e8] sm:$0xff]
        %v2467 = vld [vmem:[%s464 + $0x18f0] sm:$0xff]
        %v2468 = vld [vmem:[%s464 + $0x18f8] sm:$0xff]
        %v2469 = vld [vmem:[%s464 + $0x1900] sm:$0xff]
        %v2470 = vld [vmem:[%s464 + $0x1908] sm:$0xff]
        %v2471 = vld [vmem:[%s464 + $0x1910] sm:$0xff]
        %v2472 = vld [vmem:[%s464 + $0x1918] sm:$0xff]
        %v2473 = vld [vmem:[%s464 + $0x1920] sm:$0xff]
        %v2474 = vld [vmem:[%s464 + $0x1928] sm:$0xff]
        %v2475 = vld [vmem:[%s464 + $0x1930] sm:$0xff]
        %v2476 = vld [vmem:[%s464 + $0x1938] sm:$0xff]
        %v2477 = vld [vmem:[%s464 + $0x1940] sm:$0xff]
        %v2478 = vld [vmem:[%s464 + $0x1948] sm:$0xff]
        %v2479 = vld [vmem:[%s464 + $0x1950] sm:$0xff]
        %v2480 = vld [vmem:[%s464 + $0x1958] sm:$0xff]
        %v2481 = vld [vmem:[%s464 + $0x1960] sm:$0xff]
        %v2482 = vld [vmem:[%s464 + $0x1968] sm:$0xff]
        %v2483 = vld [vmem:[%s464 + $0x1970] sm:$0xff]
        %v2484 = vld [vmem:[%s464 + $0x1978] sm:$0xff]
        %v2485 = vld [vmem:[%s464 + $0x1980] sm:$0xff]
        %v2486 = vld [vmem:[%s464 + $0x1988] sm:$0xff]
        %v2487 = vld [vmem:[%s464 + $0x1990] sm:$0xff]
        %v2488 = vld [vmem:[%s464 + $0x1998] sm:$0xff]
        %v2489 = vld [vmem:[%s464 + $0x19a0] sm:$0xff]
        %v2490 = vld [vmem:[%s464 + $0x19a8] sm:$0xff]
        %v2491 = vld [vmem:[%s464 + $0x19b0] sm:$0xff]
        %v2492 = vld [vmem:[%s464 + $0x19b8] sm:$0xff]
        %v2493 = vld [vmem:[%s464 + $0x19c0] sm:$0xff]
        %v2494 = vld [vmem:[%s464 + $0x19c8] sm:$0xff]
        %v2495 = vld [vmem:[%s464 + $0x19d0] sm:$0xff]
        %v2496 = vld [vmem:[%s464 + $0x19d8] sm:$0xff]
        %v2497 = vld [vmem:[%s464 + $0x19e0] sm:$0xff]
        %v2498 = vld [vmem:[%s464 + $0x19e8] sm:$0xff]
        %v2499 = vld [vmem:[%s464 + $0x19f0] sm:$0xff]
        %v2500 = vld [vmem:[%s464 + $0x19f8] sm:$0xff]
        %v2501 = vld [vmem:[%s464 + $0x1a00] sm:$0xff]
        %v2502 = vld [vmem:[%s464 + $0x1a08] sm:$0xff]
        %v2503 = vld [vmem:[%s464 + $0x1a10] sm:$0xff]
        %v2504 = vld [vmem:[%s464 + $0x1a18] sm:$0xff]
        %v2505 = vld [vmem:[%s464 + $0x1a20] sm:$0xff]
        %v2506 = vld [vmem:[%s464 + $0x1a28] sm:$0xff]
        %v2507 = vld [vmem:[%s464 + $0x1a30] sm:$0xff]
        %v2508 = vld [vmem:[%s464 + $0x1a38] sm:$0xff]
        %v2509 = vld [vmem:[%s464 + $0x1a40] sm:$0xff]
        %v2510 = vld [vmem:[%s464 + $0x1a48] sm:$0xff]
        %v2511 = vld [vmem:[%s464 + $0x1a50] sm:$0xff]
        %v2512 = vld [vmem:[%s464 + $0x1a58] sm:$0xff]
        %v2513 = vld [vmem:[%s464 + $0x1a60] sm:$0xff]
        %v2514 = vld [vmem:[%s464 + $0x1a68] sm:$0xff]
        %v2515 = vld [vmem:[%s464 + $0x1a70] sm:$0xff]
        %v2516 = vld [vmem:[%s464 + $0x1a78] sm:$0xff]
        %v2517 = vld [vmem:[%s464 + $0x1a80] sm:$0xff]
        %v2518 = vld [vmem:[%s464 + $0x1a88] sm:$0xff]
        %v2519 = vld [vmem:[%s464 + $0x1a90] sm:$0xff]
        %v2520 = vld [vmem:[%s464 + $0x1a98] sm:$0xff]
        %v2521 = vld [vmem:[%s464 + $0x1aa0] sm:$0xff]
        %v2522 = vld [vmem:[%s464 + $0x1aa8] sm:$0xff]
        %v2523 = vld [vmem:[%s464 + $0x1ab0] sm:$0xff]
        %v2524 = vld [vmem:[%s464 + $0x1ab8] sm:$0xff]
        %v2525 = vld [vmem:[%s464 + $0x1ac0] sm:$0xff]
        %v2526 = vld [vmem:[%s464 + $0x1ac8] sm:$0xff]
        %v2527 = vld [vmem:[%s464 + $0x1ad0] sm:$0xff]
        %v2528 = vld [vmem:[%s464 + $0x1ad8] sm:$0xff]
        %v2529 = vld [vmem:[%s464 + $0x1ae0] sm:$0xff]
        %v2530 = vld [vmem:[%s464 + $0x1ae8] sm:$0xff]
        %v2531 = vld [vmem:[%s464 + $0x1af0] sm:$0xff]
        %v2532 = vld [vmem:[%s464 + $0x1af8] sm:$0xff]
        %v2533 = vld [vmem:[%s464 + $0x1b00] sm:$0xff]
        %v2534 = vld [vmem:[%s464 + $0x1b08] sm:$0xff]
        %v2535 = vld [vmem:[%s464 + $0x1b10] sm:$0xff]
        %v2536 = vld [vmem:[%s464 + $0x1b18] sm:$0xff]
        %v2537 = vld [vmem:[%s464 + $0x1b20] sm:$0xff]
        %v2538 = vld [vmem:[%s464 + $0x1b28] sm:$0xff]
        %v2539 = vld [vmem:[%s464 + $0x1b30] sm:$0xff]
        %v2540 = vld [vmem:[%s464 + $0x1b38] sm:$0xff]
        %v2541 = vld [vmem:[%s464 + $0x1b40] sm:$0xff]
        %v2542 = vld [vmem:[%s464 + $0x1b48] sm:$0xff]
        %v2543 = vld [vmem:[%s464 + $0x1b50] sm:$0xff]
        %v2544 = vld [vmem:[%s464 + $0x1b58] sm:$0xff]
        %v2545 = vld [vmem:[%s464 + $0x1b60] sm:$0xff]
        %v2546 = vld [vmem:[%s464 + $0x1b68] sm:$0xff]
        %v2547 = vld [vmem:[%s464 + $0x1b70] sm:$0xff]
        %v2548 = vld [vmem:[%s464 + $0x1b78] sm:$0xff]
        %v2549 = vld [vmem:[%s464 + $0x1b80] sm:$0xff]
        %v2550 = vld [vmem:[%s464 + $0x1b88] sm:$0xff]
        %v2551 = vld [vmem:[%s464 + $0x1b90] sm:$0xff]
        %v2552 = vld [vmem:[%s464 + $0x1b98] sm:$0xff]
        %v2553 = vld [vmem:[%s464 + $0x1ba0] sm:$0xff]
        %v2554 = vld [vmem:[%s464 + $0x1ba8] sm:$0xff]
        %v2555 = vld [vmem:[%s464 + $0x1bb0] sm:$0xff]
        %v2556 = vld [vmem:[%s464 + $0x1bb8] sm:$0xff]
        %v2557 = vld [vmem:[%s464 + $0x1bc0] sm:$0xff]
        %v2558 = vld [vmem:[%s464 + $0x1bc8] sm:$0xff]
        %v2559 = vld [vmem:[%s464 + $0x1bd0] sm:$0xff]
        %v2560 = vld [vmem:[%s464 + $0x1bd8] sm:$0xff]
        %v2561 = vld [vmem:[%s464 + $0x1be0] sm:$0xff]
        %v2562 = vld [vmem:[%s464 + $0x1be8] sm:$0xff]
        %v2563 = vld [vmem:[%s464 + $0x1bf0] sm:$0xff]
        %v2564 = vld [vmem:[%s464 + $0x1bf8] sm:$0xff]
        %v2565 = vld [vmem:[%s464 + $0x1c00] sm:$0xff]
        %v2566 = vld [vmem:[%s464 + $0x1c08] sm:$0xff]
        %v2567 = vld [vmem:[%s464 + $0x1c10] sm:$0xff]
        %v2568 = vld [vmem:[%s464 + $0x1c18] sm:$0xff]
        %v2569 = vld [vmem:[%s464 + $0x1c20] sm:$0xff]
        %v2570 = vld [vmem:[%s464 + $0x1c28] sm:$0xff]
        %v2571 = vld [vmem:[%s464 + $0x1c30] sm:$0xff]
        %v2572 = vld [vmem:[%s464 + $0x1c38] sm:$0xff]
        %v2573 = vld [vmem:[%s464 + $0x1c40] sm:$0xff]
        %v2574 = vld [vmem:[%s464 + $0x1c48] sm:$0xff]
        %v2575 = vld [vmem:[%s464 + $0x1c50] sm:$0xff]
        %v2576 = vld [vmem:[%s464 + $0x1c58] sm:$0xff]
        %v2577 = vld [vmem:[%s464 + $0x1c60] sm:$0xff]
        %v2578 = vld [vmem:[%s464 + $0x1c68] sm:$0xff]
        %v2579 = vld [vmem:[%s464 + $0x1c70] sm:$0xff]
        %v2580 = vld [vmem:[%s464 + $0x1c78] sm:$0xff]
        %v2581 = vld [vmem:[%s464 + $0x1c80] sm:$0xff]
        %v2582 = vld [vmem:[%s464 + $0x1c88] sm:$0xff]
        %v2583 = vld [vmem:[%s464 + $0x1c90] sm:$0xff]
        %v2584 = vld [vmem:[%s464 + $0x1c98] sm:$0xff]
        %v2585 = vld [vmem:[%s464 + $0x1ca0] sm:$0xff]
        %v2586 = vld [vmem:[%s464 + $0x1ca8] sm:$0xff]
        %v2587 = vld [vmem:[%s464 + $0x1cb0] sm:$0xff]
        %v2588 = vld [vmem:[%s464 + $0x1cb8] sm:$0xff]
        %v2589 = vld [vmem:[%s464 + $0x1cc0] sm:$0xff]
        %v2590 = vld [vmem:[%s464 + $0x1cc8] sm:$0xff]
        %v2591 = vld [vmem:[%s464 + $0x1cd0] sm:$0xff]
        %v2592 = vld [vmem:[%s464 + $0x1cd8] sm:$0xff]
        %v2593 = vld [vmem:[%s464 + $0x1ce0] sm:$0xff]
        %v2594 = vld [vmem:[%s464 + $0x1ce8] sm:$0xff]
        %v2595 = vld [vmem:[%s464 + $0x1cf0] sm:$0xff]
        %v2596 = vld [vmem:[%s464 + $0x1cf8] sm:$0xff]
        %v2597 = vld [vmem:[%s464 + $0x1d00] sm:$0xff]
        %v2598 = vld [vmem:[%s464 + $0x1d08] sm:$0xff]
        %v2599 = vld [vmem:[%s464 + $0x1d10] sm:$0xff]
        %v2600 = vld [vmem:[%s464 + $0x1d18] sm:$0xff]
        %v2601 = vld [vmem:[%s464 + $0x1d20] sm:$0xff]
        %v2602 = vld [vmem:[%s464 + $0x1d28] sm:$0xff]
        %v2603 = vld [vmem:[%s464 + $0x1d30] sm:$0xff]
        %v2604 = vld [vmem:[%s464 + $0x1d38] sm:$0xff]
        %v2605 = vld [vmem:[%s464 + $0x1d40] sm:$0xff]
        %v2606 = vld [vmem:[%s464 + $0x1d48] sm:$0xff]
        %v2607 = vld [vmem:[%s464 + $0x1d50] sm:$0xff]
        %v2608 = vld [vmem:[%s464 + $0x1d58] sm:$0xff]
        %v2609 = vld [vmem:[%s464 + $0x1d60] sm:$0xff]
        %v2610 = vld [vmem:[%s464 + $0x1d68] sm:$0xff]
        %v2611 = vld [vmem:[%s464 + $0x1d70] sm:$0xff]
        %v2612 = vld [vmem:[%s464 + $0x1d78] sm:$0xff]
        %v2613 = vld [vmem:[%s464 + $0x1d80] sm:$0xff]
        %v2614 = vld [vmem:[%s464 + $0x1d88] sm:$0xff]
        %v2615 = vld [vmem:[%s464 + $0x1d90] sm:$0xff]
        %v2616 = vld [vmem:[%s464 + $0x1d98] sm:$0xff]
        %v2617 = vld [vmem:[%s464 + $0x1da0] sm:$0xff]
        %v2618 = vld [vmem:[%s464 + $0x1da8] sm:$0xff]
        %v2619 = vld [vmem:[%s464 + $0x1db0] sm:$0xff]
        %v2620 = vld [vmem:[%s464 + $0x1db8] sm:$0xff]
        %v2621 = vld [vmem:[%s464 + $0x1dc0] sm:$0xff]
        %v2622 = vld [vmem:[%s464 + $0x1dc8] sm:$0xff]
        %v2623 = vld [vmem:[%s464 + $0x1dd0] sm:$0xff]
        %v2624 = vld [vmem:[%s464 + $0x1dd8] sm:$0xff]
        %v2625 = vld [vmem:[%s464 + $0x1de0] sm:$0xff]
        %v2626 = vld [vmem:[%s464 + $0x1de8] sm:$0xff]
        %v2627 = vld [vmem:[%s464 + $0x1df0] sm:$0xff]
        %v2628 = vld [vmem:[%s464 + $0x1df8] sm:$0xff]
        %v2629 = vld [vmem:[%s464 + $0x1e00] sm:$0xff]
        %v2630 = vld [vmem:[%s464 + $0x1e08] sm:$0xff]
        %v2631 = vld [vmem:[%s464 + $0x1e10] sm:$0xff]
        %v2632 = vld [vmem:[%s464 + $0x1e18] sm:$0xff]
        %v2633 = vld [vmem:[%s464 + $0x1e20] sm:$0xff]
        %v2634 = vld [vmem:[%s464 + $0x1e28] sm:$0xff]
        %v2635 = vld [vmem:[%s464 + $0x1e30] sm:$0xff]
        %v2636 = vld [vmem:[%s464 + $0x1e38] sm:$0xff]
        %v2637 = vld [vmem:[%s464 + $0x1e40] sm:$0xff]
        %v2638 = vld [vmem:[%s464 + $0x1e48] sm:$0xff]
        %v2639 = vld [vmem:[%s464 + $0x1e50] sm:$0xff]
        %v2640 = vld [vmem:[%s464 + $0x1e58] sm:$0xff]
        %v2641 = vld [vmem:[%s464 + $0x1e60] sm:$0xff]
        %v2642 = vld [vmem:[%s464 + $0x1e68] sm:$0xff]
        %v2643 = vld [vmem:[%s464 + $0x1e70] sm:$0xff]
        %v2644 = vld [vmem:[%s464 + $0x1e78] sm:$0xff]
        %v2645 = vld [vmem:[%s464 + $0x1e80] sm:$0xff]
        %v2646 = vld [vmem:[%s464 + $0x1e88] sm:$0xff]
        %v2647 = vld [vmem:[%s464 + $0x1e90] sm:$0xff]
        %v2648 = vld [vmem:[%s464 + $0x1e98] sm:$0xff]
        %v2649 = vld [vmem:[%s464 + $0x1ea0] sm:$0xff]
        %v2650 = vld [vmem:[%s464 + $0x1ea8] sm:$0xff]
        %v2651 = vld [vmem:[%s464 + $0x1eb0] sm:$0xff]
        %v2652 = vld [vmem:[%s464 + $0x1eb8] sm:$0xff]
        %v2653 = vld [vmem:[%s464 + $0x1ec0] sm:$0xff]
        %v2654 = vld [vmem:[%s464 + $0x1ec8] sm:$0xff]
        %v2655 = vld [vmem:[%s464 + $0x1ed0] sm:$0xff]
        %v2656 = vld [vmem:[%s464 + $0x1ed8] sm:$0xff]
        %v2657 = vld [vmem:[%s464 + $0x1ee0] sm:$0xff]
        %v2658 = vld [vmem:[%s464 + $0x1ee8] sm:$0xff]
        %v2659 = vld [vmem:[%s464 + $0x1ef0] sm:$0xff]
        %v2660 = vld [vmem:[%s464 + $0x1ef8] sm:$0xff]
        %v2661 = vld [vmem:[%s464 + $0x1f00] sm:$0xff]
        %v2662 = vld [vmem:[%s464 + $0x1f08] sm:$0xff]
        %v2663 = vld [vmem:[%s464 + $0x1f10] sm:$0xff]
        %v2664 = vld [vmem:[%s464 + $0x1f18] sm:$0xff]
        %v2665 = vld [vmem:[%s464 + $0x1f20] sm:$0xff]
        %v2666 = vld [vmem:[%s464 + $0x1f28] sm:$0xff]
        %v2667 = vld [vmem:[%s464 + $0x1f30] sm:$0xff]
        %v2668 = vld [vmem:[%s464 + $0x1f38] sm:$0xff]
        %v2669 = vld [vmem:[%s464 + $0x1f40] sm:$0xff]
        %v2670 = vld [vmem:[%s464 + $0x1f48] sm:$0xff]
        %v2671 = vld [vmem:[%s464 + $0x1f50] sm:$0xff]
        %v2672 = vld [vmem:[%s464 + $0x1f58] sm:$0xff]
        %v2673 = vld [vmem:[%s464 + $0x1f60] sm:$0xff]
        %v2674 = vld [vmem:[%s464 + $0x1f68] sm:$0xff]
        %v2675 = vld [vmem:[%s464 + $0x1f70] sm:$0xff]
        %v2676 = vld [vmem:[%s464 + $0x1f78] sm:$0xff]
        %v2677 = vld [vmem:[%s464 + $0x1f80] sm:$0xff]
        %v2678 = vld [vmem:[%s464 + $0x1f88] sm:$0xff]
        %v2679 = vld [vmem:[%s464 + $0x1f90] sm:$0xff]
        %v2680 = vld [vmem:[%s464 + $0x1f98] sm:$0xff]
        %v2681 = vld [vmem:[%s464 + $0x1fa0] sm:$0xff]
        %v2682 = vld [vmem:[%s464 + $0x1fa8] sm:$0xff]
        %v2683 = vld [vmem:[%s464 + $0x1fb0] sm:$0xff]
        %v2684 = vld [vmem:[%s464 + $0x1fb8] sm:$0xff]
        %v2685 = vld [vmem:[%s464 + $0x1fc0] sm:$0xff]
        %v2686 = vld [vmem:[%s464 + $0x1fc8] sm:$0xff]
        %v2687 = vld [vmem:[%s464 + $0x1fd0] sm:$0xff]
        %v2688 = vld [vmem:[%s464 + $0x1fd8] sm:$0xff]
        %v2689 = vld [vmem:[%s464 + $0x1fe0] sm:$0xff]
        %v2690 = vld [vmem:[%s464 + $0x1fe8] sm:$0xff]
        %v2691 = vld [vmem:[%s464 + $0x1ff0] sm:$0xff]
        %v2692 = vld [vmem:[%s464 + $0x1ff8] sm:$0xff]
        %v2693 = vld [vmem:[%s473] sm:$0xff]
        %v2695 = vlaneseq
        %v2696 = vshrl.u32 %v2695, 7
        %v2697 = vsub.s32 0, %v2696
        %v2698 = vrot.slane %v2693, %v2697
        %v2699 = vlaneseq
        %v2700 = vshrl.u32 %v2699, 7
        %v2701 = vsub.s32 1, %v2700
        %v2702 = vrot.slane %v2693, %v2701
        %v2703 = vlaneseq
        %v2704 = vshrl.u32 %v2703, 7
        %v2705 = vsub.s32 2, %v2704
        %v2706 = vrot.slane %v2693, %v2705
        %v2707 = vlaneseq
        %v2708 = vshrl.u32 %v2707, 7
        %v2709 = vsub.s32 3, %v2708
        %v2710 = vrot.slane %v2693, %v2709
        %v2711 = vlaneseq
        %v2712 = vshrl.u32 %v2711, 7
        %v2713 = vsub.s32 4, %v2712
        %v2714 = vrot.slane %v2693, %v2713
        %v2715 = vlaneseq
        %v2716 = vshrl.u32 %v2715, 7
        %v2717 = vsub.s32 5, %v2716
        %v2718 = vrot.slane %v2693, %v2717
        %v2719 = vlaneseq
        %v2720 = vshrl.u32 %v2719, 7
        %v2721 = vsub.s32 6, %v2720
        %v2722 = vrot.slane %v2693, %v2721
        %v2723 = vlaneseq
        %v2724 = vshrl.u32 %v2723, 7
        %v2725 = vsub.s32 7, %v2724
        %v2726 = vrot.slane %v2693, %v2725
        %v2743 = vunpack.c.l.b16 %v1661
        %v2744 = vunpack.c.h.b16 %v1661
        %v2745 = vunpack.c.l.b16 %v1662
        %v2746 = vunpack.c.h.b16 %v1662
        %v2747 = vunpack.c.l.b16 %v1663
        %v2748 = vunpack.c.h.b16 %v1663
        %v2749 = vunpack.c.l.b16 %v1664
        %v2750 = vunpack.c.h.b16 %v1664
        %v2751 = vunpack.c.l.b16 %v1665
        %v2752 = vunpack.c.h.b16 %v1665
        %v2753 = vunpack.c.l.b16 %v1666
        %v2754 = vunpack.c.h.b16 %v1666
        %v2755 = vunpack.c.l.b16 %v1667
        %v2756 = vunpack.c.h.b16 %v1667
        %v2757 = vunpack.c.l.b16 %v1668
        %v2758 = vunpack.c.h.b16 %v1668
        %v2759 = vpack.c.b16 %v2743, %v2743
        %v2760 = vpack.c.b16 %v2744, %v2744
        %v2761 = vpack.c.b16 %v2745, %v2745
        %v2762 = vpack.c.b16 %v2746, %v2746
        %v2763 = vpack.c.b16 %v2747, %v2747
        %v2764 = vpack.c.b16 %v2748, %v2748
        %v2765 = vpack.c.b16 %v2749, %v2749
        %v2766 = vpack.c.b16 %v2750, %v2750
        %v2767 = vpack.c.b16 %v2751, %v2751
        %v2768 = vpack.c.b16 %v2752, %v2752
        %v2769 = vpack.c.b16 %v2753, %v2753
        %v2770 = vpack.c.b16 %v2754, %v2754
        %v2771 = vpack.c.b16 %v2755, %v2755
        %v2772 = vpack.c.b16 %v2756, %v2756
        %v2773 = vpack.c.b16 %v2757, %v2757
        %v2774 = vpack.c.b16 %v2758, %v2758
        %v3815 = vunpack.c.l.b16 %v1669
        %v3816 = vunpack.c.h.b16 %v1669
        %v3817 = vunpack.c.l.b16 %v1670
        %v3818 = vunpack.c.h.b16 %v1670
        %v3819 = vunpack.c.l.b16 %v1671
        %v3820 = vunpack.c.h.b16 %v1671
        %v3821 = vunpack.c.l.b16 %v1672
        %v3822 = vunpack.c.h.b16 %v1672
        %v3823 = vunpack.c.l.b16 %v1673
        %v3824 = vunpack.c.h.b16 %v1673
        %v3825 = vunpack.c.l.b16 %v1674
        %v3826 = vunpack.c.h.b16 %v1674
        %v3827 = vunpack.c.l.b16 %v1675
        %v3828 = vunpack.c.h.b16 %v1675
        %v3829 = vunpack.c.l.b16 %v1676
        %v3830 = vunpack.c.h.b16 %v1676
        %v3831 = vunpack.c.l.b16 %v1677
        %v3832 = vunpack.c.h.b16 %v1677
        %v3833 = vunpack.c.l.b16 %v1678
        %v3834 = vunpack.c.h.b16 %v1678
        %v3835 = vunpack.c.l.b16 %v1679
        %v3836 = vunpack.c.h.b16 %v1679
        %v3837 = vunpack.c.l.b16 %v1680
        %v3838 = vunpack.c.h.b16 %v1680
        %v3839 = vunpack.c.l.b16 %v1681
        %v3840 = vunpack.c.h.b16 %v1681
        %v3841 = vunpack.c.l.b16 %v1682
        %v3842 = vunpack.c.h.b16 %v1682
        %v3843 = vunpack.c.l.b16 %v1683
        %v3844 = vunpack.c.h.b16 %v1683
        %v3845 = vunpack.c.l.b16 %v1684
        %v3846 = vunpack.c.h.b16 %v1684
        %v3847 = vunpack.c.l.b16 %v1685
        %v3848 = vunpack.c.h.b16 %v1685
        %v3849 = vunpack.c.l.b16 %v1686
        %v3850 = vunpack.c.h.b16 %v1686
        %v3851 = vunpack.c.l.b16 %v1687
        %v3852 = vunpack.c.h.b16 %v1687
        %v3853 = vunpack.c.l.b16 %v1688
        %v3854 = vunpack.c.h.b16 %v1688
        %v3855 = vunpack.c.l.b16 %v1689
        %v3856 = vunpack.c.h.b16 %v1689
        %v3857 = vunpack.c.l.b16 %v1690
        %v3858 = vunpack.c.h.b16 %v1690
        %v3859 = vunpack.c.l.b16 %v1691
        %v3860 = vunpack.c.h.b16 %v1691
        %v3861 = vunpack.c.l.b16 %v1692
        %v3862 = vunpack.c.h.b16 %v1692
        %v3863 = vunpack.c.l.b16 %v1693
        %v3864 = vunpack.c.h.b16 %v1693
        %v3865 = vunpack.c.l.b16 %v1694
        %v3866 = vunpack.c.h.b16 %v1694
        %v3867 = vunpack.c.l.b16 %v1695
        %v3868 = vunpack.c.h.b16 %v1695
        %v3869 = vunpack.c.l.b16 %v1696
        %v3870 = vunpack.c.h.b16 %v1696
        %v3871 = vunpack.c.l.b16 %v1697
        %v3872 = vunpack.c.h.b16 %v1697
        %v3873 = vunpack.c.l.b16 %v1698
        %v3874 = vunpack.c.h.b16 %v1698
        %v3875 = vunpack.c.l.b16 %v1699
        %v3876 = vunpack.c.h.b16 %v1699
        %v3877 = vunpack.c.l.b16 %v1700
        %v3878 = vunpack.c.h.b16 %v1700
        %v3879 = vunpack.c.l.b16 %v1701
        %v3880 = vunpack.c.h.b16 %v1701
        %v3881 = vunpack.c.l.b16 %v1702
        %v3882 = vunpack.c.h.b16 %v1702
        %v3883 = vunpack.c.l.b16 %v1703
        %v3884 = vunpack.c.h.b16 %v1703
        %v3885 = vunpack.c.l.b16 %v1704
        %v3886 = vunpack.c.h.b16 %v1704
        %v3887 = vunpack.c.l.b16 %v1705
        %v3888 = vunpack.c.h.b16 %v1705
        %v3889 = vunpack.c.l.b16 %v1706
        %v3890 = vunpack.c.h.b16 %v1706
        %v3891 = vunpack.c.l.b16 %v1707
        %v3892 = vunpack.c.h.b16 %v1707
        %v3893 = vunpack.c.l.b16 %v1708
        %v3894 = vunpack.c.h.b16 %v1708
        %v3895 = vunpack.c.l.b16 %v1709
        %v3896 = vunpack.c.h.b16 %v1709
        %v3897 = vunpack.c.l.b16 %v1710
        %v3898 = vunpack.c.h.b16 %v1710
        %v3899 = vunpack.c.l.b16 %v1711
        %v3900 = vunpack.c.h.b16 %v1711
        %v3901 = vunpack.c.l.b16 %v1712
        %v3902 = vunpack.c.h.b16 %v1712
        %v3903 = vunpack.c.l.b16 %v1713
        %v3904 = vunpack.c.h.b16 %v1713
        %v3905 = vunpack.c.l.b16 %v1714
        %v3906 = vunpack.c.h.b16 %v1714
        %v3907 = vunpack.c.l.b16 %v1715
        %v3908 = vunpack.c.h.b16 %v1715
        %v3909 = vunpack.c.l.b16 %v1716
        %v3910 = vunpack.c.h.b16 %v1716
        %v3911 = vunpack.c.l.b16 %v1717
        %v3912 = vunpack.c.h.b16 %v1717
        %v3913 = vunpack.c.l.b16 %v1718
        %v3914 = vunpack.c.h.b16 %v1718
        %v3915 = vunpack.c.l.b16 %v1719
        %v3916 = vunpack.c.h.b16 %v1719
        %v3917 = vunpack.c.l.b16 %v1720
        %v3918 = vunpack.c.h.b16 %v1720
        %v3919 = vunpack.c.l.b16 %v1721
        %v3920 = vunpack.c.h.b16 %v1721
        %v3921 = vunpack.c.l.b16 %v1722
        %v3922 = vunpack.c.h.b16 %v1722
        %v3923 = vunpack.c.l.b16 %v1723
        %v3924 = vunpack.c.h.b16 %v1723
        %v3925 = vunpack.c.l.b16 %v1724
        %v3926 = vunpack.c.h.b16 %v1724
        %v3927 = vunpack.c.l.b16 %v1725
        %v3928 = vunpack.c.h.b16 %v1725
        %v3929 = vunpack.c.l.b16 %v1726
        %v3930 = vunpack.c.h.b16 %v1726
        %v3931 = vunpack.c.l.b16 %v1727
        %v3932 = vunpack.c.h.b16 %v1727
        %v3933 = vunpack.c.l.b16 %v1728
        %v3934 = vunpack.c.h.b16 %v1728
        %v3935 = vunpack.c.l.b16 %v1729
        %v3936 = vunpack.c.h.b16 %v1729
        %v3937 = vunpack.c.l.b16 %v1730
        %v3938 = vunpack.c.h.b16 %v1730
        %v3939 = vunpack.c.l.b16 %v1731
        %v3940 = vunpack.c.h.b16 %v1731
        %v3941 = vunpack.c.l.b16 %v1732
        %v3942 = vunpack.c.h.b16 %v1732
        %v3943 = vunpack.c.l.b16 %v1733
        %v3944 = vunpack.c.h.b16 %v1733
        %v3945 = vunpack.c.l.b16 %v1734
        %v3946 = vunpack.c.h.b16 %v1734
        %v3947 = vunpack.c.l.b16 %v1735
        %v3948 = vunpack.c.h.b16 %v1735
        %v3949 = vunpack.c.l.b16 %v1736
        %v3950 = vunpack.c.h.b16 %v1736
        %v3951 = vunpack.c.l.b16 %v1737
        %v3952 = vunpack.c.h.b16 %v1737
        %v3953 = vunpack.c.l.b16 %v1738
        %v3954 = vunpack.c.h.b16 %v1738
        %v3955 = vunpack.c.l.b16 %v1739
        %v3956 = vunpack.c.h.b16 %v1739
        %v3957 = vunpack.c.l.b16 %v1740
        %v3958 = vunpack.c.h.b16 %v1740
        %v3959 = vunpack.c.l.b16 %v1741
        %v3960 = vunpack.c.h.b16 %v1741
        %v3961 = vunpack.c.l.b16 %v1742
        %v3962 = vunpack.c.h.b16 %v1742
        %v3963 = vunpack.c.l.b16 %v1743
        %v3964 = vunpack.c.h.b16 %v1743
        %v3965 = vunpack.c.l.b16 %v1744
        %v3966 = vunpack.c.h.b16 %v1744
        %v3967 = vunpack.c.l.b16 %v1745
        %v3968 = vunpack.c.h.b16 %v1745
        %v3969 = vunpack.c.l.b16 %v1746
        %v3970 = vunpack.c.h.b16 %v1746
        %v3971 = vunpack.c.l.b16 %v1747
        %v3972 = vunpack.c.h.b16 %v1747
        %v3973 = vunpack.c.l.b16 %v1748
        %v3974 = vunpack.c.h.b16 %v1748
        %v3975 = vunpack.c.l.b16 %v1749
        %v3976 = vunpack.c.h.b16 %v1749
        %v3977 = vunpack.c.l.b16 %v1750
        %v3978 = vunpack.c.h.b16 %v1750
        %v3979 = vunpack.c.l.b16 %v1751
        %v3980 = vunpack.c.h.b16 %v1751
        %v3981 = vunpack.c.l.b16 %v1752
        %v3982 = vunpack.c.h.b16 %v1752
        %v3983 = vunpack.c.l.b16 %v1753
        %v3984 = vunpack.c.h.b16 %v1753
        %v3985 = vunpack.c.l.b16 %v1754
        %v3986 = vunpack.c.h.b16 %v1754
        %v3987 = vunpack.c.l.b16 %v1755
        %v3988 = vunpack.c.h.b16 %v1755
        %v3989 = vunpack.c.l.b16 %v1756
        %v3990 = vunpack.c.h.b16 %v1756
        %v3991 = vunpack.c.l.b16 %v1757
        %v3992 = vunpack.c.h.b16 %v1757
        %v3993 = vunpack.c.l.b16 %v1758
        %v3994 = vunpack.c.h.b16 %v1758
        %v3995 = vunpack.c.l.b16 %v1759
        %v3996 = vunpack.c.h.b16 %v1759
        %v3997 = vunpack.c.l.b16 %v1760
        %v3998 = vunpack.c.h.b16 %v1760
        %v3999 = vunpack.c.l.b16 %v1761
        %v4000 = vunpack.c.h.b16 %v1761
        %v4001 = vunpack.c.l.b16 %v1762
        %v4002 = vunpack.c.h.b16 %v1762
        %v4003 = vunpack.c.l.b16 %v1763
        %v4004 = vunpack.c.h.b16 %v1763
        %v4005 = vunpack.c.l.b16 %v1764
        %v4006 = vunpack.c.h.b16 %v1764
        %v4007 = vunpack.c.l.b16 %v1765
        %v4008 = vunpack.c.h.b16 %v1765
        %v4009 = vunpack.c.l.b16 %v1766
        %v4010 = vunpack.c.h.b16 %v1766
        %v4011 = vunpack.c.l.b16 %v1767
        %v4012 = vunpack.c.h.b16 %v1767
        %v4013 = vunpack.c.l.b16 %v1768
        %v4014 = vunpack.c.h.b16 %v1768
        %v4015 = vunpack.c.l.b16 %v1769
        %v4016 = vunpack.c.h.b16 %v1769
        %v4017 = vunpack.c.l.b16 %v1770
        %v4018 = vunpack.c.h.b16 %v1770
        %v4019 = vunpack.c.l.b16 %v1771
        %v4020 = vunpack.c.h.b16 %v1771
        %v4021 = vunpack.c.l.b16 %v1772
        %v4022 = vunpack.c.h.b16 %v1772
        %v4023 = vunpack.c.l.b16 %v1773
        %v4024 = vunpack.c.h.b16 %v1773
        %v4025 = vunpack.c.l.b16 %v1774
        %v4026 = vunpack.c.h.b16 %v1774
        %v4027 = vunpack.c.l.b16 %v1775
        %v4028 = vunpack.c.h.b16 %v1775
        %v4029 = vunpack.c.l.b16 %v1776
        %v4030 = vunpack.c.h.b16 %v1776
        %v4031 = vunpack.c.l.b16 %v1777
        %v4032 = vunpack.c.h.b16 %v1777
        %v4033 = vunpack.c.l.b16 %v1778
        %v4034 = vunpack.c.h.b16 %v1778
        %v4035 = vunpack.c.l.b16 %v1779
        %v4036 = vunpack.c.h.b16 %v1779
        %v4037 = vunpack.c.l.b16 %v1780
        %v4038 = vunpack.c.h.b16 %v1780
        %v4039 = vunpack.c.l.b16 %v1781
        %v4040 = vunpack.c.h.b16 %v1781
        %v4041 = vunpack.c.l.b16 %v1782
        %v4042 = vunpack.c.h.b16 %v1782
        %v4043 = vunpack.c.l.b16 %v1783
        %v4044 = vunpack.c.h.b16 %v1783
        %v4045 = vunpack.c.l.b16 %v1784
        %v4046 = vunpack.c.h.b16 %v1784
        %v4047 = vunpack.c.l.b16 %v1785
        %v4048 = vunpack.c.h.b16 %v1785
        %v4049 = vunpack.c.l.b16 %v1786
        %v4050 = vunpack.c.h.b16 %v1786
        %v4051 = vunpack.c.l.b16 %v1787
        %v4052 = vunpack.c.h.b16 %v1787
        %v4053 = vunpack.c.l.b16 %v1788
        %v4054 = vunpack.c.h.b16 %v1788
        %v4055 = vunpack.c.l.b16 %v1789
        %v4056 = vunpack.c.h.b16 %v1789
        %v4057 = vunpack.c.l.b16 %v1790
        %v4058 = vunpack.c.h.b16 %v1790
        %v4059 = vunpack.c.l.b16 %v1791
        %v4060 = vunpack.c.h.b16 %v1791
        %v4061 = vunpack.c.l.b16 %v1792
        %v4062 = vunpack.c.h.b16 %v1792
        %v4063 = vunpack.c.l.b16 %v1793
        %v4064 = vunpack.c.h.b16 %v1793
        %v4065 = vunpack.c.l.b16 %v1794
        %v4066 = vunpack.c.h.b16 %v1794
        %v4067 = vunpack.c.l.b16 %v1795
        %v4068 = vunpack.c.h.b16 %v1795
        %v4069 = vunpack.c.l.b16 %v1796
        %v4070 = vunpack.c.h.b16 %v1796
        %v4071 = vunpack.c.l.b16 %v1797
        %v4072 = vunpack.c.h.b16 %v1797
        %v4073 = vunpack.c.l.b16 %v1798
        %v4074 = vunpack.c.h.b16 %v1798
        %v4075 = vunpack.c.l.b16 %v1799
        %v4076 = vunpack.c.h.b16 %v1799
        %v4077 = vunpack.c.l.b16 %v1800
        %v4078 = vunpack.c.h.b16 %v1800
        %v4079 = vunpack.c.l.b16 %v1801
        %v4080 = vunpack.c.h.b16 %v1801
        %v4081 = vunpack.c.l.b16 %v1802
        %v4082 = vunpack.c.h.b16 %v1802
        %v4083 = vunpack.c.l.b16 %v1803
        %v4084 = vunpack.c.h.b16 %v1803
        %v4085 = vunpack.c.l.b16 %v1804
        %v4086 = vunpack.c.h.b16 %v1804
        %v4087 = vunpack.c.l.b16 %v1805
        %v4088 = vunpack.c.h.b16 %v1805
        %v4089 = vunpack.c.l.b16 %v1806
        %v4090 = vunpack.c.h.b16 %v1806
        %v4091 = vunpack.c.l.b16 %v1807
        %v4092 = vunpack.c.h.b16 %v1807
        %v4093 = vunpack.c.l.b16 %v1808
        %v4094 = vunpack.c.h.b16 %v1808
        %v4095 = vunpack.c.l.b16 %v1809
        %v4096 = vunpack.c.h.b16 %v1809
        %v4097 = vunpack.c.l.b16 %v1810
        %v4098 = vunpack.c.h.b16 %v1810
        %v4099 = vunpack.c.l.b16 %v1811
        %v4100 = vunpack.c.h.b16 %v1811
        %v4101 = vunpack.c.l.b16 %v1812
        %v4102 = vunpack.c.h.b16 %v1812
        %v4103 = vunpack.c.l.b16 %v1813
        %v4104 = vunpack.c.h.b16 %v1813
        %v4105 = vunpack.c.l.b16 %v1814
        %v4106 = vunpack.c.h.b16 %v1814
        %v4107 = vunpack.c.l.b16 %v1815
        %v4108 = vunpack.c.h.b16 %v1815
        %v4109 = vunpack.c.l.b16 %v1816
        %v4110 = vunpack.c.h.b16 %v1816
        %v4111 = vunpack.c.l.b16 %v1817
        %v4112 = vunpack.c.h.b16 %v1817
        %v4113 = vunpack.c.l.b16 %v1818
        %v4114 = vunpack.c.h.b16 %v1818
        %v4115 = vunpack.c.l.b16 %v1819
        %v4116 = vunpack.c.h.b16 %v1819
        %v4117 = vunpack.c.l.b16 %v1820
        %v4118 = vunpack.c.h.b16 %v1820
        %v4119 = vunpack.c.l.b16 %v1821
        %v4120 = vunpack.c.h.b16 %v1821
        %v4121 = vunpack.c.l.b16 %v1822
        %v4122 = vunpack.c.h.b16 %v1822
        %v4123 = vunpack.c.l.b16 %v1823
        %v4124 = vunpack.c.h.b16 %v1823
        %v4125 = vunpack.c.l.b16 %v1824
        %v4126 = vunpack.c.h.b16 %v1824
        %v4127 = vunpack.c.l.b16 %v1825
        %v4128 = vunpack.c.h.b16 %v1825
        %v4129 = vunpack.c.l.b16 %v1826
        %v4130 = vunpack.c.h.b16 %v1826
        %v4131 = vunpack.c.l.b16 %v1827
        %v4132 = vunpack.c.h.b16 %v1827
        %v4133 = vunpack.c.l.b16 %v1828
        %v4134 = vunpack.c.h.b16 %v1828
        %v4135 = vunpack.c.l.b16 %v1829
        %v4136 = vunpack.c.h.b16 %v1829
        %v4137 = vunpack.c.l.b16 %v1830
        %v4138 = vunpack.c.h.b16 %v1830
        %v4139 = vunpack.c.l.b16 %v1831
        %v4140 = vunpack.c.h.b16 %v1831
        %v4141 = vunpack.c.l.b16 %v1832
        %v4142 = vunpack.c.h.b16 %v1832
        %v4143 = vunpack.c.l.b16 %v1833
        %v4144 = vunpack.c.h.b16 %v1833
        %v4145 = vunpack.c.l.b16 %v1834
        %v4146 = vunpack.c.h.b16 %v1834
        %v4147 = vunpack.c.l.b16 %v1835
        %v4148 = vunpack.c.h.b16 %v1835
        %v4149 = vunpack.c.l.b16 %v1836
        %v4150 = vunpack.c.h.b16 %v1836
        %v4151 = vunpack.c.l.b16 %v1837
        %v4152 = vunpack.c.h.b16 %v1837
        %v4153 = vunpack.c.l.b16 %v1838
        %v4154 = vunpack.c.h.b16 %v1838
        %v4155 = vunpack.c.l.b16 %v1839
        %v4156 = vunpack.c.h.b16 %v1839
        %v4157 = vunpack.c.l.b16 %v1840
        %v4158 = vunpack.c.h.b16 %v1840
        %v4159 = vunpack.c.l.b16 %v1841
        %v4160 = vunpack.c.h.b16 %v1841
        %v4161 = vunpack.c.l.b16 %v1842
        %v4162 = vunpack.c.h.b16 %v1842
        %v4163 = vunpack.c.l.b16 %v1843
        %v4164 = vunpack.c.h.b16 %v1843
        %v4165 = vunpack.c.l.b16 %v1844
        %v4166 = vunpack.c.h.b16 %v1844
        %v4167 = vunpack.c.l.b16 %v1845
        %v4168 = vunpack.c.h.b16 %v1845
        %v4169 = vunpack.c.l.b16 %v1846
        %v4170 = vunpack.c.h.b16 %v1846
        %v4171 = vunpack.c.l.b16 %v1847
        %v4172 = vunpack.c.h.b16 %v1847
        %v4173 = vunpack.c.l.b16 %v1848
        %v4174 = vunpack.c.h.b16 %v1848
        %v4175 = vunpack.c.l.b16 %v1849
        %v4176 = vunpack.c.h.b16 %v1849
        %v4177 = vunpack.c.l.b16 %v1850
        %v4178 = vunpack.c.h.b16 %v1850
        %v4179 = vunpack.c.l.b16 %v1851
        %v4180 = vunpack.c.h.b16 %v1851
        %v4181 = vunpack.c.l.b16 %v1852
        %v4182 = vunpack.c.h.b16 %v1852
        %v4183 = vunpack.c.l.b16 %v1853
        %v4184 = vunpack.c.h.b16 %v1853
        %v4185 = vunpack.c.l.b16 %v1854
        %v4186 = vunpack.c.h.b16 %v1854
        %v4187 = vunpack.c.l.b16 %v1855
        %v4188 = vunpack.c.h.b16 %v1855
        %v4189 = vunpack.c.l.b16 %v1856
        %v4190 = vunpack.c.h.b16 %v1856
        %v4191 = vunpack.c.l.b16 %v1857
        %v4192 = vunpack.c.h.b16 %v1857
        %v4193 = vunpack.c.l.b16 %v1858
        %v4194 = vunpack.c.h.b16 %v1858
        %v4195 = vunpack.c.l.b16 %v1859
        %v4196 = vunpack.c.h.b16 %v1859
        %v4197 = vunpack.c.l.b16 %v1860
        %v4198 = vunpack.c.h.b16 %v1860
        %v4199 = vunpack.c.l.b16 %v1861
        %v4200 = vunpack.c.h.b16 %v1861
        %v4201 = vunpack.c.l.b16 %v1862
        %v4202 = vunpack.c.h.b16 %v1862
        %v4203 = vunpack.c.l.b16 %v1863
        %v4204 = vunpack.c.h.b16 %v1863
        %v4205 = vunpack.c.l.b16 %v1864
        %v4206 = vunpack.c.h.b16 %v1864
        %v4207 = vunpack.c.l.b16 %v1865
        %v4208 = vunpack.c.h.b16 %v1865
        %v4209 = vunpack.c.l.b16 %v1866
        %v4210 = vunpack.c.h.b16 %v1866
        %v4211 = vunpack.c.l.b16 %v1867
        %v4212 = vunpack.c.h.b16 %v1867
        %v4213 = vunpack.c.l.b16 %v1868
        %v4214 = vunpack.c.h.b16 %v1868
        %v4215 = vunpack.c.l.b16 %v1869
        %v4216 = vunpack.c.h.b16 %v1869
        %v4217 = vunpack.c.l.b16 %v1870
        %v4218 = vunpack.c.h.b16 %v1870
        %v4219 = vunpack.c.l.b16 %v1871
        %v4220 = vunpack.c.h.b16 %v1871
        %v4221 = vunpack.c.l.b16 %v1872
        %v4222 = vunpack.c.h.b16 %v1872
        %v4223 = vunpack.c.l.b16 %v1873
        %v4224 = vunpack.c.h.b16 %v1873
        %v4225 = vunpack.c.l.b16 %v1874
        %v4226 = vunpack.c.h.b16 %v1874
        %v4227 = vunpack.c.l.b16 %v1875
        %v4228 = vunpack.c.h.b16 %v1875
        %v4229 = vunpack.c.l.b16 %v1876
        %v4230 = vunpack.c.h.b16 %v1876
        %v4231 = vunpack.c.l.b16 %v1877
        %v4232 = vunpack.c.h.b16 %v1877
        %v4233 = vunpack.c.l.b16 %v1878
        %v4234 = vunpack.c.h.b16 %v1878
        %v4235 = vunpack.c.l.b16 %v1879
        %v4236 = vunpack.c.h.b16 %v1879
        %v4237 = vunpack.c.l.b16 %v1880
        %v4238 = vunpack.c.h.b16 %v1880
        %v4239 = vunpack.c.l.b16 %v1881
        %v4240 = vunpack.c.h.b16 %v1881
        %v4241 = vunpack.c.l.b16 %v1882
        %v4242 = vunpack.c.h.b16 %v1882
        %v4243 = vunpack.c.l.b16 %v1883
        %v4244 = vunpack.c.h.b16 %v1883
        %v4245 = vunpack.c.l.b16 %v1884
        %v4246 = vunpack.c.h.b16 %v1884
        %v4247 = vunpack.c.l.b16 %v1885
        %v4248 = vunpack.c.h.b16 %v1885
        %v4249 = vunpack.c.l.b16 %v1886
        %v4250 = vunpack.c.h.b16 %v1886
        %v4251 = vunpack.c.l.b16 %v1887
        %v4252 = vunpack.c.h.b16 %v1887
        %v4253 = vunpack.c.l.b16 %v1888
        %v4254 = vunpack.c.h.b16 %v1888
        %v4255 = vunpack.c.l.b16 %v1889
        %v4256 = vunpack.c.h.b16 %v1889
        %v4257 = vunpack.c.l.b16 %v1890
        %v4258 = vunpack.c.h.b16 %v1890
        %v4259 = vunpack.c.l.b16 %v1891
        %v4260 = vunpack.c.h.b16 %v1891
        %v4261 = vunpack.c.l.b16 %v1892
        %v4262 = vunpack.c.h.b16 %v1892
        %v4263 = vunpack.c.l.b16 %v1893
        %v4264 = vunpack.c.h.b16 %v1893
        %v4265 = vunpack.c.l.b16 %v1894
        %v4266 = vunpack.c.h.b16 %v1894
        %v4267 = vunpack.c.l.b16 %v1895
        %v4268 = vunpack.c.h.b16 %v1895
        %v4269 = vunpack.c.l.b16 %v1896
        %v4270 = vunpack.c.h.b16 %v1896
        %v4271 = vunpack.c.l.b16 %v1897
        %v4272 = vunpack.c.h.b16 %v1897
        %v4273 = vunpack.c.l.b16 %v1898
        %v4274 = vunpack.c.h.b16 %v1898
        %v4275 = vunpack.c.l.b16 %v1899
        %v4276 = vunpack.c.h.b16 %v1899
        %v4277 = vunpack.c.l.b16 %v1900
        %v4278 = vunpack.c.h.b16 %v1900
        %v4279 = vunpack.c.l.b16 %v1901
        %v4280 = vunpack.c.h.b16 %v1901
        %v4281 = vunpack.c.l.b16 %v1902
        %v4282 = vunpack.c.h.b16 %v1902
        %v4283 = vunpack.c.l.b16 %v1903
        %v4284 = vunpack.c.h.b16 %v1903
        %v4285 = vunpack.c.l.b16 %v1904
        %v4286 = vunpack.c.h.b16 %v1904
        %v4287 = vunpack.c.l.b16 %v1905
        %v4288 = vunpack.c.h.b16 %v1905
        %v4289 = vunpack.c.l.b16 %v1906
        %v4290 = vunpack.c.h.b16 %v1906
        %v4291 = vunpack.c.l.b16 %v1907
        %v4292 = vunpack.c.h.b16 %v1907
        %v4293 = vunpack.c.l.b16 %v1908
        %v4294 = vunpack.c.h.b16 %v1908
        %v4295 = vunpack.c.l.b16 %v1909
        %v4296 = vunpack.c.h.b16 %v1909
        %v4297 = vunpack.c.l.b16 %v1910
        %v4298 = vunpack.c.h.b16 %v1910
        %v4299 = vunpack.c.l.b16 %v1911
        %v4300 = vunpack.c.h.b16 %v1911
        %v4301 = vunpack.c.l.b16 %v1912
        %v4302 = vunpack.c.h.b16 %v1912
        %v4303 = vunpack.c.l.b16 %v1913
        %v4304 = vunpack.c.h.b16 %v1913
        %v4305 = vunpack.c.l.b16 %v1914
        %v4306 = vunpack.c.h.b16 %v1914
        %v4307 = vunpack.c.l.b16 %v1915
        %v4308 = vunpack.c.h.b16 %v1915
        %v4309 = vunpack.c.l.b16 %v1916
        %v4310 = vunpack.c.h.b16 %v1916
        %v4311 = vunpack.c.l.b16 %v1917
        %v4312 = vunpack.c.h.b16 %v1917
        %v4313 = vunpack.c.l.b16 %v1918
        %v4314 = vunpack.c.h.b16 %v1918
        %v4315 = vunpack.c.l.b16 %v1919
        %v4316 = vunpack.c.h.b16 %v1919
        %v4317 = vunpack.c.l.b16 %v1920
        %v4318 = vunpack.c.h.b16 %v1920
        %v4319 = vunpack.c.l.b16 %v1921
        %v4320 = vunpack.c.h.b16 %v1921
        %v4321 = vunpack.c.l.b16 %v1922
        %v4322 = vunpack.c.h.b16 %v1922
        %v4323 = vunpack.c.l.b16 %v1923
        %v4324 = vunpack.c.h.b16 %v1923
        %v4325 = vunpack.c.l.b16 %v1924
        %v4326 = vunpack.c.h.b16 %v1924
        %v4327 = vunpack.c.l.b16 %v1925
        %v4328 = vunpack.c.h.b16 %v1925
        %v4329 = vunpack.c.l.b16 %v1926
        %v4330 = vunpack.c.h.b16 %v1926
        %v4331 = vunpack.c.l.b16 %v1927
        %v4332 = vunpack.c.h.b16 %v1927
        %v4333 = vunpack.c.l.b16 %v1928
        %v4334 = vunpack.c.h.b16 %v1928
        %v4335 = vunpack.c.l.b16 %v1929
        %v4336 = vunpack.c.h.b16 %v1929
        %v4337 = vunpack.c.l.b16 %v1930
        %v4338 = vunpack.c.h.b16 %v1930
        %v4339 = vunpack.c.l.b16 %v1931
        %v4340 = vunpack.c.h.b16 %v1931
        %v4341 = vunpack.c.l.b16 %v1932
        %v4342 = vunpack.c.h.b16 %v1932
        %v4343 = vunpack.c.l.b16 %v1933
        %v4344 = vunpack.c.h.b16 %v1933
        %v4345 = vunpack.c.l.b16 %v1934
        %v4346 = vunpack.c.h.b16 %v1934
        %v4347 = vunpack.c.l.b16 %v1935
        %v4348 = vunpack.c.h.b16 %v1935
        %v4349 = vunpack.c.l.b16 %v1936
        %v4350 = vunpack.c.h.b16 %v1936
        %v4351 = vunpack.c.l.b16 %v1937
        %v4352 = vunpack.c.h.b16 %v1937
        %v4353 = vunpack.c.l.b16 %v1938
        %v4354 = vunpack.c.h.b16 %v1938
        %v4355 = vunpack.c.l.b16 %v1939
        %v4356 = vunpack.c.h.b16 %v1939
        %v4357 = vunpack.c.l.b16 %v1940
        %v4358 = vunpack.c.h.b16 %v1940
        %v4359 = vunpack.c.l.b16 %v1941
        %v4360 = vunpack.c.h.b16 %v1941
        %v4361 = vunpack.c.l.b16 %v1942
        %v4362 = vunpack.c.h.b16 %v1942
        %v4363 = vunpack.c.l.b16 %v1943
        %v4364 = vunpack.c.h.b16 %v1943
        %v4365 = vunpack.c.l.b16 %v1944
        %v4366 = vunpack.c.h.b16 %v1944
        %v4367 = vunpack.c.l.b16 %v1945
        %v4368 = vunpack.c.h.b16 %v1945
        %v4369 = vunpack.c.l.b16 %v1946
        %v4370 = vunpack.c.h.b16 %v1946
        %v4371 = vunpack.c.l.b16 %v1947
        %v4372 = vunpack.c.h.b16 %v1947
        %v4373 = vunpack.c.l.b16 %v1948
        %v4374 = vunpack.c.h.b16 %v1948
        %v4375 = vunpack.c.l.b16 %v1949
        %v4376 = vunpack.c.h.b16 %v1949
        %v4377 = vunpack.c.l.b16 %v1950
        %v4378 = vunpack.c.h.b16 %v1950
        %v4379 = vunpack.c.l.b16 %v1951
        %v4380 = vunpack.c.h.b16 %v1951
        %v4381 = vunpack.c.l.b16 %v1952
        %v4382 = vunpack.c.h.b16 %v1952
        %v4383 = vunpack.c.l.b16 %v1953
        %v4384 = vunpack.c.h.b16 %v1953
        %v4385 = vunpack.c.l.b16 %v1954
        %v4386 = vunpack.c.h.b16 %v1954
        %v4387 = vunpack.c.l.b16 %v1955
        %v4388 = vunpack.c.h.b16 %v1955
        %v4389 = vunpack.c.l.b16 %v1956
        %v4390 = vunpack.c.h.b16 %v1956
        %v4391 = vunpack.c.l.b16 %v1957
        %v4392 = vunpack.c.h.b16 %v1957
        %v4393 = vunpack.c.l.b16 %v1958
        %v4394 = vunpack.c.h.b16 %v1958
        %v4395 = vunpack.c.l.b16 %v1959
        %v4396 = vunpack.c.h.b16 %v1959
        %v4397 = vunpack.c.l.b16 %v1960
        %v4398 = vunpack.c.h.b16 %v1960
        %v4399 = vunpack.c.l.b16 %v1961
        %v4400 = vunpack.c.h.b16 %v1961
        %v4401 = vunpack.c.l.b16 %v1962
        %v4402 = vunpack.c.h.b16 %v1962
        %v4403 = vunpack.c.l.b16 %v1963
        %v4404 = vunpack.c.h.b16 %v1963
        %v4405 = vunpack.c.l.b16 %v1964
        %v4406 = vunpack.c.h.b16 %v1964
        %v4407 = vunpack.c.l.b16 %v1965
        %v4408 = vunpack.c.h.b16 %v1965
        %v4409 = vunpack.c.l.b16 %v1966
        %v4410 = vunpack.c.h.b16 %v1966
        %v4411 = vunpack.c.l.b16 %v1967
        %v4412 = vunpack.c.h.b16 %v1967
        %v4413 = vunpack.c.l.b16 %v1968
        %v4414 = vunpack.c.h.b16 %v1968
        %v4415 = vunpack.c.l.b16 %v1969
        %v4416 = vunpack.c.h.b16 %v1969
        %v4417 = vunpack.c.l.b16 %v1970
        %v4418 = vunpack.c.h.b16 %v1970
        %v4419 = vunpack.c.l.b16 %v1971
        %v4420 = vunpack.c.h.b16 %v1971
        %v4421 = vunpack.c.l.b16 %v1972
        %v4422 = vunpack.c.h.b16 %v1972
        %v4423 = vunpack.c.l.b16 %v1973
        %v4424 = vunpack.c.h.b16 %v1973
        %v4425 = vunpack.c.l.b16 %v1974
        %v4426 = vunpack.c.h.b16 %v1974
        %v4427 = vunpack.c.l.b16 %v1975
        %v4428 = vunpack.c.h.b16 %v1975
        %v4429 = vunpack.c.l.b16 %v1976
        %v4430 = vunpack.c.h.b16 %v1976
        %v4431 = vunpack.c.l.b16 %v1977
        %v4432 = vunpack.c.h.b16 %v1977
        %v4433 = vunpack.c.l.b16 %v1978
        %v4434 = vunpack.c.h.b16 %v1978
        %v4435 = vunpack.c.l.b16 %v1979
        %v4436 = vunpack.c.h.b16 %v1979
        %v4437 = vunpack.c.l.b16 %v1980
        %v4438 = vunpack.c.h.b16 %v1980
        %v4439 = vunpack.c.l.b16 %v1981
        %v4440 = vunpack.c.h.b16 %v1981
        %v4441 = vunpack.c.l.b16 %v1982
        %v4442 = vunpack.c.h.b16 %v1982
        %v4443 = vunpack.c.l.b16 %v1983
        %v4444 = vunpack.c.h.b16 %v1983
        %v4445 = vunpack.c.l.b16 %v1984
        %v4446 = vunpack.c.h.b16 %v1984
        %v4447 = vunpack.c.l.b16 %v1985
        %v4448 = vunpack.c.h.b16 %v1985
        %v4449 = vunpack.c.l.b16 %v1986
        %v4450 = vunpack.c.h.b16 %v1986
        %v4451 = vunpack.c.l.b16 %v1987
        %v4452 = vunpack.c.h.b16 %v1987
        %v4453 = vunpack.c.l.b16 %v1988
        %v4454 = vunpack.c.h.b16 %v1988
        %v4455 = vunpack.c.l.b16 %v1989
        %v4456 = vunpack.c.h.b16 %v1989
        %v4457 = vunpack.c.l.b16 %v1990
        %v4458 = vunpack.c.h.b16 %v1990
        %v4459 = vunpack.c.l.b16 %v1991
        %v4460 = vunpack.c.h.b16 %v1991
        %v4461 = vunpack.c.l.b16 %v1992
        %v4462 = vunpack.c.h.b16 %v1992
        %v4463 = vunpack.c.l.b16 %v1993
        %v4464 = vunpack.c.h.b16 %v1993
        %v4465 = vunpack.c.l.b16 %v1994
        %v4466 = vunpack.c.h.b16 %v1994
        %v4467 = vunpack.c.l.b16 %v1995
        %v4468 = vunpack.c.h.b16 %v1995
        %v4469 = vunpack.c.l.b16 %v1996
        %v4470 = vunpack.c.h.b16 %v1996
        %v4471 = vunpack.c.l.b16 %v1997
        %v4472 = vunpack.c.h.b16 %v1997
        %v4473 = vunpack.c.l.b16 %v1998
        %v4474 = vunpack.c.h.b16 %v1998
        %v4475 = vunpack.c.l.b16 %v1999
        %v4476 = vunpack.c.h.b16 %v1999
        %v4477 = vunpack.c.l.b16 %v2000
        %v4478 = vunpack.c.h.b16 %v2000
        %v4479 = vunpack.c.l.b16 %v2001
        %v4480 = vunpack.c.h.b16 %v2001
        %v4481 = vunpack.c.l.b16 %v2002
        %v4482 = vunpack.c.h.b16 %v2002
        %v4483 = vunpack.c.l.b16 %v2003
        %v4484 = vunpack.c.h.b16 %v2003
        %v4485 = vunpack.c.l.b16 %v2004
        %v4486 = vunpack.c.h.b16 %v2004
        %v4487 = vunpack.c.l.b16 %v2005
        %v4488 = vunpack.c.h.b16 %v2005
        %v4489 = vunpack.c.l.b16 %v2006
        %v4490 = vunpack.c.h.b16 %v2006
        %v4491 = vunpack.c.l.b16 %v2007
        %v4492 = vunpack.c.h.b16 %v2007
        %v4493 = vunpack.c.l.b16 %v2008
        %v4494 = vunpack.c.h.b16 %v2008
        %v4495 = vunpack.c.l.b16 %v2009
        %v4496 = vunpack.c.h.b16 %v2009
        %v4497 = vunpack.c.l.b16 %v2010
        %v4498 = vunpack.c.h.b16 %v2010
        %v4499 = vunpack.c.l.b16 %v2011
        %v4500 = vunpack.c.h.b16 %v2011
        %v4501 = vunpack.c.l.b16 %v2012
        %v4502 = vunpack.c.h.b16 %v2012
        %v4503 = vunpack.c.l.b16 %v2013
        %v4504 = vunpack.c.h.b16 %v2013
        %v4505 = vunpack.c.l.b16 %v2014
        %v4506 = vunpack.c.h.b16 %v2014
        %v4507 = vunpack.c.l.b16 %v2015
        %v4508 = vunpack.c.h.b16 %v2015
        %v4509 = vunpack.c.l.b16 %v2016
        %v4510 = vunpack.c.h.b16 %v2016
        %v4511 = vunpack.c.l.b16 %v2017
        %v4512 = vunpack.c.h.b16 %v2017
        %v4513 = vunpack.c.l.b16 %v2018
        %v4514 = vunpack.c.h.b16 %v2018
        %v4515 = vunpack.c.l.b16 %v2019
        %v4516 = vunpack.c.h.b16 %v2019
        %v4517 = vunpack.c.l.b16 %v2020
        %v4518 = vunpack.c.h.b16 %v2020
        %v4519 = vunpack.c.l.b16 %v2021
        %v4520 = vunpack.c.h.b16 %v2021
        %v4521 = vunpack.c.l.b16 %v2022
        %v4522 = vunpack.c.h.b16 %v2022
        %v4523 = vunpack.c.l.b16 %v2023
        %v4524 = vunpack.c.h.b16 %v2023
        %v4525 = vunpack.c.l.b16 %v2024
        %v4526 = vunpack.c.h.b16 %v2024
        %v4527 = vunpack.c.l.b16 %v2025
        %v4528 = vunpack.c.h.b16 %v2025
        %v4529 = vunpack.c.l.b16 %v2026
        %v4530 = vunpack.c.h.b16 %v2026
        %v4531 = vunpack.c.l.b16 %v2027
        %v4532 = vunpack.c.h.b16 %v2027
        %v4533 = vunpack.c.l.b16 %v2028
        %v4534 = vunpack.c.h.b16 %v2028
        %v4535 = vunpack.c.l.b16 %v2029
        %v4536 = vunpack.c.h.b16 %v2029
        %v4537 = vunpack.c.l.b16 %v2030
        %v4538 = vunpack.c.h.b16 %v2030
        %v4539 = vunpack.c.l.b16 %v2031
        %v4540 = vunpack.c.h.b16 %v2031
        %v4541 = vunpack.c.l.b16 %v2032
        %v4542 = vunpack.c.h.b16 %v2032
        %v4543 = vunpack.c.l.b16 %v2033
        %v4544 = vunpack.c.h.b16 %v2033
        %v4545 = vunpack.c.l.b16 %v2034
        %v4546 = vunpack.c.h.b16 %v2034
        %v4547 = vunpack.c.l.b16 %v2035
        %v4548 = vunpack.c.h.b16 %v2035
        %v4549 = vunpack.c.l.b16 %v2036
        %v4550 = vunpack.c.h.b16 %v2036
        %v4551 = vunpack.c.l.b16 %v2037
        %v4552 = vunpack.c.h.b16 %v2037
        %v4553 = vunpack.c.l.b16 %v2038
        %v4554 = vunpack.c.h.b16 %v2038
        %v4555 = vunpack.c.l.b16 %v2039
        %v4556 = vunpack.c.h.b16 %v2039
        %v4557 = vunpack.c.l.b16 %v2040
        %v4558 = vunpack.c.h.b16 %v2040
        %v4559 = vunpack.c.l.b16 %v2041
        %v4560 = vunpack.c.h.b16 %v2041
        %v4561 = vunpack.c.l.b16 %v2042
        %v4562 = vunpack.c.h.b16 %v2042
        %v4563 = vunpack.c.l.b16 %v2043
        %v4564 = vunpack.c.h.b16 %v2043
        %v4565 = vunpack.c.l.b16 %v2044
        %v4566 = vunpack.c.h.b16 %v2044
        %v4567 = vunpack.c.l.b16 %v2045
        %v4568 = vunpack.c.h.b16 %v2045
        %v4569 = vunpack.c.l.b16 %v2046
        %v4570 = vunpack.c.h.b16 %v2046
        %v4571 = vunpack.c.l.b16 %v2047
        %v4572 = vunpack.c.h.b16 %v2047
        %v4573 = vunpack.c.l.b16 %v2048
        %v4574 = vunpack.c.h.b16 %v2048
        %v4575 = vunpack.c.l.b16 %v2049
        %v4576 = vunpack.c.h.b16 %v2049
        %v4577 = vunpack.c.l.b16 %v2050
        %v4578 = vunpack.c.h.b16 %v2050
        %v4579 = vunpack.c.l.b16 %v2051
        %v4580 = vunpack.c.h.b16 %v2051
        %v4581 = vunpack.c.l.b16 %v2052
        %v4582 = vunpack.c.h.b16 %v2052
        %v4583 = vunpack.c.l.b16 %v2053
        %v4584 = vunpack.c.h.b16 %v2053
        %v4585 = vunpack.c.l.b16 %v2054
        %v4586 = vunpack.c.h.b16 %v2054
        %v4587 = vunpack.c.l.b16 %v2055
        %v4588 = vunpack.c.h.b16 %v2055
        %v4589 = vunpack.c.l.b16 %v2056
        %v4590 = vunpack.c.h.b16 %v2056
        %v4591 = vunpack.c.l.b16 %v2057
        %v4592 = vunpack.c.h.b16 %v2057
        %v4593 = vunpack.c.l.b16 %v2058
        %v4594 = vunpack.c.h.b16 %v2058
        %v4595 = vunpack.c.l.b16 %v2059
        %v4596 = vunpack.c.h.b16 %v2059
        %v4597 = vunpack.c.l.b16 %v2060
        %v4598 = vunpack.c.h.b16 %v2060
        %v4599 = vunpack.c.l.b16 %v2061
        %v4600 = vunpack.c.h.b16 %v2061
        %v4601 = vunpack.c.l.b16 %v2062
        %v4602 = vunpack.c.h.b16 %v2062
        %v4603 = vunpack.c.l.b16 %v2063
        %v4604 = vunpack.c.h.b16 %v2063
        %v4605 = vunpack.c.l.b16 %v2064
        %v4606 = vunpack.c.h.b16 %v2064
        %v4607 = vunpack.c.l.b16 %v2065
        %v4608 = vunpack.c.h.b16 %v2065
        %v4609 = vunpack.c.l.b16 %v2066
        %v4610 = vunpack.c.h.b16 %v2066
        %v4611 = vunpack.c.l.b16 %v2067
        %v4612 = vunpack.c.h.b16 %v2067
        %v4613 = vunpack.c.l.b16 %v2068
        %v4614 = vunpack.c.h.b16 %v2068
        %v4615 = vunpack.c.l.b16 %v2069
        %v4616 = vunpack.c.h.b16 %v2069
        %v4617 = vunpack.c.l.b16 %v2070
        %v4618 = vunpack.c.h.b16 %v2070
        %v4619 = vunpack.c.l.b16 %v2071
        %v4620 = vunpack.c.h.b16 %v2071
        %v4621 = vunpack.c.l.b16 %v2072
        %v4622 = vunpack.c.h.b16 %v2072
        %v4623 = vunpack.c.l.b16 %v2073
        %v4624 = vunpack.c.h.b16 %v2073
        %v4625 = vunpack.c.l.b16 %v2074
        %v4626 = vunpack.c.h.b16 %v2074
        %v4627 = vunpack.c.l.b16 %v2075
        %v4628 = vunpack.c.h.b16 %v2075
        %v4629 = vunpack.c.l.b16 %v2076
        %v4630 = vunpack.c.h.b16 %v2076
        %v4631 = vunpack.c.l.b16 %v2077
        %v4632 = vunpack.c.h.b16 %v2077
        %v4633 = vunpack.c.l.b16 %v2078
        %v4634 = vunpack.c.h.b16 %v2078
        %v4635 = vunpack.c.l.b16 %v2079
        %v4636 = vunpack.c.h.b16 %v2079
        %v4637 = vunpack.c.l.b16 %v2080
        %v4638 = vunpack.c.h.b16 %v2080
        %v4639 = vunpack.c.l.b16 %v2081
        %v4640 = vunpack.c.h.b16 %v2081
        %v4641 = vunpack.c.l.b16 %v2082
        %v4642 = vunpack.c.h.b16 %v2082
        %v4643 = vunpack.c.l.b16 %v2083
        %v4644 = vunpack.c.h.b16 %v2083
        %v4645 = vunpack.c.l.b16 %v2084
        %v4646 = vunpack.c.h.b16 %v2084
        %v4647 = vunpack.c.l.b16 %v2085
        %v4648 = vunpack.c.h.b16 %v2085
        %v4649 = vunpack.c.l.b16 %v2086
        %v4650 = vunpack.c.h.b16 %v2086
        %v4651 = vunpack.c.l.b16 %v2087
        %v4652 = vunpack.c.h.b16 %v2087
        %v4653 = vunpack.c.l.b16 %v2088
        %v4654 = vunpack.c.h.b16 %v2088
        %v4655 = vunpack.c.l.b16 %v2089
        %v4656 = vunpack.c.h.b16 %v2089
        %v4657 = vunpack.c.l.b16 %v2090
        %v4658 = vunpack.c.h.b16 %v2090
        %v4659 = vunpack.c.l.b16 %v2091
        %v4660 = vunpack.c.h.b16 %v2091
        %v4661 = vunpack.c.l.b16 %v2092
        %v4662 = vunpack.c.h.b16 %v2092
        %v4663 = vunpack.c.l.b16 %v2093
        %v4664 = vunpack.c.h.b16 %v2093
        %v4665 = vunpack.c.l.b16 %v2094
        %v4666 = vunpack.c.h.b16 %v2094
        %v4667 = vunpack.c.l.b16 %v2095
        %v4668 = vunpack.c.h.b16 %v2095
        %v4669 = vunpack.c.l.b16 %v2096
        %v4670 = vunpack.c.h.b16 %v2096
        %v4671 = vunpack.c.l.b16 %v2097
        %v4672 = vunpack.c.h.b16 %v2097
        %v4673 = vunpack.c.l.b16 %v2098
        %v4674 = vunpack.c.h.b16 %v2098
        %v4675 = vunpack.c.l.b16 %v2099
        %v4676 = vunpack.c.h.b16 %v2099
        %v4677 = vunpack.c.l.b16 %v2100
        %v4678 = vunpack.c.h.b16 %v2100
        %v4679 = vunpack.c.l.b16 %v2101
        %v4680 = vunpack.c.h.b16 %v2101
        %v4681 = vunpack.c.l.b16 %v2102
        %v4682 = vunpack.c.h.b16 %v2102
        %v4683 = vunpack.c.l.b16 %v2103
        %v4684 = vunpack.c.h.b16 %v2103
        %v4685 = vunpack.c.l.b16 %v2104
        %v4686 = vunpack.c.h.b16 %v2104
        %v4687 = vunpack.c.l.b16 %v2105
        %v4688 = vunpack.c.h.b16 %v2105
        %v4689 = vunpack.c.l.b16 %v2106
        %v4690 = vunpack.c.h.b16 %v2106
        %v4691 = vunpack.c.l.b16 %v2107
        %v4692 = vunpack.c.h.b16 %v2107
        %v4693 = vunpack.c.l.b16 %v2108
        %v4694 = vunpack.c.h.b16 %v2108
        %v4695 = vunpack.c.l.b16 %v2109
        %v4696 = vunpack.c.h.b16 %v2109
        %v4697 = vunpack.c.l.b16 %v2110
        %v4698 = vunpack.c.h.b16 %v2110
        %v4699 = vunpack.c.l.b16 %v2111
        %v4700 = vunpack.c.h.b16 %v2111
        %v4701 = vunpack.c.l.b16 %v2112
        %v4702 = vunpack.c.h.b16 %v2112
        %v4703 = vunpack.c.l.b16 %v2113
        %v4704 = vunpack.c.h.b16 %v2113
        %v4705 = vunpack.c.l.b16 %v2114
        %v4706 = vunpack.c.h.b16 %v2114
        %v4707 = vunpack.c.l.b16 %v2115
        %v4708 = vunpack.c.h.b16 %v2115
        %v4709 = vunpack.c.l.b16 %v2116
        %v4710 = vunpack.c.h.b16 %v2116
        %v4711 = vunpack.c.l.b16 %v2117
        %v4712 = vunpack.c.h.b16 %v2117
        %v4713 = vunpack.c.l.b16 %v2118
        %v4714 = vunpack.c.h.b16 %v2118
        %v4715 = vunpack.c.l.b16 %v2119
        %v4716 = vunpack.c.h.b16 %v2119
        %v4717 = vunpack.c.l.b16 %v2120
        %v4718 = vunpack.c.h.b16 %v2120
        %v4719 = vunpack.c.l.b16 %v2121
        %v4720 = vunpack.c.h.b16 %v2121
        %v4721 = vunpack.c.l.b16 %v2122
        %v4722 = vunpack.c.h.b16 %v2122
        %v4723 = vunpack.c.l.b16 %v2123
        %v4724 = vunpack.c.h.b16 %v2123
        %v4725 = vunpack.c.l.b16 %v2124
        %v4726 = vunpack.c.h.b16 %v2124
        %v4727 = vunpack.c.l.b16 %v2125
        %v4728 = vunpack.c.h.b16 %v2125
        %v4729 = vunpack.c.l.b16 %v2126
        %v4730 = vunpack.c.h.b16 %v2126
        %v4731 = vunpack.c.l.b16 %v2127
        %v4732 = vunpack.c.h.b16 %v2127
        %v4733 = vunpack.c.l.b16 %v2128
        %v4734 = vunpack.c.h.b16 %v2128
        %v4735 = vunpack.c.l.b16 %v2129
        %v4736 = vunpack.c.h.b16 %v2129
        %v4737 = vunpack.c.l.b16 %v2130
        %v4738 = vunpack.c.h.b16 %v2130
        %v4739 = vunpack.c.l.b16 %v2131
        %v4740 = vunpack.c.h.b16 %v2131
        %v4741 = vunpack.c.l.b16 %v2132
        %v4742 = vunpack.c.h.b16 %v2132
        %v4743 = vunpack.c.l.b16 %v2133
        %v4744 = vunpack.c.h.b16 %v2133
        %v4745 = vunpack.c.l.b16 %v2134
        %v4746 = vunpack.c.h.b16 %v2134
        %v4747 = vunpack.c.l.b16 %v2135
        %v4748 = vunpack.c.h.b16 %v2135
        %v4749 = vunpack.c.l.b16 %v2136
        %v4750 = vunpack.c.h.b16 %v2136
        %v4751 = vunpack.c.l.b16 %v2137
        %v4752 = vunpack.c.h.b16 %v2137
        %v4753 = vunpack.c.l.b16 %v2138
        %v4754 = vunpack.c.h.b16 %v2138
        %v4755 = vunpack.c.l.b16 %v2139
        %v4756 = vunpack.c.h.b16 %v2139
        %v4757 = vunpack.c.l.b16 %v2140
        %v4758 = vunpack.c.h.b16 %v2140
        %v4759 = vunpack.c.l.b16 %v2141
        %v4760 = vunpack.c.h.b16 %v2141
        %v4761 = vunpack.c.l.b16 %v2142
        %v4762 = vunpack.c.h.b16 %v2142
        %v4763 = vunpack.c.l.b16 %v2143
        %v4764 = vunpack.c.h.b16 %v2143
        %v4765 = vunpack.c.l.b16 %v2144
        %v4766 = vunpack.c.h.b16 %v2144
        %v4767 = vunpack.c.l.b16 %v2145
        %v4768 = vunpack.c.h.b16 %v2145
        %v4769 = vunpack.c.l.b16 %v2146
        %v4770 = vunpack.c.h.b16 %v2146
        %v4771 = vunpack.c.l.b16 %v2147
        %v4772 = vunpack.c.h.b16 %v2147
        %v4773 = vunpack.c.l.b16 %v2148
        %v4774 = vunpack.c.h.b16 %v2148
        %v4775 = vunpack.c.l.b16 %v2149
        %v4776 = vunpack.c.h.b16 %v2149
        %v4777 = vunpack.c.l.b16 %v2150
        %v4778 = vunpack.c.h.b16 %v2150
        %v4779 = vunpack.c.l.b16 %v2151
        %v4780 = vunpack.c.h.b16 %v2151
        %v4781 = vunpack.c.l.b16 %v2152
        %v4782 = vunpack.c.h.b16 %v2152
        %v4783 = vunpack.c.l.b16 %v2153
        %v4784 = vunpack.c.h.b16 %v2153
        %v4785 = vunpack.c.l.b16 %v2154
        %v4786 = vunpack.c.h.b16 %v2154
        %v4787 = vunpack.c.l.b16 %v2155
        %v4788 = vunpack.c.h.b16 %v2155
        %v4789 = vunpack.c.l.b16 %v2156
        %v4790 = vunpack.c.h.b16 %v2156
        %v4791 = vunpack.c.l.b16 %v2157
        %v4792 = vunpack.c.h.b16 %v2157
        %v4793 = vunpack.c.l.b16 %v2158
        %v4794 = vunpack.c.h.b16 %v2158
        %v4795 = vunpack.c.l.b16 %v2159
        %v4796 = vunpack.c.h.b16 %v2159
        %v4797 = vunpack.c.l.b16 %v2160
        %v4798 = vunpack.c.h.b16 %v2160
        %v4799 = vunpack.c.l.b16 %v2161
        %v4800 = vunpack.c.h.b16 %v2161
        %v4801 = vunpack.c.l.b16 %v2162
        %v4802 = vunpack.c.h.b16 %v2162
        %v4803 = vunpack.c.l.b16 %v2163
        %v4804 = vunpack.c.h.b16 %v2163
        %v4805 = vunpack.c.l.b16 %v2164
        %v4806 = vunpack.c.h.b16 %v2164
        %v4807 = vunpack.c.l.b16 %v2165
        %v4808 = vunpack.c.h.b16 %v2165
        %v4809 = vunpack.c.l.b16 %v2166
        %v4810 = vunpack.c.h.b16 %v2166
        %v4811 = vunpack.c.l.b16 %v2167
        %v4812 = vunpack.c.h.b16 %v2167
        %v4813 = vunpack.c.l.b16 %v2168
        %v4814 = vunpack.c.h.b16 %v2168
        %v4815 = vunpack.c.l.b16 %v2169
        %v4816 = vunpack.c.h.b16 %v2169
        %v4817 = vunpack.c.l.b16 %v2170
        %v4818 = vunpack.c.h.b16 %v2170
        %v4819 = vunpack.c.l.b16 %v2171
        %v4820 = vunpack.c.h.b16 %v2171
        %v4821 = vunpack.c.l.b16 %v2172
        %v4822 = vunpack.c.h.b16 %v2172
        %v4823 = vunpack.c.l.b16 %v2173
        %v4824 = vunpack.c.h.b16 %v2173
        %v4825 = vunpack.c.l.b16 %v2174
        %v4826 = vunpack.c.h.b16 %v2174
        %v4827 = vunpack.c.l.b16 %v2175
        %v4828 = vunpack.c.h.b16 %v2175
        %v4829 = vunpack.c.l.b16 %v2176
        %v4830 = vunpack.c.h.b16 %v2176
        %v4831 = vunpack.c.l.b16 %v2177
        %v4832 = vunpack.c.h.b16 %v2177
        %v4833 = vunpack.c.l.b16 %v2178
        %v4834 = vunpack.c.h.b16 %v2178
        %v4835 = vunpack.c.l.b16 %v2179
        %v4836 = vunpack.c.h.b16 %v2179
        %v4837 = vunpack.c.l.b16 %v2180
        %v4838 = vunpack.c.h.b16 %v2180
        %v4839 = vunpack.c.l.b16 %v2181
        %v4840 = vunpack.c.h.b16 %v2181
        %v4841 = vunpack.c.l.b16 %v2182
        %v4842 = vunpack.c.h.b16 %v2182
        %v4843 = vunpack.c.l.b16 %v2183
        %v4844 = vunpack.c.h.b16 %v2183
        %v4845 = vunpack.c.l.b16 %v2184
        %v4846 = vunpack.c.h.b16 %v2184
        %v4847 = vunpack.c.l.b16 %v2185
        %v4848 = vunpack.c.h.b16 %v2185
        %v4849 = vunpack.c.l.b16 %v2186
        %v4850 = vunpack.c.h.b16 %v2186
        %v4851 = vunpack.c.l.b16 %v2187
        %v4852 = vunpack.c.h.b16 %v2187
        %v4853 = vunpack.c.l.b16 %v2188
        %v4854 = vunpack.c.h.b16 %v2188
        %v4855 = vunpack.c.l.b16 %v2189
        %v4856 = vunpack.c.h.b16 %v2189
        %v4857 = vunpack.c.l.b16 %v2190
        %v4858 = vunpack.c.h.b16 %v2190
        %v4859 = vunpack.c.l.b16 %v2191
        %v4860 = vunpack.c.h.b16 %v2191
        %v4861 = vunpack.c.l.b16 %v2192
        %v4862 = vunpack.c.h.b16 %v2192
        %v4863 = vunpack.c.l.b16 %v2193
        %v4864 = vunpack.c.h.b16 %v2193
        %v4865 = vunpack.c.l.b16 %v2194
        %v4866 = vunpack.c.h.b16 %v2194
        %v4867 = vunpack.c.l.b16 %v2195
        %v4868 = vunpack.c.h.b16 %v2195
        %v4869 = vunpack.c.l.b16 %v2196
        %v4870 = vunpack.c.h.b16 %v2196
        %v4871 = vunpack.c.l.b16 %v2197
        %v4872 = vunpack.c.h.b16 %v2197
        %v4873 = vunpack.c.l.b16 %v2198
        %v4874 = vunpack.c.h.b16 %v2198
        %v4875 = vunpack.c.l.b16 %v2199
        %v4876 = vunpack.c.h.b16 %v2199
        %v4877 = vunpack.c.l.b16 %v2200
        %v4878 = vunpack.c.h.b16 %v2200
        %v4879 = vunpack.c.l.b16 %v2201
        %v4880 = vunpack.c.h.b16 %v2201
        %v4881 = vunpack.c.l.b16 %v2202
        %v4882 = vunpack.c.h.b16 %v2202
        %v4883 = vunpack.c.l.b16 %v2203
        %v4884 = vunpack.c.h.b16 %v2203
        %v4885 = vunpack.c.l.b16 %v2204
        %v4886 = vunpack.c.h.b16 %v2204
        %v4887 = vunpack.c.l.b16 %v2205
        %v4888 = vunpack.c.h.b16 %v2205
        %v4889 = vunpack.c.l.b16 %v2206
        %v4890 = vunpack.c.h.b16 %v2206
        %v4891 = vunpack.c.l.b16 %v2207
        %v4892 = vunpack.c.h.b16 %v2207
        %v4893 = vunpack.c.l.b16 %v2208
        %v4894 = vunpack.c.h.b16 %v2208
        %v4895 = vunpack.c.l.b16 %v2209
        %v4896 = vunpack.c.h.b16 %v2209
        %v4897 = vunpack.c.l.b16 %v2210
        %v4898 = vunpack.c.h.b16 %v2210
        %v4899 = vunpack.c.l.b16 %v2211
        %v4900 = vunpack.c.h.b16 %v2211
        %v4901 = vunpack.c.l.b16 %v2212
        %v4902 = vunpack.c.h.b16 %v2212
        %v4903 = vunpack.c.l.b16 %v2213
        %v4904 = vunpack.c.h.b16 %v2213
        %v4905 = vunpack.c.l.b16 %v2214
        %v4906 = vunpack.c.h.b16 %v2214
        %v4907 = vunpack.c.l.b16 %v2215
        %v4908 = vunpack.c.h.b16 %v2215
        %v4909 = vunpack.c.l.b16 %v2216
        %v4910 = vunpack.c.h.b16 %v2216
        %v4911 = vunpack.c.l.b16 %v2217
        %v4912 = vunpack.c.h.b16 %v2217
        %v4913 = vunpack.c.l.b16 %v2218
        %v4914 = vunpack.c.h.b16 %v2218
        %v4915 = vunpack.c.l.b16 %v2219
        %v4916 = vunpack.c.h.b16 %v2219
        %v4917 = vunpack.c.l.b16 %v2220
        %v4918 = vunpack.c.h.b16 %v2220
        %v4919 = vunpack.c.l.b16 %v2221
        %v4920 = vunpack.c.h.b16 %v2221
        %v4921 = vunpack.c.l.b16 %v2222
        %v4922 = vunpack.c.h.b16 %v2222
        %v4923 = vunpack.c.l.b16 %v2223
        %v4924 = vunpack.c.h.b16 %v2223
        %v4925 = vunpack.c.l.b16 %v2224
        %v4926 = vunpack.c.h.b16 %v2224
        %v4927 = vunpack.c.l.b16 %v2225
        %v4928 = vunpack.c.h.b16 %v2225
        %v4929 = vunpack.c.l.b16 %v2226
        %v4930 = vunpack.c.h.b16 %v2226
        %v4931 = vunpack.c.l.b16 %v2227
        %v4932 = vunpack.c.h.b16 %v2227
        %v4933 = vunpack.c.l.b16 %v2228
        %v4934 = vunpack.c.h.b16 %v2228
        %v4935 = vunpack.c.l.b16 %v2229
        %v4936 = vunpack.c.h.b16 %v2229
        %v4937 = vunpack.c.l.b16 %v2230
        %v4938 = vunpack.c.h.b16 %v2230
        %v4939 = vunpack.c.l.b16 %v2231
        %v4940 = vunpack.c.h.b16 %v2231
        %v4941 = vunpack.c.l.b16 %v2232
        %v4942 = vunpack.c.h.b16 %v2232
        %v4943 = vunpack.c.l.b16 %v2233
        %v4944 = vunpack.c.h.b16 %v2233
        %v4945 = vunpack.c.l.b16 %v2234
        %v4946 = vunpack.c.h.b16 %v2234
        %v4947 = vunpack.c.l.b16 %v2235
        %v4948 = vunpack.c.h.b16 %v2235
        %v4949 = vunpack.c.l.b16 %v2236
        %v4950 = vunpack.c.h.b16 %v2236
        %v4951 = vunpack.c.l.b16 %v2237
        %v4952 = vunpack.c.h.b16 %v2237
        %v4953 = vunpack.c.l.b16 %v2238
        %v4954 = vunpack.c.h.b16 %v2238
        %v4955 = vunpack.c.l.b16 %v2239
        %v4956 = vunpack.c.h.b16 %v2239
        %v4957 = vunpack.c.l.b16 %v2240
        %v4958 = vunpack.c.h.b16 %v2240
        %v4959 = vunpack.c.l.b16 %v2241
        %v4960 = vunpack.c.h.b16 %v2241
        %v4961 = vunpack.c.l.b16 %v2242
        %v4962 = vunpack.c.h.b16 %v2242
        %v4963 = vunpack.c.l.b16 %v2243
        %v4964 = vunpack.c.h.b16 %v2243
        %v4965 = vunpack.c.l.b16 %v2244
        %v4966 = vunpack.c.h.b16 %v2244
        %v4967 = vunpack.c.l.b16 %v2245
        %v4968 = vunpack.c.h.b16 %v2245
        %v4969 = vunpack.c.l.b16 %v2246
        %v4970 = vunpack.c.h.b16 %v2246
        %v4971 = vunpack.c.l.b16 %v2247
        %v4972 = vunpack.c.h.b16 %v2247
        %v4973 = vunpack.c.l.b16 %v2248
        %v4974 = vunpack.c.h.b16 %v2248
        %v4975 = vunpack.c.l.b16 %v2249
        %v4976 = vunpack.c.h.b16 %v2249
        %v4977 = vunpack.c.l.b16 %v2250
        %v4978 = vunpack.c.h.b16 %v2250
        %v4979 = vunpack.c.l.b16 %v2251
        %v4980 = vunpack.c.h.b16 %v2251
        %v4981 = vunpack.c.l.b16 %v2252
        %v4982 = vunpack.c.h.b16 %v2252
        %v4983 = vunpack.c.l.b16 %v2253
        %v4984 = vunpack.c.h.b16 %v2253
        %v4985 = vunpack.c.l.b16 %v2254
        %v4986 = vunpack.c.h.b16 %v2254
        %v4987 = vunpack.c.l.b16 %v2255
        %v4988 = vunpack.c.h.b16 %v2255
        %v4989 = vunpack.c.l.b16 %v2256
        %v4990 = vunpack.c.h.b16 %v2256
        %v4991 = vunpack.c.l.b16 %v2257
        %v4992 = vunpack.c.h.b16 %v2257
        %v4993 = vunpack.c.l.b16 %v2258
        %v4994 = vunpack.c.h.b16 %v2258
        %v4995 = vunpack.c.l.b16 %v2259
        %v4996 = vunpack.c.h.b16 %v2259
        %v4997 = vunpack.c.l.b16 %v2260
        %v4998 = vunpack.c.h.b16 %v2260
        %v4999 = vunpack.c.l.b16 %v2261
        %v5000 = vunpack.c.h.b16 %v2261
        %v5001 = vunpack.c.l.b16 %v2262
        %v5002 = vunpack.c.h.b16 %v2262
        %v5003 = vunpack.c.l.b16 %v2263
        %v5004 = vunpack.c.h.b16 %v2263
        %v5005 = vunpack.c.l.b16 %v2264
        %v5006 = vunpack.c.h.b16 %v2264
        %v5007 = vunpack.c.l.b16 %v2265
        %v5008 = vunpack.c.h.b16 %v2265
        %v5009 = vunpack.c.l.b16 %v2266
        %v5010 = vunpack.c.h.b16 %v2266
        %v5011 = vunpack.c.l.b16 %v2267
        %v5012 = vunpack.c.h.b16 %v2267
        %v5013 = vunpack.c.l.b16 %v2268
        %v5014 = vunpack.c.h.b16 %v2268
        %v5015 = vunpack.c.l.b16 %v2269
        %v5016 = vunpack.c.h.b16 %v2269
        %v5017 = vunpack.c.l.b16 %v2270
        %v5018 = vunpack.c.h.b16 %v2270
        %v5019 = vunpack.c.l.b16 %v2271
        %v5020 = vunpack.c.h.b16 %v2271
        %v5021 = vunpack.c.l.b16 %v2272
        %v5022 = vunpack.c.h.b16 %v2272
        %v5023 = vunpack.c.l.b16 %v2273
        %v5024 = vunpack.c.h.b16 %v2273
        %v5025 = vunpack.c.l.b16 %v2274
        %v5026 = vunpack.c.h.b16 %v2274
        %v5027 = vunpack.c.l.b16 %v2275
        %v5028 = vunpack.c.h.b16 %v2275
        %v5029 = vunpack.c.l.b16 %v2276
        %v5030 = vunpack.c.h.b16 %v2276
        %v5031 = vunpack.c.l.b16 %v2277
        %v5032 = vunpack.c.h.b16 %v2277
        %v5033 = vunpack.c.l.b16 %v2278
        %v5034 = vunpack.c.h.b16 %v2278
        %v5035 = vunpack.c.l.b16 %v2279
        %v5036 = vunpack.c.h.b16 %v2279
        %v5037 = vunpack.c.l.b16 %v2280
        %v5038 = vunpack.c.h.b16 %v2280
        %v5039 = vunpack.c.l.b16 %v2281
        %v5040 = vunpack.c.h.b16 %v2281
        %v5041 = vunpack.c.l.b16 %v2282
        %v5042 = vunpack.c.h.b16 %v2282
        %v5043 = vunpack.c.l.b16 %v2283
        %v5044 = vunpack.c.h.b16 %v2283
        %v5045 = vunpack.c.l.b16 %v2284
        %v5046 = vunpack.c.h.b16 %v2284
        %v5047 = vunpack.c.l.b16 %v2285
        %v5048 = vunpack.c.h.b16 %v2285
        %v5049 = vunpack.c.l.b16 %v2286
        %v5050 = vunpack.c.h.b16 %v2286
        %v5051 = vunpack.c.l.b16 %v2287
        %v5052 = vunpack.c.h.b16 %v2287
        %v5053 = vunpack.c.l.b16 %v2288
        %v5054 = vunpack.c.h.b16 %v2288
        %v5055 = vunpack.c.l.b16 %v2289
        %v5056 = vunpack.c.h.b16 %v2289
        %v5057 = vunpack.c.l.b16 %v2290
        %v5058 = vunpack.c.h.b16 %v2290
        %v5059 = vunpack.c.l.b16 %v2291
        %v5060 = vunpack.c.h.b16 %v2291
        %v5061 = vunpack.c.l.b16 %v2292
        %v5062 = vunpack.c.h.b16 %v2292
        %v5063 = vunpack.c.l.b16 %v2293
        %v5064 = vunpack.c.h.b16 %v2293
        %v5065 = vunpack.c.l.b16 %v2294
        %v5066 = vunpack.c.h.b16 %v2294
        %v5067 = vunpack.c.l.b16 %v2295
        %v5068 = vunpack.c.h.b16 %v2295
        %v5069 = vunpack.c.l.b16 %v2296
        %v5070 = vunpack.c.h.b16 %v2296
        %v5071 = vunpack.c.l.b16 %v2297
        %v5072 = vunpack.c.h.b16 %v2297
        %v5073 = vunpack.c.l.b16 %v2298
        %v5074 = vunpack.c.h.b16 %v2298
        %v5075 = vunpack.c.l.b16 %v2299
        %v5076 = vunpack.c.h.b16 %v2299
        %v5077 = vunpack.c.l.b16 %v2300
        %v5078 = vunpack.c.h.b16 %v2300
        %v5079 = vunpack.c.l.b16 %v2301
        %v5080 = vunpack.c.h.b16 %v2301
        %v5081 = vunpack.c.l.b16 %v2302
        %v5082 = vunpack.c.h.b16 %v2302
        %v5083 = vunpack.c.l.b16 %v2303
        %v5084 = vunpack.c.h.b16 %v2303
        %v5085 = vunpack.c.l.b16 %v2304
        %v5086 = vunpack.c.h.b16 %v2304
        %v5087 = vunpack.c.l.b16 %v2305
        %v5088 = vunpack.c.h.b16 %v2305
        %v5089 = vunpack.c.l.b16 %v2306
        %v5090 = vunpack.c.h.b16 %v2306
        %v5091 = vunpack.c.l.b16 %v2307
        %v5092 = vunpack.c.h.b16 %v2307
        %v5093 = vunpack.c.l.b16 %v2308
        %v5094 = vunpack.c.h.b16 %v2308
        %v5095 = vunpack.c.l.b16 %v2309
        %v5096 = vunpack.c.h.b16 %v2309
        %v5097 = vunpack.c.l.b16 %v2310
        %v5098 = vunpack.c.h.b16 %v2310
        %v5099 = vunpack.c.l.b16 %v2311
        %v5100 = vunpack.c.h.b16 %v2311
        %v5101 = vunpack.c.l.b16 %v2312
        %v5102 = vunpack.c.h.b16 %v2312
        %v5103 = vunpack.c.l.b16 %v2313
        %v5104 = vunpack.c.h.b16 %v2313
        %v5105 = vunpack.c.l.b16 %v2314
        %v5106 = vunpack.c.h.b16 %v2314
        %v5107 = vunpack.c.l.b16 %v2315
        %v5108 = vunpack.c.h.b16 %v2315
        %v5109 = vunpack.c.l.b16 %v2316
        %v5110 = vunpack.c.h.b16 %v2316
        %v5111 = vunpack.c.l.b16 %v2317
        %v5112 = vunpack.c.h.b16 %v2317
        %v5113 = vunpack.c.l.b16 %v2318
        %v5114 = vunpack.c.h.b16 %v2318
        %v5115 = vunpack.c.l.b16 %v2319
        %v5116 = vunpack.c.h.b16 %v2319
        %v5117 = vunpack.c.l.b16 %v2320
        %v5118 = vunpack.c.h.b16 %v2320
        %v5119 = vunpack.c.l.b16 %v2321
        %v5120 = vunpack.c.h.b16 %v2321
        %v5121 = vunpack.c.l.b16 %v2322
        %v5122 = vunpack.c.h.b16 %v2322
        %v5123 = vunpack.c.l.b16 %v2323
        %v5124 = vunpack.c.h.b16 %v2323
        %v5125 = vunpack.c.l.b16 %v2324
        %v5126 = vunpack.c.h.b16 %v2324
        %v5127 = vunpack.c.l.b16 %v2325
        %v5128 = vunpack.c.h.b16 %v2325
        %v5129 = vunpack.c.l.b16 %v2326
        %v5130 = vunpack.c.h.b16 %v2326
        %v5131 = vunpack.c.l.b16 %v2327
        %v5132 = vunpack.c.h.b16 %v2327
        %v5133 = vunpack.c.l.b16 %v2328
        %v5134 = vunpack.c.h.b16 %v2328
        %v5135 = vunpack.c.l.b16 %v2329
        %v5136 = vunpack.c.h.b16 %v2329
        %v5137 = vunpack.c.l.b16 %v2330
        %v5138 = vunpack.c.h.b16 %v2330
        %v5139 = vunpack.c.l.b16 %v2331
        %v5140 = vunpack.c.h.b16 %v2331
        %v5141 = vunpack.c.l.b16 %v2332
        %v5142 = vunpack.c.h.b16 %v2332
        %v5143 = vunpack.c.l.b16 %v2333
        %v5144 = vunpack.c.h.b16 %v2333
        %v5145 = vunpack.c.l.b16 %v2334
        %v5146 = vunpack.c.h.b16 %v2334
        %v5147 = vunpack.c.l.b16 %v2335
        %v5148 = vunpack.c.h.b16 %v2335
        %v5149 = vunpack.c.l.b16 %v2336
        %v5150 = vunpack.c.h.b16 %v2336
        %v5151 = vunpack.c.l.b16 %v2337
        %v5152 = vunpack.c.h.b16 %v2337
        %v5153 = vunpack.c.l.b16 %v2338
        %v5154 = vunpack.c.h.b16 %v2338
        %v5155 = vunpack.c.l.b16 %v2339
        %v5156 = vunpack.c.h.b16 %v2339
        %v5157 = vunpack.c.l.b16 %v2340
        %v5158 = vunpack.c.h.b16 %v2340
        %v5159 = vunpack.c.l.b16 %v2341
        %v5160 = vunpack.c.h.b16 %v2341
        %v5161 = vunpack.c.l.b16 %v2342
        %v5162 = vunpack.c.h.b16 %v2342
        %v5163 = vunpack.c.l.b16 %v2343
        %v5164 = vunpack.c.h.b16 %v2343
        %v5165 = vunpack.c.l.b16 %v2344
        %v5166 = vunpack.c.h.b16 %v2344
        %v5167 = vunpack.c.l.b16 %v2345
        %v5168 = vunpack.c.h.b16 %v2345
        %v5169 = vunpack.c.l.b16 %v2346
        %v5170 = vunpack.c.h.b16 %v2346
        %v5171 = vunpack.c.l.b16 %v2347
        %v5172 = vunpack.c.h.b16 %v2347
        %v5173 = vunpack.c.l.b16 %v2348
        %v5174 = vunpack.c.h.b16 %v2348
        %v5175 = vunpack.c.l.b16 %v2349
        %v5176 = vunpack.c.h.b16 %v2349
        %v5177 = vunpack.c.l.b16 %v2350
        %v5178 = vunpack.c.h.b16 %v2350
        %v5179 = vunpack.c.l.b16 %v2351
        %v5180 = vunpack.c.h.b16 %v2351
        %v5181 = vunpack.c.l.b16 %v2352
        %v5182 = vunpack.c.h.b16 %v2352
        %v5183 = vunpack.c.l.b16 %v2353
        %v5184 = vunpack.c.h.b16 %v2353
        %v5185 = vunpack.c.l.b16 %v2354
        %v5186 = vunpack.c.h.b16 %v2354
        %v5187 = vunpack.c.l.b16 %v2355
        %v5188 = vunpack.c.h.b16 %v2355
        %v5189 = vunpack.c.l.b16 %v2356
        %v5190 = vunpack.c.h.b16 %v2356
        %v5191 = vunpack.c.l.b16 %v2357
        %v5192 = vunpack.c.h.b16 %v2357
        %v5193 = vunpack.c.l.b16 %v2358
        %v5194 = vunpack.c.h.b16 %v2358
        %v5195 = vunpack.c.l.b16 %v2359
        %v5196 = vunpack.c.h.b16 %v2359
        %v5197 = vunpack.c.l.b16 %v2360
        %v5198 = vunpack.c.h.b16 %v2360
        %v5199 = vunpack.c.l.b16 %v2361
        %v5200 = vunpack.c.h.b16 %v2361
        %v5201 = vunpack.c.l.b16 %v2362
        %v5202 = vunpack.c.h.b16 %v2362
        %v5203 = vunpack.c.l.b16 %v2363
        %v5204 = vunpack.c.h.b16 %v2363
        %v5205 = vunpack.c.l.b16 %v2364
        %v5206 = vunpack.c.h.b16 %v2364
        %v5207 = vunpack.c.l.b16 %v2365
        %v5208 = vunpack.c.h.b16 %v2365
        %v5209 = vunpack.c.l.b16 %v2366
        %v5210 = vunpack.c.h.b16 %v2366
        %v5211 = vunpack.c.l.b16 %v2367
        %v5212 = vunpack.c.h.b16 %v2367
        %v5213 = vunpack.c.l.b16 %v2368
        %v5214 = vunpack.c.h.b16 %v2368
        %v5215 = vunpack.c.l.b16 %v2369
        %v5216 = vunpack.c.h.b16 %v2369
        %v5217 = vunpack.c.l.b16 %v2370
        %v5218 = vunpack.c.h.b16 %v2370
        %v5219 = vunpack.c.l.b16 %v2371
        %v5220 = vunpack.c.h.b16 %v2371
        %v5221 = vunpack.c.l.b16 %v2372
        %v5222 = vunpack.c.h.b16 %v2372
        %v5223 = vunpack.c.l.b16 %v2373
        %v5224 = vunpack.c.h.b16 %v2373
        %v5225 = vunpack.c.l.b16 %v2374
        %v5226 = vunpack.c.h.b16 %v2374
        %v5227 = vunpack.c.l.b16 %v2375
        %v5228 = vunpack.c.h.b16 %v2375
        %v5229 = vunpack.c.l.b16 %v2376
        %v5230 = vunpack.c.h.b16 %v2376
        %v5231 = vunpack.c.l.b16 %v2377
        %v5232 = vunpack.c.h.b16 %v2377
        %v5233 = vunpack.c.l.b16 %v2378
        %v5234 = vunpack.c.h.b16 %v2378
        %v5235 = vunpack.c.l.b16 %v2379
        %v5236 = vunpack.c.h.b16 %v2379
        %v5237 = vunpack.c.l.b16 %v2380
        %v5238 = vunpack.c.h.b16 %v2380
        %v5239 = vunpack.c.l.b16 %v2381
        %v5240 = vunpack.c.h.b16 %v2381
        %v5241 = vunpack.c.l.b16 %v2382
        %v5242 = vunpack.c.h.b16 %v2382
        %v5243 = vunpack.c.l.b16 %v2383
        %v5244 = vunpack.c.h.b16 %v2383
        %v5245 = vunpack.c.l.b16 %v2384
        %v5246 = vunpack.c.h.b16 %v2384
        %v5247 = vunpack.c.l.b16 %v2385
        %v5248 = vunpack.c.h.b16 %v2385
        %v5249 = vunpack.c.l.b16 %v2386
        %v5250 = vunpack.c.h.b16 %v2386
        %v5251 = vunpack.c.l.b16 %v2387
        %v5252 = vunpack.c.h.b16 %v2387
        %v5253 = vunpack.c.l.b16 %v2388
        %v5254 = vunpack.c.h.b16 %v2388
        %v5255 = vunpack.c.l.b16 %v2389
        %v5256 = vunpack.c.h.b16 %v2389
        %v5257 = vunpack.c.l.b16 %v2390
        %v5258 = vunpack.c.h.b16 %v2390
        %v5259 = vunpack.c.l.b16 %v2391
        %v5260 = vunpack.c.h.b16 %v2391
        %v5261 = vunpack.c.l.b16 %v2392
        %v5262 = vunpack.c.h.b16 %v2392
        %v5263 = vunpack.c.l.b16 %v2393
        %v5264 = vunpack.c.h.b16 %v2393
        %v5265 = vunpack.c.l.b16 %v2394
        %v5266 = vunpack.c.h.b16 %v2394
        %v5267 = vunpack.c.l.b16 %v2395
        %v5268 = vunpack.c.h.b16 %v2395
        %v5269 = vunpack.c.l.b16 %v2396
        %v5270 = vunpack.c.h.b16 %v2396
        %v5271 = vunpack.c.l.b16 %v2397
        %v5272 = vunpack.c.h.b16 %v2397
        %v5273 = vunpack.c.l.b16 %v2398
        %v5274 = vunpack.c.h.b16 %v2398
        %v5275 = vunpack.c.l.b16 %v2399
        %v5276 = vunpack.c.h.b16 %v2399
        %v5277 = vunpack.c.l.b16 %v2400
        %v5278 = vunpack.c.h.b16 %v2400
        %v5279 = vunpack.c.l.b16 %v2401
        %v5280 = vunpack.c.h.b16 %v2401
        %v5281 = vunpack.c.l.b16 %v2402
        %v5282 = vunpack.c.h.b16 %v2402
        %v5283 = vunpack.c.l.b16 %v2403
        %v5284 = vunpack.c.h.b16 %v2403
        %v5285 = vunpack.c.l.b16 %v2404
        %v5286 = vunpack.c.h.b16 %v2404
        %v5287 = vunpack.c.l.b16 %v2405
        %v5288 = vunpack.c.h.b16 %v2405
        %v5289 = vunpack.c.l.b16 %v2406
        %v5290 = vunpack.c.h.b16 %v2406
        %v5291 = vunpack.c.l.b16 %v2407
        %v5292 = vunpack.c.h.b16 %v2407
        %v5293 = vunpack.c.l.b16 %v2408
        %v5294 = vunpack.c.h.b16 %v2408
        %v5295 = vunpack.c.l.b16 %v2409
        %v5296 = vunpack.c.h.b16 %v2409
        %v5297 = vunpack.c.l.b16 %v2410
        %v5298 = vunpack.c.h.b16 %v2410
        %v5299 = vunpack.c.l.b16 %v2411
        %v5300 = vunpack.c.h.b16 %v2411
        %v5301 = vunpack.c.l.b16 %v2412
        %v5302 = vunpack.c.h.b16 %v2412
        %v5303 = vunpack.c.l.b16 %v2413
        %v5304 = vunpack.c.h.b16 %v2413
        %v5305 = vunpack.c.l.b16 %v2414
        %v5306 = vunpack.c.h.b16 %v2414
        %v5307 = vunpack.c.l.b16 %v2415
        %v5308 = vunpack.c.h.b16 %v2415
        %v5309 = vunpack.c.l.b16 %v2416
        %v5310 = vunpack.c.h.b16 %v2416
        %v5311 = vunpack.c.l.b16 %v2417
        %v5312 = vunpack.c.h.b16 %v2417
        %v5313 = vunpack.c.l.b16 %v2418
        %v5314 = vunpack.c.h.b16 %v2418
        %v5315 = vunpack.c.l.b16 %v2419
        %v5316 = vunpack.c.h.b16 %v2419
        %v5317 = vunpack.c.l.b16 %v2420
        %v5318 = vunpack.c.h.b16 %v2420
        %v5319 = vunpack.c.l.b16 %v2421
        %v5320 = vunpack.c.h.b16 %v2421
        %v5321 = vunpack.c.l.b16 %v2422
        %v5322 = vunpack.c.h.b16 %v2422
        %v5323 = vunpack.c.l.b16 %v2423
        %v5324 = vunpack.c.h.b16 %v2423
        %v5325 = vunpack.c.l.b16 %v2424
        %v5326 = vunpack.c.h.b16 %v2424
        %v5327 = vunpack.c.l.b16 %v2425
        %v5328 = vunpack.c.h.b16 %v2425
        %v5329 = vunpack.c.l.b16 %v2426
        %v5330 = vunpack.c.h.b16 %v2426
        %v5331 = vunpack.c.l.b16 %v2427
        %v5332 = vunpack.c.h.b16 %v2427
        %v5333 = vunpack.c.l.b16 %v2428
        %v5334 = vunpack.c.h.b16 %v2428
        %v5335 = vunpack.c.l.b16 %v2429
        %v5336 = vunpack.c.h.b16 %v2429
        %v5337 = vunpack.c.l.b16 %v2430
        %v5338 = vunpack.c.h.b16 %v2430
        %v5339 = vunpack.c.l.b16 %v2431
        %v5340 = vunpack.c.h.b16 %v2431
        %v5341 = vunpack.c.l.b16 %v2432
        %v5342 = vunpack.c.h.b16 %v2432
        %v5343 = vunpack.c.l.b16 %v2433
        %v5344 = vunpack.c.h.b16 %v2433
        %v5345 = vunpack.c.l.b16 %v2434
        %v5346 = vunpack.c.h.b16 %v2434
        %v5347 = vunpack.c.l.b16 %v2435
        %v5348 = vunpack.c.h.b16 %v2435
        %v5349 = vunpack.c.l.b16 %v2436
        %v5350 = vunpack.c.h.b16 %v2436
        %v5351 = vunpack.c.l.b16 %v2437
        %v5352 = vunpack.c.h.b16 %v2437
        %v5353 = vunpack.c.l.b16 %v2438
        %v5354 = vunpack.c.h.b16 %v2438
        %v5355 = vunpack.c.l.b16 %v2439
        %v5356 = vunpack.c.h.b16 %v2439
        %v5357 = vunpack.c.l.b16 %v2440
        %v5358 = vunpack.c.h.b16 %v2440
        %v5359 = vunpack.c.l.b16 %v2441
        %v5360 = vunpack.c.h.b16 %v2441
        %v5361 = vunpack.c.l.b16 %v2442
        %v5362 = vunpack.c.h.b16 %v2442
        %v5363 = vunpack.c.l.b16 %v2443
        %v5364 = vunpack.c.h.b16 %v2443
        %v5365 = vunpack.c.l.b16 %v2444
        %v5366 = vunpack.c.h.b16 %v2444
        %v5367 = vunpack.c.l.b16 %v2445
        %v5368 = vunpack.c.h.b16 %v2445
        %v5369 = vunpack.c.l.b16 %v2446
        %v5370 = vunpack.c.h.b16 %v2446
        %v5371 = vunpack.c.l.b16 %v2447
        %v5372 = vunpack.c.h.b16 %v2447
        %v5373 = vunpack.c.l.b16 %v2448
        %v5374 = vunpack.c.h.b16 %v2448
        %v5375 = vunpack.c.l.b16 %v2449
        %v5376 = vunpack.c.h.b16 %v2449
        %v5377 = vunpack.c.l.b16 %v2450
        %v5378 = vunpack.c.h.b16 %v2450
        %v5379 = vunpack.c.l.b16 %v2451
        %v5380 = vunpack.c.h.b16 %v2451
        %v5381 = vunpack.c.l.b16 %v2452
        %v5382 = vunpack.c.h.b16 %v2452
        %v5383 = vunpack.c.l.b16 %v2453
        %v5384 = vunpack.c.h.b16 %v2453
        %v5385 = vunpack.c.l.b16 %v2454
        %v5386 = vunpack.c.h.b16 %v2454
        %v5387 = vunpack.c.l.b16 %v2455
        %v5388 = vunpack.c.h.b16 %v2455
        %v5389 = vunpack.c.l.b16 %v2456
        %v5390 = vunpack.c.h.b16 %v2456
        %v5391 = vunpack.c.l.b16 %v2457
        %v5392 = vunpack.c.h.b16 %v2457
        %v5393 = vunpack.c.l.b16 %v2458
        %v5394 = vunpack.c.h.b16 %v2458
        %v5395 = vunpack.c.l.b16 %v2459
        %v5396 = vunpack.c.h.b16 %v2459
        %v5397 = vunpack.c.l.b16 %v2460
        %v5398 = vunpack.c.h.b16 %v2460
        %v5399 = vunpack.c.l.b16 %v2461
        %v5400 = vunpack.c.h.b16 %v2461
        %v5401 = vunpack.c.l.b16 %v2462
        %v5402 = vunpack.c.h.b16 %v2462
        %v5403 = vunpack.c.l.b16 %v2463
        %v5404 = vunpack.c.h.b16 %v2463
        %v5405 = vunpack.c.l.b16 %v2464
        %v5406 = vunpack.c.h.b16 %v2464
        %v5407 = vunpack.c.l.b16 %v2465
        %v5408 = vunpack.c.h.b16 %v2465
        %v5409 = vunpack.c.l.b16 %v2466
        %v5410 = vunpack.c.h.b16 %v2466
        %v5411 = vunpack.c.l.b16 %v2467
        %v5412 = vunpack.c.h.b16 %v2467
        %v5413 = vunpack.c.l.b16 %v2468
        %v5414 = vunpack.c.h.b16 %v2468
        %v5415 = vunpack.c.l.b16 %v2469
        %v5416 = vunpack.c.h.b16 %v2469
        %v5417 = vunpack.c.l.b16 %v2470
        %v5418 = vunpack.c.h.b16 %v2470
        %v5419 = vunpack.c.l.b16 %v2471
        %v5420 = vunpack.c.h.b16 %v2471
        %v5421 = vunpack.c.l.b16 %v2472
        %v5422 = vunpack.c.h.b16 %v2472
        %v5423 = vunpack.c.l.b16 %v2473
        %v5424 = vunpack.c.h.b16 %v2473
        %v5425 = vunpack.c.l.b16 %v2474
        %v5426 = vunpack.c.h.b16 %v2474
        %v5427 = vunpack.c.l.b16 %v2475
        %v5428 = vunpack.c.h.b16 %v2475
        %v5429 = vunpack.c.l.b16 %v2476
        %v5430 = vunpack.c.h.b16 %v2476
        %v5431 = vunpack.c.l.b16 %v2477
        %v5432 = vunpack.c.h.b16 %v2477
        %v5433 = vunpack.c.l.b16 %v2478
        %v5434 = vunpack.c.h.b16 %v2478
        %v5435 = vunpack.c.l.b16 %v2479
        %v5436 = vunpack.c.h.b16 %v2479
        %v5437 = vunpack.c.l.b16 %v2480
        %v5438 = vunpack.c.h.b16 %v2480
        %v5439 = vunpack.c.l.b16 %v2481
        %v5440 = vunpack.c.h.b16 %v2481
        %v5441 = vunpack.c.l.b16 %v2482
        %v5442 = vunpack.c.h.b16 %v2482
        %v5443 = vunpack.c.l.b16 %v2483
        %v5444 = vunpack.c.h.b16 %v2483
        %v5445 = vunpack.c.l.b16 %v2484
        %v5446 = vunpack.c.h.b16 %v2484
        %v5447 = vunpack.c.l.b16 %v2485
        %v5448 = vunpack.c.h.b16 %v2485
        %v5449 = vunpack.c.l.b16 %v2486
        %v5450 = vunpack.c.h.b16 %v2486
        %v5451 = vunpack.c.l.b16 %v2487
        %v5452 = vunpack.c.h.b16 %v2487
        %v5453 = vunpack.c.l.b16 %v2488
        %v5454 = vunpack.c.h.b16 %v2488
        %v5455 = vunpack.c.l.b16 %v2489
        %v5456 = vunpack.c.h.b16 %v2489
        %v5457 = vunpack.c.l.b16 %v2490
        %v5458 = vunpack.c.h.b16 %v2490
        %v5459 = vunpack.c.l.b16 %v2491
        %v5460 = vunpack.c.h.b16 %v2491
        %v5461 = vunpack.c.l.b16 %v2492
        %v5462 = vunpack.c.h.b16 %v2492
        %v5463 = vunpack.c.l.b16 %v2493
        %v5464 = vunpack.c.h.b16 %v2493
        %v5465 = vunpack.c.l.b16 %v2494
        %v5466 = vunpack.c.h.b16 %v2494
        %v5467 = vunpack.c.l.b16 %v2495
        %v5468 = vunpack.c.h.b16 %v2495
        %v5469 = vunpack.c.l.b16 %v2496
        %v5470 = vunpack.c.h.b16 %v2496
        %v5471 = vunpack.c.l.b16 %v2497
        %v5472 = vunpack.c.h.b16 %v2497
        %v5473 = vunpack.c.l.b16 %v2498
        %v5474 = vunpack.c.h.b16 %v2498
        %v5475 = vunpack.c.l.b16 %v2499
        %v5476 = vunpack.c.h.b16 %v2499
        %v5477 = vunpack.c.l.b16 %v2500
        %v5478 = vunpack.c.h.b16 %v2500
        %v5479 = vunpack.c.l.b16 %v2501
        %v5480 = vunpack.c.h.b16 %v2501
        %v5481 = vunpack.c.l.b16 %v2502
        %v5482 = vunpack.c.h.b16 %v2502
        %v5483 = vunpack.c.l.b16 %v2503
        %v5484 = vunpack.c.h.b16 %v2503
        %v5485 = vunpack.c.l.b16 %v2504
        %v5486 = vunpack.c.h.b16 %v2504
        %v5487 = vunpack.c.l.b16 %v2505
        %v5488 = vunpack.c.h.b16 %v2505
        %v5489 = vunpack.c.l.b16 %v2506
        %v5490 = vunpack.c.h.b16 %v2506
        %v5491 = vunpack.c.l.b16 %v2507
        %v5492 = vunpack.c.h.b16 %v2507
        %v5493 = vunpack.c.l.b16 %v2508
        %v5494 = vunpack.c.h.b16 %v2508
        %v5495 = vunpack.c.l.b16 %v2509
        %v5496 = vunpack.c.h.b16 %v2509
        %v5497 = vunpack.c.l.b16 %v2510
        %v5498 = vunpack.c.h.b16 %v2510
        %v5499 = vunpack.c.l.b16 %v2511
        %v5500 = vunpack.c.h.b16 %v2511
        %v5501 = vunpack.c.l.b16 %v2512
        %v5502 = vunpack.c.h.b16 %v2512
        %v5503 = vunpack.c.l.b16 %v2513
        %v5504 = vunpack.c.h.b16 %v2513
        %v5505 = vunpack.c.l.b16 %v2514
        %v5506 = vunpack.c.h.b16 %v2514
        %v5507 = vunpack.c.l.b16 %v2515
        %v5508 = vunpack.c.h.b16 %v2515
        %v5509 = vunpack.c.l.b16 %v2516
        %v5510 = vunpack.c.h.b16 %v2516
        %v5511 = vunpack.c.l.b16 %v2517
        %v5512 = vunpack.c.h.b16 %v2517
        %v5513 = vunpack.c.l.b16 %v2518
        %v5514 = vunpack.c.h.b16 %v2518
        %v5515 = vunpack.c.l.b16 %v2519
        %v5516 = vunpack.c.h.b16 %v2519
        %v5517 = vunpack.c.l.b16 %v2520
        %v5518 = vunpack.c.h.b16 %v2520
        %v5519 = vunpack.c.l.b16 %v2521
        %v5520 = vunpack.c.h.b16 %v2521
        %v5521 = vunpack.c.l.b16 %v2522
        %v5522 = vunpack.c.h.b16 %v2522
        %v5523 = vunpack.c.l.b16 %v2523
        %v5524 = vunpack.c.h.b16 %v2523
        %v5525 = vunpack.c.l.b16 %v2524
        %v5526 = vunpack.c.h.b16 %v2524
        %v5527 = vunpack.c.l.b16 %v2525
        %v5528 = vunpack.c.h.b16 %v2525
        %v5529 = vunpack.c.l.b16 %v2526
        %v5530 = vunpack.c.h.b16 %v2526
        %v5531 = vunpack.c.l.b16 %v2527
        %v5532 = vunpack.c.h.b16 %v2527
        %v5533 = vunpack.c.l.b16 %v2528
        %v5534 = vunpack.c.h.b16 %v2528
        %v5535 = vunpack.c.l.b16 %v2529
        %v5536 = vunpack.c.h.b16 %v2529
        %v5537 = vunpack.c.l.b16 %v2530
        %v5538 = vunpack.c.h.b16 %v2530
        %v5539 = vunpack.c.l.b16 %v2531
        %v5540 = vunpack.c.h.b16 %v2531
        %v5541 = vunpack.c.l.b16 %v2532
        %v5542 = vunpack.c.h.b16 %v2532
        %v5543 = vunpack.c.l.b16 %v2533
        %v5544 = vunpack.c.h.b16 %v2533
        %v5545 = vunpack.c.l.b16 %v2534
        %v5546 = vunpack.c.h.b16 %v2534
        %v5547 = vunpack.c.l.b16 %v2535
        %v5548 = vunpack.c.h.b16 %v2535
        %v5549 = vunpack.c.l.b16 %v2536
        %v5550 = vunpack.c.h.b16 %v2536
        %v5551 = vunpack.c.l.b16 %v2537
        %v5552 = vunpack.c.h.b16 %v2537
        %v5553 = vunpack.c.l.b16 %v2538
        %v5554 = vunpack.c.h.b16 %v2538
        %v5555 = vunpack.c.l.b16 %v2539
        %v5556 = vunpack.c.h.b16 %v2539
        %v5557 = vunpack.c.l.b16 %v2540
        %v5558 = vunpack.c.h.b16 %v2540
        %v5559 = vunpack.c.l.b16 %v2541
        %v5560 = vunpack.c.h.b16 %v2541
        %v5561 = vunpack.c.l.b16 %v2542
        %v5562 = vunpack.c.h.b16 %v2542
        %v5563 = vunpack.c.l.b16 %v2543
        %v5564 = vunpack.c.h.b16 %v2543
        %v5565 = vunpack.c.l.b16 %v2544
        %v5566 = vunpack.c.h.b16 %v2544
        %v5567 = vunpack.c.l.b16 %v2545
        %v5568 = vunpack.c.h.b16 %v2545
        %v5569 = vunpack.c.l.b16 %v2546
        %v5570 = vunpack.c.h.b16 %v2546
        %v5571 = vunpack.c.l.b16 %v2547
        %v5572 = vunpack.c.h.b16 %v2547
        %v5573 = vunpack.c.l.b16 %v2548
        %v5574 = vunpack.c.h.b16 %v2548
        %v5575 = vunpack.c.l.b16 %v2549
        %v5576 = vunpack.c.h.b16 %v2549
        %v5577 = vunpack.c.l.b16 %v2550
        %v5578 = vunpack.c.h.b16 %v2550
        %v5579 = vunpack.c.l.b16 %v2551
        %v5580 = vunpack.c.h.b16 %v2551
        %v5581 = vunpack.c.l.b16 %v2552
        %v5582 = vunpack.c.h.b16 %v2552
        %v5583 = vunpack.c.l.b16 %v2553
        %v5584 = vunpack.c.h.b16 %v2553
        %v5585 = vunpack.c.l.b16 %v2554
        %v5586 = vunpack.c.h.b16 %v2554
        %v5587 = vunpack.c.l.b16 %v2555
        %v5588 = vunpack.c.h.b16 %v2555
        %v5589 = vunpack.c.l.b16 %v2556
        %v5590 = vunpack.c.h.b16 %v2556
        %v5591 = vunpack.c.l.b16 %v2557
        %v5592 = vunpack.c.h.b16 %v2557
        %v5593 = vunpack.c.l.b16 %v2558
        %v5594 = vunpack.c.h.b16 %v2558
        %v5595 = vunpack.c.l.b16 %v2559
        %v5596 = vunpack.c.h.b16 %v2559
        %v5597 = vunpack.c.l.b16 %v2560
        %v5598 = vunpack.c.h.b16 %v2560
        %v5599 = vunpack.c.l.b16 %v2561
        %v5600 = vunpack.c.h.b16 %v2561
        %v5601 = vunpack.c.l.b16 %v2562
        %v5602 = vunpack.c.h.b16 %v2562
        %v5603 = vunpack.c.l.b16 %v2563
        %v5604 = vunpack.c.h.b16 %v2563
        %v5605 = vunpack.c.l.b16 %v2564
        %v5606 = vunpack.c.h.b16 %v2564
        %v5607 = vunpack.c.l.b16 %v2565
        %v5608 = vunpack.c.h.b16 %v2565
        %v5609 = vunpack.c.l.b16 %v2566
        %v5610 = vunpack.c.h.b16 %v2566
        %v5611 = vunpack.c.l.b16 %v2567
        %v5612 = vunpack.c.h.b16 %v2567
        %v5613 = vunpack.c.l.b16 %v2568
        %v5614 = vunpack.c.h.b16 %v2568
        %v5615 = vunpack.c.l.b16 %v2569
        %v5616 = vunpack.c.h.b16 %v2569
        %v5617 = vunpack.c.l.b16 %v2570
        %v5618 = vunpack.c.h.b16 %v2570
        %v5619 = vunpack.c.l.b16 %v2571
        %v5620 = vunpack.c.h.b16 %v2571
        %v5621 = vunpack.c.l.b16 %v2572
        %v5622 = vunpack.c.h.b16 %v2572
        %v5623 = vunpack.c.l.b16 %v2573
        %v5624 = vunpack.c.h.b16 %v2573
        %v5625 = vunpack.c.l.b16 %v2574
        %v5626 = vunpack.c.h.b16 %v2574
        %v5627 = vunpack.c.l.b16 %v2575
        %v5628 = vunpack.c.h.b16 %v2575
        %v5629 = vunpack.c.l.b16 %v2576
        %v5630 = vunpack.c.h.b16 %v2576
        %v5631 = vunpack.c.l.b16 %v2577
        %v5632 = vunpack.c.h.b16 %v2577
        %v5633 = vunpack.c.l.b16 %v2578
        %v5634 = vunpack.c.h.b16 %v2578
        %v5635 = vunpack.c.l.b16 %v2579
        %v5636 = vunpack.c.h.b16 %v2579
        %v5637 = vunpack.c.l.b16 %v2580
        %v5638 = vunpack.c.h.b16 %v2580
        %v5639 = vunpack.c.l.b16 %v2581
        %v5640 = vunpack.c.h.b16 %v2581
        %v5641 = vunpack.c.l.b16 %v2582
        %v5642 = vunpack.c.h.b16 %v2582
        %v5643 = vunpack.c.l.b16 %v2583
        %v5644 = vunpack.c.h.b16 %v2583
        %v5645 = vunpack.c.l.b16 %v2584
        %v5646 = vunpack.c.h.b16 %v2584
        %v5647 = vunpack.c.l.b16 %v2585
        %v5648 = vunpack.c.h.b16 %v2585
        %v5649 = vunpack.c.l.b16 %v2586
        %v5650 = vunpack.c.h.b16 %v2586
        %v5651 = vunpack.c.l.b16 %v2587
        %v5652 = vunpack.c.h.b16 %v2587
        %v5653 = vunpack.c.l.b16 %v2588
        %v5654 = vunpack.c.h.b16 %v2588
        %v5655 = vunpack.c.l.b16 %v2589
        %v5656 = vunpack.c.h.b16 %v2589
        %v5657 = vunpack.c.l.b16 %v2590
        %v5658 = vunpack.c.h.b16 %v2590
        %v5659 = vunpack.c.l.b16 %v2591
        %v5660 = vunpack.c.h.b16 %v2591
        %v5661 = vunpack.c.l.b16 %v2592
        %v5662 = vunpack.c.h.b16 %v2592
        %v5663 = vunpack.c.l.b16 %v2593
        %v5664 = vunpack.c.h.b16 %v2593
        %v5665 = vunpack.c.l.b16 %v2594
        %v5666 = vunpack.c.h.b16 %v2594
        %v5667 = vunpack.c.l.b16 %v2595
        %v5668 = vunpack.c.h.b16 %v2595
        %v5669 = vunpack.c.l.b16 %v2596
        %v5670 = vunpack.c.h.b16 %v2596
        %v5671 = vunpack.c.l.b16 %v2597
        %v5672 = vunpack.c.h.b16 %v2597
        %v5673 = vunpack.c.l.b16 %v2598
        %v5674 = vunpack.c.h.b16 %v2598
        %v5675 = vunpack.c.l.b16 %v2599
        %v5676 = vunpack.c.h.b16 %v2599
        %v5677 = vunpack.c.l.b16 %v2600
        %v5678 = vunpack.c.h.b16 %v2600
        %v5679 = vunpack.c.l.b16 %v2601
        %v5680 = vunpack.c.h.b16 %v2601
        %v5681 = vunpack.c.l.b16 %v2602
        %v5682 = vunpack.c.h.b16 %v2602
        %v5683 = vunpack.c.l.b16 %v2603
        %v5684 = vunpack.c.h.b16 %v2603
        %v5685 = vunpack.c.l.b16 %v2604
        %v5686 = vunpack.c.h.b16 %v2604
        %v5687 = vunpack.c.l.b16 %v2605
        %v5688 = vunpack.c.h.b16 %v2605
        %v5689 = vunpack.c.l.b16 %v2606
        %v5690 = vunpack.c.h.b16 %v2606
        %v5691 = vunpack.c.l.b16 %v2607
        %v5692 = vunpack.c.h.b16 %v2607
        %v5693 = vunpack.c.l.b16 %v2608
        %v5694 = vunpack.c.h.b16 %v2608
        %v5695 = vunpack.c.l.b16 %v2609
        %v5696 = vunpack.c.h.b16 %v2609
        %v5697 = vunpack.c.l.b16 %v2610
        %v5698 = vunpack.c.h.b16 %v2610
        %v5699 = vunpack.c.l.b16 %v2611
        %v5700 = vunpack.c.h.b16 %v2611
        %v5701 = vunpack.c.l.b16 %v2612
        %v5702 = vunpack.c.h.b16 %v2612
        %v5703 = vunpack.c.l.b16 %v2613
        %v5704 = vunpack.c.h.b16 %v2613
        %v5705 = vunpack.c.l.b16 %v2614
        %v5706 = vunpack.c.h.b16 %v2614
        %v5707 = vunpack.c.l.b16 %v2615
        %v5708 = vunpack.c.h.b16 %v2615
        %v5709 = vunpack.c.l.b16 %v2616
        %v5710 = vunpack.c.h.b16 %v2616
        %v5711 = vunpack.c.l.b16 %v2617
        %v5712 = vunpack.c.h.b16 %v2617
        %v5713 = vunpack.c.l.b16 %v2618
        %v5714 = vunpack.c.h.b16 %v2618
        %v5715 = vunpack.c.l.b16 %v2619
        %v5716 = vunpack.c.h.b16 %v2619
        %v5717 = vunpack.c.l.b16 %v2620
        %v5718 = vunpack.c.h.b16 %v2620
        %v5719 = vunpack.c.l.b16 %v2621
        %v5720 = vunpack.c.h.b16 %v2621
        %v5721 = vunpack.c.l.b16 %v2622
        %v5722 = vunpack.c.h.b16 %v2622
        %v5723 = vunpack.c.l.b16 %v2623
        %v5724 = vunpack.c.h.b16 %v2623
        %v5725 = vunpack.c.l.b16 %v2624
        %v5726 = vunpack.c.h.b16 %v2624
        %v5727 = vunpack.c.l.b16 %v2625
        %v5728 = vunpack.c.h.b16 %v2625
        %v5729 = vunpack.c.l.b16 %v2626
        %v5730 = vunpack.c.h.b16 %v2626
        %v5731 = vunpack.c.l.b16 %v2627
        %v5732 = vunpack.c.h.b16 %v2627
        %v5733 = vunpack.c.l.b16 %v2628
        %v5734 = vunpack.c.h.b16 %v2628
        %v5735 = vunpack.c.l.b16 %v2629
        %v5736 = vunpack.c.h.b16 %v2629
        %v5737 = vunpack.c.l.b16 %v2630
        %v5738 = vunpack.c.h.b16 %v2630
        %v5739 = vunpack.c.l.b16 %v2631
        %v5740 = vunpack.c.h.b16 %v2631
        %v5741 = vunpack.c.l.b16 %v2632
        %v5742 = vunpack.c.h.b16 %v2632
        %v5743 = vunpack.c.l.b16 %v2633
        %v5744 = vunpack.c.h.b16 %v2633
        %v5745 = vunpack.c.l.b16 %v2634
        %v5746 = vunpack.c.h.b16 %v2634
        %v5747 = vunpack.c.l.b16 %v2635
        %v5748 = vunpack.c.h.b16 %v2635
        %v5749 = vunpack.c.l.b16 %v2636
        %v5750 = vunpack.c.h.b16 %v2636
        %v5751 = vunpack.c.l.b16 %v2637
        %v5752 = vunpack.c.h.b16 %v2637
        %v5753 = vunpack.c.l.b16 %v2638
        %v5754 = vunpack.c.h.b16 %v2638
        %v5755 = vunpack.c.l.b16 %v2639
        %v5756 = vunpack.c.h.b16 %v2639
        %v5757 = vunpack.c.l.b16 %v2640
        %v5758 = vunpack.c.h.b16 %v2640
        %v5759 = vunpack.c.l.b16 %v2641
        %v5760 = vunpack.c.h.b16 %v2641
        %v5761 = vunpack.c.l.b16 %v2642
        %v5762 = vunpack.c.h.b16 %v2642
        %v5763 = vunpack.c.l.b16 %v2643
        %v5764 = vunpack.c.h.b16 %v2643
        %v5765 = vunpack.c.l.b16 %v2644
        %v5766 = vunpack.c.h.b16 %v2644
        %v5767 = vunpack.c.l.b16 %v2645
        %v5768 = vunpack.c.h.b16 %v2645
        %v5769 = vunpack.c.l.b16 %v2646
        %v5770 = vunpack.c.h.b16 %v2646
        %v5771 = vunpack.c.l.b16 %v2647
        %v5772 = vunpack.c.h.b16 %v2647
        %v5773 = vunpack.c.l.b16 %v2648
        %v5774 = vunpack.c.h.b16 %v2648
        %v5775 = vunpack.c.l.b16 %v2649
        %v5776 = vunpack.c.h.b16 %v2649
        %v5777 = vunpack.c.l.b16 %v2650
        %v5778 = vunpack.c.h.b16 %v2650
        %v5779 = vunpack.c.l.b16 %v2651
        %v5780 = vunpack.c.h.b16 %v2651
        %v5781 = vunpack.c.l.b16 %v2652
        %v5782 = vunpack.c.h.b16 %v2652
        %v5783 = vunpack.c.l.b16 %v2653
        %v5784 = vunpack.c.h.b16 %v2653
        %v5785 = vunpack.c.l.b16 %v2654
        %v5786 = vunpack.c.h.b16 %v2654
        %v5787 = vunpack.c.l.b16 %v2655
        %v5788 = vunpack.c.h.b16 %v2655
        %v5789 = vunpack.c.l.b16 %v2656
        %v5790 = vunpack.c.h.b16 %v2656
        %v5791 = vunpack.c.l.b16 %v2657
        %v5792 = vunpack.c.h.b16 %v2657
        %v5793 = vunpack.c.l.b16 %v2658
        %v5794 = vunpack.c.h.b16 %v2658
        %v5795 = vunpack.c.l.b16 %v2659
        %v5796 = vunpack.c.h.b16 %v2659
        %v5797 = vunpack.c.l.b16 %v2660
        %v5798 = vunpack.c.h.b16 %v2660
        %v5799 = vunpack.c.l.b16 %v2661
        %v5800 = vunpack.c.h.b16 %v2661
        %v5801 = vunpack.c.l.b16 %v2662
        %v5802 = vunpack.c.h.b16 %v2662
        %v5803 = vunpack.c.l.b16 %v2663
        %v5804 = vunpack.c.h.b16 %v2663
        %v5805 = vunpack.c.l.b16 %v2664
        %v5806 = vunpack.c.h.b16 %v2664
        %v5807 = vunpack.c.l.b16 %v2665
        %v5808 = vunpack.c.h.b16 %v2665
        %v5809 = vunpack.c.l.b16 %v2666
        %v5810 = vunpack.c.h.b16 %v2666
        %v5811 = vunpack.c.l.b16 %v2667
        %v5812 = vunpack.c.h.b16 %v2667
        %v5813 = vunpack.c.l.b16 %v2668
        %v5814 = vunpack.c.h.b16 %v2668
        %v5815 = vunpack.c.l.b16 %v2669
        %v5816 = vunpack.c.h.b16 %v2669
        %v5817 = vunpack.c.l.b16 %v2670
        %v5818 = vunpack.c.h.b16 %v2670
        %v5819 = vunpack.c.l.b16 %v2671
        %v5820 = vunpack.c.h.b16 %v2671
        %v5821 = vunpack.c.l.b16 %v2672
        %v5822 = vunpack.c.h.b16 %v2672
        %v5823 = vunpack.c.l.b16 %v2673
        %v5824 = vunpack.c.h.b16 %v2673
        %v5825 = vunpack.c.l.b16 %v2674
        %v5826 = vunpack.c.h.b16 %v2674
        %v5827 = vunpack.c.l.b16 %v2675
        %v5828 = vunpack.c.h.b16 %v2675
        %v5829 = vunpack.c.l.b16 %v2676
        %v5830 = vunpack.c.h.b16 %v2676
        %v5831 = vunpack.c.l.b16 %v2677
        %v5832 = vunpack.c.h.b16 %v2677
        %v5833 = vunpack.c.l.b16 %v2678
        %v5834 = vunpack.c.h.b16 %v2678
        %v5835 = vunpack.c.l.b16 %v2679
        %v5836 = vunpack.c.h.b16 %v2679
        %v5837 = vunpack.c.l.b16 %v2680
        %v5838 = vunpack.c.h.b16 %v2680
        %v5839 = vunpack.c.l.b16 %v2681
        %v5840 = vunpack.c.h.b16 %v2681
        %v5841 = vunpack.c.l.b16 %v2682
        %v5842 = vunpack.c.h.b16 %v2682
        %v5843 = vunpack.c.l.b16 %v2683
        %v5844 = vunpack.c.h.b16 %v2683
        %v5845 = vunpack.c.l.b16 %v2684
        %v5846 = vunpack.c.h.b16 %v2684
        %v5847 = vunpack.c.l.b16 %v2685
        %v5848 = vunpack.c.h.b16 %v2685
        %v5849 = vunpack.c.l.b16 %v2686
        %v5850 = vunpack.c.h.b16 %v2686
        %v5851 = vunpack.c.l.b16 %v2687
        %v5852 = vunpack.c.h.b16 %v2687
        %v5853 = vunpack.c.l.b16 %v2688
        %v5854 = vunpack.c.h.b16 %v2688
        %v5855 = vunpack.c.l.b16 %v2689
        %v5856 = vunpack.c.h.b16 %v2689
        %v5857 = vunpack.c.l.b16 %v2690
        %v5858 = vunpack.c.h.b16 %v2690
        %v5859 = vunpack.c.l.b16 %v2691
        %v5860 = vunpack.c.h.b16 %v2691
        %v5861 = vunpack.c.l.b16 %v2692
        %v5862 = vunpack.c.h.b16 %v2692
        %v5863 = vpack.c.b16 %v3823, %v3815
        %v5864 = vpack.c.b16 %v3824, %v3816
        %v5865 = vpack.c.b16 %v3825, %v3817
        %v5866 = vpack.c.b16 %v3826, %v3818
        %v5867 = vpack.c.b16 %v3827, %v3819
        %v5868 = vpack.c.b16 %v3828, %v3820
        %v5869 = vpack.c.b16 %v3829, %v3821
        %v5870 = vpack.c.b16 %v3830, %v3822
        %v5871 = vpack.c.b16 %v3839, %v3831
        %v5872 = vpack.c.b16 %v3840, %v3832
        %v5873 = vpack.c.b16 %v3841, %v3833
        %v5874 = vpack.c.b16 %v3842, %v3834
        %v5875 = vpack.c.b16 %v3843, %v3835
        %v5876 = vpack.c.b16 %v3844, %v3836
        %v5877 = vpack.c.b16 %v3845, %v3837
        %v5878 = vpack.c.b16 %v3846, %v3838
        %v5879 = vpack.c.b16 %v3855, %v3847
        %v5880 = vpack.c.b16 %v3856, %v3848
        %v5881 = vpack.c.b16 %v3857, %v3849
        %v5882 = vpack.c.b16 %v3858, %v3850
        %v5883 = vpack.c.b16 %v3859, %v3851
        %v5884 = vpack.c.b16 %v3860, %v3852
        %v5885 = vpack.c.b16 %v3861, %v3853
        %v5886 = vpack.c.b16 %v3862, %v3854
        %v5887 = vpack.c.b16 %v3871, %v3863
        %v5888 = vpack.c.b16 %v3872, %v3864
        %v5889 = vpack.c.b16 %v3873, %v3865
        %v5890 = vpack.c.b16 %v3874, %v3866
        %v5891 = vpack.c.b16 %v3875, %v3867
        %v5892 = vpack.c.b16 %v3876, %v3868
        %v5893 = vpack.c.b16 %v3877, %v3869
        %v5894 = vpack.c.b16 %v3878, %v3870
        %v5895 = vpack.c.b16 %v3887, %v3879
        %v5896 = vpack.c.b16 %v3888, %v3880
        %v5897 = vpack.c.b16 %v3889, %v3881
        %v5898 = vpack.c.b16 %v3890, %v3882
        %v5899 = vpack.c.b16 %v3891, %v3883
        %v5900 = vpack.c.b16 %v3892, %v3884
        %v5901 = vpack.c.b16 %v3893, %v3885
        %v5902 = vpack.c.b16 %v3894, %v3886
        %v5903 = vpack.c.b16 %v3903, %v3895
        %v5904 = vpack.c.b16 %v3904, %v3896
        %v5905 = vpack.c.b16 %v3905, %v3897
        %v5906 = vpack.c.b16 %v3906, %v3898
        %v5907 = vpack.c.b16 %v3907, %v3899
        %v5908 = vpack.c.b16 %v3908, %v3900
        %v5909 = vpack.c.b16 %v3909, %v3901
        %v5910 = vpack.c.b16 %v3910, %v3902
        %v5911 = vpack.c.b16 %v3919, %v3911
        %v5912 = vpack.c.b16 %v3920, %v3912
        %v5913 = vpack.c.b16 %v3921, %v3913
        %v5914 = vpack.c.b16 %v3922, %v3914
        %v5915 = vpack.c.b16 %v3923, %v3915
        %v5916 = vpack.c.b16 %v3924, %v3916
        %v5917 = vpack.c.b16 %v3925, %v3917
        %v5918 = vpack.c.b16 %v3926, %v3918
        %v5919 = vpack.c.b16 %v3935, %v3927
        %v5920 = vpack.c.b16 %v3936, %v3928
        %v5921 = vpack.c.b16 %v3937, %v3929
        %v5922 = vpack.c.b16 %v3938, %v3930
        %v5923 = vpack.c.b16 %v3939, %v3931
        %v5924 = vpack.c.b16 %v3940, %v3932
        %v5925 = vpack.c.b16 %v3941, %v3933
        %v5926 = vpack.c.b16 %v3942, %v3934
        %v5927 = vpack.c.b16 %v3951, %v3943
        %v5928 = vpack.c.b16 %v3952, %v3944
        %v5929 = vpack.c.b16 %v3953, %v3945
        %v5930 = vpack.c.b16 %v3954, %v3946
        %v5931 = vpack.c.b16 %v3955, %v3947
        %v5932 = vpack.c.b16 %v3956, %v3948
        %v5933 = vpack.c.b16 %v3957, %v3949
        %v5934 = vpack.c.b16 %v3958, %v3950
        %v5935 = vpack.c.b16 %v3967, %v3959
        %v5936 = vpack.c.b16 %v3968, %v3960
        %v5937 = vpack.c.b16 %v3969, %v3961
        %v5938 = vpack.c.b16 %v3970, %v3962
        %v5939 = vpack.c.b16 %v3971, %v3963
        %v5940 = vpack.c.b16 %v3972, %v3964
        %v5941 = vpack.c.b16 %v3973, %v3965
        %v5942 = vpack.c.b16 %v3974, %v3966
        %v5943 = vpack.c.b16 %v3983, %v3975
        %v5944 = vpack.c.b16 %v3984, %v3976
        %v5945 = vpack.c.b16 %v3985, %v3977
        %v5946 = vpack.c.b16 %v3986, %v3978
        %v5947 = vpack.c.b16 %v3987, %v3979
        %v5948 = vpack.c.b16 %v3988, %v3980
        %v5949 = vpack.c.b16 %v3989, %v3981
        %v5950 = vpack.c.b16 %v3990, %v3982
        %v5951 = vpack.c.b16 %v3999, %v3991
        %v5952 = vpack.c.b16 %v4000, %v3992
        %v5953 = vpack.c.b16 %v4001, %v3993
        %v5954 = vpack.c.b16 %v4002, %v3994
        %v5955 = vpack.c.b16 %v4003, %v3995
        %v5956 = vpack.c.b16 %v4004, %v3996
        %v5957 = vpack.c.b16 %v4005, %v3997
        %v5958 = vpack.c.b16 %v4006, %v3998
        %v5959 = vpack.c.b16 %v4015, %v4007
        %v5960 = vpack.c.b16 %v4016, %v4008
        %v5961 = vpack.c.b16 %v4017, %v4009
        %v5962 = vpack.c.b16 %v4018, %v4010
        %v5963 = vpack.c.b16 %v4019, %v4011
        %v5964 = vpack.c.b16 %v4020, %v4012
        %v5965 = vpack.c.b16 %v4021, %v4013
        %v5966 = vpack.c.b16 %v4022, %v4014
        %v5967 = vpack.c.b16 %v4031, %v4023
        %v5968 = vpack.c.b16 %v4032, %v4024
        %v5969 = vpack.c.b16 %v4033, %v4025
        %v5970 = vpack.c.b16 %v4034, %v4026
        %v5971 = vpack.c.b16 %v4035, %v4027
        %v5972 = vpack.c.b16 %v4036, %v4028
        %v5973 = vpack.c.b16 %v4037, %v4029
        %v5974 = vpack.c.b16 %v4038, %v4030
        %v5975 = vpack.c.b16 %v4047, %v4039
        %v5976 = vpack.c.b16 %v4048, %v4040
        %v5977 = vpack.c.b16 %v4049, %v4041
        %v5978 = vpack.c.b16 %v4050, %v4042
        %v5979 = vpack.c.b16 %v4051, %v4043
        %v5980 = vpack.c.b16 %v4052, %v4044
        %v5981 = vpack.c.b16 %v4053, %v4045
        %v5982 = vpack.c.b16 %v4054, %v4046
        %v5983 = vpack.c.b16 %v4063, %v4055
        %v5984 = vpack.c.b16 %v4064, %v4056
        %v5985 = vpack.c.b16 %v4065, %v4057
        %v5986 = vpack.c.b16 %v4066, %v4058
        %v5987 = vpack.c.b16 %v4067, %v4059
        %v5988 = vpack.c.b16 %v4068, %v4060
        %v5989 = vpack.c.b16 %v4069, %v4061
        %v5990 = vpack.c.b16 %v4070, %v4062
        %v5991 = vpack.c.b16 %v4079, %v4071
        %v5992 = vpack.c.b16 %v4080, %v4072
        %v5993 = vpack.c.b16 %v4081, %v4073
        %v5994 = vpack.c.b16 %v4082, %v4074
        %v5995 = vpack.c.b16 %v4083, %v4075
        %v5996 = vpack.c.b16 %v4084, %v4076
        %v5997 = vpack.c.b16 %v4085, %v4077
        %v5998 = vpack.c.b16 %v4086, %v4078
        %v5999 = vpack.c.b16 %v4095, %v4087
        %v6000 = vpack.c.b16 %v4096, %v4088
        %v6001 = vpack.c.b16 %v4097, %v4089
        %v6002 = vpack.c.b16 %v4098, %v4090
        %v6003 = vpack.c.b16 %v4099, %v4091
        %v6004 = vpack.c.b16 %v4100, %v4092
        %v6005 = vpack.c.b16 %v4101, %v4093
        %v6006 = vpack.c.b16 %v4102, %v4094
        %v6007 = vpack.c.b16 %v4111, %v4103
        %v6008 = vpack.c.b16 %v4112, %v4104
        %v6009 = vpack.c.b16 %v4113, %v4105
        %v6010 = vpack.c.b16 %v4114, %v4106
        %v6011 = vpack.c.b16 %v4115, %v4107
        %v6012 = vpack.c.b16 %v4116, %v4108
        %v6013 = vpack.c.b16 %v4117, %v4109
        %v6014 = vpack.c.b16 %v4118, %v4110
        %v6015 = vpack.c.b16 %v4127, %v4119
        %v6016 = vpack.c.b16 %v4128, %v4120
        %v6017 = vpack.c.b16 %v4129, %v4121
        %v6018 = vpack.c.b16 %v4130, %v4122
        %v6019 = vpack.c.b16 %v4131, %v4123
        %v6020 = vpack.c.b16 %v4132, %v4124
        %v6021 = vpack.c.b16 %v4133, %v4125
        %v6022 = vpack.c.b16 %v4134, %v4126
        %v6023 = vpack.c.b16 %v4143, %v4135
        %v6024 = vpack.c.b16 %v4144, %v4136
        %v6025 = vpack.c.b16 %v4145, %v4137
        %v6026 = vpack.c.b16 %v4146, %v4138
        %v6027 = vpack.c.b16 %v4147, %v4139
        %v6028 = vpack.c.b16 %v4148, %v4140
        %v6029 = vpack.c.b16 %v4149, %v4141
        %v6030 = vpack.c.b16 %v4150, %v4142
        %v6031 = vpack.c.b16 %v4159, %v4151
        %v6032 = vpack.c.b16 %v4160, %v4152
        %v6033 = vpack.c.b16 %v4161, %v4153
        %v6034 = vpack.c.b16 %v4162, %v4154
        %v6035 = vpack.c.b16 %v4163, %v4155
        %v6036 = vpack.c.b16 %v4164, %v4156
        %v6037 = vpack.c.b16 %v4165, %v4157
        %v6038 = vpack.c.b16 %v4166, %v4158
        %v6039 = vpack.c.b16 %v4175, %v4167
        %v6040 = vpack.c.b16 %v4176, %v4168
        %v6041 = vpack.c.b16 %v4177, %v4169
        %v6042 = vpack.c.b16 %v4178, %v4170
        %v6043 = vpack.c.b16 %v4179, %v4171
        %v6044 = vpack.c.b16 %v4180, %v4172
        %v6045 = vpack.c.b16 %v4181, %v4173
        %v6046 = vpack.c.b16 %v4182, %v4174
        %v6047 = vpack.c.b16 %v4191, %v4183
        %v6048 = vpack.c.b16 %v4192, %v4184
        %v6049 = vpack.c.b16 %v4193, %v4185
        %v6050 = vpack.c.b16 %v4194, %v4186
        %v6051 = vpack.c.b16 %v4195, %v4187
        %v6052 = vpack.c.b16 %v4196, %v4188
        %v6053 = vpack.c.b16 %v4197, %v4189
        %v6054 = vpack.c.b16 %v4198, %v4190
        %v6055 = vpack.c.b16 %v4207, %v4199
        %v6056 = vpack.c.b16 %v4208, %v4200
        %v6057 = vpack.c.b16 %v4209, %v4201
        %v6058 = vpack.c.b16 %v4210, %v4202
        %v6059 = vpack.c.b16 %v4211, %v4203
        %v6060 = vpack.c.b16 %v4212, %v4204
        %v6061 = vpack.c.b16 %v4213, %v4205
        %v6062 = vpack.c.b16 %v4214, %v4206
        %v6063 = vpack.c.b16 %v4223, %v4215
        %v6064 = vpack.c.b16 %v4224, %v4216
        %v6065 = vpack.c.b16 %v4225, %v4217
        %v6066 = vpack.c.b16 %v4226, %v4218
        %v6067 = vpack.c.b16 %v4227, %v4219
        %v6068 = vpack.c.b16 %v4228, %v4220
        %v6069 = vpack.c.b16 %v4229, %v4221
        %v6070 = vpack.c.b16 %v4230, %v4222
        %v6071 = vpack.c.b16 %v4239, %v4231
        %v6072 = vpack.c.b16 %v4240, %v4232
        %v6073 = vpack.c.b16 %v4241, %v4233
        %v6074 = vpack.c.b16 %v4242, %v4234
        %v6075 = vpack.c.b16 %v4243, %v4235
        %v6076 = vpack.c.b16 %v4244, %v4236
        %v6077 = vpack.c.b16 %v4245, %v4237
        %v6078 = vpack.c.b16 %v4246, %v4238
        %v6079 = vpack.c.b16 %v4255, %v4247
        %v6080 = vpack.c.b16 %v4256, %v4248
        %v6081 = vpack.c.b16 %v4257, %v4249
        %v6082 = vpack.c.b16 %v4258, %v4250
        %v6083 = vpack.c.b16 %v4259, %v4251
        %v6084 = vpack.c.b16 %v4260, %v4252
        %v6085 = vpack.c.b16 %v4261, %v4253
        %v6086 = vpack.c.b16 %v4262, %v4254
        %v6087 = vpack.c.b16 %v4271, %v4263
        %v6088 = vpack.c.b16 %v4272, %v4264
        %v6089 = vpack.c.b16 %v4273, %v4265
        %v6090 = vpack.c.b16 %v4274, %v4266
        %v6091 = vpack.c.b16 %v4275, %v4267
        %v6092 = vpack.c.b16 %v4276, %v4268
        %v6093 = vpack.c.b16 %v4277, %v4269
        %v6094 = vpack.c.b16 %v4278, %v4270
        %v6095 = vpack.c.b16 %v4287, %v4279
        %v6096 = vpack.c.b16 %v4288, %v4280
        %v6097 = vpack.c.b16 %v4289, %v4281
        %v6098 = vpack.c.b16 %v4290, %v4282
        %v6099 = vpack.c.b16 %v4291, %v4283
        %v6100 = vpack.c.b16 %v4292, %v4284
        %v6101 = vpack.c.b16 %v4293, %v4285
        %v6102 = vpack.c.b16 %v4294, %v4286
        %v6103 = vpack.c.b16 %v4303, %v4295
        %v6104 = vpack.c.b16 %v4304, %v4296
        %v6105 = vpack.c.b16 %v4305, %v4297
        %v6106 = vpack.c.b16 %v4306, %v4298
        %v6107 = vpack.c.b16 %v4307, %v4299
        %v6108 = vpack.c.b16 %v4308, %v4300
        %v6109 = vpack.c.b16 %v4309, %v4301
        %v6110 = vpack.c.b16 %v4310, %v4302
        %v6111 = vpack.c.b16 %v4319, %v4311
        %v6112 = vpack.c.b16 %v4320, %v4312
        %v6113 = vpack.c.b16 %v4321, %v4313
        %v6114 = vpack.c.b16 %v4322, %v4314
        %v6115 = vpack.c.b16 %v4323, %v4315
        %v6116 = vpack.c.b16 %v4324, %v4316
        %v6117 = vpack.c.b16 %v4325, %v4317
        %v6118 = vpack.c.b16 %v4326, %v4318
        %v6119 = vpack.c.b16 %v4335, %v4327
        %v6120 = vpack.c.b16 %v4336, %v4328
        %v6121 = vpack.c.b16 %v4337, %v4329
        %v6122 = vpack.c.b16 %v4338, %v4330
        %v6123 = vpack.c.b16 %v4339, %v4331
        %v6124 = vpack.c.b16 %v4340, %v4332
        %v6125 = vpack.c.b16 %v4341, %v4333
        %v6126 = vpack.c.b16 %v4342, %v4334
        %v6127 = vpack.c.b16 %v4351, %v4343
        %v6128 = vpack.c.b16 %v4352, %v4344
        %v6129 = vpack.c.b16 %v4353, %v4345
        %v6130 = vpack.c.b16 %v4354, %v4346
        %v6131 = vpack.c.b16 %v4355, %v4347
        %v6132 = vpack.c.b16 %v4356, %v4348
        %v6133 = vpack.c.b16 %v4357, %v4349
        %v6134 = vpack.c.b16 %v4358, %v4350
        %v6135 = vpack.c.b16 %v4367, %v4359
        %v6136 = vpack.c.b16 %v4368, %v4360
        %v6137 = vpack.c.b16 %v4369, %v4361
        %v6138 = vpack.c.b16 %v4370, %v4362
        %v6139 = vpack.c.b16 %v4371, %v4363
        %v6140 = vpack.c.b16 %v4372, %v4364
        %v6141 = vpack.c.b16 %v4373, %v4365
        %v6142 = vpack.c.b16 %v4374, %v4366
        %v6143 = vpack.c.b16 %v4383, %v4375
        %v6144 = vpack.c.b16 %v4384, %v4376
        %v6145 = vpack.c.b16 %v4385, %v4377
        %v6146 = vpack.c.b16 %v4386, %v4378
        %v6147 = vpack.c.b16 %v4387, %v4379
        %v6148 = vpack.c.b16 %v4388, %v4380
        %v6149 = vpack.c.b16 %v4389, %v4381
        %v6150 = vpack.c.b16 %v4390, %v4382
        %v6151 = vpack.c.b16 %v4399, %v4391
        %v6152 = vpack.c.b16 %v4400, %v4392
        %v6153 = vpack.c.b16 %v4401, %v4393
        %v6154 = vpack.c.b16 %v4402, %v4394
        %v6155 = vpack.c.b16 %v4403, %v4395
        %v6156 = vpack.c.b16 %v4404, %v4396
        %v6157 = vpack.c.b16 %v4405, %v4397
        %v6158 = vpack.c.b16 %v4406, %v4398
        %v6159 = vpack.c.b16 %v4415, %v4407
        %v6160 = vpack.c.b16 %v4416, %v4408
        %v6161 = vpack.c.b16 %v4417, %v4409
        %v6162 = vpack.c.b16 %v4418, %v4410
        %v6163 = vpack.c.b16 %v4419, %v4411
        %v6164 = vpack.c.b16 %v4420, %v4412
        %v6165 = vpack.c.b16 %v4421, %v4413
        %v6166 = vpack.c.b16 %v4422, %v4414
        %v6167 = vpack.c.b16 %v4431, %v4423
        %v6168 = vpack.c.b16 %v4432, %v4424
        %v6169 = vpack.c.b16 %v4433, %v4425
        %v6170 = vpack.c.b16 %v4434, %v4426
        %v6171 = vpack.c.b16 %v4435, %v4427
        %v6172 = vpack.c.b16 %v4436, %v4428
        %v6173 = vpack.c.b16 %v4437, %v4429
        %v6174 = vpack.c.b16 %v4438, %v4430
        %v6175 = vpack.c.b16 %v4447, %v4439
        %v6176 = vpack.c.b16 %v4448, %v4440
        %v6177 = vpack.c.b16 %v4449, %v4441
        %v6178 = vpack.c.b16 %v4450, %v4442
        %v6179 = vpack.c.b16 %v4451, %v4443
        %v6180 = vpack.c.b16 %v4452, %v4444
        %v6181 = vpack.c.b16 %v4453, %v4445
        %v6182 = vpack.c.b16 %v4454, %v4446
        %v6183 = vpack.c.b16 %v4463, %v4455
        %v6184 = vpack.c.b16 %v4464, %v4456
        %v6185 = vpack.c.b16 %v4465, %v4457
        %v6186 = vpack.c.b16 %v4466, %v4458
        %v6187 = vpack.c.b16 %v4467, %v4459
        %v6188 = vpack.c.b16 %v4468, %v4460
        %v6189 = vpack.c.b16 %v4469, %v4461
        %v6190 = vpack.c.b16 %v4470, %v4462
        %v6191 = vpack.c.b16 %v4479, %v4471
        %v6192 = vpack.c.b16 %v4480, %v4472
        %v6193 = vpack.c.b16 %v4481, %v4473
        %v6194 = vpack.c.b16 %v4482, %v4474
        %v6195 = vpack.c.b16 %v4483, %v4475
        %v6196 = vpack.c.b16 %v4484, %v4476
        %v6197 = vpack.c.b16 %v4485, %v4477
        %v6198 = vpack.c.b16 %v4486, %v4478
        %v6199 = vpack.c.b16 %v4495, %v4487
        %v6200 = vpack.c.b16 %v4496, %v4488
        %v6201 = vpack.c.b16 %v4497, %v4489
        %v6202 = vpack.c.b16 %v4498, %v4490
        %v6203 = vpack.c.b16 %v4499, %v4491
        %v6204 = vpack.c.b16 %v4500, %v4492
        %v6205 = vpack.c.b16 %v4501, %v4493
        %v6206 = vpack.c.b16 %v4502, %v4494
        %v6207 = vpack.c.b16 %v4511, %v4503
        %v6208 = vpack.c.b16 %v4512, %v4504
        %v6209 = vpack.c.b16 %v4513, %v4505
        %v6210 = vpack.c.b16 %v4514, %v4506
        %v6211 = vpack.c.b16 %v4515, %v4507
        %v6212 = vpack.c.b16 %v4516, %v4508
        %v6213 = vpack.c.b16 %v4517, %v4509
        %v6214 = vpack.c.b16 %v4518, %v4510
        %v6215 = vpack.c.b16 %v4527, %v4519
        %v6216 = vpack.c.b16 %v4528, %v4520
        %v6217 = vpack.c.b16 %v4529, %v4521
        %v6218 = vpack.c.b16 %v4530, %v4522
        %v6219 = vpack.c.b16 %v4531, %v4523
        %v6220 = vpack.c.b16 %v4532, %v4524
        %v6221 = vpack.c.b16 %v4533, %v4525
        %v6222 = vpack.c.b16 %v4534, %v4526
        %v6223 = vpack.c.b16 %v4543, %v4535
        %v6224 = vpack.c.b16 %v4544, %v4536
        %v6225 = vpack.c.b16 %v4545, %v4537
        %v6226 = vpack.c.b16 %v4546, %v4538
        %v6227 = vpack.c.b16 %v4547, %v4539
        %v6228 = vpack.c.b16 %v4548, %v4540
        %v6229 = vpack.c.b16 %v4549, %v4541
        %v6230 = vpack.c.b16 %v4550, %v4542
        %v6231 = vpack.c.b16 %v4559, %v4551
        %v6232 = vpack.c.b16 %v4560, %v4552
        %v6233 = vpack.c.b16 %v4561, %v4553
        %v6234 = vpack.c.b16 %v4562, %v4554
        %v6235 = vpack.c.b16 %v4563, %v4555
        %v6236 = vpack.c.b16 %v4564, %v4556
        %v6237 = vpack.c.b16 %v4565, %v4557
        %v6238 = vpack.c.b16 %v4566, %v4558
        %v6239 = vpack.c.b16 %v4575, %v4567
        %v6240 = vpack.c.b16 %v4576, %v4568
        %v6241 = vpack.c.b16 %v4577, %v4569
        %v6242 = vpack.c.b16 %v4578, %v4570
        %v6243 = vpack.c.b16 %v4579, %v4571
        %v6244 = vpack.c.b16 %v4580, %v4572
        %v6245 = vpack.c.b16 %v4581, %v4573
        %v6246 = vpack.c.b16 %v4582, %v4574
        %v6247 = vpack.c.b16 %v4591, %v4583
        %v6248 = vpack.c.b16 %v4592, %v4584
        %v6249 = vpack.c.b16 %v4593, %v4585
        %v6250 = vpack.c.b16 %v4594, %v4586
        %v6251 = vpack.c.b16 %v4595, %v4587
        %v6252 = vpack.c.b16 %v4596, %v4588
        %v6253 = vpack.c.b16 %v4597, %v4589
        %v6254 = vpack.c.b16 %v4598, %v4590
        %v6255 = vpack.c.b16 %v4607, %v4599
        %v6256 = vpack.c.b16 %v4608, %v4600
        %v6257 = vpack.c.b16 %v4609, %v4601
        %v6258 = vpack.c.b16 %v4610, %v4602
        %v6259 = vpack.c.b16 %v4611, %v4603
        %v6260 = vpack.c.b16 %v4612, %v4604
        %v6261 = vpack.c.b16 %v4613, %v4605
        %v6262 = vpack.c.b16 %v4614, %v4606
        %v6263 = vpack.c.b16 %v4623, %v4615
        %v6264 = vpack.c.b16 %v4624, %v4616
        %v6265 = vpack.c.b16 %v4625, %v4617
        %v6266 = vpack.c.b16 %v4626, %v4618
        %v6267 = vpack.c.b16 %v4627, %v4619
        %v6268 = vpack.c.b16 %v4628, %v4620
        %v6269 = vpack.c.b16 %v4629, %v4621
        %v6270 = vpack.c.b16 %v4630, %v4622
        %v6271 = vpack.c.b16 %v4639, %v4631
        %v6272 = vpack.c.b16 %v4640, %v4632
        %v6273 = vpack.c.b16 %v4641, %v4633
        %v6274 = vpack.c.b16 %v4642, %v4634
        %v6275 = vpack.c.b16 %v4643, %v4635
        %v6276 = vpack.c.b16 %v4644, %v4636
        %v6277 = vpack.c.b16 %v4645, %v4637
        %v6278 = vpack.c.b16 %v4646, %v4638
        %v6279 = vpack.c.b16 %v4655, %v4647
        %v6280 = vpack.c.b16 %v4656, %v4648
        %v6281 = vpack.c.b16 %v4657, %v4649
        %v6282 = vpack.c.b16 %v4658, %v4650
        %v6283 = vpack.c.b16 %v4659, %v4651
        %v6284 = vpack.c.b16 %v4660, %v4652
        %v6285 = vpack.c.b16 %v4661, %v4653
        %v6286 = vpack.c.b16 %v4662, %v4654
        %v6287 = vpack.c.b16 %v4671, %v4663
        %v6288 = vpack.c.b16 %v4672, %v4664
        %v6289 = vpack.c.b16 %v4673, %v4665
        %v6290 = vpack.c.b16 %v4674, %v4666
        %v6291 = vpack.c.b16 %v4675, %v4667
        %v6292 = vpack.c.b16 %v4676, %v4668
        %v6293 = vpack.c.b16 %v4677, %v4669
        %v6294 = vpack.c.b16 %v4678, %v4670
        %v6295 = vpack.c.b16 %v4687, %v4679
        %v6296 = vpack.c.b16 %v4688, %v4680
        %v6297 = vpack.c.b16 %v4689, %v4681
        %v6298 = vpack.c.b16 %v4690, %v4682
        %v6299 = vpack.c.b16 %v4691, %v4683
        %v6300 = vpack.c.b16 %v4692, %v4684
        %v6301 = vpack.c.b16 %v4693, %v4685
        %v6302 = vpack.c.b16 %v4694, %v4686
        %v6303 = vpack.c.b16 %v4703, %v4695
        %v6304 = vpack.c.b16 %v4704, %v4696
        %v6305 = vpack.c.b16 %v4705, %v4697
        %v6306 = vpack.c.b16 %v4706, %v4698
        %v6307 = vpack.c.b16 %v4707, %v4699
        %v6308 = vpack.c.b16 %v4708, %v4700
        %v6309 = vpack.c.b16 %v4709, %v4701
        %v6310 = vpack.c.b16 %v4710, %v4702
        %v6311 = vpack.c.b16 %v4719, %v4711
        %v6312 = vpack.c.b16 %v4720, %v4712
        %v6313 = vpack.c.b16 %v4721, %v4713
        %v6314 = vpack.c.b16 %v4722, %v4714
        %v6315 = vpack.c.b16 %v4723, %v4715
        %v6316 = vpack.c.b16 %v4724, %v4716
        %v6317 = vpack.c.b16 %v4725, %v4717
        %v6318 = vpack.c.b16 %v4726, %v4718
        %v6319 = vpack.c.b16 %v4735, %v4727
        %v6320 = vpack.c.b16 %v4736, %v4728
        %v6321 = vpack.c.b16 %v4737, %v4729
        %v6322 = vpack.c.b16 %v4738, %v4730
        %v6323 = vpack.c.b16 %v4739, %v4731
        %v6324 = vpack.c.b16 %v4740, %v4732
        %v6325 = vpack.c.b16 %v4741, %v4733
        %v6326 = vpack.c.b16 %v4742, %v4734
        %v6327 = vpack.c.b16 %v4751, %v4743
        %v6328 = vpack.c.b16 %v4752, %v4744
        %v6329 = vpack.c.b16 %v4753, %v4745
        %v6330 = vpack.c.b16 %v4754, %v4746
        %v6331 = vpack.c.b16 %v4755, %v4747
        %v6332 = vpack.c.b16 %v4756, %v4748
        %v6333 = vpack.c.b16 %v4757, %v4749
        %v6334 = vpack.c.b16 %v4758, %v4750
        %v6335 = vpack.c.b16 %v4767, %v4759
        %v6336 = vpack.c.b16 %v4768, %v4760
        %v6337 = vpack.c.b16 %v4769, %v4761
        %v6338 = vpack.c.b16 %v4770, %v4762
        %v6339 = vpack.c.b16 %v4771, %v4763
        %v6340 = vpack.c.b16 %v4772, %v4764
        %v6341 = vpack.c.b16 %v4773, %v4765
        %v6342 = vpack.c.b16 %v4774, %v4766
        %v6343 = vpack.c.b16 %v4783, %v4775
        %v6344 = vpack.c.b16 %v4784, %v4776
        %v6345 = vpack.c.b16 %v4785, %v4777
        %v6346 = vpack.c.b16 %v4786, %v4778
        %v6347 = vpack.c.b16 %v4787, %v4779
        %v6348 = vpack.c.b16 %v4788, %v4780
        %v6349 = vpack.c.b16 %v4789, %v4781
        %v6350 = vpack.c.b16 %v4790, %v4782
        %v6351 = vpack.c.b16 %v4799, %v4791
        %v6352 = vpack.c.b16 %v4800, %v4792
        %v6353 = vpack.c.b16 %v4801, %v4793
        %v6354 = vpack.c.b16 %v4802, %v4794
        %v6355 = vpack.c.b16 %v4803, %v4795
        %v6356 = vpack.c.b16 %v4804, %v4796
        %v6357 = vpack.c.b16 %v4805, %v4797
        %v6358 = vpack.c.b16 %v4806, %v4798
        %v6359 = vpack.c.b16 %v4815, %v4807
        %v6360 = vpack.c.b16 %v4816, %v4808
        %v6361 = vpack.c.b16 %v4817, %v4809
        %v6362 = vpack.c.b16 %v4818, %v4810
        %v6363 = vpack.c.b16 %v4819, %v4811
        %v6364 = vpack.c.b16 %v4820, %v4812
        %v6365 = vpack.c.b16 %v4821, %v4813
        %v6366 = vpack.c.b16 %v4822, %v4814
        %v6367 = vpack.c.b16 %v4831, %v4823
        %v6368 = vpack.c.b16 %v4832, %v4824
        %v6369 = vpack.c.b16 %v4833, %v4825
        %v6370 = vpack.c.b16 %v4834, %v4826
        %v6371 = vpack.c.b16 %v4835, %v4827
        %v6372 = vpack.c.b16 %v4836, %v4828
        %v6373 = vpack.c.b16 %v4837, %v4829
        %v6374 = vpack.c.b16 %v4838, %v4830
        %v6375 = vpack.c.b16 %v4847, %v4839
        %v6376 = vpack.c.b16 %v4848, %v4840
        %v6377 = vpack.c.b16 %v4849, %v4841
        %v6378 = vpack.c.b16 %v4850, %v4842
        %v6379 = vpack.c.b16 %v4851, %v4843
        %v6380 = vpack.c.b16 %v4852, %v4844
        %v6381 = vpack.c.b16 %v4853, %v4845
        %v6382 = vpack.c.b16 %v4854, %v4846
        %v6383 = vpack.c.b16 %v4863, %v4855
        %v6384 = vpack.c.b16 %v4864, %v4856
        %v6385 = vpack.c.b16 %v4865, %v4857
        %v6386 = vpack.c.b16 %v4866, %v4858
        %v6387 = vpack.c.b16 %v4867, %v4859
        %v6388 = vpack.c.b16 %v4868, %v4860
        %v6389 = vpack.c.b16 %v4869, %v4861
        %v6390 = vpack.c.b16 %v4870, %v4862
        %v6391 = vpack.c.b16 %v4879, %v4871
        %v6392 = vpack.c.b16 %v4880, %v4872
        %v6393 = vpack.c.b16 %v4881, %v4873
        %v6394 = vpack.c.b16 %v4882, %v4874
        %v6395 = vpack.c.b16 %v4883, %v4875
        %v6396 = vpack.c.b16 %v4884, %v4876
        %v6397 = vpack.c.b16 %v4885, %v4877
        %v6398 = vpack.c.b16 %v4886, %v4878
        %v6399 = vpack.c.b16 %v4895, %v4887
        %v6400 = vpack.c.b16 %v4896, %v4888
        %v6401 = vpack.c.b16 %v4897, %v4889
        %v6402 = vpack.c.b16 %v4898, %v4890
        %v6403 = vpack.c.b16 %v4899, %v4891
        %v6404 = vpack.c.b16 %v4900, %v4892
        %v6405 = vpack.c.b16 %v4901, %v4893
        %v6406 = vpack.c.b16 %v4902, %v4894
        %v6407 = vpack.c.b16 %v4911, %v4903
        %v6408 = vpack.c.b16 %v4912, %v4904
        %v6409 = vpack.c.b16 %v4913, %v4905
        %v6410 = vpack.c.b16 %v4914, %v4906
        %v6411 = vpack.c.b16 %v4915, %v4907
        %v6412 = vpack.c.b16 %v4916, %v4908
        %v6413 = vpack.c.b16 %v4917, %v4909
        %v6414 = vpack.c.b16 %v4918, %v4910
        %v6415 = vpack.c.b16 %v4927, %v4919
        %v6416 = vpack.c.b16 %v4928, %v4920
        %v6417 = vpack.c.b16 %v4929, %v4921
        %v6418 = vpack.c.b16 %v4930, %v4922
        %v6419 = vpack.c.b16 %v4931, %v4923
        %v6420 = vpack.c.b16 %v4932, %v4924
        %v6421 = vpack.c.b16 %v4933, %v4925
        %v6422 = vpack.c.b16 %v4934, %v4926
        %v6423 = vpack.c.b16 %v4943, %v4935
        %v6424 = vpack.c.b16 %v4944, %v4936
        %v6425 = vpack.c.b16 %v4945, %v4937
        %v6426 = vpack.c.b16 %v4946, %v4938
        %v6427 = vpack.c.b16 %v4947, %v4939
        %v6428 = vpack.c.b16 %v4948, %v4940
        %v6429 = vpack.c.b16 %v4949, %v4941
        %v6430 = vpack.c.b16 %v4950, %v4942
        %v6431 = vpack.c.b16 %v4959, %v4951
        %v6432 = vpack.c.b16 %v4960, %v4952
        %v6433 = vpack.c.b16 %v4961, %v4953
        %v6434 = vpack.c.b16 %v4962, %v4954
        %v6435 = vpack.c.b16 %v4963, %v4955
        %v6436 = vpack.c.b16 %v4964, %v4956
        %v6437 = vpack.c.b16 %v4965, %v4957
        %v6438 = vpack.c.b16 %v4966, %v4958
        %v6439 = vpack.c.b16 %v4975, %v4967
        %v6440 = vpack.c.b16 %v4976, %v4968
        %v6441 = vpack.c.b16 %v4977, %v4969
        %v6442 = vpack.c.b16 %v4978, %v4970
        %v6443 = vpack.c.b16 %v4979, %v4971
        %v6444 = vpack.c.b16 %v4980, %v4972
        %v6445 = vpack.c.b16 %v4981, %v4973
        %v6446 = vpack.c.b16 %v4982, %v4974
        %v6447 = vpack.c.b16 %v4991, %v4983
        %v6448 = vpack.c.b16 %v4992, %v4984
        %v6449 = vpack.c.b16 %v4993, %v4985
        %v6450 = vpack.c.b16 %v4994, %v4986
        %v6451 = vpack.c.b16 %v4995, %v4987
        %v6452 = vpack.c.b16 %v4996, %v4988
        %v6453 = vpack.c.b16 %v4997, %v4989
        %v6454 = vpack.c.b16 %v4998, %v4990
        %v6455 = vpack.c.b16 %v5007, %v4999
        %v6456 = vpack.c.b16 %v5008, %v5000
        %v6457 = vpack.c.b16 %v5009, %v5001
        %v6458 = vpack.c.b16 %v5010, %v5002
        %v6459 = vpack.c.b16 %v5011, %v5003
        %v6460 = vpack.c.b16 %v5012, %v5004
        %v6461 = vpack.c.b16 %v5013, %v5005
        %v6462 = vpack.c.b16 %v5014, %v5006
        %v6463 = vpack.c.b16 %v5023, %v5015
        %v6464 = vpack.c.b16 %v5024, %v5016
        %v6465 = vpack.c.b16 %v5025, %v5017
        %v6466 = vpack.c.b16 %v5026, %v5018
        %v6467 = vpack.c.b16 %v5027, %v5019
        %v6468 = vpack.c.b16 %v5028, %v5020
        %v6469 = vpack.c.b16 %v5029, %v5021
        %v6470 = vpack.c.b16 %v5030, %v5022
        %v6471 = vpack.c.b16 %v5039, %v5031
        %v6472 = vpack.c.b16 %v5040, %v5032
        %v6473 = vpack.c.b16 %v5041, %v5033
        %v6474 = vpack.c.b16 %v5042, %v5034
        %v6475 = vpack.c.b16 %v5043, %v5035
        %v6476 = vpack.c.b16 %v5044, %v5036
        %v6477 = vpack.c.b16 %v5045, %v5037
        %v6478 = vpack.c.b16 %v5046, %v5038
        %v6479 = vpack.c.b16 %v5055, %v5047
        %v6480 = vpack.c.b16 %v5056, %v5048
        %v6481 = vpack.c.b16 %v5057, %v5049
        %v6482 = vpack.c.b16 %v5058, %v5050
        %v6483 = vpack.c.b16 %v5059, %v5051
        %v6484 = vpack.c.b16 %v5060, %v5052
        %v6485 = vpack.c.b16 %v5061, %v5053
        %v6486 = vpack.c.b16 %v5062, %v5054
        %v6487 = vpack.c.b16 %v5071, %v5063
        %v6488 = vpack.c.b16 %v5072, %v5064
        %v6489 = vpack.c.b16 %v5073, %v5065
        %v6490 = vpack.c.b16 %v5074, %v5066
        %v6491 = vpack.c.b16 %v5075, %v5067
        %v6492 = vpack.c.b16 %v5076, %v5068
        %v6493 = vpack.c.b16 %v5077, %v5069
        %v6494 = vpack.c.b16 %v5078, %v5070
        %v6495 = vpack.c.b16 %v5087, %v5079
        %v6496 = vpack.c.b16 %v5088, %v5080
        %v6497 = vpack.c.b16 %v5089, %v5081
        %v6498 = vpack.c.b16 %v5090, %v5082
        %v6499 = vpack.c.b16 %v5091, %v5083
        %v6500 = vpack.c.b16 %v5092, %v5084
        %v6501 = vpack.c.b16 %v5093, %v5085
        %v6502 = vpack.c.b16 %v5094, %v5086
        %v6503 = vpack.c.b16 %v5103, %v5095
        %v6504 = vpack.c.b16 %v5104, %v5096
        %v6505 = vpack.c.b16 %v5105, %v5097
        %v6506 = vpack.c.b16 %v5106, %v5098
        %v6507 = vpack.c.b16 %v5107, %v5099
        %v6508 = vpack.c.b16 %v5108, %v5100
        %v6509 = vpack.c.b16 %v5109, %v5101
        %v6510 = vpack.c.b16 %v5110, %v5102
        %v6511 = vpack.c.b16 %v5119, %v5111
        %v6512 = vpack.c.b16 %v5120, %v5112
        %v6513 = vpack.c.b16 %v5121, %v5113
        %v6514 = vpack.c.b16 %v5122, %v5114
        %v6515 = vpack.c.b16 %v5123, %v5115
        %v6516 = vpack.c.b16 %v5124, %v5116
        %v6517 = vpack.c.b16 %v5125, %v5117
        %v6518 = vpack.c.b16 %v5126, %v5118
        %v6519 = vpack.c.b16 %v5135, %v5127
        %v6520 = vpack.c.b16 %v5136, %v5128
        %v6521 = vpack.c.b16 %v5137, %v5129
        %v6522 = vpack.c.b16 %v5138, %v5130
        %v6523 = vpack.c.b16 %v5139, %v5131
        %v6524 = vpack.c.b16 %v5140, %v5132
        %v6525 = vpack.c.b16 %v5141, %v5133
        %v6526 = vpack.c.b16 %v5142, %v5134
        %v6527 = vpack.c.b16 %v5151, %v5143
        %v6528 = vpack.c.b16 %v5152, %v5144
        %v6529 = vpack.c.b16 %v5153, %v5145
        %v6530 = vpack.c.b16 %v5154, %v5146
        %v6531 = vpack.c.b16 %v5155, %v5147
        %v6532 = vpack.c.b16 %v5156, %v5148
        %v6533 = vpack.c.b16 %v5157, %v5149
        %v6534 = vpack.c.b16 %v5158, %v5150
        %v6535 = vpack.c.b16 %v5167, %v5159
        %v6536 = vpack.c.b16 %v5168, %v5160
        %v6537 = vpack.c.b16 %v5169, %v5161
        %v6538 = vpack.c.b16 %v5170, %v5162
        %v6539 = vpack.c.b16 %v5171, %v5163
        %v6540 = vpack.c.b16 %v5172, %v5164
        %v6541 = vpack.c.b16 %v5173, %v5165
        %v6542 = vpack.c.b16 %v5174, %v5166
        %v6543 = vpack.c.b16 %v5183, %v5175
        %v6544 = vpack.c.b16 %v5184, %v5176
        %v6545 = vpack.c.b16 %v5185, %v5177
        %v6546 = vpack.c.b16 %v5186, %v5178
        %v6547 = vpack.c.b16 %v5187, %v5179
        %v6548 = vpack.c.b16 %v5188, %v5180
        %v6549 = vpack.c.b16 %v5189, %v5181
        %v6550 = vpack.c.b16 %v5190, %v5182
        %v6551 = vpack.c.b16 %v5199, %v5191
        %v6552 = vpack.c.b16 %v5200, %v5192
        %v6553 = vpack.c.b16 %v5201, %v5193
        %v6554 = vpack.c.b16 %v5202, %v5194
        %v6555 = vpack.c.b16 %v5203, %v5195
        %v6556 = vpack.c.b16 %v5204, %v5196
        %v6557 = vpack.c.b16 %v5205, %v5197
        %v6558 = vpack.c.b16 %v5206, %v5198
        %v6559 = vpack.c.b16 %v5215, %v5207
        %v6560 = vpack.c.b16 %v5216, %v5208
        %v6561 = vpack.c.b16 %v5217, %v5209
        %v6562 = vpack.c.b16 %v5218, %v5210
        %v6563 = vpack.c.b16 %v5219, %v5211
        %v6564 = vpack.c.b16 %v5220, %v5212
        %v6565 = vpack.c.b16 %v5221, %v5213
        %v6566 = vpack.c.b16 %v5222, %v5214
        %v6567 = vpack.c.b16 %v5231, %v5223
        %v6568 = vpack.c.b16 %v5232, %v5224
        %v6569 = vpack.c.b16 %v5233, %v5225
        %v6570 = vpack.c.b16 %v5234, %v5226
        %v6571 = vpack.c.b16 %v5235, %v5227
        %v6572 = vpack.c.b16 %v5236, %v5228
        %v6573 = vpack.c.b16 %v5237, %v5229
        %v6574 = vpack.c.b16 %v5238, %v5230
        %v6575 = vpack.c.b16 %v5247, %v5239
        %v6576 = vpack.c.b16 %v5248, %v5240
        %v6577 = vpack.c.b16 %v5249, %v5241
        %v6578 = vpack.c.b16 %v5250, %v5242
        %v6579 = vpack.c.b16 %v5251, %v5243
        %v6580 = vpack.c.b16 %v5252, %v5244
        %v6581 = vpack.c.b16 %v5253, %v5245
        %v6582 = vpack.c.b16 %v5254, %v5246
        %v6583 = vpack.c.b16 %v5263, %v5255
        %v6584 = vpack.c.b16 %v5264, %v5256
        %v6585 = vpack.c.b16 %v5265, %v5257
        %v6586 = vpack.c.b16 %v5266, %v5258
        %v6587 = vpack.c.b16 %v5267, %v5259
        %v6588 = vpack.c.b16 %v5268, %v5260
        %v6589 = vpack.c.b16 %v5269, %v5261
        %v6590 = vpack.c.b16 %v5270, %v5262
        %v6591 = vpack.c.b16 %v5279, %v5271
        %v6592 = vpack.c.b16 %v5280, %v5272
        %v6593 = vpack.c.b16 %v5281, %v5273
        %v6594 = vpack.c.b16 %v5282, %v5274
        %v6595 = vpack.c.b16 %v5283, %v5275
        %v6596 = vpack.c.b16 %v5284, %v5276
        %v6597 = vpack.c.b16 %v5285, %v5277
        %v6598 = vpack.c.b16 %v5286, %v5278
        %v6599 = vpack.c.b16 %v5295, %v5287
        %v6600 = vpack.c.b16 %v5296, %v5288
        %v6601 = vpack.c.b16 %v5297, %v5289
        %v6602 = vpack.c.b16 %v5298, %v5290
        %v6603 = vpack.c.b16 %v5299, %v5291
        %v6604 = vpack.c.b16 %v5300, %v5292
        %v6605 = vpack.c.b16 %v5301, %v5293
        %v6606 = vpack.c.b16 %v5302, %v5294
        %v6607 = vpack.c.b16 %v5311, %v5303
        %v6608 = vpack.c.b16 %v5312, %v5304
        %v6609 = vpack.c.b16 %v5313, %v5305
        %v6610 = vpack.c.b16 %v5314, %v5306
        %v6611 = vpack.c.b16 %v5315, %v5307
        %v6612 = vpack.c.b16 %v5316, %v5308
        %v6613 = vpack.c.b16 %v5317, %v5309
        %v6614 = vpack.c.b16 %v5318, %v5310
        %v6615 = vpack.c.b16 %v5327, %v5319
        %v6616 = vpack.c.b16 %v5328, %v5320
        %v6617 = vpack.c.b16 %v5329, %v5321
        %v6618 = vpack.c.b16 %v5330, %v5322
        %v6619 = vpack.c.b16 %v5331, %v5323
        %v6620 = vpack.c.b16 %v5332, %v5324
        %v6621 = vpack.c.b16 %v5333, %v5325
        %v6622 = vpack.c.b16 %v5334, %v5326
        %v6623 = vpack.c.b16 %v5343, %v5335
        %v6624 = vpack.c.b16 %v5344, %v5336
        %v6625 = vpack.c.b16 %v5345, %v5337
        %v6626 = vpack.c.b16 %v5346, %v5338
        %v6627 = vpack.c.b16 %v5347, %v5339
        %v6628 = vpack.c.b16 %v5348, %v5340
        %v6629 = vpack.c.b16 %v5349, %v5341
        %v6630 = vpack.c.b16 %v5350, %v5342
        %v6631 = vpack.c.b16 %v5359, %v5351
        %v6632 = vpack.c.b16 %v5360, %v5352
        %v6633 = vpack.c.b16 %v5361, %v5353
        %v6634 = vpack.c.b16 %v5362, %v5354
        %v6635 = vpack.c.b16 %v5363, %v5355
        %v6636 = vpack.c.b16 %v5364, %v5356
        %v6637 = vpack.c.b16 %v5365, %v5357
        %v6638 = vpack.c.b16 %v5366, %v5358
        %v6639 = vpack.c.b16 %v5375, %v5367
        %v6640 = vpack.c.b16 %v5376, %v5368
        %v6641 = vpack.c.b16 %v5377, %v5369
        %v6642 = vpack.c.b16 %v5378, %v5370
        %v6643 = vpack.c.b16 %v5379, %v5371
        %v6644 = vpack.c.b16 %v5380, %v5372
        %v6645 = vpack.c.b16 %v5381, %v5373
        %v6646 = vpack.c.b16 %v5382, %v5374
        %v6647 = vpack.c.b16 %v5391, %v5383
        %v6648 = vpack.c.b16 %v5392, %v5384
        %v6649 = vpack.c.b16 %v5393, %v5385
        %v6650 = vpack.c.b16 %v5394, %v5386
        %v6651 = vpack.c.b16 %v5395, %v5387
        %v6652 = vpack.c.b16 %v5396, %v5388
        %v6653 = vpack.c.b16 %v5397, %v5389
        %v6654 = vpack.c.b16 %v5398, %v5390
        %v6655 = vpack.c.b16 %v5407, %v5399
        %v6656 = vpack.c.b16 %v5408, %v5400
        %v6657 = vpack.c.b16 %v5409, %v5401
        %v6658 = vpack.c.b16 %v5410, %v5402
        %v6659 = vpack.c.b16 %v5411, %v5403
        %v6660 = vpack.c.b16 %v5412, %v5404
        %v6661 = vpack.c.b16 %v5413, %v5405
        %v6662 = vpack.c.b16 %v5414, %v5406
        %v6663 = vpack.c.b16 %v5423, %v5415
        %v6664 = vpack.c.b16 %v5424, %v5416
        %v6665 = vpack.c.b16 %v5425, %v5417
        %v6666 = vpack.c.b16 %v5426, %v5418
        %v6667 = vpack.c.b16 %v5427, %v5419
        %v6668 = vpack.c.b16 %v5428, %v5420
        %v6669 = vpack.c.b16 %v5429, %v5421
        %v6670 = vpack.c.b16 %v5430, %v5422
        %v6671 = vpack.c.b16 %v5439, %v5431
        %v6672 = vpack.c.b16 %v5440, %v5432
        %v6673 = vpack.c.b16 %v5441, %v5433
        %v6674 = vpack.c.b16 %v5442, %v5434
        %v6675 = vpack.c.b16 %v5443, %v5435
        %v6676 = vpack.c.b16 %v5444, %v5436
        %v6677 = vpack.c.b16 %v5445, %v5437
        %v6678 = vpack.c.b16 %v5446, %v5438
        %v6679 = vpack.c.b16 %v5455, %v5447
        %v6680 = vpack.c.b16 %v5456, %v5448
        %v6681 = vpack.c.b16 %v5457, %v5449
        %v6682 = vpack.c.b16 %v5458, %v5450
        %v6683 = vpack.c.b16 %v5459, %v5451
        %v6684 = vpack.c.b16 %v5460, %v5452
        %v6685 = vpack.c.b16 %v5461, %v5453
        %v6686 = vpack.c.b16 %v5462, %v5454
        %v6687 = vpack.c.b16 %v5471, %v5463
        %v6688 = vpack.c.b16 %v5472, %v5464
        %v6689 = vpack.c.b16 %v5473, %v5465
        %v6690 = vpack.c.b16 %v5474, %v5466
        %v6691 = vpack.c.b16 %v5475, %v5467
        %v6692 = vpack.c.b16 %v5476, %v5468
        %v6693 = vpack.c.b16 %v5477, %v5469
        %v6694 = vpack.c.b16 %v5478, %v5470
        %v6695 = vpack.c.b16 %v5487, %v5479
        %v6696 = vpack.c.b16 %v5488, %v5480
        %v6697 = vpack.c.b16 %v5489, %v5481
        %v6698 = vpack.c.b16 %v5490, %v5482
        %v6699 = vpack.c.b16 %v5491, %v5483
        %v6700 = vpack.c.b16 %v5492, %v5484
        %v6701 = vpack.c.b16 %v5493, %v5485
        %v6702 = vpack.c.b16 %v5494, %v5486
        %v6703 = vpack.c.b16 %v5503, %v5495
        %v6704 = vpack.c.b16 %v5504, %v5496
        %v6705 = vpack.c.b16 %v5505, %v5497
        %v6706 = vpack.c.b16 %v5506, %v5498
        %v6707 = vpack.c.b16 %v5507, %v5499
        %v6708 = vpack.c.b16 %v5508, %v5500
        %v6709 = vpack.c.b16 %v5509, %v5501
        %v6710 = vpack.c.b16 %v5510, %v5502
        %v6711 = vpack.c.b16 %v5519, %v5511
        %v6712 = vpack.c.b16 %v5520, %v5512
        %v6713 = vpack.c.b16 %v5521, %v5513
        %v6714 = vpack.c.b16 %v5522, %v5514
        %v6715 = vpack.c.b16 %v5523, %v5515
        %v6716 = vpack.c.b16 %v5524, %v5516
        %v6717 = vpack.c.b16 %v5525, %v5517
        %v6718 = vpack.c.b16 %v5526, %v5518
        %v6719 = vpack.c.b16 %v5535, %v5527
        %v6720 = vpack.c.b16 %v5536, %v5528
        %v6721 = vpack.c.b16 %v5537, %v5529
        %v6722 = vpack.c.b16 %v5538, %v5530
        %v6723 = vpack.c.b16 %v5539, %v5531
        %v6724 = vpack.c.b16 %v5540, %v5532
        %v6725 = vpack.c.b16 %v5541, %v5533
        %v6726 = vpack.c.b16 %v5542, %v5534
        %v6727 = vpack.c.b16 %v5551, %v5543
        %v6728 = vpack.c.b16 %v5552, %v5544
        %v6729 = vpack.c.b16 %v5553, %v5545
        %v6730 = vpack.c.b16 %v5554, %v5546
        %v6731 = vpack.c.b16 %v5555, %v5547
        %v6732 = vpack.c.b16 %v5556, %v5548
        %v6733 = vpack.c.b16 %v5557, %v5549
        %v6734 = vpack.c.b16 %v5558, %v5550
        %v6735 = vpack.c.b16 %v5567, %v5559
        %v6736 = vpack.c.b16 %v5568, %v5560
        %v6737 = vpack.c.b16 %v5569, %v5561
        %v6738 = vpack.c.b16 %v5570, %v5562
        %v6739 = vpack.c.b16 %v5571, %v5563
        %v6740 = vpack.c.b16 %v5572, %v5564
        %v6741 = vpack.c.b16 %v5573, %v5565
        %v6742 = vpack.c.b16 %v5574, %v5566
        %v6743 = vpack.c.b16 %v5583, %v5575
        %v6744 = vpack.c.b16 %v5584, %v5576
        %v6745 = vpack.c.b16 %v5585, %v5577
        %v6746 = vpack.c.b16 %v5586, %v5578
        %v6747 = vpack.c.b16 %v5587, %v5579
        %v6748 = vpack.c.b16 %v5588, %v5580
        %v6749 = vpack.c.b16 %v5589, %v5581
        %v6750 = vpack.c.b16 %v5590, %v5582
        %v6751 = vpack.c.b16 %v5599, %v5591
        %v6752 = vpack.c.b16 %v5600, %v5592
        %v6753 = vpack.c.b16 %v5601, %v5593
        %v6754 = vpack.c.b16 %v5602, %v5594
        %v6755 = vpack.c.b16 %v5603, %v5595
        %v6756 = vpack.c.b16 %v5604, %v5596
        %v6757 = vpack.c.b16 %v5605, %v5597
        %v6758 = vpack.c.b16 %v5606, %v5598
        %v6759 = vpack.c.b16 %v5615, %v5607
        %v6760 = vpack.c.b16 %v5616, %v5608
        %v6761 = vpack.c.b16 %v5617, %v5609
        %v6762 = vpack.c.b16 %v5618, %v5610
        %v6763 = vpack.c.b16 %v5619, %v5611
        %v6764 = vpack.c.b16 %v5620, %v5612
        %v6765 = vpack.c.b16 %v5621, %v5613
        %v6766 = vpack.c.b16 %v5622, %v5614
        %v6767 = vpack.c.b16 %v5631, %v5623
        %v6768 = vpack.c.b16 %v5632, %v5624
        %v6769 = vpack.c.b16 %v5633, %v5625
        %v6770 = vpack.c.b16 %v5634, %v5626
        %v6771 = vpack.c.b16 %v5635, %v5627
        %v6772 = vpack.c.b16 %v5636, %v5628
        %v6773 = vpack.c.b16 %v5637, %v5629
        %v6774 = vpack.c.b16 %v5638, %v5630
        %v6775 = vpack.c.b16 %v5647, %v5639
        %v6776 = vpack.c.b16 %v5648, %v5640
        %v6777 = vpack.c.b16 %v5649, %v5641
        %v6778 = vpack.c.b16 %v5650, %v5642
        %v6779 = vpack.c.b16 %v5651, %v5643
        %v6780 = vpack.c.b16 %v5652, %v5644
        %v6781 = vpack.c.b16 %v5653, %v5645
        %v6782 = vpack.c.b16 %v5654, %v5646
        %v6783 = vpack.c.b16 %v5663, %v5655
        %v6784 = vpack.c.b16 %v5664, %v5656
        %v6785 = vpack.c.b16 %v5665, %v5657
        %v6786 = vpack.c.b16 %v5666, %v5658
        %v6787 = vpack.c.b16 %v5667, %v5659
        %v6788 = vpack.c.b16 %v5668, %v5660
        %v6789 = vpack.c.b16 %v5669, %v5661
        %v6790 = vpack.c.b16 %v5670, %v5662
        %v6791 = vpack.c.b16 %v5679, %v5671
        %v6792 = vpack.c.b16 %v5680, %v5672
        %v6793 = vpack.c.b16 %v5681, %v5673
        %v6794 = vpack.c.b16 %v5682, %v5674
        %v6795 = vpack.c.b16 %v5683, %v5675
        %v6796 = vpack.c.b16 %v5684, %v5676
        %v6797 = vpack.c.b16 %v5685, %v5677
        %v6798 = vpack.c.b16 %v5686, %v5678
        %v6799 = vpack.c.b16 %v5695, %v5687
        %v6800 = vpack.c.b16 %v5696, %v5688
        %v6801 = vpack.c.b16 %v5697, %v5689
        %v6802 = vpack.c.b16 %v5698, %v5690
        %v6803 = vpack.c.b16 %v5699, %v5691
        %v6804 = vpack.c.b16 %v5700, %v5692
        %v6805 = vpack.c.b16 %v5701, %v5693
        %v6806 = vpack.c.b16 %v5702, %v5694
        %v6807 = vpack.c.b16 %v5711, %v5703
        %v6808 = vpack.c.b16 %v5712, %v5704
        %v6809 = vpack.c.b16 %v5713, %v5705
        %v6810 = vpack.c.b16 %v5714, %v5706
        %v6811 = vpack.c.b16 %v5715, %v5707
        %v6812 = vpack.c.b16 %v5716, %v5708
        %v6813 = vpack.c.b16 %v5717, %v5709
        %v6814 = vpack.c.b16 %v5718, %v5710
        %v6815 = vpack.c.b16 %v5727, %v5719
        %v6816 = vpack.c.b16 %v5728, %v5720
        %v6817 = vpack.c.b16 %v5729, %v5721
        %v6818 = vpack.c.b16 %v5730, %v5722
        %v6819 = vpack.c.b16 %v5731, %v5723
        %v6820 = vpack.c.b16 %v5732, %v5724
        %v6821 = vpack.c.b16 %v5733, %v5725
        %v6822 = vpack.c.b16 %v5734, %v5726
        %v6823 = vpack.c.b16 %v5743, %v5735
        %v6824 = vpack.c.b16 %v5744, %v5736
        %v6825 = vpack.c.b16 %v5745, %v5737
        %v6826 = vpack.c.b16 %v5746, %v5738
        %v6827 = vpack.c.b16 %v5747, %v5739
        %v6828 = vpack.c.b16 %v5748, %v5740
        %v6829 = vpack.c.b16 %v5749, %v5741
        %v6830 = vpack.c.b16 %v5750, %v5742
        %v6831 = vpack.c.b16 %v5759, %v5751
        %v6832 = vpack.c.b16 %v5760, %v5752
        %v6833 = vpack.c.b16 %v5761, %v5753
        %v6834 = vpack.c.b16 %v5762, %v5754
        %v6835 = vpack.c.b16 %v5763, %v5755
        %v6836 = vpack.c.b16 %v5764, %v5756
        %v6837 = vpack.c.b16 %v5765, %v5757
        %v6838 = vpack.c.b16 %v5766, %v5758
        %v6839 = vpack.c.b16 %v5775, %v5767
        %v6840 = vpack.c.b16 %v5776, %v5768
        %v6841 = vpack.c.b16 %v5777, %v5769
        %v6842 = vpack.c.b16 %v5778, %v5770
        %v6843 = vpack.c.b16 %v5779, %v5771
        %v6844 = vpack.c.b16 %v5780, %v5772
        %v6845 = vpack.c.b16 %v5781, %v5773
        %v6846 = vpack.c.b16 %v5782, %v5774
        %v6847 = vpack.c.b16 %v5791, %v5783
        %v6848 = vpack.c.b16 %v5792, %v5784
        %v6849 = vpack.c.b16 %v5793, %v5785
        %v6850 = vpack.c.b16 %v5794, %v5786
        %v6851 = vpack.c.b16 %v5795, %v5787
        %v6852 = vpack.c.b16 %v5796, %v5788
        %v6853 = vpack.c.b16 %v5797, %v5789
        %v6854 = vpack.c.b16 %v5798, %v5790
        %v6855 = vpack.c.b16 %v5807, %v5799
        %v6856 = vpack.c.b16 %v5808, %v5800
        %v6857 = vpack.c.b16 %v5809, %v5801
        %v6858 = vpack.c.b16 %v5810, %v5802
        %v6859 = vpack.c.b16 %v5811, %v5803
        %v6860 = vpack.c.b16 %v5812, %v5804
        %v6861 = vpack.c.b16 %v5813, %v5805
        %v6862 = vpack.c.b16 %v5814, %v5806
        %v6863 = vpack.c.b16 %v5823, %v5815
        %v6864 = vpack.c.b16 %v5824, %v5816
        %v6865 = vpack.c.b16 %v5825, %v5817
        %v6866 = vpack.c.b16 %v5826, %v5818
        %v6867 = vpack.c.b16 %v5827, %v5819
        %v6868 = vpack.c.b16 %v5828, %v5820
        %v6869 = vpack.c.b16 %v5829, %v5821
        %v6870 = vpack.c.b16 %v5830, %v5822
        %v6871 = vpack.c.b16 %v5839, %v5831
        %v6872 = vpack.c.b16 %v5840, %v5832
        %v6873 = vpack.c.b16 %v5841, %v5833
        %v6874 = vpack.c.b16 %v5842, %v5834
        %v6875 = vpack.c.b16 %v5843, %v5835
        %v6876 = vpack.c.b16 %v5844, %v5836
        %v6877 = vpack.c.b16 %v5845, %v5837
        %v6878 = vpack.c.b16 %v5846, %v5838
        %v6879 = vpack.c.b16 %v5855, %v5847
        %v6880 = vpack.c.b16 %v5856, %v5848
        %v6881 = vpack.c.b16 %v5857, %v5849
        %v6882 = vpack.c.b16 %v5858, %v5850
        %v6883 = vpack.c.b16 %v5859, %v5851
        %v6884 = vpack.c.b16 %v5860, %v5852
        %v6885 = vpack.c.b16 %v5861, %v5853
        %v6886 = vpack.c.b16 %v5862, %v5854
        %7911 = vmatprep.subr.bf16.mxu0 %v5864
        %7912 = vmatpush1.bf16.msra.mxu0 %v5863
        %7913 = vmatprep.subr.bf16.mxu0 %v5872
        %7914 = vmatpush1.bf16.msra.mxu0 %v5871
        %7915 = vmatprep.subr.bf16.mxu0 %v5880
        %7916 = vmatpush1.bf16.msra.mxu0 %v5879
        %7917 = vmatprep.subr.bf16.mxu0 %v5888
        %7918 = vmatpush1.bf16.msra.mxu0 %v5887
        %7919 = vmatprep.subr.bf16.mxu0 %v5896
        %7920 = vmatpush1.bf16.msra.mxu0 %v5895
        %7921 = vmatprep.subr.bf16.mxu0 %v5904
        %7922 = vmatpush1.bf16.msra.mxu0 %v5903
        %7923 = vmatprep.subr.bf16.mxu0 %v5912
        %7924 = vmatpush1.bf16.msra.mxu0 %v5911
        %7925 = vmatprep.subr.bf16.mxu0 %v5920
        %7926 = vmatpush1.bf16.msra.mxu0 %v5919
        %7927 = vmatprep.subr.bf16.mxu0 %v5928
        %7928 = vmatpush1.bf16.msra.mxu0 %v5927
        %7929 = vmatprep.subr.bf16.mxu0 %v5936
        %7930 = vmatpush1.bf16.msra.mxu0 %v5935
        %7931 = vmatprep.subr.bf16.mxu0 %v5944
        %7932 = vmatpush1.bf16.msra.mxu0 %v5943
        %7933 = vmatprep.subr.bf16.mxu0 %v5952
        %7934 = vmatpush1.bf16.msra.mxu0 %v5951
        %7935 = vmatprep.subr.bf16.mxu0 %v5960
        %7936 = vmatpush1.bf16.msra.mxu0 %v5959
        %7937 = vmatprep.subr.bf16.mxu0 %v5968
        %7938 = vmatpush1.bf16.msra.mxu0 %v5967
        %7939 = vmatprep.subr.bf16.mxu0 %v5976
        %7940 = vmatpush1.bf16.msra.mxu0 %v5975
        %7941 = vmatprep.subr.bf16.mxu0 %v5984
        %7942 = vmatpush1.bf16.msra.mxu0 %v5983
        %7943 = vmatprep.mubr.bf16.mxu0 %v2760
        %7944 = vmatmul.mubr.bf16.gmra.mrb[0].mxu0 %v2759
        %v7945 = vpop.f32.mrb[0].mxu0
        %v7946 = vadd.f32 %v2698, %v7945
        %v7947 = vpop.f32.mrb[0].mxu0
        %v7948 = vadd.f32 %v2702, %v7947
        %v7949 = vpop.f32.mrb[0].mxu0
        %v7950 = vpop.f32.mrb[0].mxu0
        %7951 = vdwg.mxu0
        %7952 = vmatprep.subr.bf16.mxu0 %v5992
        %7953 = vmatpush1.bf16.msra.mxu0 %v5991
        %7954 = vmatprep.subr.bf16.mxu0 %v6000
        %7955 = vmatpush1.bf16.msra.mxu0 %v5999
        %7956 = vmatprep.subr.bf16.mxu0 %v6008
        %7957 = vmatpush1.bf16.msra.mxu0 %v6007
        %7958 = vmatprep.subr.bf16.mxu0 %v6016
        %7959 = vmatpush1.bf16.msra.mxu0 %v6015
        %7960 = vmatprep.subr.bf16.mxu0 %v6024
        %7961 = vmatpush1.bf16.msra.mxu0 %v6023
        %7962 = vmatprep.subr.bf16.mxu0 %v6032
        %7963 = vmatpush1.bf16.msra.mxu0 %v6031
        %7964 = vmatprep.subr.bf16.mxu0 %v6040
        %7965 = vmatpush1.bf16.msra.mxu0 %v6039
        %7966 = vmatprep.subr.bf16.mxu0 %v6048
        %7967 = vmatpush1.bf16.msra.mxu0 %v6047
        %7968 = vmatprep.subr.bf16.mxu0 %v6056
        %7969 = vmatpush1.bf16.msra.mxu0 %v6055
        %7970 = vmatprep.subr.bf16.mxu0 %v6064
        %7971 = vmatpush1.bf16.msra.mxu0 %v6063
        %7972 = vmatprep.subr.bf16.mxu0 %v6072
        %7973 = vmatpush1.bf16.msra.mxu0 %v6071
        %7974 = vmatprep.subr.bf16.mxu0 %v6080
        %7975 = vmatpush1.bf16.msra.mxu0 %v6079
        %7976 = vmatprep.subr.bf16.mxu0 %v6088
        %7977 = vmatpush1.bf16.msra.mxu0 %v6087
        %7978 = vmatprep.subr.bf16.mxu0 %v6096
        %7979 = vmatpush1.bf16.msra.mxu0 %v6095
        %7980 = vmatprep.subr.bf16.mxu0 %v6104
        %7981 = vmatpush1.bf16.msra.mxu0 %v6103
        %7982 = vmatprep.subr.bf16.mxu0 %v6112
        %7983 = vmatpush1.bf16.msra.mxu0 %v6111
        %7984 = vmatprep.mubr.bf16.mxu0 %v2762
        %7985 = vmatmul.mubr.bf16.gmra.mrb[0].mxu0 %v2761
        %v7986 = vpop.f32.mrb[0].mxu0
        %v7987 = vadd.f32 %v7946, %v7986
        %v7988 = vpop.f32.mrb[0].mxu0
        %v7989 = vadd.f32 %v7948, %v7988
        %v7990 = vpop.f32.mrb[0].mxu0
        %v7991 = vpop.f32.mrb[0].mxu0
        %7992 = vdwg.mxu0
        %7993 = vmatprep.subr.bf16.mxu0 %v6120
        %7994 = vmatpush1.bf16.msra.mxu0 %v6119
        %7995 = vmatprep.subr.bf16.mxu0 %v6128
        %7996 = vmatpush1.bf16.msra.mxu0 %v6127
        %7997 = vmatprep.subr.bf16.mxu0 %v6136
        %7998 = vmatpush1.bf16.msra.mxu0 %v6135
        %7999 = vmatprep.subr.bf16.mxu0 %v6144
        %8000 = vmatpush1.bf16.msra.mxu0 %v6143
        %8001 = vmatprep.subr.bf16.mxu0 %v6152
        %8002 = vmatpush1.bf16.msra.mxu0 %v6151
        %8003 = vmatprep.subr.bf16.mxu0 %v6160
        %8004 = vmatpush1.bf16.msra.mxu0 %v6159
        %8005 = vmatprep.subr.bf16.mxu0 %v6168
        %8006 = vmatpush1.bf16.msra.mxu0 %v6167
        %8007 = vmatprep.subr.bf16.mxu0 %v6176
        %8008 = vmatpush1.bf16.msra.mxu0 %v6175
        %8009 = vmatprep.subr.bf16.mxu0 %v6184
        %8010 = vmatpush1.bf16.msra.mxu0 %v6183
        %8011 = vmatprep.subr.bf16.mxu0 %v6192
        %8012 = vmatpush1.bf16.msra.mxu0 %v6191
        %8013 = vmatprep.subr.bf16.mxu0 %v6200
        %8014 = vmatpush1.bf16.msra.mxu0 %v6199
        %8015 = vmatprep.subr.bf16.mxu0 %v6208
        %8016 = vmatpush1.bf16.msra.mxu0 %v6207
        %8017 = vmatprep.subr.bf16.mxu0 %v6216
        %8018 = vmatpush1.bf16.msra.mxu0 %v6215
        %8019 = vmatprep.subr.bf16.mxu0 %v6224
        %8020 = vmatpush1.bf16.msra.mxu0 %v6223
        %8021 = vmatprep.subr.bf16.mxu0 %v6232
        %8022 = vmatpush1.bf16.msra.mxu0 %v6231
        %8023 = vmatprep.subr.bf16.mxu0 %v6240
        %8024 = vmatpush1.bf16.msra.mxu0 %v6239
        %8025 = vmatprep.mubr.bf16.mxu0 %v2764
        %8026 = vmatmul.mubr.bf16.gmra.mrb[0].mxu0 %v2763
        %v8027 = vpop.f32.mrb[0].mxu0
        %v8028 = vadd.f32 %v7987, %v8027
        %v8029 = vpop.f32.mrb[0].mxu0
        %v8030 = vadd.f32 %v7989, %v8029
        %v8031 = vpop.f32.mrb[0].mxu0
        %v8032 = vpop.f32.mrb[0].mxu0
        %8033 = vdwg.mxu0
        %8034 = vmatprep.subr.bf16.mxu0 %v6248
        %8035 = vmatpush1.bf16.msra.mxu0 %v6247
        %8036 = vmatprep.subr.bf16.mxu0 %v6256
        %8037 = vmatpush1.bf16.msra.mxu0 %v6255
        %8038 = vmatprep.subr.bf16.mxu0 %v6264
        %8039 = vmatpush1.bf16.msra.mxu0 %v6263
        %8040 = vmatprep.subr.bf16.mxu0 %v6272
        %8041 = vmatpush1.bf16.msra.mxu0 %v6271
        %8042 = vmatprep.subr.bf16.mxu0 %v6280
        %8043 = vmatpush1.bf16.msra.mxu0 %v6279
        %8044 = vmatprep.subr.bf16.mxu0 %v6288
        %8045 = vmatpush1.bf16.msra.mxu0 %v6287
        %8046 = vmatprep.subr.bf16.mxu0 %v6296
        %8047 = vmatpush1.bf16.msra.mxu0 %v6295
        %8048 = vmatprep.subr.bf16.mxu0 %v6304
        %8049 = vmatpush1.bf16.msra.mxu0 %v6303
        %8050 = vmatprep.subr.bf16.mxu0 %v6312
        %8051 = vmatpush1.bf16.msra.mxu0 %v6311
        %8052 = vmatprep.subr.bf16.mxu0 %v6320
        %8053 = vmatpush1.bf16.msra.mxu0 %v6319
        %8054 = vmatprep.subr.bf16.mxu0 %v6328
        %8055 = vmatpush1.bf16.msra.mxu0 %v6327
        %8056 = vmatprep.subr.bf16.mxu0 %v6336
        %8057 = vmatpush1.bf16.msra.mxu0 %v6335
        %8058 = vmatprep.subr.bf16.mxu0 %v6344
        %8059 = vmatpush1.bf16.msra.mxu0 %v6343
        %8060 = vmatprep.subr.bf16.mxu0 %v6352
        %8061 = vmatpush1.bf16.msra.mxu0 %v6351
        %8062 = vmatprep.subr.bf16.mxu0 %v6360
        %8063 = vmatpush1.bf16.msra.mxu0 %v6359
        %8064 = vmatprep.subr.bf16.mxu0 %v6368
        %8065 = vmatpush1.bf16.msra.mxu0 %v6367
        %8066 = vmatprep.mubr.bf16.mxu0 %v2766
        %8067 = vmatmul.mubr.bf16.gmra.mrb[0].mxu0 %v2765
        %v8068 = vpop.f32.mrb[0].mxu0
        %v8069 = vadd.f32 %v8028, %v8068
        %v8070 = vpop.f32.mrb[0].mxu0
        %v8071 = vadd.f32 %v8030, %v8070
        %v8072 = vpop.f32.mrb[0].mxu0
        %v8073 = vpop.f32.mrb[0].mxu0
        %8074 = vdwg.mxu0
        %8075 = vmatprep.subr.bf16.mxu0 %v6376
        %8076 = vmatpush1.bf16.msra.mxu0 %v6375
        %8077 = vmatprep.subr.bf16.mxu0 %v6384
        %8078 = vmatpush1.bf16.msra.mxu0 %v6383
        %8079 = vmatprep.subr.bf16.mxu0 %v6392
        %8080 = vmatpush1.bf16.msra.mxu0 %v6391
        %8081 = vmatprep.subr.bf16.mxu0 %v6400
        %8082 = vmatpush1.bf16.msra.mxu0 %v6399
        %8083 = vmatprep.subr.bf16.mxu0 %v6408
        %8084 = vmatpush1.bf16.msra.mxu0 %v6407
        %8085 = vmatprep.subr.bf16.mxu0 %v6416
        %8086 = vmatpush1.bf16.msra.mxu0 %v6415
        %8087 = vmatprep.subr.bf16.mxu0 %v6424
        %8088 = vmatpush1.bf16.msra.mxu0 %v6423
        %8089 = vmatprep.subr.bf16.mxu0 %v6432
        %8090 = vmatpush1.bf16.msra.mxu0 %v6431
        %8091 = vmatprep.subr.bf16.mxu0 %v6440
        %8092 = vmatpush1.bf16.msra.mxu0 %v6439
        %8093 = vmatprep.subr.bf16.mxu0 %v6448
        %8094 = vmatpush1.bf16.msra.mxu0 %v6447
        %8095 = vmatprep.subr.bf16.mxu0 %v6456
        %8096 = vmatpush1.bf16.msra.mxu0 %v6455
        %8097 = vmatprep.subr.bf16.mxu0 %v6464
        %8098 = vmatpush1.bf16.msra.mxu0 %v6463
        %8099 = vmatprep.subr.bf16.mxu0 %v6472
        %8100 = vmatpush1.bf16.msra.mxu0 %v6471
        %8101 = vmatprep.subr.bf16.mxu0 %v6480
        %8102 = vmatpush1.bf16.msra.mxu0 %v6479
        %8103 = vmatprep.subr.bf16.mxu0 %v6488
        %8104 = vmatpush1.bf16.msra.mxu0 %v6487
        %8105 = vmatprep.subr.bf16.mxu0 %v6496
        %8106 = vmatpush1.bf16.msra.mxu0 %v6495
        %8107 = vmatprep.mubr.bf16.mxu0 %v2768
        %8108 = vmatmul.mubr.bf16.gmra.mrb[0].mxu0 %v2767
        %v8109 = vpop.f32.mrb[0].mxu0
        %v8110 = vadd.f32 %v8069, %v8109
        %v8111 = vpop.f32.mrb[0].mxu0
        %v8112 = vadd.f32 %v8071, %v8111
        %v8113 = vpop.f32.mrb[0].mxu0
        %v8114 = vpop.f32.mrb[0].mxu0
        %8115 = vdwg.mxu0
        %8116 = vmatprep.subr.bf16.mxu0 %v6504
        %8117 = vmatpush1.bf16.msra.mxu0 %v6503
        %8118 = vmatprep.subr.bf16.mxu0 %v6512
        %8119 = vmatpush1.bf16.msra.mxu0 %v6511
        %8120 = vmatprep.subr.bf16.mxu0 %v6520
        %8121 = vmatpush1.bf16.msra.mxu0 %v6519
        %8122 = vmatprep.subr.bf16.mxu0 %v6528
        %8123 = vmatpush1.bf16.msra.mxu0 %v6527
        %8124 = vmatprep.subr.bf16.mxu0 %v6536
        %8125 = vmatpush1.bf16.msra.mxu0 %v6535
        %8126 = vmatprep.subr.bf16.mxu0 %v6544
        %8127 = vmatpush1.bf16.msra.mxu0 %v6543
        %8128 = vmatprep.subr.bf16.mxu0 %v6552
        %8129 = vmatpush1.bf16.msra.mxu0 %v6551
        %8130 = vmatprep.subr.bf16.mxu0 %v6560
        %8131 = vmatpush1.bf16.msra.mxu0 %v6559
        %8132 = vmatprep.subr.bf16.mxu0 %v6568
        %8133 = vmatpush1.bf16.msra.mxu0 %v6567
        %8134 = vmatprep.subr.bf16.mxu0 %v6576
        %8135 = vmatpush1.bf16.msra.mxu0 %v6575
        %8136 = vmatprep.subr.bf16.mxu0 %v6584
        %8137 = vmatpush1.bf16.msra.mxu0 %v6583
        %8138 = vmatprep.subr.bf16.mxu0 %v6592
        %8139 = vmatpush1.bf16.msra.mxu0 %v6591
        %8140 = vmatprep.subr.bf16.mxu0 %v6600
        %8141 = vmatpush1.bf16.msra.mxu0 %v6599
        %8142 = vmatprep.subr.bf16.mxu0 %v6608
        %8143 = vmatpush1.bf16.msra.mxu0 %v6607
        %8144 = vmatprep.subr.bf16.mxu0 %v6616
        %8145 = vmatpush1.bf16.msra.mxu0 %v6615
        %8146 = vmatprep.subr.bf16.mxu0 %v6624
        %8147 = vmatpush1.bf16.msra.mxu0 %v6623
        %8148 = vmatprep.mubr.bf16.mxu0 %v2770
        %8149 = vmatmul.mubr.bf16.gmra.mrb[0].mxu0 %v2769
        %v8150 = vpop.f32.mrb[0].mxu0
        %v8151 = vadd.f32 %v8110, %v8150
        %v8152 = vpop.f32.mrb[0].mxu0
        %v8153 = vadd.f32 %v8112, %v8152
        %v8154 = vpop.f32.mrb[0].mxu0
        %v8155 = vpop.f32.mrb[0].mxu0
        %8156 = vdwg.mxu0
        %8157 = vmatprep.subr.bf16.mxu0 %v6632
        %8158 = vmatpush1.bf16.msra.mxu0 %v6631
        %8159 = vmatprep.subr.bf16.mxu0 %v6640
        %8160 = vmatpush1.bf16.msra.mxu0 %v6639
        %8161 = vmatprep.subr.bf16.mxu0 %v6648
        %8162 = vmatpush1.bf16.msra.mxu0 %v6647
        %8163 = vmatprep.subr.bf16.mxu0 %v6656
        %8164 = vmatpush1.bf16.msra.mxu0 %v6655
        %8165 = vmatprep.subr.bf16.mxu0 %v6664
        %8166 = vmatpush1.bf16.msra.mxu0 %v6663
        %8167 = vmatprep.subr.bf16.mxu0 %v6672
        %8168 = vmatpush1.bf16.msra.mxu0 %v6671
        %8169 = vmatprep.subr.bf16.mxu0 %v6680
        %8170 = vmatpush1.bf16.msra.mxu0 %v6679
        %8171 = vmatprep.subr.bf16.mxu0 %v6688
        %8172 = vmatpush1.bf16.msra.mxu0 %v6687
        %8173 = vmatprep.subr.bf16.mxu0 %v6696
        %8174 = vmatpush1.bf16.msra.mxu0 %v6695
        %8175 = vmatprep.subr.bf16.mxu0 %v6704
        %8176 = vmatpush1.bf16.msra.mxu0 %v6703
        %8177 = vmatprep.subr.bf16.mxu0 %v6712
        %8178 = vmatpush1.bf16.msra.mxu0 %v6711
        %8179 = vmatprep.subr.bf16.mxu0 %v6720
        %8180 = vmatpush1.bf16.msra.mxu0 %v6719
        %8181 = vmatprep.subr.bf16.mxu0 %v6728
        %8182 = vmatpush1.bf16.msra.mxu0 %v6727
        %8183 = vmatprep.subr.bf16.mxu0 %v6736
        %8184 = vmatpush1.bf16.msra.mxu0 %v6735
        %8185 = vmatprep.subr.bf16.mxu0 %v6744
        %8186 = vmatpush1.bf16.msra.mxu0 %v6743
        %8187 = vmatprep.subr.bf16.mxu0 %v6752
        %8188 = vmatpush1.bf16.msra.mxu0 %v6751
        %8189 = vmatprep.mubr.bf16.mxu0 %v2772
        %8190 = vmatmul.mubr.bf16.gmra.mrb[0].mxu0 %v2771
        %v8191 = vpop.f32.mrb[0].mxu0
        %v8192 = vadd.f32 %v8151, %v8191
        %v8193 = vpop.f32.mrb[0].mxu0
        %v8194 = vadd.f32 %v8153, %v8193
        %v8195 = vpop.f32.mrb[0].mxu0
        %v8196 = vpop.f32.mrb[0].mxu0
        %8197 = vdwg.mxu0
        %8198 = vmatprep.subr.bf16.mxu0 %v6760
        %8199 = vmatpush1.bf16.msra.mxu0 %v6759
        %8200 = vmatprep.subr.bf16.mxu0 %v6768
        %8201 = vmatpush1.bf16.msra.mxu0 %v6767
        %8202 = vmatprep.subr.bf16.mxu0 %v6776
        %8203 = vmatpush1.bf16.msra.mxu0 %v6775
        %8204 = vmatprep.subr.bf16.mxu0 %v6784
        %8205 = vmatpush1.bf16.msra.mxu0 %v6783
        %8206 = vmatprep.subr.bf16.mxu0 %v6792
        %8207 = vmatpush1.bf16.msra.mxu0 %v6791
        %8208 = vmatprep.subr.bf16.mxu0 %v6800
        %8209 = vmatpush1.bf16.msra.mxu0 %v6799
        %8210 = vmatprep.subr.bf16.mxu0 %v6808
        %8211 = vmatpush1.bf16.msra.mxu0 %v6807
        %8212 = vmatprep.subr.bf16.mxu0 %v6816
        %8213 = vmatpush1.bf16.msra.mxu0 %v6815
        %8214 = vmatprep.subr.bf16.mxu0 %v6824
        %8215 = vmatpush1.bf16.msra.mxu0 %v6823
        %8216 = vmatprep.subr.bf16.mxu0 %v6832
        %8217 = vmatpush1.bf16.msra.mxu0 %v6831
        %8218 = vmatprep.subr.bf16.mxu0 %v6840
        %8219 = vmatpush1.bf16.msra.mxu0 %v6839
        %8220 = vmatprep.subr.bf16.mxu0 %v6848
        %8221 = vmatpush1.bf16.msra.mxu0 %v6847
        %8222 = vmatprep.subr.bf16.mxu0 %v6856
        %8223 = vmatpush1.bf16.msra.mxu0 %v6855
        %8224 = vmatprep.subr.bf16.mxu0 %v6864
        %8225 = vmatpush1.bf16.msra.mxu0 %v6863
        %8226 = vmatprep.subr.bf16.mxu0 %v6872
        %8227 = vmatpush1.bf16.msra.mxu0 %v6871
        %8228 = vmatprep.subr.bf16.mxu0 %v6880
        %8229 = vmatpush1.bf16.msra.mxu0 %v6879
        %8230 = vmatprep.mubr.bf16.mxu0 %v2774
        %8231 = vmatmul.mubr.bf16.gmra.mrb[0].mxu0 %v2773
        %v8232 = vpop.f32.mrb[0].mxu0
        %v8233 = vadd.f32 %v8192, %v8232
        %v8234 = vpop.f32.mrb[0].mxu0
        %v8235 = vadd.f32 %v8194, %v8234
        %v8236 = vpop.f32.mrb[0].mxu0
        %v8237 = vpop.f32.mrb[0].mxu0
        %8238 = vdwg.mxu0
        %8239 = vmatprep.subr.bf16.mxu0 %v5866
        %8240 = vmatpush1.bf16.msra.mxu0 %v5865
        %8241 = vmatprep.subr.bf16.mxu0 %v5874
        %8242 = vmatpush1.bf16.msra.mxu0 %v5873
        %8243 = vmatprep.subr.bf16.mxu0 %v5882
        %8244 = vmatpush1.bf16.msra.mxu0 %v5881
        %8245 = vmatprep.subr.bf16.mxu0 %v5890
        %8246 = vmatpush1.bf16.msra.mxu0 %v5889
        %8247 = vmatprep.subr.bf16.mxu0 %v5898
        %8248 = vmatpush1.bf16.msra.mxu0 %v5897
        %8249 = vmatprep.subr.bf16.mxu0 %v5906
        %8250 = vmatpush1.bf16.msra.mxu0 %v5905
        %8251 = vmatprep.subr.bf16.mxu0 %v5914
        %8252 = vmatpush1.bf16.msra.mxu0 %v5913
        %8253 = vmatprep.subr.bf16.mxu0 %v5922
        %8254 = vmatpush1.bf16.msra.mxu0 %v5921
        %8255 = vmatprep.subr.bf16.mxu0 %v5930
        %8256 = vmatpush1.bf16.msra.mxu0 %v5929
        %8257 = vmatprep.subr.bf16.mxu0 %v5938
        %8258 = vmatpush1.bf16.msra.mxu0 %v5937
        %8259 = vmatprep.subr.bf16.mxu0 %v5946
        %8260 = vmatpush1.bf16.msra.mxu0 %v5945
        %8261 = vmatprep.subr.bf16.mxu0 %v5954
        %8262 = vmatpush1.bf16.msra.mxu0 %v5953
        %8263 = vmatprep.subr.bf16.mxu0 %v5962
        %8264 = vmatpush1.bf16.msra.mxu0 %v5961
        %8265 = vmatprep.subr.bf16.mxu0 %v5970
        %8266 = vmatpush1.bf16.msra.mxu0 %v5969
        %8267 = vmatprep.subr.bf16.mxu0 %v5978
        %8268 = vmatpush1.bf16.msra.mxu0 %v5977
        %8269 = vmatprep.subr.bf16.mxu0 %v5986
        %8270 = vmatpush1.bf16.msra.mxu0 %v5985
        %8271 = vmatprep.mubr.bf16.mxu0 %v2760
        %8272 = vmatmul.mubr.bf16.gmra.mrb[0].mxu0 %v2759
        %v8273 = vpop.f32.mrb[0].mxu0
        %v8274 = vadd.f32 %v2706, %v8273
        %v8275 = vpop.f32.mrb[0].mxu0
        %v8276 = vadd.f32 %v2710, %v8275
        %v8277 = vpop.f32.mrb[0].mxu0
        %v8278 = vpop.f32.mrb[0].mxu0
        %8279 = vdwg.mxu0
        %8280 = vmatprep.subr.bf16.mxu0 %v5994
        %8281 = vmatpush1.bf16.msra.mxu0 %v5993
        %8282 = vmatprep.subr.bf16.mxu0 %v6002
        %8283 = vmatpush1.bf16.msra.mxu0 %v6001
        %8284 = vmatprep.subr.bf16.mxu0 %v6010
        %8285 = vmatpush1.bf16.msra.mxu0 %v6009
        %8286 = vmatprep.subr.bf16.mxu0 %v6018
        %8287 = vmatpush1.bf16.msra.mxu0 %v6017
        %8288 = vmatprep.subr.bf16.mxu0 %v6026
        %8289 = vmatpush1.bf16.msra.mxu0 %v6025
        %8290 = vmatprep.subr.bf16.mxu0 %v6034
        %8291 = vmatpush1.bf16.msra.mxu0 %v6033
        %8292 = vmatprep.subr.bf16.mxu0 %v6042
        %8293 = vmatpush1.bf16.msra.mxu0 %v6041
        %8294 = vmatprep.subr.bf16.mxu0 %v6050
        %8295 = vmatpush1.bf16.msra.mxu0 %v6049
        %8296 = vmatprep.subr.bf16.mxu0 %v6058
        %8297 = vmatpush1.bf16.msra.mxu0 %v6057
        %8298 = vmatprep.subr.bf16.mxu0 %v6066
        %8299 = vmatpush1.bf16.msra.mxu0 %v6065
        %8300 = vmatprep.subr.bf16.mxu0 %v6074
        %8301 = vmatpush1.bf16.msra.mxu0 %v6073
        %8302 = vmatprep.subr.bf16.mxu0 %v6082
        %8303 = vmatpush1.bf16.msra.mxu0 %v6081
        %8304 = vmatprep.subr.bf16.mxu0 %v6090
        %8305 = vmatpush1.bf16.msra.mxu0 %v6089
        %8306 = vmatprep.subr.bf16.mxu0 %v6098
        %8307 = vmatpush1.bf16.msra.mxu0 %v6097
        %8308 = vmatprep.subr.bf16.mxu0 %v6106
        %8309 = vmatpush1.bf16.msra.mxu0 %v6105
        %8310 = vmatprep.subr.bf16.mxu0 %v6114
        %8311 = vmatpush1.bf16.msra.mxu0 %v6113
        %8312 = vmatprep.mubr.bf16.mxu0 %v2762
        %8313 = vmatmul.mubr.bf16.gmra.mrb[0].mxu0 %v2761
        %v8314 = vpop.f32.mrb[0].mxu0
        %v8315 = vadd.f32 %v8274, %v8314
        %v8316 = vpop.f32.mrb[0].mxu0
        %v8317 = vadd.f32 %v8276, %v8316
        %v8318 = vpop.f32.mrb[0].mxu0
        %v8319 = vpop.f32.mrb[0].mxu0
        %8320 = vdwg.mxu0
        %8321 = vmatprep.subr.bf16.mxu0 %v6122
        %8322 = vmatpush1.bf16.msra.mxu0 %v6121
        %8323 = vmatprep.subr.bf16.mxu0 %v6130
        %8324 = vmatpush1.bf16.msra.mxu0 %v6129
        %8325 = vmatprep.subr.bf16.mxu0 %v6138
        %8326 = vmatpush1.bf16.msra.mxu0 %v6137
        %8327 = vmatprep.subr.bf16.mxu0 %v6146
        %8328 = vmatpush1.bf16.msra.mxu0 %v6145
        %8329 = vmatprep.subr.bf16.mxu0 %v6154
        %8330 = vmatpush1.bf16.msra.mxu0 %v6153
        %8331 = vmatprep.subr.bf16.mxu0 %v6162
        %8332 = vmatpush1.bf16.msra.mxu0 %v6161
        %8333 = vmatprep.subr.bf16.mxu0 %v6170
        %8334 = vmatpush1.bf16.msra.mxu0 %v6169
        %8335 = vmatprep.subr.bf16.mxu0 %v6178
        %8336 = vmatpush1.bf16.msra.mxu0 %v6177
        %8337 = vmatprep.subr.bf16.mxu0 %v6186
        %8338 = vmatpush1.bf16.msra.mxu0 %v6185
        %8339 = vmatprep.subr.bf16.mxu0 %v6194
        %8340 = vmatpush1.bf16.msra.mxu0 %v6193
        %8341 = vmatprep.subr.bf16.mxu0 %v6202
        %8342 = vmatpush1.bf16.msra.mxu0 %v6201
        %8343 = vmatprep.subr.bf16.mxu0 %v6210
        %8344 = vmatpush1.bf16.msra.mxu0 %v6209
        %8345 = vmatprep.subr.bf16.mxu0 %v6218
        %8346 = vmatpush1.bf16.msra.mxu0 %v6217
        %8347 = vmatprep.subr.bf16.mxu0 %v6226
        %8348 = vmatpush1.bf16.msra.mxu0 %v6225
        %8349 = vmatprep.subr.bf16.mxu0 %v6234
        %8350 = vmatpush1.bf16.msra.mxu0 %v6233
        %8351 = vmatprep.subr.bf16.mxu0 %v6242
        %8352 = vmatpush1.bf16.msra.mxu0 %v6241
        %8353 = vmatprep.mubr.bf16.mxu0 %v2764
        %8354 = vmatmul.mubr.bf16.gmra.mrb[0].mxu0 %v2763
        %v8355 = vpop.f32.mrb[0].mxu0
        %v8356 = vadd.f32 %v8315, %v8355
        %v8357 = vpop.f32.mrb[0].mxu0
        %v8358 = vadd.f32 %v8317, %v8357
        %v8359 = vpop.f32.mrb[0].mxu0
        %v8360 = vpop.f32.mrb[0].mxu0
        %8361 = vdwg.mxu0
        %8362 = vmatprep.subr.bf16.mxu0 %v6250
        %8363 = vmatpush1.bf16.msra.mxu0 %v6249
        %8364 = vmatprep.subr.bf16.mxu0 %v6258
        %8365 = vmatpush1.bf16.msra.mxu0 %v6257
        %8366 = vmatprep.subr.bf16.mxu0 %v6266
        %8367 = vmatpush1.bf16.msra.mxu0 %v6265
        %8368 = vmatprep.subr.bf16.mxu0 %v6274
        %8369 = vmatpush1.bf16.msra.mxu0 %v6273
        %8370 = vmatprep.subr.bf16.mxu0 %v6282
        %8371 = vmatpush1.bf16.msra.mxu0 %v6281
        %8372 = vmatprep.subr.bf16.mxu0 %v6290
        %8373 = vmatpush1.bf16.msra.mxu0 %v6289
        %8374 = vmatprep.subr.bf16.mxu0 %v6298
        %8375 = vmatpush1.bf16.msra.mxu0 %v6297
        %8376 = vmatprep.subr.bf16.mxu0 %v6306
        %8377 = vmatpush1.bf16.msra.mxu0 %v6305
        %8378 = vmatprep.subr.bf16.mxu0 %v6314
        %8379 = vmatpush1.bf16.msra.mxu0 %v6313
        %8380 = vmatprep.subr.bf16.mxu0 %v6322
        %8381 = vmatpush1.bf16.msra.mxu0 %v6321
        %8382 = vmatprep.subr.bf16.mxu0 %v6330
        %8383 = vmatpush1.bf16.msra.mxu0 %v6329
        %8384 = vmatprep.subr.bf16.mxu0 %v6338
        %8385 = vmatpush1.bf16.msra.mxu0 %v6337
        %8386 = vmatprep.subr.bf16.mxu0 %v6346
        %8387 = vmatpush1.bf16.msra.mxu0 %v6345
        %8388 = vmatprep.subr.bf16.mxu0 %v6354
        %8389 = vmatpush1.bf16.msra.mxu0 %v6353
        %8390 = vmatprep.subr.bf16.mxu0 %v6362
        %8391 = vmatpush1.bf16.msra.mxu0 %v6361
        %8392 = vmatprep.subr.bf16.mxu0 %v6370
        %8393 = vmatpush1.bf16.msra.mxu0 %v6369
        %8394 = vmatprep.mubr.bf16.mxu0 %v2766
        %8395 = vmatmul.mubr.bf16.gmra.mrb[0].mxu0 %v2765
        %v8396 = vpop.f32.mrb[0].mxu0
        %v8397 = vadd.f32 %v8356, %v8396
        %v8398 = vpop.f32.mrb[0].mxu0
        %v8399 = vadd.f32 %v8358, %v8398
        %v8400 = vpop.f32.mrb[0].mxu0
        %v8401 = vpop.f32.mrb[0].mxu0
        %8402 = vdwg.mxu0
        %8403 = vmatprep.subr.bf16.mxu0 %v6378
        %8404 = vmatpush1.bf16.msra.mxu0 %v6377
        %8405 = vmatprep.subr.bf16.mxu0 %v6386
        %8406 = vmatpush1.bf16.msra.mxu0 %v6385
        %8407 = vmatprep.subr.bf16.mxu0 %v6394
        %8408 = vmatpush1.bf16.msra.mxu0 %v6393
        %8409 = vmatprep.subr.bf16.mxu0 %v6402
        %8410 = vmatpush1.bf16.msra.mxu0 %v6401
        %8411 = vmatprep.subr.bf16.mxu0 %v6410
        %8412 = vmatpush1.bf16.msra.mxu0 %v6409
        %8413 = vmatprep.subr.bf16.mxu0 %v6418
        %8414 = vmatpush1.bf16.msra.mxu0 %v6417
        %8415 = vmatprep.subr.bf16.mxu0 %v6426
        %8416 = vmatpush1.bf16.msra.mxu0 %v6425
        %8417 = vmatprep.subr.bf16.mxu0 %v6434
        %8418 = vmatpush1.bf16.msra.mxu0 %v6433
        %8419 = vmatprep.subr.bf16.mxu0 %v6442
        %8420 = vmatpush1.bf16.msra.mxu0 %v6441
        %8421 = vmatprep.subr.bf16.mxu0 %v6450
        %8422 = vmatpush1.bf16.msra.mxu0 %v6449
        %8423 = vmatprep.subr.bf16.mxu0 %v6458
        %8424 = vmatpush1.bf16.msra.mxu0 %v6457
        %8425 = vmatprep.subr.bf16.mxu0 %v6466
        %8426 = vmatpush1.bf16.msra.mxu0 %v6465
        %8427 = vmatprep.subr.bf16.mxu0 %v6474
        %8428 = vmatpush1.bf16.msra.mxu0 %v6473
        %8429 = vmatprep.subr.bf16.mxu0 %v6482
        %8430 = vmatpush1.bf16.msra.mxu0 %v6481
        %8431 = vmatprep.subr.bf16.mxu0 %v6490
        %8432 = vmatpush1.bf16.msra.mxu0 %v6489
        %8433 = vmatprep.subr.bf16.mxu0 %v6498
        %8434 = vmatpush1.bf16.msra.mxu0 %v6497
        %8435 = vmatprep.mubr.bf16.mxu0 %v2768
        %8436 = vmatmul.mubr.bf16.gmra.mrb[0].mxu0 %v2767
        %v8437 = vpop.f32.mrb[0].mxu0
        %v8438 = vadd.f32 %v8397, %v8437
        %v8439 = vpop.f32.mrb[0].mxu0
        %v8440 = vadd.f32 %v8399, %v8439
        %v8441 = vpop.f32.mrb[0].mxu0
        %v8442 = vpop.f32.mrb[0].mxu0
        %8443 = vdwg.mxu0
        %8444 = vmatprep.subr.bf16.mxu0 %v6506
        %8445 = vmatpush1.bf16.msra.mxu0 %v6505
        %8446 = vmatprep.subr.bf16.mxu0 %v6514
        %8447 = vmatpush1.bf16.msra.mxu0 %v6513
        %8448 = vmatprep.subr.bf16.mxu0 %v6522
        %8449 = vmatpush1.bf16.msra.mxu0 %v6521
        %8450 = vmatprep.subr.bf16.mxu0 %v6530
        %8451 = vmatpush1.bf16.msra.mxu0 %v6529
        %8452 = vmatprep.subr.bf16.mxu0 %v6538
        %8453 = vmatpush1.bf16.msra.mxu0 %v6537
        %8454 = vmatprep.subr.bf16.mxu0 %v6546
        %8455 = vmatpush1.bf16.msra.mxu0 %v6545
        %8456 = vmatprep.subr.bf16.mxu0 %v6554
        %8457 = vmatpush1.bf16.msra.mxu0 %v6553
        %8458 = vmatprep.subr.bf16.mxu0 %v6562
        %8459 = vmatpush1.bf16.msra.mxu0 %v6561
        %8460 = vmatprep.subr.bf16.mxu0 %v6570
        %8461 = vmatpush1.bf16.msra.mxu0 %v6569
        %8462 = vmatprep.subr.bf16.mxu0 %v6578
        %8463 = vmatpush1.bf16.msra.mxu0 %v6577
        %8464 = vmatprep.subr.bf16.mxu0 %v6586
        %8465 = vmatpush1.bf16.msra.mxu0 %v6585
        %8466 = vmatprep.subr.bf16.mxu0 %v6594
        %8467 = vmatpush1.bf16.msra.mxu0 %v6593
        %8468 = vmatprep.subr.bf16.mxu0 %v6602
        %8469 = vmatpush1.bf16.msra.mxu0 %v6601
        %8470 = vmatprep.subr.bf16.mxu0 %v6610
        %8471 = vmatpush1.bf16.msra.mxu0 %v6609
        %8472 = vmatprep.subr.bf16.mxu0 %v6618
        %8473 = vmatpush1.bf16.msra.mxu0 %v6617
        %8474 = vmatprep.subr.bf16.mxu0 %v6626
        %8475 = vmatpush1.bf16.msra.mxu0 %v6625
        %8476 = vmatprep.mubr.bf16.mxu0 %v2770
        %8477 = vmatmul.mubr.bf16.gmra.mrb[0].mxu0 %v2769
        %v8478 = vpop.f32.mrb[0].mxu0
        %v8479 = vadd.f32 %v8438, %v8478
        %v8480 = vpop.f32.mrb[0].mxu0
        %v8481 = vadd.f32 %v8440, %v8480
        %v8482 = vpop.f32.mrb[0].mxu0
        %v8483 = vpop.f32.mrb[0].mxu0
        %8484 = vdwg.mxu0
        %8485 = vmatprep.subr.bf16.mxu0 %v6634
        %8486 = vmatpush1.bf16.msra.mxu0 %v6633
        %8487 = vmatprep.subr.bf16.mxu0 %v6642
        %8488 = vmatpush1.bf16.msra.mxu0 %v6641
        %8489 = vmatprep.subr.bf16.mxu0 %v6650
        %8490 = vmatpush1.bf16.msra.mxu0 %v6649
        %8491 = vmatprep.subr.bf16.mxu0 %v6658
        %8492 = vmatpush1.bf16.msra.mxu0 %v6657
        %8493 = vmatprep.subr.bf16.mxu0 %v6666
        %8494 = vmatpush1.bf16.msra.mxu0 %v6665
        %8495 = vmatprep.subr.bf16.mxu0 %v6674
        %8496 = vmatpush1.bf16.msra.mxu0 %v6673
        %8497 = vmatprep.subr.bf16.mxu0 %v6682
        %8498 = vmatpush1.bf16.msra.mxu0 %v6681
        %8499 = vmatprep.subr.bf16.mxu0 %v6690
        %8500 = vmatpush1.bf16.msra.mxu0 %v6689
        %8501 = vmatprep.subr.bf16.mxu0 %v6698
        %8502 = vmatpush1.bf16.msra.mxu0 %v6697
        %8503 = vmatprep.subr.bf16.mxu0 %v6706
        %8504 = vmatpush1.bf16.msra.mxu0 %v6705
        %8505 = vmatprep.subr.bf16.mxu0 %v6714
        %8506 = vmatpush1.bf16.msra.mxu0 %v6713
        %8507 = vmatprep.subr.bf16.mxu0 %v6722
        %8508 = vmatpush1.bf16.msra.mxu0 %v6721
        %8509 = vmatprep.subr.bf16.mxu0 %v6730
        %8510 = vmatpush1.bf16.msra.mxu0 %v6729
        %8511 = vmatprep.subr.bf16.mxu0 %v6738
        %8512 = vmatpush1.bf16.msra.mxu0 %v6737
        %8513 = vmatprep.subr.bf16.mxu0 %v6746
        %8514 = vmatpush1.bf16.msra.mxu0 %v6745
        %8515 = vmatprep.subr.bf16.mxu0 %v6754
        %8516 = vmatpush1.bf16.msra.mxu0 %v6753
        %8517 = vmatprep.mubr.bf16.mxu0 %v2772
        %8518 = vmatmul.mubr.bf16.gmra.mrb[0].mxu0 %v2771
        %v8519 = vpop.f32.mrb[0].mxu0
        %v8520 = vadd.f32 %v8479, %v8519
        %v8521 = vpop.f32.mrb[0].mxu0
        %v8522 = vadd.f32 %v8481, %v8521
        %v8523 = vpop.f32.mrb[0].mxu0
        %v8524 = vpop.f32.mrb[0].mxu0
        %8525 = vdwg.mxu0
        %8526 = vmatprep.subr.bf16.mxu0 %v6762
        %8527 = vmatpush1.bf16.msra.mxu0 %v6761
        %8528 = vmatprep.subr.bf16.mxu0 %v6770
        %8529 = vmatpush1.bf16.msra.mxu0 %v6769
        %8530 = vmatprep.subr.bf16.mxu0 %v6778
        %8531 = vmatpush1.bf16.msra.mxu0 %v6777
        %8532 = vmatprep.subr.bf16.mxu0 %v6786
        %8533 = vmatpush1.bf16.msra.mxu0 %v6785
        %8534 = vmatprep.subr.bf16.mxu0 %v6794
        %8535 = vmatpush1.bf16.msra.mxu0 %v6793
        %8536 = vmatprep.subr.bf16.mxu0 %v6802
        %8537 = vmatpush1.bf16.msra.mxu0 %v6801
        %8538 = vmatprep.subr.bf16.mxu0 %v6810
        %8539 = vmatpush1.bf16.msra.mxu0 %v6809
        %8540 = vmatprep.subr.bf16.mxu0 %v6818
        %8541 = vmatpush1.bf16.msra.mxu0 %v6817
        %8542 = vmatprep.subr.bf16.mxu0 %v6826
        %8543 = vmatpush1.bf16.msra.mxu0 %v6825
        %8544 = vmatprep.subr.bf16.mxu0 %v6834
        %8545 = vmatpush1.bf16.msra.mxu0 %v6833
        %8546 = vmatprep.subr.bf16.mxu0 %v6842
        %8547 = vmatpush1.bf16.msra.mxu0 %v6841
        %8548 = vmatprep.subr.bf16.mxu0 %v6850
        %8549 = vmatpush1.bf16.msra.mxu0 %v6849
        %8550 = vmatprep.subr.bf16.mxu0 %v6858
        %8551 = vmatpush1.bf16.msra.mxu0 %v6857
        %8552 = vmatprep.subr.bf16.mxu0 %v6866
        %8553 = vmatpush1.bf16.msra.mxu0 %v6865
        %8554 = vmatprep.subr.bf16.mxu0 %v6874
        %8555 = vmatpush1.bf16.msra.mxu0 %v6873
        %8556 = vmatprep.subr.bf16.mxu0 %v6882
        %8557 = vmatpush1.bf16.msra.mxu0 %v6881
        %8558 = vmatprep.mubr.bf16.mxu0 %v2774
        %8559 = vmatmul.mubr.bf16.gmra.mrb[0].mxu0 %v2773
        %v8560 = vpop.f32.mrb[0].mxu0
        %v8561 = vadd.f32 %v8520, %v8560
        %v8562 = vpop.f32.mrb[0].mxu0
        %v8563 = vadd.f32 %v8522, %v8562
        %v8564 = vpop.f32.mrb[0].mxu0
        %v8565 = vpop.f32.mrb[0].mxu0
        %8566 = vdwg.mxu0
        %8567 = vmatprep.subr.bf16.mxu0 %v5868
        %8568 = vmatpush1.bf16.msra.mxu0 %v5867
        %8569 = vmatprep.subr.bf16.mxu0 %v5876
        %8570 = vmatpush1.bf16.msra.mxu0 %v5875
        %8571 = vmatprep.subr.bf16.mxu0 %v5884
        %8572 = vmatpush1.bf16.msra.mxu0 %v5883
        %8573 = vmatprep.subr.bf16.mxu0 %v5892
        %8574 = vmatpush1.bf16.msra.mxu0 %v5891
        %8575 = vmatprep.subr.bf16.mxu0 %v5900
        %8576 = vmatpush1.bf16.msra.mxu0 %v5899
        %8577 = vmatprep.subr.bf16.mxu0 %v5908
        %8578 = vmatpush1.bf16.msra.mxu0 %v5907
        %8579 = vmatprep.subr.bf16.mxu0 %v5916
        %8580 = vmatpush1.bf16.msra.mxu0 %v5915
        %8581 = vmatprep.subr.bf16.mxu0 %v5924
        %8582 = vmatpush1.bf16.msra.mxu0 %v5923
        %8583 = vmatprep.subr.bf16.mxu0 %v5932
        %8584 = vmatpush1.bf16.msra.mxu0 %v5931
        %8585 = vmatprep.subr.bf16.mxu0 %v5940
        %8586 = vmatpush1.bf16.msra.mxu0 %v5939
        %8587 = vmatprep.subr.bf16.mxu0 %v5948
        %8588 = vmatpush1.bf16.msra.mxu0 %v5947
        %8589 = vmatprep.subr.bf16.mxu0 %v5956
        %8590 = vmatpush1.bf16.msra.mxu0 %v5955
        %8591 = vmatprep.subr.bf16.mxu0 %v5964
        %8592 = vmatpush1.bf16.msra.mxu0 %v5963
        %8593 = vmatprep.subr.bf16.mxu0 %v5972
        %8594 = vmatpush1.bf16.msra.mxu0 %v5971
        %8595 = vmatprep.subr.bf16.mxu0 %v5980
        %8596 = vmatpush1.bf16.msra.mxu0 %v5979
        %8597 = vmatprep.subr.bf16.mxu0 %v5988
        %8598 = vmatpush1.bf16.msra.mxu0 %v5987
        %8599 = vmatprep.mubr.bf16.mxu0 %v2760
        %8600 = vmatmul.mubr.bf16.gmra.mrb[0].mxu0 %v2759
        %v8601 = vpop.f32.mrb[0].mxu0
        %v8602 = vadd.f32 %v2714, %v8601
        %v8603 = vpop.f32.mrb[0].mxu0
        %v8604 = vadd.f32 %v2718, %v8603
        %v8605 = vpop.f32.mrb[0].mxu0
        %v8606 = vpop.f32.mrb[0].mxu0
        %8607 = vdwg.mxu0
        %8608 = vmatprep.subr.bf16.mxu0 %v5996
        %8609 = vmatpush1.bf16.msra.mxu0 %v5995
        %8610 = vmatprep.subr.bf16.mxu0 %v6004
        %8611 = vmatpush1.bf16.msra.mxu0 %v6003
        %8612 = vmatprep.subr.bf16.mxu0 %v6012
        %8613 = vmatpush1.bf16.msra.mxu0 %v6011
        %8614 = vmatprep.subr.bf16.mxu0 %v6020
        %8615 = vmatpush1.bf16.msra.mxu0 %v6019
        %8616 = vmatprep.subr.bf16.mxu0 %v6028
        %8617 = vmatpush1.bf16.msra.mxu0 %v6027
        %8618 = vmatprep.subr.bf16.mxu0 %v6036
        %8619 = vmatpush1.bf16.msra.mxu0 %v6035
        %8620 = vmatprep.subr.bf16.mxu0 %v6044
        %8621 = vmatpush1.bf16.msra.mxu0 %v6043
        %8622 = vmatprep.subr.bf16.mxu0 %v6052
        %8623 = vmatpush1.bf16.msra.mxu0 %v6051
        %8624 = vmatprep.subr.bf16.mxu0 %v6060
        %8625 = vmatpush1.bf16.msra.mxu0 %v6059
        %8626 = vmatprep.subr.bf16.mxu0 %v6068
        %8627 = vmatpush1.bf16.msra.mxu0 %v6067
        %8628 = vmatprep.subr.bf16.mxu0 %v6076
        %8629 = vmatpush1.bf16.msra.mxu0 %v6075
        %8630 = vmatprep.subr.bf16.mxu0 %v6084
        %8631 = vmatpush1.bf16.msra.mxu0 %v6083
        %8632 = vmatprep.subr.bf16.mxu0 %v6092
        %8633 = vmatpush1.bf16.msra.mxu0 %v6091
        %8634 = vmatprep.subr.bf16.mxu0 %v6100
        %8635 = vmatpush1.bf16.msra.mxu0 %v6099
        %8636 = vmatprep.subr.bf16.mxu0 %v6108
        %8637 = vmatpush1.bf16.msra.mxu0 %v6107
        %8638 = vmatprep.subr.bf16.mxu0 %v6116
        %8639 = vmatpush1.bf16.msra.mxu0 %v6115
        %8640 = vmatprep.mubr.bf16.mxu0 %v2762
        %8641 = vmatmul.mubr.bf16.gmra.mrb[0].mxu0 %v2761
        %v8642 = vpop.f32.mrb[0].mxu0
        %v8643 = vadd.f32 %v8602, %v8642
        %v8644 = vpop.f32.mrb[0].mxu0
        %v8645 = vadd.f32 %v8604, %v8644
        %v8646 = vpop.f32.mrb[0].mxu0
        %v8647 = vpop.f32.mrb[0].mxu0
        %8648 = vdwg.mxu0
        %8649 = vmatprep.subr.bf16.mxu0 %v6124
        %8650 = vmatpush1.bf16.msra.mxu0 %v6123
        %8651 = vmatprep.subr.bf16.mxu0 %v6132
        %8652 = vmatpush1.bf16.msra.mxu0 %v6131
        %8653 = vmatprep.subr.bf16.mxu0 %v6140
        %8654 = vmatpush1.bf16.msra.mxu0 %v6139
        %8655 = vmatprep.subr.bf16.mxu0 %v6148
        %8656 = vmatpush1.bf16.msra.mxu0 %v6147
        %8657 = vmatprep.subr.bf16.mxu0 %v6156
        %8658 = vmatpush1.bf16.msra.mxu0 %v6155
        %8659 = vmatprep.subr.bf16.mxu0 %v6164
        %8660 = vmatpush1.bf16.msra.mxu0 %v6163
        %8661 = vmatprep.subr.bf16.mxu0 %v6172
        %8662 = vmatpush1.bf16.msra.mxu0 %v6171
        %8663 = vmatprep.subr.bf16.mxu0 %v6180
        %8664 = vmatpush1.bf16.msra.mxu0 %v6179
        %8665 = vmatprep.subr.bf16.mxu0 %v6188
        %8666 = vmatpush1.bf16.msra.mxu0 %v6187
        %8667 = vmatprep.subr.bf16.mxu0 %v6196
        %8668 = vmatpush1.bf16.msra.mxu0 %v6195
        %8669 = vmatprep.subr.bf16.mxu0 %v6204
        %8670 = vmatpush1.bf16.msra.mxu0 %v6203
        %8671 = vmatprep.subr.bf16.mxu0 %v6212
        %8672 = vmatpush1.bf16.msra.mxu0 %v6211
        %8673 = vmatprep.subr.bf16.mxu0 %v6220
        %8674 = vmatpush1.bf16.msra.mxu0 %v6219
        %8675 = vmatprep.subr.bf16.mxu0 %v6228
        %8676 = vmatpush1.bf16.msra.mxu0 %v6227
        %8677 = vmatprep.subr.bf16.mxu0 %v6236
        %8678 = vmatpush1.bf16.msra.mxu0 %v6235
        %8679 = vmatprep.subr.bf16.mxu0 %v6244
        %8680 = vmatpush1.bf16.msra.mxu0 %v6243
        %8681 = vmatprep.mubr.bf16.mxu0 %v2764
        %8682 = vmatmul.mubr.bf16.gmra.mrb[0].mxu0 %v2763
        %v8683 = vpop.f32.mrb[0].mxu0
        %v8684 = vadd.f32 %v8643, %v8683
        %v8685 = vpop.f32.mrb[0].mxu0
        %v8686 = vadd.f32 %v8645, %v8685
        %v8687 = vpop.f32.mrb[0].mxu0
        %v8688 = vpop.f32.mrb[0].mxu0
        %8689 = vdwg.mxu0
        %8690 = vmatprep.subr.bf16.mxu0 %v6252
        %8691 = vmatpush1.bf16.msra.mxu0 %v6251
        %8692 = vmatprep.subr.bf16.mxu0 %v6260
        %8693 = vmatpush1.bf16.msra.mxu0 %v6259
        %8694 = vmatprep.subr.bf16.mxu0 %v6268
        %8695 = vmatpush1.bf16.msra.mxu0 %v6267
        %8696 = vmatprep.subr.bf16.mxu0 %v6276
        %8697 = vmatpush1.bf16.msra.mxu0 %v6275
        %8698 = vmatprep.subr.bf16.mxu0 %v6284
        %8699 = vmatpush1.bf16.msra.mxu0 %v6283
        %8700 = vmatprep.subr.bf16.mxu0 %v6292
        %8701 = vmatpush1.bf16.msra.mxu0 %v6291
        %8702 = vmatprep.subr.bf16.mxu0 %v6300
        %8703 = vmatpush1.bf16.msra.mxu0 %v6299
        %8704 = vmatprep.subr.bf16.mxu0 %v6308
        %8705 = vmatpush1.bf16.msra.mxu0 %v6307
        %8706 = vmatprep.subr.bf16.mxu0 %v6316
        %8707 = vmatpush1.bf16.msra.mxu0 %v6315
        %8708 = vmatprep.subr.bf16.mxu0 %v6324
        %8709 = vmatpush1.bf16.msra.mxu0 %v6323
        %8710 = vmatprep.subr.bf16.mxu0 %v6332
        %8711 = vmatpush1.bf16.msra.mxu0 %v6331
        %8712 = vmatprep.subr.bf16.mxu0 %v6340
        %8713 = vmatpush1.bf16.msra.mxu0 %v6339
        %8714 = vmatprep.subr.bf16.mxu0 %v6348
        %8715 = vmatpush1.bf16.msra.mxu0 %v6347
        %8716 = vmatprep.subr.bf16.mxu0 %v6356
        %8717 = vmatpush1.bf16.msra.mxu0 %v6355
        %8718 = vmatprep.subr.bf16.mxu0 %v6364
        %8719 = vmatpush1.bf16.msra.mxu0 %v6363
        %8720 = vmatprep.subr.bf16.mxu0 %v6372
        %8721 = vmatpush1.bf16.msra.mxu0 %v6371
        %8722 = vmatprep.mubr.bf16.mxu0 %v2766
        %8723 = vmatmul.mubr.bf16.gmra.mrb[0].mxu0 %v2765
        %v8724 = vpop.f32.mrb[0].mxu0
        %v8725 = vadd.f32 %v8684, %v8724
        %v8726 = vpop.f32.mrb[0].mxu0
        %v8727 = vadd.f32 %v8686, %v8726
        %v8728 = vpop.f32.mrb[0].mxu0
        %v8729 = vpop.f32.mrb[0].mxu0
        %8730 = vdwg.mxu0
        %8731 = vmatprep.subr.bf16.mxu0 %v6380
        %8732 = vmatpush1.bf16.msra.mxu0 %v6379
        %8733 = vmatprep.subr.bf16.mxu0 %v6388
        %8734 = vmatpush1.bf16.msra.mxu0 %v6387
        %8735 = vmatprep.subr.bf16.mxu0 %v6396
        %8736 = vmatpush1.bf16.msra.mxu0 %v6395
        %8737 = vmatprep.subr.bf16.mxu0 %v6404
        %8738 = vmatpush1.bf16.msra.mxu0 %v6403
        %8739 = vmatprep.subr.bf16.mxu0 %v6412
        %8740 = vmatpush1.bf16.msra.mxu0 %v6411
        %8741 = vmatprep.subr.bf16.mxu0 %v6420
        %8742 = vmatpush1.bf16.msra.mxu0 %v6419
        %8743 = vmatprep.subr.bf16.mxu0 %v6428
        %8744 = vmatpush1.bf16.msra.mxu0 %v6427
        %8745 = vmatprep.subr.bf16.mxu0 %v6436
        %8746 = vmatpush1.bf16.msra.mxu0 %v6435
        %8747 = vmatprep.subr.bf16.mxu0 %v6444
        %8748 = vmatpush1.bf16.msra.mxu0 %v6443
        %8749 = vmatprep.subr.bf16.mxu0 %v6452
        %8750 = vmatpush1.bf16.msra.mxu0 %v6451
        %8751 = vmatprep.subr.bf16.mxu0 %v6460
        %8752 = vmatpush1.bf16.msra.mxu0 %v6459
        %8753 = vmatprep.subr.bf16.mxu0 %v6468
        %8754 = vmatpush1.bf16.msra.mxu0 %v6467
        %8755 = vmatprep.subr.bf16.mxu0 %v6476
        %8756 = vmatpush1.bf16.msra.mxu0 %v6475
        %8757 = vmatprep.subr.bf16.mxu0 %v6484
        %8758 = vmatpush1.bf16.msra.mxu0 %v6483
        %8759 = vmatprep.subr.bf16.mxu0 %v6492
        %8760 = vmatpush1.bf16.msra.mxu0 %v6491
        %8761 = vmatprep.subr.bf16.mxu0 %v6500
        %8762 = vmatpush1.bf16.msra.mxu0 %v6499
        %8763 = vmatprep.mubr.bf16.mxu0 %v2768
        %8764 = vmatmul.mubr.bf16.gmra.mrb[0].mxu0 %v2767
        %v8765 = vpop.f32.mrb[0].mxu0
        %v8766 = vadd.f32 %v8725, %v8765
        %v8767 = vpop.f32.mrb[0].mxu0
        %v8768 = vadd.f32 %v8727, %v8767
        %v8769 = vpop.f32.mrb[0].mxu0
        %v8770 = vpop.f32.mrb[0].mxu0
        %8771 = vdwg.mxu0
        %8772 = vmatprep.subr.bf16.mxu0 %v6508
        %8773 = vmatpush1.bf16.msra.mxu0 %v6507
        %8774 = vmatprep.subr.bf16.mxu0 %v6516
        %8775 = vmatpush1.bf16.msra.mxu0 %v6515
        %8776 = vmatprep.subr.bf16.mxu0 %v6524
        %8777 = vmatpush1.bf16.msra.mxu0 %v6523
        %8778 = vmatprep.subr.bf16.mxu0 %v6532
        %8779 = vmatpush1.bf16.msra.mxu0 %v6531
        %8780 = vmatprep.subr.bf16.mxu0 %v6540
        %8781 = vmatpush1.bf16.msra.mxu0 %v6539
        %8782 = vmatprep.subr.bf16.mxu0 %v6548
        %8783 = vmatpush1.bf16.msra.mxu0 %v6547
        %8784 = vmatprep.subr.bf16.mxu0 %v6556
        %8785 = vmatpush1.bf16.msra.mxu0 %v6555
        %8786 = vmatprep.subr.bf16.mxu0 %v6564
        %8787 = vmatpush1.bf16.msra.mxu0 %v6563
        %8788 = vmatprep.subr.bf16.mxu0 %v6572
        %8789 = vmatpush1.bf16.msra.mxu0 %v6571
        %8790 = vmatprep.subr.bf16.mxu0 %v6580
        %8791 = vmatpush1.bf16.msra.mxu0 %v6579
        %8792 = vmatprep.subr.bf16.mxu0 %v6588
        %8793 = vmatpush1.bf16.msra.mxu0 %v6587
        %8794 = vmatprep.subr.bf16.mxu0 %v6596
        %8795 = vmatpush1.bf16.msra.mxu0 %v6595
        %8796 = vmatprep.subr.bf16.mxu0 %v6604
        %8797 = vmatpush1.bf16.msra.mxu0 %v6603
        %8798 = vmatprep.subr.bf16.mxu0 %v6612
        %8799 = vmatpush1.bf16.msra.mxu0 %v6611
        %8800 = vmatprep.subr.bf16.mxu0 %v6620
        %8801 = vmatpush1.bf16.msra.mxu0 %v6619
        %8802 = vmatprep.subr.bf16.mxu0 %v6628
        %8803 = vmatpush1.bf16.msra.mxu0 %v6627
        %8804 = vmatprep.mubr.bf16.mxu0 %v2770
        %8805 = vmatmul.mubr.bf16.gmra.mrb[0].mxu0 %v2769
        %v8806 = vpop.f32.mrb[0].mxu0
        %v8807 = vadd.f32 %v8766, %v8806
        %v8808 = vpop.f32.mrb[0].mxu0
        %v8809 = vadd.f32 %v8768, %v8808
        %v8810 = vpop.f32.mrb[0].mxu0
        %v8811 = vpop.f32.mrb[0].mxu0
        %8812 = vdwg.mxu0
        %8813 = vmatprep.subr.bf16.mxu0 %v6636
        %8814 = vmatpush1.bf16.msra.mxu0 %v6635
        %8815 = vmatprep.subr.bf16.mxu0 %v6644
        %8816 = vmatpush1.bf16.msra.mxu0 %v6643
        %8817 = vmatprep.subr.bf16.mxu0 %v6652
        %8818 = vmatpush1.bf16.msra.mxu0 %v6651
        %8819 = vmatprep.subr.bf16.mxu0 %v6660
        %8820 = vmatpush1.bf16.msra.mxu0 %v6659
        %8821 = vmatprep.subr.bf16.mxu0 %v6668
        %8822 = vmatpush1.bf16.msra.mxu0 %v6667
        %8823 = vmatprep.subr.bf16.mxu0 %v6676
        %8824 = vmatpush1.bf16.msra.mxu0 %v6675
        %8825 = vmatprep.subr.bf16.mxu0 %v6684
        %8826 = vmatpush1.bf16.msra.mxu0 %v6683
        %8827 = vmatprep.subr.bf16.mxu0 %v6692
        %8828 = vmatpush1.bf16.msra.mxu0 %v6691
        %8829 = vmatprep.subr.bf16.mxu0 %v6700
        %8830 = vmatpush1.bf16.msra.mxu0 %v6699
        %8831 = vmatprep.subr.bf16.mxu0 %v6708
        %8832 = vmatpush1.bf16.msra.mxu0 %v6707
        %8833 = vmatprep.subr.bf16.mxu0 %v6716
        %8834 = vmatpush1.bf16.msra.mxu0 %v6715
        %8835 = vmatprep.subr.bf16.mxu0 %v6724
        %8836 = vmatpush1.bf16.msra.mxu0 %v6723
        %8837 = vmatprep.subr.bf16.mxu0 %v6732
        %8838 = vmatpush1.bf16.msra.mxu0 %v6731
        %8839 = vmatprep.subr.bf16.mxu0 %v6740
        %8840 = vmatpush1.bf16.msra.mxu0 %v6739
        %8841 = vmatprep.subr.bf16.mxu0 %v6748
        %8842 = vmatpush1.bf16.msra.mxu0 %v6747
        %8843 = vmatprep.subr.bf16.mxu0 %v6756
        %8844 = vmatpush1.bf16.msra.mxu0 %v6755
        %8845 = vmatprep.mubr.bf16.mxu0 %v2772
        %8846 = vmatmul.mubr.bf16.gmra.mrb[0].mxu0 %v2771
        %v8847 = vpop.f32.mrb[0].mxu0
        %v8848 = vadd.f32 %v8807, %v8847
        %v8849 = vpop.f32.mrb[0].mxu0
        %v8850 = vadd.f32 %v8809, %v8849
        %v8851 = vpop.f32.mrb[0].mxu0
        %v8852 = vpop.f32.mrb[0].mxu0
        %8853 = vdwg.mxu0
        %8854 = vmatprep.subr.bf16.mxu0 %v6764
        %8855 = vmatpush1.bf16.msra.mxu0 %v6763
        %8856 = vmatprep.subr.bf16.mxu0 %v6772
        %8857 = vmatpush1.bf16.msra.mxu0 %v6771
        %8858 = vmatprep.subr.bf16.mxu0 %v6780
        %8859 = vmatpush1.bf16.msra.mxu0 %v6779
        %8860 = vmatprep.subr.bf16.mxu0 %v6788
        %8861 = vmatpush1.bf16.msra.mxu0 %v6787
        %8862 = vmatprep.subr.bf16.mxu0 %v6796
        %8863 = vmatpush1.bf16.msra.mxu0 %v6795
        %8864 = vmatprep.subr.bf16.mxu0 %v6804
        %8865 = vmatpush1.bf16.msra.mxu0 %v6803
        %8866 = vmatprep.subr.bf16.mxu0 %v6812
        %8867 = vmatpush1.bf16.msra.mxu0 %v6811
        %8868 = vmatprep.subr.bf16.mxu0 %v6820
        %8869 = vmatpush1.bf16.msra.mxu0 %v6819
        %8870 = vmatprep.subr.bf16.mxu0 %v6828
        %8871 = vmatpush1.bf16.msra.mxu0 %v6827
        %8872 = vmatprep.subr.bf16.mxu0 %v6836
        %8873 = vmatpush1.bf16.msra.mxu0 %v6835
        %8874 = vmatprep.subr.bf16.mxu0 %v6844
        %8875 = vmatpush1.bf16.msra.mxu0 %v6843
        %8876 = vmatprep.subr.bf16.mxu0 %v6852
        %8877 = vmatpush1.bf16.msra.mxu0 %v6851
        %8878 = vmatprep.subr.bf16.mxu0 %v6860
        %8879 = vmatpush1.bf16.msra.mxu0 %v6859
        %8880 = vmatprep.subr.bf16.mxu0 %v6868
        %8881 = vmatpush1.bf16.msra.mxu0 %v6867
        %8882 = vmatprep.subr.bf16.mxu0 %v6876
        %8883 = vmatpush1.bf16.msra.mxu0 %v6875
        %8884 = vmatprep.subr.bf16.mxu0 %v6884
        %8885 = vmatpush1.bf16.msra.mxu0 %v6883
        %8886 = vmatprep.mubr.bf16.mxu0 %v2774
        %8887 = vmatmul.mubr.bf16.gmra.mrb[0].mxu0 %v2773
        %v8888 = vpop.f32.mrb[0].mxu0
        %v8889 = vadd.f32 %v8848, %v8888
        %v8890 = vpop.f32.mrb[0].mxu0
        %v8891 = vadd.f32 %v8850, %v8890
        %v8892 = vpop.f32.mrb[0].mxu0
        %v8893 = vpop.f32.mrb[0].mxu0
        %8894 = vdwg.mxu0
        %8895 = vmatprep.subr.bf16.mxu0 %v5870
        %8896 = vmatpush1.bf16.msra.mxu0 %v5869
        %8897 = vmatprep.subr.bf16.mxu0 %v5878
        %8898 = vmatpush1.bf16.msra.mxu0 %v5877
        %8899 = vmatprep.subr.bf16.mxu0 %v5886
        %8900 = vmatpush1.bf16.msra.mxu0 %v5885
        %8901 = vmatprep.subr.bf16.mxu0 %v5894
        %8902 = vmatpush1.bf16.msra.mxu0 %v5893
        %8903 = vmatprep.subr.bf16.mxu0 %v5902
        %8904 = vmatpush1.bf16.msra.mxu0 %v5901
        %8905 = vmatprep.subr.bf16.mxu0 %v5910
        %8906 = vmatpush1.bf16.msra.mxu0 %v5909
        %8907 = vmatprep.subr.bf16.mxu0 %v5918
        %8908 = vmatpush1.bf16.msra.mxu0 %v5917
        %8909 = vmatprep.subr.bf16.mxu0 %v5926
        %8910 = vmatpush1.bf16.msra.mxu0 %v5925
        %8911 = vmatprep.subr.bf16.mxu0 %v5934
        %8912 = vmatpush1.bf16.msra.mxu0 %v5933
        %8913 = vmatprep.subr.bf16.mxu0 %v5942
        %8914 = vmatpush1.bf16.msra.mxu0 %v5941
        %8915 = vmatprep.subr.bf16.mxu0 %v5950
        %8916 = vmatpush1.bf16.msra.mxu0 %v5949
        %8917 = vmatprep.subr.bf16.mxu0 %v5958
        %8918 = vmatpush1.bf16.msra.mxu0 %v5957
        %8919 = vmatprep.subr.bf16.mxu0 %v5966
        %8920 = vmatpush1.bf16.msra.mxu0 %v5965
        %8921 = vmatprep.subr.bf16.mxu0 %v5974
        %8922 = vmatpush1.bf16.msra.mxu0 %v5973
        %8923 = vmatprep.subr.bf16.mxu0 %v5982
        %8924 = vmatpush1.bf16.msra.mxu0 %v5981
        %8925 = vmatprep.subr.bf16.mxu0 %v5990
        %8926 = vmatpush1.bf16.msra.mxu0 %v5989
        %8927 = vmatprep.mubr.bf16.mxu0 %v2760
        %8928 = vmatmul.mubr.bf16.gmra.mrb[0].mxu0 %v2759
        %v8929 = vpop.f32.mrb[0].mxu0
        %v8930 = vadd.f32 %v2722, %v8929
        %v8931 = vpop.f32.mrb[0].mxu0
        %v8932 = vadd.f32 %v2726, %v8931
        %v8933 = vpop.f32.mrb[0].mxu0
        %v8934 = vpop.f32.mrb[0].mxu0
        %8935 = vdwg.mxu0
        %8936 = vmatprep.subr.bf16.mxu0 %v5998
        %8937 = vmatpush1.bf16.msra.mxu0 %v5997
        %8938 = vmatprep.subr.bf16.mxu0 %v6006
        %8939 = vmatpush1.bf16.msra.mxu0 %v6005
        %8940 = vmatprep.subr.bf16.mxu0 %v6014
        %8941 = vmatpush1.bf16.msra.mxu0 %v6013
        %8942 = vmatprep.subr.bf16.mxu0 %v6022
        %8943 = vmatpush1.bf16.msra.mxu0 %v6021
        %8944 = vmatprep.subr.bf16.mxu0 %v6030
        %8945 = vmatpush1.bf16.msra.mxu0 %v6029
        %8946 = vmatprep.subr.bf16.mxu0 %v6038
        %8947 = vmatpush1.bf16.msra.mxu0 %v6037
        %8948 = vmatprep.subr.bf16.mxu0 %v6046
        %8949 = vmatpush1.bf16.msra.mxu0 %v6045
        %8950 = vmatprep.subr.bf16.mxu0 %v6054
        %8951 = vmatpush1.bf16.msra.mxu0 %v6053
        %8952 = vmatprep.subr.bf16.mxu0 %v6062
        %8953 = vmatpush1.bf16.msra.mxu0 %v6061
        %8954 = vmatprep.subr.bf16.mxu0 %v6070
        %8955 = vmatpush1.bf16.msra.mxu0 %v6069
        %8956 = vmatprep.subr.bf16.mxu0 %v6078
        %8957 = vmatpush1.bf16.msra.mxu0 %v6077
        %8958 = vmatprep.subr.bf16.mxu0 %v6086
        %8959 = vmatpush1.bf16.msra.mxu0 %v6085
        %8960 = vmatprep.subr.bf16.mxu0 %v6094
        %8961 = vmatpush1.bf16.msra.mxu0 %v6093
        %8962 = vmatprep.subr.bf16.mxu0 %v6102
        %8963 = vmatpush1.bf16.msra.mxu0 %v6101
        %8964 = vmatprep.subr.bf16.mxu0 %v6110
        %8965 = vmatpush1.bf16.msra.mxu0 %v6109
        %8966 = vmatprep.subr.bf16.mxu0 %v6118
        %8967 = vmatpush1.bf16.msra.mxu0 %v6117
        %8968 = vmatprep.mubr.bf16.mxu0 %v2762
        %8969 = vmatmul.mubr.bf16.gmra.mrb[0].mxu0 %v2761
        %v8970 = vpop.f32.mrb[0].mxu0
        %v8971 = vadd.f32 %v8930, %v8970
        %v8972 = vpop.f32.mrb[0].mxu0
        %v8973 = vadd.f32 %v8932, %v8972
        %v8974 = vpop.f32.mrb[0].mxu0
        %v8975 = vpop.f32.mrb[0].mxu0
        %8976 = vdwg.mxu0
        %8977 = vmatprep.subr.bf16.mxu0 %v6126
        %8978 = vmatpush1.bf16.msra.mxu0 %v6125
        %8979 = vmatprep.subr.bf16.mxu0 %v6134
        %8980 = vmatpush1.bf16.msra.mxu0 %v6133
        %8981 = vmatprep.subr.bf16.mxu0 %v6142
        %8982 = vmatpush1.bf16.msra.mxu0 %v6141
        %8983 = vmatprep.subr.bf16.mxu0 %v6150
        %8984 = vmatpush1.bf16.msra.mxu0 %v6149
        %8985 = vmatprep.subr.bf16.mxu0 %v6158
        %8986 = vmatpush1.bf16.msra.mxu0 %v6157
        %8987 = vmatprep.subr.bf16.mxu0 %v6166
        %8988 = vmatpush1.bf16.msra.mxu0 %v6165
        %8989 = vmatprep.subr.bf16.mxu0 %v6174
        %8990 = vmatpush1.bf16.msra.mxu0 %v6173
        %8991 = vmatprep.subr.bf16.mxu0 %v6182
        %8992 = vmatpush1.bf16.msra.mxu0 %v6181
        %8993 = vmatprep.subr.bf16.mxu0 %v6190
        %8994 = vmatpush1.bf16.msra.mxu0 %v6189
        %8995 = vmatprep.subr.bf16.mxu0 %v6198
        %8996 = vmatpush1.bf16.msra.mxu0 %v6197
        %8997 = vmatprep.subr.bf16.mxu0 %v6206
        %8998 = vmatpush1.bf16.msra.mxu0 %v6205
        %8999 = vmatprep.subr.bf16.mxu0 %v6214
        %9000 = vmatpush1.bf16.msra.mxu0 %v6213
        %9001 = vmatprep.subr.bf16.mxu0 %v6222
        %9002 = vmatpush1.bf16.msra.mxu0 %v6221
        %9003 = vmatprep.subr.bf16.mxu0 %v6230
        %9004 = vmatpush1.bf16.msra.mxu0 %v6229
        %9005 = vmatprep.subr.bf16.mxu0 %v6238
        %9006 = vmatpush1.bf16.msra.mxu0 %v6237
        %9007 = vmatprep.subr.bf16.mxu0 %v6246
        %9008 = vmatpush1.bf16.msra.mxu0 %v6245
        %9009 = vmatprep.mubr.bf16.mxu0 %v2764
        %9010 = vmatmul.mubr.bf16.gmra.mrb[0].mxu0 %v2763
        %v9011 = vpop.f32.mrb[0].mxu0
        %v9012 = vadd.f32 %v8971, %v9011
        %v9013 = vpop.f32.mrb[0].mxu0
        %v9014 = vadd.f32 %v8973, %v9013
        %v9015 = vpop.f32.mrb[0].mxu0
        %v9016 = vpop.f32.mrb[0].mxu0
        %9017 = vdwg.mxu0
        %9018 = vmatprep.subr.bf16.mxu0 %v6254
        %9019 = vmatpush1.bf16.msra.mxu0 %v6253
        %9020 = vmatprep.subr.bf16.mxu0 %v6262
        %9021 = vmatpush1.bf16.msra.mxu0 %v6261
        %9022 = vmatprep.subr.bf16.mxu0 %v6270
        %9023 = vmatpush1.bf16.msra.mxu0 %v6269
        %9024 = vmatprep.subr.bf16.mxu0 %v6278
        %9025 = vmatpush1.bf16.msra.mxu0 %v6277
        %9026 = vmatprep.subr.bf16.mxu0 %v6286
        %9027 = vmatpush1.bf16.msra.mxu0 %v6285
        %9028 = vmatprep.subr.bf16.mxu0 %v6294
        %9029 = vmatpush1.bf16.msra.mxu0 %v6293
        %9030 = vmatprep.subr.bf16.mxu0 %v6302
        %9031 = vmatpush1.bf16.msra.mxu0 %v6301
        %9032 = vmatprep.subr.bf16.mxu0 %v6310
        %9033 = vmatpush1.bf16.msra.mxu0 %v6309
        %9034 = vmatprep.subr.bf16.mxu0 %v6318
        %9035 = vmatpush1.bf16.msra.mxu0 %v6317
        %9036 = vmatprep.subr.bf16.mxu0 %v6326
        %9037 = vmatpush1.bf16.msra.mxu0 %v6325
        %9038 = vmatprep.subr.bf16.mxu0 %v6334
        %9039 = vmatpush1.bf16.msra.mxu0 %v6333
        %9040 = vmatprep.subr.bf16.mxu0 %v6342
        %9041 = vmatpush1.bf16.msra.mxu0 %v6341
        %9042 = vmatprep.subr.bf16.mxu0 %v6350
        %9043 = vmatpush1.bf16.msra.mxu0 %v6349
        %9044 = vmatprep.subr.bf16.mxu0 %v6358
        %9045 = vmatpush1.bf16.msra.mxu0 %v6357
        %9046 = vmatprep.subr.bf16.mxu0 %v6366
        %9047 = vmatpush1.bf16.msra.mxu0 %v6365
        %9048 = vmatprep.subr.bf16.mxu0 %v6374
        %9049 = vmatpush1.bf16.msra.mxu0 %v6373
        %9050 = vmatprep.mubr.bf16.mxu0 %v2766
        %9051 = vmatmul.mubr.bf16.gmra.mrb[0].mxu0 %v2765
        %v9052 = vpop.f32.mrb[0].mxu0
        %v9053 = vadd.f32 %v9012, %v9052
        %v9054 = vpop.f32.mrb[0].mxu0
        %v9055 = vadd.f32 %v9014, %v9054
        %v9056 = vpop.f32.mrb[0].mxu0
        %v9057 = vpop.f32.mrb[0].mxu0
        %9058 = vdwg.mxu0
        %9059 = vmatprep.subr.bf16.mxu0 %v6382
        %9060 = vmatpush1.bf16.msra.mxu0 %v6381
        %9061 = vmatprep.subr.bf16.mxu0 %v6390
        %9062 = vmatpush1.bf16.msra.mxu0 %v6389
        %9063 = vmatprep.subr.bf16.mxu0 %v6398
        %9064 = vmatpush1.bf16.msra.mxu0 %v6397
        %9065 = vmatprep.subr.bf16.mxu0 %v6406
        %9066 = vmatpush1.bf16.msra.mxu0 %v6405
        %9067 = vmatprep.subr.bf16.mxu0 %v6414
        %9068 = vmatpush1.bf16.msra.mxu0 %v6413
        %9069 = vmatprep.subr.bf16.mxu0 %v6422
        %9070 = vmatpush1.bf16.msra.mxu0 %v6421
        %9071 = vmatprep.subr.bf16.mxu0 %v6430
        %9072 = vmatpush1.bf16.msra.mxu0 %v6429
        %9073 = vmatprep.subr.bf16.mxu0 %v6438
        %9074 = vmatpush1.bf16.msra.mxu0 %v6437
        %9075 = vmatprep.subr.bf16.mxu0 %v6446
        %9076 = vmatpush1.bf16.msra.mxu0 %v6445
        %9077 = vmatprep.subr.bf16.mxu0 %v6454
        %9078 = vmatpush1.bf16.msra.mxu0 %v6453
        %9079 = vmatprep.subr.bf16.mxu0 %v6462
        %9080 = vmatpush1.bf16.msra.mxu0 %v6461
        %9081 = vmatprep.subr.bf16.mxu0 %v6470
        %9082 = vmatpush1.bf16.msra.mxu0 %v6469
        %9083 = vmatprep.subr.bf16.mxu0 %v6478
        %9084 = vmatpush1.bf16.msra.mxu0 %v6477
        %9085 = vmatprep.subr.bf16.mxu0 %v6486
        %9086 = vmatpush1.bf16.msra.mxu0 %v6485
        %9087 = vmatprep.subr.bf16.mxu0 %v6494
        %9088 = vmatpush1.bf16.msra.mxu0 %v6493
        %9089 = vmatprep.subr.bf16.mxu0 %v6502
        %9090 = vmatpush1.bf16.msra.mxu0 %v6501
        %9091 = vmatprep.mubr.bf16.mxu0 %v2768
        %9092 = vmatmul.mubr.bf16.gmra.mrb[0].mxu0 %v2767
        %v9093 = vpop.f32.mrb[0].mxu0
        %v9094 = vadd.f32 %v9053, %v9093
        %v9095 = vpop.f32.mrb[0].mxu0
        %v9096 = vadd.f32 %v9055, %v9095
        %v9097 = vpop.f32.mrb[0].mxu0
        %v9098 = vpop.f32.mrb[0].mxu0
        %9099 = vdwg.mxu0
        %9100 = vmatprep.subr.bf16.mxu0 %v6510
        %9101 = vmatpush1.bf16.msra.mxu0 %v6509
        %9102 = vmatprep.subr.bf16.mxu0 %v6518
        %9103 = vmatpush1.bf16.msra.mxu0 %v6517
        %9104 = vmatprep.subr.bf16.mxu0 %v6526
        %9105 = vmatpush1.bf16.msra.mxu0 %v6525
        %9106 = vmatprep.subr.bf16.mxu0 %v6534
        %9107 = vmatpush1.bf16.msra.mxu0 %v6533
        %9108 = vmatprep.subr.bf16.mxu0 %v6542
        %9109 = vmatpush1.bf16.msra.mxu0 %v6541
        %9110 = vmatprep.subr.bf16.mxu0 %v6550
        %9111 = vmatpush1.bf16.msra.mxu0 %v6549
        %9112 = vmatprep.subr.bf16.mxu0 %v6558
        %9113 = vmatpush1.bf16.msra.mxu0 %v6557
        %9114 = vmatprep.subr.bf16.mxu0 %v6566
        %9115 = vmatpush1.bf16.msra.mxu0 %v6565
        %9116 = vmatprep.subr.bf16.mxu0 %v6574
        %9117 = vmatpush1.bf16.msra.mxu0 %v6573
        %9118 = vmatprep.subr.bf16.mxu0 %v6582
        %9119 = vmatpush1.bf16.msra.mxu0 %v6581
        %9120 = vmatprep.subr.bf16.mxu0 %v6590
        %9121 = vmatpush1.bf16.msra.mxu0 %v6589
        %9122 = vmatprep.subr.bf16.mxu0 %v6598
        %9123 = vmatpush1.bf16.msra.mxu0 %v6597
        %9124 = vmatprep.subr.bf16.mxu0 %v6606
        %9125 = vmatpush1.bf16.msra.mxu0 %v6605
        %9126 = vmatprep.subr.bf16.mxu0 %v6614
        %9127 = vmatpush1.bf16.msra.mxu0 %v6613
        %9128 = vmatprep.subr.bf16.mxu0 %v6622
        %9129 = vmatpush1.bf16.msra.mxu0 %v6621
        %9130 = vmatprep.subr.bf16.mxu0 %v6630
        %9131 = vmatpush1.bf16.msra.mxu0 %v6629
        %9132 = vmatprep.mubr.bf16.mxu0 %v2770
        %9133 = vmatmul.mubr.bf16.gmra.mrb[0].mxu0 %v2769
        %v9134 = vpop.f32.mrb[0].mxu0
        %v9135 = vadd.f32 %v9094, %v9134
        %v9136 = vpop.f32.mrb[0].mxu0
        %v9137 = vadd.f32 %v9096, %v9136
        %v9138 = vpop.f32.mrb[0].mxu0
        %v9139 = vpop.f32.mrb[0].mxu0
        %9140 = vdwg.mxu0
        %9141 = vmatprep.subr.bf16.mxu0 %v6638
        %9142 = vmatpush1.bf16.msra.mxu0 %v6637
        %9143 = vmatprep.subr.bf16.mxu0 %v6646
        %9144 = vmatpush1.bf16.msra.mxu0 %v6645
        %9145 = vmatprep.subr.bf16.mxu0 %v6654
        %9146 = vmatpush1.bf16.msra.mxu0 %v6653
        %9147 = vmatprep.subr.bf16.mxu0 %v6662
        %9148 = vmatpush1.bf16.msra.mxu0 %v6661
        %9149 = vmatprep.subr.bf16.mxu0 %v6670
        %9150 = vmatpush1.bf16.msra.mxu0 %v6669
        %9151 = vmatprep.subr.bf16.mxu0 %v6678
        %9152 = vmatpush1.bf16.msra.mxu0 %v6677
        %9153 = vmatprep.subr.bf16.mxu0 %v6686
        %9154 = vmatpush1.bf16.msra.mxu0 %v6685
        %9155 = vmatprep.subr.bf16.mxu0 %v6694
        %9156 = vmatpush1.bf16.msra.mxu0 %v6693
        %9157 = vmatprep.subr.bf16.mxu0 %v6702
        %9158 = vmatpush1.bf16.msra.mxu0 %v6701
        %9159 = vmatprep.subr.bf16.mxu0 %v6710
        %9160 = vmatpush1.bf16.msra.mxu0 %v6709
        %9161 = vmatprep.subr.bf16.mxu0 %v6718
        %9162 = vmatpush1.bf16.msra.mxu0 %v6717
        %9163 = vmatprep.subr.bf16.mxu0 %v6726
        %9164 = vmatpush1.bf16.msra.mxu0 %v6725
        %9165 = vmatprep.subr.bf16.mxu0 %v6734
        %9166 = vmatpush1.bf16.msra.mxu0 %v6733
        %9167 = vmatprep.subr.bf16.mxu0 %v6742
        %9168 = vmatpush1.bf16.msra.mxu0 %v6741
        %9169 = vmatprep.subr.bf16.mxu0 %v6750
        %9170 = vmatpush1.bf16.msra.mxu0 %v6749
        %9171 = vmatprep.subr.bf16.mxu0 %v6758
        %9172 = vmatpush1.bf16.msra.mxu0 %v6757
        %9173 = vmatprep.mubr.bf16.mxu0 %v2772
        %9174 = vmatmul.mubr.bf16.gmra.mrb[0].mxu0 %v2771
        %v9175 = vpop.f32.mrb[0].mxu0
        %v9176 = vadd.f32 %v9135, %v9175
        %v9177 = vpop.f32.mrb[0].mxu0
        %v9178 = vadd.f32 %v9137, %v9177
        %v9179 = vpop.f32.mrb[0].mxu0
        %v9180 = vpop.f32.mrb[0].mxu0
        %9181 = vdwg.mxu0
        %9182 = vmatprep.subr.bf16.mxu0 %v6766
        %9183 = vmatpush1.bf16.msra.mxu0 %v6765
        %9184 = vmatprep.subr.bf16.mxu0 %v6774
        %9185 = vmatpush1.bf16.msra.mxu0 %v6773
        %9186 = vmatprep.subr.bf16.mxu0 %v6782
        %9187 = vmatpush1.bf16.msra.mxu0 %v6781
        %9188 = vmatprep.subr.bf16.mxu0 %v6790
        %9189 = vmatpush1.bf16.msra.mxu0 %v6789
        %9190 = vmatprep.subr.bf16.mxu0 %v6798
        %9191 = vmatpush1.bf16.msra.mxu0 %v6797
        %9192 = vmatprep.subr.bf16.mxu0 %v6806
        %9193 = vmatpush1.bf16.msra.mxu0 %v6805
        %9194 = vmatprep.subr.bf16.mxu0 %v6814
        %9195 = vmatpush1.bf16.msra.mxu0 %v6813
        %9196 = vmatprep.subr.bf16.mxu0 %v6822
        %9197 = vmatpush1.bf16.msra.mxu0 %v6821
        %9198 = vmatprep.subr.bf16.mxu0 %v6830
        %9199 = vmatpush1.bf16.msra.mxu0 %v6829
        %9200 = vmatprep.subr.bf16.mxu0 %v6838
        %9201 = vmatpush1.bf16.msra.mxu0 %v6837
        %9202 = vmatprep.subr.bf16.mxu0 %v6846
        %9203 = vmatpush1.bf16.msra.mxu0 %v6845
        %9204 = vmatprep.subr.bf16.mxu0 %v6854
        %9205 = vmatpush1.bf16.msra.mxu0 %v6853
        %9206 = vmatprep.subr.bf16.mxu0 %v6862
        %9207 = vmatpush1.bf16.msra.mxu0 %v6861
        %9208 = vmatprep.subr.bf16.mxu0 %v6870
        %9209 = vmatpush1.bf16.msra.mxu0 %v6869
        %9210 = vmatprep.subr.bf16.mxu0 %v6878
        %9211 = vmatpush1.bf16.msra.mxu0 %v6877
        %9212 = vmatprep.subr.bf16.mxu0 %v6886
        %9213 = vmatpush1.bf16.msra.mxu0 %v6885
        %9214 = vmatprep.mubr.bf16.mxu0 %v2774
        %9215 = vmatmul.mubr.bf16.gmra.mrb[0].mxu0 %v2773
        %v9216 = vpop.f32.mrb[0].mxu0
        %v9217 = vadd.f32 %v9176, %v9216
        %v9218 = vpop.f32.mrb[0].mxu0
        %v9219 = vadd.f32 %v9178, %v9218
        %v9220 = vpop.f32.mrb[0].mxu0
        %v9221 = vpop.f32.mrb[0].mxu0
        %9222 = vdwg.mxu0
        %v9223 = vmax.f32 %v8233, 0.0
        %v9224 = vmax.f32 %v8235, 0.0
        %v9225 = vmax.f32 %v8561, 0.0
        %v9226 = vmax.f32 %v8563, 0.0
        %v9227 = vmax.f32 %v8889, 0.0
        %v9228 = vmax.f32 %v8891, 0.0
        %v9229 = vmax.f32 %v9217, 0.0
        %v9230 = vmax.f32 %v9219, 0.0
        %v9231 = vld [vmem:[#allocation18] sm:$0xff]
        %v9232 = vpack.c.bf16 %v9223, %v9223
        %v9233 = vpack.c.bf16 %v9224, %v9224
        %v9234 = vpack.c.bf16 %v9225, %v9225
        %v9235 = vpack.c.bf16 %v9226, %v9226
        %v9236 = vpack.c.bf16 %v9227, %v9227
        %v9237 = vpack.c.bf16 %v9228, %v9228
        %v9238 = vpack.c.bf16 %v9229, %v9229
        %v9239 = vpack.c.bf16 %v9230, %v9230
        %v9240 = vld [vmem:[%s482] sm:$0xf]
        %v9241 = vld [vmem:[%s482 + $0x4] sm:$0xf]
        %v9242 = vld [vmem:[%s482 + $0x8] sm:$0xf]
        %v9243 = vld [vmem:[%s482 + $0xc] sm:$0xf]
        %v9244 = vld [vmem:[%s482 + $0x10] sm:$0xf]
        %v9245 = vld [vmem:[%s482 + $0x14] sm:$0xf]
        %v9246 = vld [vmem:[%s482 + $0x18] sm:$0xf]
        %v9247 = vld [vmem:[%s482 + $0x1c] sm:$0xf]
        %v9248 = vld [vmem:[%s482 + $0x20] sm:$0xf]
        %v9249 = vld [vmem:[%s482 + $0x24] sm:$0xf]
        %v9250 = vld [vmem:[%s482 + $0x28] sm:$0xf]
        %v9251 = vld [vmem:[%s482 + $0x2c] sm:$0xf]
        %v9252 = vld [vmem:[%s482 + $0x30] sm:$0xf]
        %v9253 = vld [vmem:[%s482 + $0x34] sm:$0xf]
        %v9254 = vld [vmem:[%s482 + $0x38] sm:$0xf]
        %v9255 = vld [vmem:[%s482 + $0x3c] sm:$0xf]
        %v9256 = vld [vmem:[%s482 + $0x40] sm:$0xf]
        %v9257 = vld [vmem:[%s482 + $0x44] sm:$0xf]
        %v9258 = vld [vmem:[%s482 + $0x48] sm:$0xf]
        %v9259 = vld [vmem:[%s482 + $0x4c] sm:$0xf]
        %v9260 = vld [vmem:[%s482 + $0x50] sm:$0xf]
        %v9261 = vld [vmem:[%s482 + $0x54] sm:$0xf]
        %v9262 = vld [vmem:[%s482 + $0x58] sm:$0xf]
        %v9263 = vld [vmem:[%s482 + $0x5c] sm:$0xf]
        %v9264 = vld [vmem:[%s482 + $0x60] sm:$0xf]
        %v9265 = vld [vmem:[%s482 + $0x64] sm:$0xf]
        %v9266 = vld [vmem:[%s482 + $0x68] sm:$0xf]
        %v9267 = vld [vmem:[%s482 + $0x6c] sm:$0xf]
        %v9268 = vld [vmem:[%s482 + $0x70] sm:$0xf]
        %v9269 = vld [vmem:[%s482 + $0x74] sm:$0xf]
        %v9270 = vld [vmem:[%s482 + $0x78] sm:$0xf]
        %v9271 = vld [vmem:[%s482 + $0x7c] sm:$0xf]
        %v9272 = vld [vmem:[%s482 + $0x80] sm:$0xf]
        %v9273 = vld [vmem:[%s482 + $0x84] sm:$0xf]
        %v9274 = vld [vmem:[%s482 + $0x88] sm:$0xf]
        %v9275 = vld [vmem:[%s482 + $0x8c] sm:$0xf]
        %v9276 = vld [vmem:[%s482 + $0x90] sm:$0xf]
        %v9277 = vld [vmem:[%s482 + $0x94] sm:$0xf]
        %v9278 = vld [vmem:[%s482 + $0x98] sm:$0xf]
        %v9279 = vld [vmem:[%s482 + $0x9c] sm:$0xf]
        %v9280 = vld [vmem:[%s482 + $0xa0] sm:$0xf]
        %v9281 = vld [vmem:[%s482 + $0xa4] sm:$0xf]
        %v9282 = vld [vmem:[%s482 + $0xa8] sm:$0xf]
        %v9283 = vld [vmem:[%s482 + $0xac] sm:$0xf]
        %v9284 = vld [vmem:[%s482 + $0xb0] sm:$0xf]
        %v9285 = vld [vmem:[%s482 + $0xb4] sm:$0xf]
        %v9286 = vld [vmem:[%s482 + $0xb8] sm:$0xf]
        %v9287 = vld [vmem:[%s482 + $0xbc] sm:$0xf]
        %v9288 = vld [vmem:[%s482 + $0xc0] sm:$0xf]
        %v9289 = vld [vmem:[%s482 + $0xc4] sm:$0xf]
        %v9290 = vld [vmem:[%s482 + $0xc8] sm:$0xf]
        %v9291 = vld [vmem:[%s482 + $0xcc] sm:$0xf]
        %v9292 = vld [vmem:[%s482 + $0xd0] sm:$0xf]
        %v9293 = vld [vmem:[%s482 + $0xd4] sm:$0xf]
        %v9294 = vld [vmem:[%s482 + $0xd8] sm:$0xf]
        %v9295 = vld [vmem:[%s482 + $0xdc] sm:$0xf]
        %v9296 = vld [vmem:[%s482 + $0xe0] sm:$0xf]
        %v9297 = vld [vmem:[%s482 + $0xe4] sm:$0xf]
        %v9298 = vld [vmem:[%s482 + $0xe8] sm:$0xf]
        %v9299 = vld [vmem:[%s482 + $0xec] sm:$0xf]
        %v9300 = vld [vmem:[%s482 + $0xf0] sm:$0xf]
        %v9301 = vld [vmem:[%s482 + $0xf4] sm:$0xf]
        %v9302 = vld [vmem:[%s482 + $0xf8] sm:$0xf]
        %v9303 = vld [vmem:[%s482 + $0xfc] sm:$0xf]
        %v9304 = vld [vmem:[%s482 + $0x100] sm:$0xf]
        %v9305 = vld [vmem:[%s482 + $0x104] sm:$0xf]
        %v9306 = vld [vmem:[%s482 + $0x108] sm:$0xf]
        %v9307 = vld [vmem:[%s482 + $0x10c] sm:$0xf]
        %v9308 = vld [vmem:[%s482 + $0x110] sm:$0xf]
        %v9309 = vld [vmem:[%s482 + $0x114] sm:$0xf]
        %v9310 = vld [vmem:[%s482 + $0x118] sm:$0xf]
        %v9311 = vld [vmem:[%s482 + $0x11c] sm:$0xf]
        %v9312 = vld [vmem:[%s482 + $0x120] sm:$0xf]
        %v9313 = vld [vmem:[%s482 + $0x124] sm:$0xf]
        %v9314 = vld [vmem:[%s482 + $0x128] sm:$0xf]
        %v9315 = vld [vmem:[%s482 + $0x12c] sm:$0xf]
        %v9316 = vld [vmem:[%s482 + $0x130] sm:$0xf]
        %v9317 = vld [vmem:[%s482 + $0x134] sm:$0xf]
        %v9318 = vld [vmem:[%s482 + $0x138] sm:$0xf]
        %v9319 = vld [vmem:[%s482 + $0x13c] sm:$0xf]
        %v9320 = vld [vmem:[%s482 + $0x140] sm:$0xf]
        %v9321 = vld [vmem:[%s482 + $0x144] sm:$0xf]
        %v9322 = vld [vmem:[%s482 + $0x148] sm:$0xf]
        %v9323 = vld [vmem:[%s482 + $0x14c] sm:$0xf]
        %v9324 = vld [vmem:[%s482 + $0x150] sm:$0xf]
        %v9325 = vld [vmem:[%s482 + $0x154] sm:$0xf]
        %v9326 = vld [vmem:[%s482 + $0x158] sm:$0xf]
        %v9327 = vld [vmem:[%s482 + $0x15c] sm:$0xf]
        %v9328 = vld [vmem:[%s482 + $0x160] sm:$0xf]
        %v9329 = vld [vmem:[%s482 + $0x164] sm:$0xf]
        %v9330 = vld [vmem:[%s482 + $0x168] sm:$0xf]
        %v9331 = vld [vmem:[%s482 + $0x16c] sm:$0xf]
        %v9332 = vld [vmem:[%s482 + $0x170] sm:$0xf]
        %v9333 = vld [vmem:[%s482 + $0x174] sm:$0xf]
        %v9334 = vld [vmem:[%s482 + $0x178] sm:$0xf]
        %v9335 = vld [vmem:[%s482 + $0x17c] sm:$0xf]
        %v9336 = vld [vmem:[%s482 + $0x180] sm:$0xf]
        %v9337 = vld [vmem:[%s482 + $0x184] sm:$0xf]
        %v9338 = vld [vmem:[%s482 + $0x188] sm:$0xf]
        %v9339 = vld [vmem:[%s482 + $0x18c] sm:$0xf]
        %v9340 = vld [vmem:[%s482 + $0x190] sm:$0xf]
        %v9341 = vld [vmem:[%s482 + $0x194] sm:$0xf]
        %v9342 = vld [vmem:[%s482 + $0x198] sm:$0xf]
        %v9343 = vld [vmem:[%s482 + $0x19c] sm:$0xf]
        %v9344 = vld [vmem:[%s482 + $0x1a0] sm:$0xf]
        %v9345 = vld [vmem:[%s482 + $0x1a4] sm:$0xf]
        %v9346 = vld [vmem:[%s482 + $0x1a8] sm:$0xf]
        %v9347 = vld [vmem:[%s482 + $0x1ac] sm:$0xf]
        %v9348 = vld [vmem:[%s482 + $0x1b0] sm:$0xf]
        %v9349 = vld [vmem:[%s482 + $0x1b4] sm:$0xf]
        %v9350 = vld [vmem:[%s482 + $0x1b8] sm:$0xf]
        %v9351 = vld [vmem:[%s482 + $0x1bc] sm:$0xf]
        %v9352 = vld [vmem:[%s482 + $0x1c0] sm:$0xf]
        %v9353 = vld [vmem:[%s482 + $0x1c4] sm:$0xf]
        %v9354 = vld [vmem:[%s482 + $0x1c8] sm:$0xf]
        %v9355 = vld [vmem:[%s482 + $0x1cc] sm:$0xf]
        %v9356 = vld [vmem:[%s482 + $0x1d0] sm:$0xf]
        %v9357 = vld [vmem:[%s482 + $0x1d4] sm:$0xf]
        %v9358 = vld [vmem:[%s482 + $0x1d8] sm:$0xf]
        %v9359 = vld [vmem:[%s482 + $0x1dc] sm:$0xf]
        %v9360 = vld [vmem:[%s482 + $0x1e0] sm:$0xf]
        %v9361 = vld [vmem:[%s482 + $0x1e4] sm:$0xf]
        %v9362 = vld [vmem:[%s482 + $0x1e8] sm:$0xf]
        %v9363 = vld [vmem:[%s482 + $0x1ec] sm:$0xf]
        %v9364 = vld [vmem:[%s482 + $0x1f0] sm:$0xf]
        %v9365 = vld [vmem:[%s482 + $0x1f4] sm:$0xf]
        %v9366 = vld [vmem:[%s482 + $0x1f8] sm:$0xf]
        %v9367 = vld [vmem:[%s482 + $0x1fc] sm:$0xf]
        %v9496 = vunpack.c.l.b16 %v9240
        %v9497 = vunpack.c.l.b16 %v9241
        %v9498 = vunpack.c.l.b16 %v9242
        %v9499 = vunpack.c.l.b16 %v9243
        %v9500 = vunpack.c.l.b16 %v9244
        %v9501 = vunpack.c.l.b16 %v9245
        %v9502 = vunpack.c.l.b16 %v9246
        %v9503 = vunpack.c.l.b16 %v9247
        %v9504 = vunpack.c.l.b16 %v9248
        %v9505 = vunpack.c.l.b16 %v9249
        %v9506 = vunpack.c.l.b16 %v9250
        %v9507 = vunpack.c.l.b16 %v9251
        %v9508 = vunpack.c.l.b16 %v9252
        %v9509 = vunpack.c.l.b16 %v9253
        %v9510 = vunpack.c.l.b16 %v9254
        %v9511 = vunpack.c.l.b16 %v9255
        %v9512 = vunpack.c.l.b16 %v9256
        %v9513 = vunpack.c.l.b16 %v9257
        %v9514 = vunpack.c.l.b16 %v9258
        %v9515 = vunpack.c.l.b16 %v9259
        %v9516 = vunpack.c.l.b16 %v9260
        %v9517 = vunpack.c.l.b16 %v9261
        %v9518 = vunpack.c.l.b16 %v9262
        %v9519 = vunpack.c.l.b16 %v9263
        %v9520 = vunpack.c.l.b16 %v9264
        %v9521 = vunpack.c.l.b16 %v9265
        %v9522 = vunpack.c.l.b16 %v9266
        %v9523 = vunpack.c.l.b16 %v9267
        %v9524 = vunpack.c.l.b16 %v9268
        %v9525 = vunpack.c.l.b16 %v9269
        %v9526 = vunpack.c.l.b16 %v9270
        %v9527 = vunpack.c.l.b16 %v9271
        %v9528 = vunpack.c.l.b16 %v9272
        %v9529 = vunpack.c.l.b16 %v9273
        %v9530 = vunpack.c.l.b16 %v9274
        %v9531 = vunpack.c.l.b16 %v9275
        %v9532 = vunpack.c.l.b16 %v9276
        %v9533 = vunpack.c.l.b16 %v9277
        %v9534 = vunpack.c.l.b16 %v9278
        %v9535 = vunpack.c.l.b16 %v9279
        %v9536 = vunpack.c.l.b16 %v9280
        %v9537 = vunpack.c.l.b16 %v9281
        %v9538 = vunpack.c.l.b16 %v9282
        %v9539 = vunpack.c.l.b16 %v9283
        %v9540 = vunpack.c.l.b16 %v9284
        %v9541 = vunpack.c.l.b16 %v9285
        %v9542 = vunpack.c.l.b16 %v9286
        %v9543 = vunpack.c.l.b16 %v9287
        %v9544 = vunpack.c.l.b16 %v9288
        %v9545 = vunpack.c.l.b16 %v9289
        %v9546 = vunpack.c.l.b16 %v9290
        %v9547 = vunpack.c.l.b16 %v9291
        %v9548 = vunpack.c.l.b16 %v9292
        %v9549 = vunpack.c.l.b16 %v9293
        %v9550 = vunpack.c.l.b16 %v9294
        %v9551 = vunpack.c.l.b16 %v9295
        %v9552 = vunpack.c.l.b16 %v9296
        %v9553 = vunpack.c.l.b16 %v9297
        %v9554 = vunpack.c.l.b16 %v9298
        %v9555 = vunpack.c.l.b16 %v9299
        %v9556 = vunpack.c.l.b16 %v9300
        %v9557 = vunpack.c.l.b16 %v9301
        %v9558 = vunpack.c.l.b16 %v9302
        %v9559 = vunpack.c.l.b16 %v9303
        %v9560 = vunpack.c.l.b16 %v9304
        %v9561 = vunpack.c.l.b16 %v9305
        %v9562 = vunpack.c.l.b16 %v9306
        %v9563 = vunpack.c.l.b16 %v9307
        %v9564 = vunpack.c.l.b16 %v9308
        %v9565 = vunpack.c.l.b16 %v9309
        %v9566 = vunpack.c.l.b16 %v9310
        %v9567 = vunpack.c.l.b16 %v9311
        %v9568 = vunpack.c.l.b16 %v9312
        %v9569 = vunpack.c.l.b16 %v9313
        %v9570 = vunpack.c.l.b16 %v9314
        %v9571 = vunpack.c.l.b16 %v9315
        %v9572 = vunpack.c.l.b16 %v9316
        %v9573 = vunpack.c.l.b16 %v9317
        %v9574 = vunpack.c.l.b16 %v9318
        %v9575 = vunpack.c.l.b16 %v9319
        %v9576 = vunpack.c.l.b16 %v9320
        %v9577 = vunpack.c.l.b16 %v9321
        %v9578 = vunpack.c.l.b16 %v9322
        %v9579 = vunpack.c.l.b16 %v9323
        %v9580 = vunpack.c.l.b16 %v9324
        %v9581 = vunpack.c.l.b16 %v9325
        %v9582 = vunpack.c.l.b16 %v9326
        %v9583 = vunpack.c.l.b16 %v9327
        %v9584 = vunpack.c.l.b16 %v9328
        %v9585 = vunpack.c.l.b16 %v9329
        %v9586 = vunpack.c.l.b16 %v9330
        %v9587 = vunpack.c.l.b16 %v9331
        %v9588 = vunpack.c.l.b16 %v9332
        %v9589 = vunpack.c.l.b16 %v9333
        %v9590 = vunpack.c.l.b16 %v9334
        %v9591 = vunpack.c.l.b16 %v9335
        %v9592 = vunpack.c.l.b16 %v9336
        %v9593 = vunpack.c.l.b16 %v9337
        %v9594 = vunpack.c.l.b16 %v9338
        %v9595 = vunpack.c.l.b16 %v9339
        %v9596 = vunpack.c.l.b16 %v9340
        %v9597 = vunpack.c.l.b16 %v9341
        %v9598 = vunpack.c.l.b16 %v9342
        %v9599 = vunpack.c.l.b16 %v9343
        %v9600 = vunpack.c.l.b16 %v9344
        %v9601 = vunpack.c.l.b16 %v9345
        %v9602 = vunpack.c.l.b16 %v9346
        %v9603 = vunpack.c.l.b16 %v9347
        %v9604 = vunpack.c.l.b16 %v9348
        %v9605 = vunpack.c.l.b16 %v9349
        %v9606 = vunpack.c.l.b16 %v9350
        %v9607 = vunpack.c.l.b16 %v9351
        %v9608 = vunpack.c.l.b16 %v9352
        %v9609 = vunpack.c.l.b16 %v9353
        %v9610 = vunpack.c.l.b16 %v9354
        %v9611 = vunpack.c.l.b16 %v9355
        %v9612 = vunpack.c.l.b16 %v9356
        %v9613 = vunpack.c.l.b16 %v9357
        %v9614 = vunpack.c.l.b16 %v9358
        %v9615 = vunpack.c.l.b16 %v9359
        %v9616 = vunpack.c.l.b16 %v9360
        %v9617 = vunpack.c.l.b16 %v9361
        %v9618 = vunpack.c.l.b16 %v9362
        %v9619 = vunpack.c.l.b16 %v9363
        %v9620 = vunpack.c.l.b16 %v9364
        %v9621 = vunpack.c.l.b16 %v9365
        %v9622 = vunpack.c.l.b16 %v9366
        %v9623 = vunpack.c.l.b16 %v9367
        %v9624 = vpack.c.b16 %v9497, %v9496
        %v9625 = vpack.c.b16 %v9499, %v9498
        %v9626 = vpack.c.b16 %v9501, %v9500
        %v9627 = vpack.c.b16 %v9503, %v9502
        %v9628 = vpack.c.b16 %v9505, %v9504
        %v9629 = vpack.c.b16 %v9507, %v9506
        %v9630 = vpack.c.b16 %v9509, %v9508
        %v9631 = vpack.c.b16 %v9511, %v9510
        %v9632 = vpack.c.b16 %v9513, %v9512
        %v9633 = vpack.c.b16 %v9515, %v9514
        %v9634 = vpack.c.b16 %v9517, %v9516
        %v9635 = vpack.c.b16 %v9519, %v9518
        %v9636 = vpack.c.b16 %v9521, %v9520
        %v9637 = vpack.c.b16 %v9523, %v9522
        %v9638 = vpack.c.b16 %v9525, %v9524
        %v9639 = vpack.c.b16 %v9527, %v9526
        %v9640 = vpack.c.b16 %v9529, %v9528
        %v9641 = vpack.c.b16 %v9531, %v9530
        %v9642 = vpack.c.b16 %v9533, %v9532
        %v9643 = vpack.c.b16 %v9535, %v9534
        %v9644 = vpack.c.b16 %v9537, %v9536
        %v9645 = vpack.c.b16 %v9539, %v9538
        %v9646 = vpack.c.b16 %v9541, %v9540
        %v9647 = vpack.c.b16 %v9543, %v9542
        %v9648 = vpack.c.b16 %v9545, %v9544
        %v9649 = vpack.c.b16 %v9547, %v9546
        %v9650 = vpack.c.b16 %v9549, %v9548
        %v9651 = vpack.c.b16 %v9551, %v9550
        %v9652 = vpack.c.b16 %v9553, %v9552
        %v9653 = vpack.c.b16 %v9555, %v9554
        %v9654 = vpack.c.b16 %v9557, %v9556
        %v9655 = vpack.c.b16 %v9559, %v9558
        %v9656 = vpack.c.b16 %v9561, %v9560
        %v9657 = vpack.c.b16 %v9563, %v9562
        %v9658 = vpack.c.b16 %v9565, %v9564
        %v9659 = vpack.c.b16 %v9567, %v9566
        %v9660 = vpack.c.b16 %v9569, %v9568
        %v9661 = vpack.c.b16 %v9571, %v9570
        %v9662 = vpack.c.b16 %v9573, %v9572
        %v9663 = vpack.c.b16 %v9575, %v9574
        %v9664 = vpack.c.b16 %v9577, %v9576
        %v9665 = vpack.c.b16 %v9579, %v9578
        %v9666 = vpack.c.b16 %v9581, %v9580
        %v9667 = vpack.c.b16 %v9583, %v9582
        %v9668 = vpack.c.b16 %v9585, %v9584
        %v9669 = vpack.c.b16 %v9587, %v9586
        %v9670 = vpack.c.b16 %v9589, %v9588
        %v9671 = vpack.c.b16 %v9591, %v9590
        %v9672 = vpack.c.b16 %v9593, %v9592
        %v9673 = vpack.c.b16 %v9595, %v9594
        %v9674 = vpack.c.b16 %v9597, %v9596
        %v9675 = vpack.c.b16 %v9599, %v9598
        %v9676 = vpack.c.b16 %v9601, %v9600
        %v9677 = vpack.c.b16 %v9603, %v9602
        %v9678 = vpack.c.b16 %v9605, %v9604
        %v9679 = vpack.c.b16 %v9607, %v9606
        %v9680 = vpack.c.b16 %v9609, %v9608
        %v9681 = vpack.c.b16 %v9611, %v9610
        %v9682 = vpack.c.b16 %v9613, %v9612
        %v9683 = vpack.c.b16 %v9615, %v9614
        %v9684 = vpack.c.b16 %v9617, %v9616
        %v9685 = vpack.c.b16 %v9619, %v9618
        %v9686 = vpack.c.b16 %v9621, %v9620
        %v9687 = vpack.c.b16 %v9623, %v9622
        %9752 = vmatprep.subr.bf16.mxu0 0
        %9753 = vmatpush1.bf16.msra.mxu0 %v9624
        %9754 = vmatprep.subr.bf16.mxu0 0
        %9755 = vmatpush1.bf16.msra.mxu0 %v9625
        %9756 = vmatprep.subr.bf16.mxu0 0
        %9757 = vmatpush1.bf16.msra.mxu0 %v9626
        %9758 = vmatprep.subr.bf16.mxu0 0
        %9759 = vmatpush1.bf16.msra.mxu0 %v9627
        %9760 = vmatprep.subr.bf16.mxu0 0
        %9761 = vmatpush1.bf16.msra.mxu0 %v9628
        %9762 = vmatprep.subr.bf16.mxu0 0
        %9763 = vmatpush1.bf16.msra.mxu0 %v9629
        %9764 = vmatprep.subr.bf16.mxu0 0
        %9765 = vmatpush1.bf16.msra.mxu0 %v9630
        %9766 = vmatprep.subr.bf16.mxu0 0
        %9767 = vmatpush1.bf16.msra.mxu0 %v9631
        %9768 = vmatprep.subr.bf16.mxu0 0
        %9769 = vmatpush1.bf16.msra.mxu0 %v9632
        %9770 = vmatprep.subr.bf16.mxu0 0
        %9771 = vmatpush1.bf16.msra.mxu0 %v9633
        %9772 = vmatprep.subr.bf16.mxu0 0
        %9773 = vmatpush1.bf16.msra.mxu0 %v9634
        %9774 = vmatprep.subr.bf16.mxu0 0
        %9775 = vmatpush1.bf16.msra.mxu0 %v9635
        %9776 = vmatprep.subr.bf16.mxu0 0
        %9777 = vmatpush1.bf16.msra.mxu0 %v9636
        %9778 = vmatprep.subr.bf16.mxu0 0
        %9779 = vmatpush1.bf16.msra.mxu0 %v9637
        %9780 = vmatprep.subr.bf16.mxu0 0
        %9781 = vmatpush1.bf16.msra.mxu0 %v9638
        %9782 = vmatprep.subr.bf16.mxu0 0
        %9783 = vmatpush1.bf16.msra.mxu0 %v9639
        %9784 = vmatprep.mubr.bf16.mxu0 %v9233
        %9785 = vmatmul.mubr.bf16.gmra.mrb[0].mxu0 %v9232
        %v9786 = vpop.f32.mrb[0].mxu0
        %v9787 = vadd.f32 0.0, %v9786
        %v9788 = vpop.f32.mrb[0].mxu0
        %v9789 = vpop.f32.mrb[0].mxu0
        %v9790 = vpop.f32.mrb[0].mxu0
        %9791 = vdwg.mxu0
        %9792 = vmatprep.subr.bf16.mxu0 0
        %9793 = vmatpush1.bf16.msra.mxu0 %v9640
        %9794 = vmatprep.subr.bf16.mxu0 0
        %9795 = vmatpush1.bf16.msra.mxu0 %v9641
        %9796 = vmatprep.subr.bf16.mxu0 0
        %9797 = vmatpush1.bf16.msra.mxu0 %v9642
        %9798 = vmatprep.subr.bf16.mxu0 0
        %9799 = vmatpush1.bf16.msra.mxu0 %v9643
        %9800 = vmatprep.subr.bf16.mxu0 0
        %9801 = vmatpush1.bf16.msra.mxu0 %v9644
        %9802 = vmatprep.subr.bf16.mxu0 0
        %9803 = vmatpush1.bf16.msra.mxu0 %v9645
        %9804 = vmatprep.subr.bf16.mxu0 0
        %9805 = vmatpush1.bf16.msra.mxu0 %v9646
        %9806 = vmatprep.subr.bf16.mxu0 0
        %9807 = vmatpush1.bf16.msra.mxu0 %v9647
        %9808 = vmatprep.subr.bf16.mxu0 0
        %9809 = vmatpush1.bf16.msra.mxu0 %v9648
        %9810 = vmatprep.subr.bf16.mxu0 0
        %9811 = vmatpush1.bf16.msra.mxu0 %v9649
        %9812 = vmatprep.subr.bf16.mxu0 0
        %9813 = vmatpush1.bf16.msra.mxu0 %v9650
        %9814 = vmatprep.subr.bf16.mxu0 0
        %9815 = vmatpush1.bf16.msra.mxu0 %v9651
        %9816 = vmatprep.subr.bf16.mxu0 0
        %9817 = vmatpush1.bf16.msra.mxu0 %v9652
        %9818 = vmatprep.subr.bf16.mxu0 0
        %9819 = vmatpush1.bf16.msra.mxu0 %v9653
        %9820 = vmatprep.subr.bf16.mxu0 0
        %9821 = vmatpush1.bf16.msra.mxu0 %v9654
        %9822 = vmatprep.subr.bf16.mxu0 0
        %9823 = vmatpush1.bf16.msra.mxu0 %v9655
        %9824 = vmatprep.mubr.bf16.mxu0 %v9235
        %9825 = vmatmul.mubr.bf16.gmra.mrb[0].mxu0 %v9234
        %v9826 = vpop.f32.mrb[0].mxu0
        %v9827 = vadd.f32 %v9787, %v9826
        %v9828 = vpop.f32.mrb[0].mxu0
        %v9829 = vpop.f32.mrb[0].mxu0
        %v9830 = vpop.f32.mrb[0].mxu0
        %9831 = vdwg.mxu0
        %9832 = vmatprep.subr.bf16.mxu0 0
        %9833 = vmatpush1.bf16.msra.mxu0 %v9656
        %9834 = vmatprep.subr.bf16.mxu0 0
        %9835 = vmatpush1.bf16.msra.mxu0 %v9657
        %9836 = vmatprep.subr.bf16.mxu0 0
        %9837 = vmatpush1.bf16.msra.mxu0 %v9658
        %9838 = vmatprep.subr.bf16.mxu0 0
        %9839 = vmatpush1.bf16.msra.mxu0 %v9659
        %9840 = vmatprep.subr.bf16.mxu0 0
        %9841 = vmatpush1.bf16.msra.mxu0 %v9660
        %9842 = vmatprep.subr.bf16.mxu0 0
        %9843 = vmatpush1.bf16.msra.mxu0 %v9661
        %9844 = vmatprep.subr.bf16.mxu0 0
        %9845 = vmatpush1.bf16.msra.mxu0 %v9662
        %9846 = vmatprep.subr.bf16.mxu0 0
        %9847 = vmatpush1.bf16.msra.mxu0 %v9663
        %9848 = vmatprep.subr.bf16.mxu0 0
        %9849 = vmatpush1.bf16.msra.mxu0 %v9664
        %9850 = vmatprep.subr.bf16.mxu0 0
        %9851 = vmatpush1.bf16.msra.mxu0 %v9665
        %9852 = vmatprep.subr.bf16.mxu0 0
        %9853 = vmatpush1.bf16.msra.mxu0 %v9666
        %9854 = vmatprep.subr.bf16.mxu0 0
        %9855 = vmatpush1.bf16.msra.mxu0 %v9667
        %9856 = vmatprep.subr.bf16.mxu0 0
        %9857 = vmatpush1.bf16.msra.mxu0 %v9668
        %9858 = vmatprep.subr.bf16.mxu0 0
        %9859 = vmatpush1.bf16.msra.mxu0 %v9669
        %9860 = vmatprep.subr.bf16.mxu0 0
        %9861 = vmatpush1.bf16.msra.mxu0 %v9670
        %9862 = vmatprep.subr.bf16.mxu0 0
        %9863 = vmatpush1.bf16.msra.mxu0 %v9671
        %9864 = vmatprep.mubr.bf16.mxu0 %v9237
        %9865 = vmatmul.mubr.bf16.gmra.mrb[0].mxu0 %v9236
        %v9866 = vpop.f32.mrb[0].mxu0
        %v9867 = vadd.f32 %v9827, %v9866
        %v9868 = vpop.f32.mrb[0].mxu0
        %v9869 = vpop.f32.mrb[0].mxu0
        %v9870 = vpop.f32.mrb[0].mxu0
        %9871 = vdwg.mxu0
        %9872 = vmatprep.subr.bf16.mxu0 0
        %9873 = vmatpush1.bf16.msra.mxu0 %v9672
        %9874 = vmatprep.subr.bf16.mxu0 0
        %9875 = vmatpush1.bf16.msra.mxu0 %v9673
        %9876 = vmatprep.subr.bf16.mxu0 0
        %9877 = vmatpush1.bf16.msra.mxu0 %v9674
        %9878 = vmatprep.subr.bf16.mxu0 0
        %9879 = vmatpush1.bf16.msra.mxu0 %v9675
        %9880 = vmatprep.subr.bf16.mxu0 0
        %9881 = vmatpush1.bf16.msra.mxu0 %v9676
        %9882 = vmatprep.subr.bf16.mxu0 0
        %9883 = vmatpush1.bf16.msra.mxu0 %v9677
        %9884 = vmatprep.subr.bf16.mxu0 0
        %9885 = vmatpush1.bf16.msra.mxu0 %v9678
        %9886 = vmatprep.subr.bf16.mxu0 0
        %9887 = vmatpush1.bf16.msra.mxu0 %v9679
        %9888 = vmatprep.subr.bf16.mxu0 0
        %9889 = vmatpush1.bf16.msra.mxu0 %v9680
        %9890 = vmatprep.subr.bf16.mxu0 0
        %9891 = vmatpush1.bf16.msra.mxu0 %v9681
        %9892 = vmatprep.subr.bf16.mxu0 0
        %9893 = vmatpush1.bf16.msra.mxu0 %v9682
        %9894 = vmatprep.subr.bf16.mxu0 0
        %9895 = vmatpush1.bf16.msra.mxu0 %v9683
        %9896 = vmatprep.subr.bf16.mxu0 0
        %9897 = vmatpush1.bf16.msra.mxu0 %v9684
        %9898 = vmatprep.subr.bf16.mxu0 0
        %9899 = vmatpush1.bf16.msra.mxu0 %v9685
        %9900 = vmatprep.subr.bf16.mxu0 0
        %9901 = vmatpush1.bf16.msra.mxu0 %v9686
        %9902 = vmatprep.subr.bf16.mxu0 0
        %9903 = vmatpush1.bf16.msra.mxu0 %v9687
        %9904 = vmatprep.mubr.bf16.mxu0 %v9239
        %9905 = vmatmul.mubr.bf16.gmra.mrb[0].mxu0 %v9238
        %v9906 = vpop.f32.mrb[0].mxu0
        %v9907 = vadd.f32 %v9867, %v9906
        %v9908 = vpop.f32.mrb[0].mxu0
        %v9909 = vpop.f32.mrb[0].mxu0
        %v9910 = vpop.f32.mrb[0].mxu0
        %9911 = vdwg.mxu0
        %v9912 = vadd.f32 %v9231, %v9907
        %9913 = vst [vmem:[#allocation18] sm:$0xff] %v9912
        %p9914 = scmp.eq.s32.totalorder %s34, 0
        %p9915 = scmp.eq.s32.totalorder %s35, 1
        %p9916 = pnand %p9914, %p9915
        %p9917 = pneg %p9916
        // Predicated region
        $region97: #{tpu_custom_call.1} parent=55 // pred_check
          _
        $region98: #{tpu_custom_call.1} parent=55 // pred_check_branch
          %9919 = sbr.rel (%p9916) target = $region100
        $region99: #{tpu_custom_call.1} parent=55 // pred_region
          %v9920 = vld [vmem:[#allocation18] sm:$0xff]
          %v9921 = vld [vmem:[#allocation17] sm:$0x1]
          %v9923 = vlaneseq
          %v9924 = vshrl.u32 %v9923, 7
          %v9925 = vsub.s32 0, %v9924
          %v9926 = vrot.slane %v9921, %v9925
          %v9928 = vadd.f32 %v9920, %v9926
          %9929 = vst [vmem:[#allocation18] sm:$0xff] %v9928
        $region100: #{tpu_custom_call.1} parent=55 // pred_fallthru
          _
        // Predicated region
        $region101: #{tpu_custom_call.1} parent=55 // pred_check
          %p9930 = pneg %p276
        $region102: #{tpu_custom_call.1} parent=55 // pred_check_branch
          %9932 = sbr.rel (%p9930) target = $region104
        $region103: #{tpu_custom_call.1} parent=55 // pred_region
          %s9934 = ssub.s32 128, 128
          %9935 = vsyncadd [#allocation5], %s9934
          %s9936 = smul.addr %s34, 128
          %s9937 = scalar_lea.hbm %s9, %s9936
          %s9939 = sshll.u32 [#allocation18], 4
          %s9940 = int_to_ptr.vmem [resolvable:$true] %s9939
          %9942 = dma.vmem_to_hbm [thread:$0]  %s9940, 128, %s9937, [#allocation5]
        $region104: #{tpu_custom_call.1} parent=55 // pred_fallthru
          _
        // Predicated region
        $region105: #{tpu_custom_call.1} parent=55 // pred_check
          %p9943 = pneg %p276
        $region106: #{tpu_custom_call.1} parent=55 // pred_check_branch
          %9945 = sbr.rel (%p9943) target = $region108
        $region107: #{tpu_custom_call.1} parent=55 // pred_region
          %9946 = dma.done [#allocation5], 128
        $region108: #{tpu_custom_call.1} parent=55 // pred_fallthru
          _
      $region56: #{tpu_custom_call.1} parent=5 // pred_fallthru
        _
      %p9947 = scmp.le.s32.totalorder 2, %s25
      // Predicated region
      $region109: #{tpu_custom_call.1} parent=5 // pred_check
        %p9948 = pneg %p9947
      $region110: #{tpu_custom_call.1} parent=5 // pred_check_branch
        %9950 = sbr.rel (%p9948) target = $region112
      $region111: #{tpu_custom_call.1} parent=5 // pred_region
        %s9951 = ssub.s32 %s25, 2
      $region112: #{tpu_custom_call.1} parent=5 // pred_fallthru
        _
    $region6: #{tpu_custom_call.1} parent=1 // loop_footer
      %s29 = sadd.s32 1, %s25
    $region7: #{tpu_custom_call.1} parent=1 // loop_footer_branch
      %24 = sbr.rel target = $region3
    $region8: #{tpu_custom_call.1} parent=1 // loop_exit
      _
    %9952 = vsyncpa [#allocation4], 1
    %s9953 = scalar_lea.sflag [#allocation4], 1
    %9954 = vsyncpa %s9953, 1
    %9955 = vsyncpa [#allocation7], 1
    %9956 = vsyncpa [#allocation10], 1
    %9957 = vsyncpa [#allocation13], 1
    %s9958 = scalar_lea.sflag [#allocation13], 1
    %9959 = vsyncpa %s9958, 1
    %9960 = vsyncpa [#allocation16], 1
    %s9961 = scalar_lea.sflag [#allocation16], 1
    %9962 = vsyncpa %s9961, 1
    %9963 = vsyncpa [#allocation5], 1
    %s9964 = scalar_lea.sflag [#allocation5], 1
    %9965 = vsyncpa %s9964, 1

</llo_original>
